<compile_context>
chip_gen: v7x
topology: tpu7x:2x2x1
jax: 0.10.0
libtpu: 0.0.40
codegen_flags: <defaults>
</compile_context>

<pallas_src>
import numpy as np
import jax
import jax.numpy as jnp
from jax import lax
from jax.experimental import pallas as pl
from jax.experimental.pallas import tpu as pltpu

N_HEAD = 2
GAIN = 1.0
N_CLASS = 34
EPS = 1e-6
NEG_BIG = -1e30     # bias for padded class logits
MASK_BIG = 1e9      # additive score penalty for padded gene columns
F32_BIG = 3.0e38    # finite +/- sentinel for masked max/min


def _round_up(n, m):
    return ((n + m - 1) // m) * m


def _softmax_last(s):
    m = jnp.max(s, axis=-1, keepdims=True)
    e = jnp.exp(s - m)
    return e / jnp.sum(e, axis=-1, keepdims=True)


# ---------------------------------------------------------------------------
# Per-layer kernel: multi-head G-TEM attention + residual + layernorm for one
# batch tile; the final layer additionally fuses relu -> fc -> log_softmax.
# ---------------------------------------------------------------------------
def _make_layer_kernel(bt, gp, g_true, n_head, ti, n_chunks, is_final):
    inv_n = 1.0 / g_true
    inv_nm1 = 1.0 / max(g_true - 1, 1)
    g_f = float(g_true)

    def kernel(*refs):
        if is_final:
            (x_ref, w_ref, cm_ref, a2_ref, b2_ref, fcw_ref, fcb_ref,
             out_ref, acc_ref, q_ref, m_ref, d_ref) = refs
        else:
            (x_ref, w_ref, cm_ref, a2_ref, b2_ref,
             out_ref, acc_ref, q_ref, m_ref, d_ref) = refs

        x = x_ref[0]                                     # (bt, gp); padded cols are 0
        cm = cm_ref[...]                                 # (1, gp) 1 = valid, 0 = pad
        w = w_ref[...]                                   # (3, n_head, gp) [WQ;WK;W0*WV]
        mb = ((cm - 1.0) * MASK_BIG).reshape(1, 1, gp)   # 0 valid / -1e9 padded column
        cm_b = jnp.broadcast_to(cm[None, :, :], (bt, 1, gp))   # hoisted out of loops

        acc_ref[...] = jnp.zeros_like(acc_ref)

        for h in range(n_head):                          # n_head == 2: static unroll;
            wq = w[0, h:h + 1, :]                        # big temps live only inside
            wk = w[1, h:h + 1, :]                        # the per-head fori_loop body.
            wv = w[2, h:h + 1, :]                        # already scaled by W_0[h]
            q = x * wq                                   # (bt, gp)
            k = x * wk
            v = x * wv                                   # 0 on padded genes

            # Exact row-wise max of q_i*k_j over VALID j only (padded k excluded):
            # max_j q_i*k_j = max(q_i*kmax, q_i*kmin).  No 0-clamp -> denominator
            # always has a term exp(0) ~= 1, so it never underflows to 0.
            kmax = jnp.max(jnp.where(cm > 0.0, k, -F32_BIG), axis=-1, keepdims=True)
            kmin = jnp.min(jnp.where(cm > 0.0, k, F32_BIG), axis=-1, keepdims=True)
            m = jnp.maximum(q * kmax, q * kmin)          # (bt, gp)

            q_ref[...] = q                               # chunk-sliced inside the loop
            m_ref[...] = m
            # mask_softmax_self (zero diagonal AFTER softmax) == subtract one term.
            d_ref[...] = jnp.exp(q * k - m) * v

            sv = jnp.sum(v, axis=-1, keepdims=True)      # sum_j v_j, exact f32 (bt, 1)
            # [v ; column-mask] MXU RHS, built ONCE per head (bf16 MXU operand).
            rhs = jnp.concatenate([v[:, None, :], cm_b], axis=1).astype(jnp.bfloat16)

            def chunk(ci, carry):
                st = pl.multiple_of(ci * ti, ti)
                q_c = q_ref[:, pl.ds(st, ti)]            # (bt, ti)
                m_c = m_ref[:, pl.ds(st, ti)]
                d_c = d_ref[:, pl.ds(st, ti)]
                # (bt, ti, gp) scores; padded columns pushed to -1e9 so exp -> 0.
                s = q_c[:, :, None] * k[:, None, :] + mb - m_c[:, :, None]
                # Contract (e - 1) in bf16; exact base terms (sv, G) added back in
                # f32, so bf16 quantization of the ~1-valued e never dominates.
                em1 = (jnp.exp(s) - 1.0).astype(jnp.bfloat16)
                nd = jnp.einsum('bcj,bij->bci', rhs, em1,
                                preferred_element_type=jnp.float32)   # (bt, 2, ti)
                num = nd[:, 0, :] + sv
                den = nd[:, 1, :] + g_f                  # >= ~1, exact divide is safe
                acc_ref[:, pl.ds(st, ti)] = (acc_ref[:, pl.ds(st, ti)]
                                             + (num - d_c) / den)
                return carry

            # Chunks cover exactly the (ceil(G/ti)*ti == gp) query rows.
            lax.fori_loop(0, n_chunks, chunk, 0)

        # Residual + torch-style layernorm (unbiased std, eps added to std), with
        # statistics over the true gene count only; padded columns forced to 0.
        acc = acc_ref[...]
        mean = jnp.sum(acc * cm, axis=-1, keepdims=True) * inv_n
        cent = (acc - mean) * cm
        var = jnp.sum(cent * cent, axis=-1, keepdims=True) * inv_nm1
        normed = a2_ref[...] * ((acc - mean) / (jnp.sqrt(var) + EPS)) + b2_ref[...]
        act = (x + normed) * cm                          # dropout == identity (eval)

        if is_final:
            hid = jnp.maximum(act, 0.0)                  # act_fun == 'relu'
            logits = jnp.dot(hid, fcw_ref[...],
                             preferred_element_type=jnp.float32) + fcb_ref[...]
            lmax = jnp.max(logits, axis=-1, keepdims=True)
            sh = logits - lmax
            lse = jnp.log(jnp.sum(jnp.exp(sh), axis=-1, keepdims=True))
            out_ref[0] = sh - lse                        # log_softmax; pads -> -1e30ish
        else:
            out_ref[0] = act

    return kernel


def _attn_layer(act3, w_stack, cmask, a2, b2, fcw, fcb, *,
                g_true, n_head, chunk_rows, is_final):
    nb, bt, gp = act3.shape
    out_cols = fcw.shape[1] if is_final else gp

    # Query-dimension chunk: lane-aligned (multiple of 128) and dividing gp so the
    # fori_loop coverage is exactly gp (no OOB slices).  128 keeps the per-chunk
    # exp temporaries ~7 MB at (bt=8, gp=1792) -> v7x-safe; on v5e/v6e (128 MiB
    # VMEM) chunk_rows=256 is a reasonable larger choice.
    if chunk_rows % 128 == 0 and chunk_rows <= gp and gp % chunk_rows == 0:
        ti = chunk_rows
    else:
        ti = min(gp, 128)
    n_chunks = -(-g_true // ti)

    in_specs = [
        pl.BlockSpec((1, bt, gp), lambda i: (i, 0, 0)),          # activations (batch-tiled)
        pl.BlockSpec((3, n_head, gp), lambda i: (0, 0, 0)),      # stacked WQ / WK / W0*WV
        pl.BlockSpec((1, gp), lambda i: (0, 0)),                 # gene column mask
        pl.BlockSpec((1, gp), lambda i: (0, 0)),                 # layernorm a_2
        pl.BlockSpec((1, gp), lambda i: (0, 0)),                 # layernorm b_2
    ]
    args = [act3, w_stack, cmask, a2, b2]
    if is_final:
        in_specs += [pl.BlockSpec((gp, out_cols), lambda i: (0, 0)),   # fc weight (G, C)
                     pl.BlockSpec((1, out_cols), lambda i: (0, 0))]    # fc bias
        args += [fcw, fcb]

    scratch_shapes = [
        pltpu.VMEM((bt, gp), jnp.float32),   # attention accumulator (both heads)
        pltpu.VMEM((bt, gp), jnp.float32),   # per-head q (chunk-sliced)
        pltpu.VMEM((bt, gp), jnp.float32),   # per-head row-max shift m
        pltpu.VMEM((bt, gp), jnp.float32),   # per-head diagonal correction
    ]

    B = nb * bt
    flops = 6 * n_head * B * gp * gp + (2 * B * gp * out_cols if is_final else 0)
    transcend = n_head * B * gp * gp
    bytes_acc = 4 * (2 * B * gp + B * out_cols + 3 * n_head * gp + 3 * gp
                     + (gp * out_cols + out_cols if is_final else 0))

    return pl.pallas_call(
        _make_layer_kernel(bt, gp, g_true, n_head, ti, n_chunks, is_final),
        out_shape=jax.ShapeDtypeStruct((nb, bt, out_cols), jnp.float32),
        grid=(nb,),
        in_specs=in_specs,
        out_specs=pl.BlockSpec((1, bt, out_cols), lambda i: (i, 0, 0)),
        scratch_shapes=scratch_shapes,
        compiler_params=pltpu.CompilerParams(
            dimension_semantics=("parallel",),          # batch tiles are independent
            vmem_limit_bytes=48 * 1024 * 1024),         # <= v7x physical 64 MiB
        cost_estimate=pl.CostEstimate(flops=flops, transcendentals=transcend,
                                      bytes_accessed=bytes_acc),
    )(*args)


# ---------------------------------------------------------------------------
# Full MyNet forward: pad gene/class dims to 128 multiples, run 3 fused layer
# kernels (the last one also does relu -> fc -> log_softmax), unpad.
# ---------------------------------------------------------------------------
def mynet_forward(params, x, *, tile_b=8, chunk_rows=128):
    B, G = x.shape
    n_head = params["attn_layers"][0]["WQ"].shape[0]
    C = params["fc_w_t"].shape[1]
    Gp = _round_up(G, 128)
    Cp = _round_up(C, 128)

    tb = max(1, min(tile_b, B))
    while B % tb:                      # pick a batch tile that divides B
        tb -= 1
    # v7x has 2 TensorCores: keep the batch grid length >= 2 when possible so
    # dimension_semantics=("parallel",) can feed both cores.
    if B // tb == 1 and tb % 2 == 0:
        tb //= 2
    nb = B // tb

    x_p = jnp.pad(x, ((0, 0), (0, Gp - G))).reshape(nb, tb, Gp)
    cmask = (jnp.arange(Gp, dtype=jnp.int32) < G).astype(jnp.float32)[None, :]
    a2 = jnp.pad(params["ln_a2"], ((0, 0), (0, Gp - G)))
    b2 = jnp.pad(params["ln_b2"], ((0, 0), (0, Gp - G)))
    fcw = jnp.pad(params["fc_w_t"], ((0, Gp - G), (0, Cp - C)))
    fcb = jnp.pad(params["fc_b"], ((0, 0), (0, Cp - C)), constant_values=NEG_BIG)

    act = x_p
    n_layers = len(params["attn_layers"])
    for li, L in enumerate(params["attn_layers"]):
        # Fold W_0[h] into WV[h]; scales num & diag identically, den uses the mask.
        w_stack = jnp.stack([L["WQ"], L["WK"], L["WV"] * L["W0"][:, None]], axis=0)
        w_stack = jnp.pad(w_stack, ((0, 0), (0, 0), (0, Gp - G)))
        last = li == n_layers - 1
        act = _attn_layer(act, w_stack, cmask, a2, b2,
                          fcw if last else None, fcb if last else None,
                          g_true=G, n_head=n_head, chunk_rows=chunk_rows,
                          is_final=last)
    return act.reshape(B, Cp)[:, :C]


# ---------------------------------------------------------------------------
# Deterministic parameter init (matches shapes/init style of the PyTorch module)
# ---------------------------------------------------------------------------
def init_params(key, n_head, n_gene, n_class, gain):
    keys = jax.random.split(key, 12)

    def xavier_normal(k, g):
        std = g * (2.0 / (n_gene + n_head)) ** 0.5
        return std * jax.random.normal(k, (n_head, n_gene), jnp.float32)

    layers = []
    ki = 0
    for _ in range(3):
        layers.append(dict(
            WQ=xavier_normal(keys[ki + 0], gain),
            WK=xavier_normal(keys[ki + 1], gain),
            WV=xavier_normal(keys[ki + 2], 1.0),
            W0=jnp.full((n_head,), 0.001, jnp.float32),
        ))
        ki += 3

    bound = (6.0 / (n_gene + n_class)) ** 0.5                    # xavier_uniform, gain=1
    fc_w = jax.random.uniform(keys[ki], (n_class, n_gene), jnp.float32, -bound, bound)
    bb = 1.0 / np.sqrt(n_gene)
    fc_b = jax.random.uniform(keys[ki + 1], (1, n_class), jnp.float32, -bb, bb)

    # TODO(synk): ffn1/ffn2 (feedforward) params exist in __init__ but forward()
    # never uses them, so they are intentionally not instantiated here.
    return dict(attn_layers=layers,
                ln_a2=jnp.ones((1, n_gene), jnp.float32),
                ln_b2=jnp.zeros((1, n_gene), jnp.float32),
                fc_w_t=fc_w.T,                                   # (G, n_class)
                fc_b=fc_b)


# ---------------------------------------------------------------------------
# Pure-JAX reference for correctness checking (dense, unpadded)
# ---------------------------------------------------------------------------
def reference_forward(params, x):
    def attn_ref(xx, L):
        B, G = xx.shape
        acc = jnp.zeros((B, G), jnp.float32)
        for h in range(L["WQ"].shape[0]):
            q = xx * L["WQ"][h][None, :]
            k = xx * L["WK"][h][None, :]
            v = xx * L["WV"][h][None, :]
            s = q[:, :, None] * k[:, None, :]
            z = _softmax_last(s) * (1.0 - jnp.eye(G))[None]       # mask after softmax
            acc = acc + L["W0"][h] * jnp.sum(z * v[:, None, :], axis=2)
        mean = acc.mean(-1, keepdims=True)
        std = jnp.sqrt(jnp.sum((acc - mean) ** 2, -1, keepdims=True) / (G - 1))
        return xx + (params["ln_a2"] * (acc - mean) / (std + EPS) + params["ln_b2"])

    out = x
    for L in params["attn_layers"]:
        out = attn_ref(out, L)
    out = jnp.maximum(out, 0.0)
    logits = jnp.dot(out, params["fc_w_t"],
                     precision=jax.lax.Precision.HIGHEST) + params["fc_b"]
    return jax.nn.log_softmax(logits, axis=1)


if __name__ == "__main__":
    # Small demo shapes (real model: batch=16, n_gene=n_feature=1708 -> padded 1792,
    # tile_b=8 -> nb=2).  G=200 is deliberately NOT a multiple of 128 to exercise the
    # pad/mask path, and gp=256 with chunk_rows=128 exercises the chunked query loop.
    B, G = 8, 200
    key = jax.random.PRNGKey(0)
    pk, xk = jax.random.split(key)
    params = init_params(pk, N_HEAD, G, N_CLASS, GAIN)
    x = jax.random.normal(xk, (B, G), jnp.float32)

    fwd = jax.jit(lambda p, xx: mynet_forward(p, xx, tile_b=4, chunk_rows=128))
    y = jax.block_until_ready(fwd(params, x))

    y_ref = reference_forward(params, x)
    # Tolerance accounts for the bf16 MXU contraction of (exp(s-m)-1) and for the
    # default-precision matmuls outside the kernel; structural/masking errors would
    # be orders of magnitude larger.
    np.testing.assert_allclose(np.asarray(y), np.asarray(y_ref), rtol=2e-2, atol=2e-2)
    assert np.isfinite(np.asarray(y)).all()

    print("KERNEL_OK")
</pallas_src>

<mosaic_0001>
module attributes {stable_mosaic.version = 11 : i64} {
  func.func @kernel(%arg0: i32, %arg1: memref<1x4x256xf32, #tpu.memory_space<vmem>>, %arg2: memref<3x2x256xf32, #tpu.memory_space<vmem>>, %arg3: memref<1x256xf32, #tpu.memory_space<vmem>>, %arg4: memref<1x256xf32, #tpu.memory_space<vmem>>, %arg5: memref<1x256xf32, #tpu.memory_space<vmem>>, %arg6: memref<256x128xf32, #tpu.memory_space<vmem>>, %arg7: memref<1x128xf32, #tpu.memory_space<vmem>>, %arg8: memref<1x4x128xf32, #tpu.memory_space<vmem>>, %arg9: memref<4x256xf32, #tpu.memory_space<vmem>>, %arg10: memref<4x256xf32, #tpu.memory_space<vmem>>, %arg11: memref<4x256xf32, #tpu.memory_space<vmem>>, %arg12: memref<4x256xf32, #tpu.memory_space<vmem>>) attributes {dimension_semantics = [#tpu.dimension_semantics<parallel>], iteration_bounds = array<i64: 2>, scalar_prefetch = 0 : i64, scratch_operands = 4 : i64, tpu.core_type = #tpu.core_type<tc>, window_params = [{transform_indices = @transform_0, window_bounds = array<i64: 1, 4, 256>}, {pipeline_mode = #tpu.pipeline_mode<synchronous>, transform_indices = @transform_1, window_bounds = array<i64: 3, 2, 256>}, {pipeline_mode = #tpu.pipeline_mode<synchronous>, transform_indices = @transform_2, window_bounds = array<i64: 1, 256>}, {pipeline_mode = #tpu.pipeline_mode<synchronous>, transform_indices = @transform_3, window_bounds = array<i64: 1, 256>}, {pipeline_mode = #tpu.pipeline_mode<synchronous>, transform_indices = @transform_4, window_bounds = array<i64: 1, 256>}, {pipeline_mode = #tpu.pipeline_mode<synchronous>, transform_indices = @transform_5, window_bounds = array<i64: 256, 128>}, {pipeline_mode = #tpu.pipeline_mode<synchronous>, transform_indices = @transform_6, window_bounds = array<i64: 1, 128>}, {transform_indices = @transform_7, window_bounds = array<i64: 1, 4, 128>}]} {
    %c0 = arith.constant 0 : index
    %c0_0 = arith.constant 0 : index
    %c0_1 = arith.constant 0 : index
    %0 = vector.load %arg1[%c0, %c0_0, %c0_1] : memref<1x4x256xf32, #tpu.memory_space<vmem>>, vector<1x4x256xf32>
    %1 = vector.shape_cast %0 : vector<1x4x256xf32> to vector<4x256xf32>
    %c0_2 = arith.constant 0 : index
    %c0_3 = arith.constant 0 : index
    %2 = vector.load %arg3[%c0_2, %c0_3] : memref<1x256xf32, #tpu.memory_space<vmem>>, vector<1x256xf32>
    %c0_4 = arith.constant 0 : index
    %c0_5 = arith.constant 0 : index
    %c0_6 = arith.constant 0 : index
    %3 = vector.load %arg2[%c0_4, %c0_5, %c0_6] : memref<3x2x256xf32, #tpu.memory_space<vmem>>, vector<3x2x256xf32>
    %cst = arith.constant 1.000000e+00 : f32
    %4 = vector.broadcast %cst : f32 to vector<1x256xf32>
    %5 = arith.subf %2, %4 : vector<1x256xf32>
    %cst_7 = arith.constant 1.000000e+09 : f32
    %6 = vector.broadcast %cst_7 : f32 to vector<1x256xf32>
    %7 = arith.mulf %5, %6 : vector<1x256xf32>
    %8 = vector.shape_cast %7 : vector<1x256xf32> to vector<1x1x256xf32>
    %9 = vector.shape_cast %2 : vector<1x256xf32> to vector<1x1x256xf32>
    %10 = vector.shape_cast %9 : vector<1x1x256xf32> to vector<1x1x256xf32>
    %11 = vector.broadcast %10 : vector<1x1x256xf32> to vector<4x1x256xf32>
    %cst_8 = arith.constant 0.000000e+00 : f32
    %12 = vector.broadcast %cst_8 : f32 to vector<4x256xf32>
    %c0_9 = arith.constant 0 : index
    %c0_10 = arith.constant 0 : index
    %13 = vector.load %arg9[%c0_9, %c0_10] : memref<4x256xf32, #tpu.memory_space<vmem>>, vector<4x256xf32>
    tpu.vector_store %arg9[%c0_9, %c0_10], %12 {strides = array<i32>} : memref<4x256xf32, #tpu.memory_space<vmem>>, vector<4x256xf32>,
    %14 = vector.extract_strided_slice %3 {offsets = [0, 0, 0], sizes = [1, 1, 256], strides = [1, 1, 1]} : vector<3x2x256xf32> to vector<1x1x256xf32>
    %15 = vector.shape_cast %14 : vector<1x1x256xf32> to vector<1x256xf32>
    %16 = vector.extract_strided_slice %3 {offsets = [1, 0, 0], sizes = [1, 1, 256], strides = [1, 1, 1]} : vector<3x2x256xf32> to vector<1x1x256xf32>
    %17 = vector.shape_cast %16 : vector<1x1x256xf32> to vector<1x256xf32>
    %18 = vector.extract_strided_slice %3 {offsets = [2, 0, 0], sizes = [1, 1, 256], strides = [1, 1, 1]} : vector<3x2x256xf32> to vector<1x1x256xf32>
    %19 = vector.shape_cast %18 : vector<1x1x256xf32> to vector<1x256xf32>
    %20 = vector.broadcast %15 : vector<1x256xf32> to vector<4x256xf32>
    %21 = arith.mulf %1, %20 : vector<4x256xf32>
    %22 = vector.broadcast %17 : vector<1x256xf32> to vector<4x256xf32>
    %23 = arith.mulf %1, %22 : vector<4x256xf32>
    %24 = vector.broadcast %19 : vector<1x256xf32> to vector<4x256xf32>
    %25 = arith.mulf %1, %24 : vector<4x256xf32>
    %cst_11 = arith.constant 0.000000e+00 : f32
    %26 = vector.broadcast %cst_11 : f32 to vector<1x256xf32>
    %27 = arith.cmpf ogt, %2, %26 : vector<1x256xf32>
    %cst_12 = arith.constant -3.000000e+38 : f32
    %28 = vector.shape_cast %27 : vector<1x256xi1> to vector<1x256xi1>
    %29 = vector.broadcast %28 : vector<1x256xi1> to vector<4x256xi1>
    %30 = vector.broadcast %cst_12 : f32 to vector<4x256xf32>
    %31 = arith.select %29, %23, %30 : vector<4x256xi1>, vector<4x256xf32>
    %cst_13 = arith.constant dense<0xFF800000> : vector<4xf32>
    %32 = vector.multi_reduction <maximumf>, %31, %cst_13 [1] : vector<4x256xf32> to vector<4xf32>
    %33 = vector.shape_cast %32 : vector<4xf32> to vector<4x1xf32>
    %cst_14 = arith.constant 0.000000e+00 : f32
    %34 = vector.broadcast %cst_14 : f32 to vector<1x256xf32>
    %35 = arith.cmpf ogt, %2, %34 : vector<1x256xf32>
    %cst_15 = arith.constant 3.000000e+38 : f32
    %36 = vector.shape_cast %35 : vector<1x256xi1> to vector<1x256xi1>
    %37 = vector.broadcast %36 : vector<1x256xi1> to vector<4x256xi1>
    %38 = vector.broadcast %cst_15 : f32 to vector<4x256xf32>
    %39 = arith.select %37, %23, %38 : vector<4x256xi1>, vector<4x256xf32>
    %cst_16 = arith.constant dense<0x7F800000> : vector<4xf32>
    %40 = vector.multi_reduction <minimumf>, %39, %cst_16 [1] : vector<4x256xf32> to vector<4xf32>
    %41 = vector.shape_cast %40 : vector<4xf32> to vector<4x1xf32>
    %42 = vector.broadcast %33 : vector<4x1xf32> to vector<4x256xf32>
    %43 = arith.mulf %21, %42 : vector<4x256xf32>
    %44 = vector.broadcast %41 : vector<4x1xf32> to vector<4x256xf32>
    %45 = arith.mulf %21, %44 : vector<4x256xf32>
    %46 = arith.maximumf %43, %45 : vector<4x256xf32>
    %c0_17 = arith.constant 0 : index
    %c0_18 = arith.constant 0 : index
    %47 = vector.load %arg10[%c0_17, %c0_18] : memref<4x256xf32, #tpu.memory_space<vmem>>, vector<4x256xf32>
    tpu.vector_store %arg10[%c0_17, %c0_18], %21 {strides = array<i32>} : memref<4x256xf32, #tpu.memory_space<vmem>>, vector<4x256xf32>,
    %c0_19 = arith.constant 0 : index
    %c0_20 = arith.constant 0 : index
    %48 = vector.load %arg11[%c0_19, %c0_20] : memref<4x256xf32, #tpu.memory_space<vmem>>, vector<4x256xf32>
    tpu.vector_store %arg11[%c0_19, %c0_20], %46 {strides = array<i32>} : memref<4x256xf32, #tpu.memory_space<vmem>>, vector<4x256xf32>,
    %49 = arith.mulf %21, %23 : vector<4x256xf32>
    %50 = arith.subf %49, %46 : vector<4x256xf32>
    %51 = math.exp %50 : vector<4x256xf32>
    %52 = arith.mulf %51, %25 : vector<4x256xf32>
    %c0_21 = arith.constant 0 : index
    %c0_22 = arith.constant 0 : index
    %53 = vector.load %arg12[%c0_21, %c0_22] : memref<4x256xf32, #tpu.memory_space<vmem>>, vector<4x256xf32>
    tpu.vector_store %arg12[%c0_21, %c0_22], %52 {strides = array<i32>} : memref<4x256xf32, #tpu.memory_space<vmem>>, vector<4x256xf32>,
    %cst_23 = arith.constant dense<0.000000e+00> : vector<4xf32>
    %54 = vector.multi_reduction <add>, %25, %cst_23 [1] : vector<4x256xf32> to vector<4xf32>
    %55 = vector.shape_cast %54 : vector<4xf32> to vector<4x1xf32>
    %56 = vector.shape_cast %25 : vector<4x256xf32> to vector<4x1x256xf32>
    %57 = tpu.concatenate %56, %11 in 1 : vector<4x1x256xf32>, vector<4x1x256xf32> -> vector<4x2x256xf32>
    %58 = arith.truncf %57 : vector<4x2x256xf32> to vector<4x2x256xbf16>
    %c0_i32 = arith.constant 0 : i32
    %c2_i32 = arith.constant 2 : i32
    %59 = arith.addi %c0_i32, %c2_i32 : i32
    %c1_i32 = arith.constant 1 : i32
    scf.for %arg13 = %c0_i32 to %59 step %c1_i32  : i32 {
      %c128_i32 = arith.constant 128 : i32
      %158 = arith.muli %arg13, %c128_i32 : i32
      %159 = tpu.assume_multiple %158, 128 : i32
      %c0_64 = arith.constant 0 : index
      %160 = arith.index_cast %159 : i32 to index
      %161 = vector.load %arg10[%c0_64, %160] : memref<4x256xf32, #tpu.memory_space<vmem>>, vector<4x128xf32>
      %c0_65 = arith.constant 0 : index
      %162 = arith.index_cast %159 : i32 to index
      %163 = vector.load %arg11[%c0_65, %162] : memref<4x256xf32, #tpu.memory_space<vmem>>, vector<4x128xf32>
      %c0_66 = arith.constant 0 : index
      %164 = arith.index_cast %159 : i32 to index
      %165 = vector.load %arg12[%c0_66, %164] : memref<4x256xf32, #tpu.memory_space<vmem>>, vector<4x128xf32>
      %166 = vector.shape_cast %161 : vector<4x128xf32> to vector<4x128x1xf32>
      %167 = vector.shape_cast %23 : vector<4x256xf32> to vector<4x1x256xf32>
      %168 = vector.broadcast %166 : vector<4x128x1xf32> to vector<4x128x256xf32>
      %169 = vector.broadcast %167 : vector<4x1x256xf32> to vector<4x128x256xf32>
      %170 = arith.mulf %168, %169 : vector<4x128x256xf32>
      %171 = vector.broadcast %8 : vector<1x1x256xf32> to vector<4x128x256xf32>
      %172 = arith.addf %170, %171 : vector<4x128x256xf32>
      %173 = vector.shape_cast %163 : vector<4x128xf32> to vector<4x128x1xf32>
      %174 = vector.broadcast %173 : vector<4x128x1xf32> to vector<4x128x256xf32>
      %175 = arith.subf %172, %174 : vector<4x128x256xf32>
      %176 = math.exp %175 : vector<4x128x256xf32>
      %cst_67 = arith.constant 1.000000e+00 : f32
      %177 = vector.broadcast %cst_67 : f32 to vector<4x128x256xf32>
      %178 = arith.subf %176, %177 : vector<4x128x256xf32>
      %179 = arith.truncf %178 : vector<4x128x256xf32> to vector<4x128x256xbf16>
      "tpu.trace_start"() <{level = 10 : i32, message = "bcj,bij->bci"}> : () -> ()
      %cst_68 = arith.constant dense<0.000000e+00> : vector<4x2x128xf32>
      %180 = tpu.matmul %58, %179, %cst_68 {dimension_numbers = #tpu.dot_dimension_numbers<[2], [2], [1], [1], [0, 0, 0, 1, 1, 1], [0], [0]>} : vector<4x2x256xbf16>, vector<4x128x256xbf16>, vector<4x2x128xf32> -> vector<4x2x128xf32>
      "tpu.trace_stop"() : () -> ()
      %181 = vector.extract_strided_slice %180 {offsets = [0, 0, 0], sizes = [4, 1, 128], strides = [1, 1, 1]} : vector<4x2x128xf32> to vector<4x1x128xf32>
      %182 = vector.shape_cast %181 : vector<4x1x128xf32> to vector<4x128xf32>
      %183 = vector.broadcast %55 : vector<4x1xf32> to vector<4x128xf32>
      %184 = arith.addf %182, %183 : vector<4x128xf32>
      %185 = vector.extract_strided_slice %180 {offsets = [0, 1, 0], sizes = [4, 1, 128], strides = [1, 1, 1]} : vector<4x2x128xf32> to vector<4x1x128xf32>
      %186 = vector.shape_cast %185 : vector<4x1x128xf32> to vector<4x128xf32>
      %cst_69 = arith.constant 2.000000e+02 : f32
      %187 = vector.broadcast %cst_69 : f32 to vector<4x128xf32>
      %188 = arith.addf %186, %187 : vector<4x128xf32>
      %c0_70 = arith.constant 0 : index
      %189 = arith.index_cast %159 : i32 to index
      %190 = vector.load %arg9[%c0_70, %189] : memref<4x256xf32, #tpu.memory_space<vmem>>, vector<4x128xf32>
      %191 = arith.subf %184, %165 : vector<4x128xf32>
      %192 = arith.divf %191, %188 : vector<4x128xf32>
      %193 = arith.addf %190, %192 : vector<4x128xf32>
      %c0_71 = arith.constant 0 : index
      %194 = arith.index_cast %159 : i32 to index
      %195 = vector.load %arg9[%c0_71, %194] : memref<4x256xf32, #tpu.memory_space<vmem>>, vector<4x128xf32>
      tpu.vector_store %arg9[%c0_71, %194], %193 {strides = array<i32>} : memref<4x256xf32, #tpu.memory_space<vmem>>, vector<4x128xf32>,
    }
    %c2_i32_24 = arith.constant 2 : i32
    %60 = vector.extract_strided_slice %3 {offsets = [0, 1, 0], sizes = [1, 1, 256], strides = [1, 1, 1]} : vector<3x2x256xf32> to vector<1x1x256xf32>
    %61 = vector.shape_cast %60 : vector<1x1x256xf32> to vector<1x256xf32>
    %62 = vector.extract_strided_slice %3 {offsets = [1, 1, 0], sizes = [1, 1, 256], strides = [1, 1, 1]} : vector<3x2x256xf32> to vector<1x1x256xf32>
    %63 = vector.shape_cast %62 : vector<1x1x256xf32> to vector<1x256xf32>
    %64 = vector.extract_strided_slice %3 {offsets = [2, 1, 0], sizes = [1, 1, 256], strides = [1, 1, 1]} : vector<3x2x256xf32> to vector<1x1x256xf32>
    %65 = vector.shape_cast %64 : vector<1x1x256xf32> to vector<1x256xf32>
    %66 = vector.broadcast %61 : vector<1x256xf32> to vector<4x256xf32>
    %67 = arith.mulf %1, %66 : vector<4x256xf32>
    %68 = vector.broadcast %63 : vector<1x256xf32> to vector<4x256xf32>
    %69 = arith.mulf %1, %68 : vector<4x256xf32>
    %70 = vector.broadcast %65 : vector<1x256xf32> to vector<4x256xf32>
    %71 = arith.mulf %1, %70 : vector<4x256xf32>
    %cst_25 = arith.constant 0.000000e+00 : f32
    %72 = vector.broadcast %cst_25 : f32 to vector<1x256xf32>
    %73 = arith.cmpf ogt, %2, %72 : vector<1x256xf32>
    %cst_26 = arith.constant -3.000000e+38 : f32
    %74 = vector.shape_cast %73 : vector<1x256xi1> to vector<1x256xi1>
    %75 = vector.broadcast %74 : vector<1x256xi1> to vector<4x256xi1>
    %76 = vector.broadcast %cst_26 : f32 to vector<4x256xf32>
    %77 = arith.select %75, %69, %76 : vector<4x256xi1>, vector<4x256xf32>
    %cst_27 = arith.constant dense<0xFF800000> : vector<4xf32>
    %78 = vector.multi_reduction <maximumf>, %77, %cst_27 [1] : vector<4x256xf32> to vector<4xf32>
    %79 = vector.shape_cast %78 : vector<4xf32> to vector<4x1xf32>
    %cst_28 = arith.constant 0.000000e+00 : f32
    %80 = vector.broadcast %cst_28 : f32 to vector<1x256xf32>
    %81 = arith.cmpf ogt, %2, %80 : vector<1x256xf32>
    %cst_29 = arith.constant 3.000000e+38 : f32
    %82 = vector.shape_cast %81 : vector<1x256xi1> to vector<1x256xi1>
    %83 = vector.broadcast %82 : vector<1x256xi1> to vector<4x256xi1>
    %84 = vector.broadcast %cst_29 : f32 to vector<4x256xf32>
    %85 = arith.select %83, %69, %84 : vector<4x256xi1>, vector<4x256xf32>
    %cst_30 = arith.constant dense<0x7F800000> : vector<4xf32>
    %86 = vector.multi_reduction <minimumf>, %85, %cst_30 [1] : vector<4x256xf32> to vector<4xf32>
    %87 = vector.shape_cast %86 : vector<4xf32> to vector<4x1xf32>
    %88 = vector.broadcast %79 : vector<4x1xf32> to vector<4x256xf32>
    %89 = arith.mulf %67, %88 : vector<4x256xf32>
    %90 = vector.broadcast %87 : vector<4x1xf32> to vector<4x256xf32>
    %91 = arith.mulf %67, %90 : vector<4x256xf32>
    %92 = arith.maximumf %89, %91 : vector<4x256xf32>
    %c0_31 = arith.constant 0 : index
    %c0_32 = arith.constant 0 : index
    %93 = vector.load %arg10[%c0_31, %c0_32] : memref<4x256xf32, #tpu.memory_space<vmem>>, vector<4x256xf32>
    tpu.vector_store %arg10[%c0_31, %c0_32], %67 {strides = array<i32>} : memref<4x256xf32, #tpu.memory_space<vmem>>, vector<4x256xf32>,
    %c0_33 = arith.constant 0 : index
    %c0_34 = arith.constant 0 : index
    %94 = vector.load %arg11[%c0_33, %c0_34] : memref<4x256xf32, #tpu.memory_space<vmem>>, vector<4x256xf32>
    tpu.vector_store %arg11[%c0_33, %c0_34], %92 {strides = array<i32>} : memref<4x256xf32, #tpu.memory_space<vmem>>, vector<4x256xf32>,
    %95 = arith.mulf %67, %69 : vector<4x256xf32>
    %96 = arith.subf %95, %92 : vector<4x256xf32>
    %97 = math.exp %96 : vector<4x256xf32>
    %98 = arith.mulf %97, %71 : vector<4x256xf32>
    %c0_35 = arith.constant 0 : index
    %c0_36 = arith.constant 0 : index
    %99 = vector.load %arg12[%c0_35, %c0_36] : memref<4x256xf32, #tpu.memory_space<vmem>>, vector<4x256xf32>
    tpu.vector_store %arg12[%c0_35, %c0_36], %98 {strides = array<i32>} : memref<4x256xf32, #tpu.memory_space<vmem>>, vector<4x256xf32>,
    %cst_37 = arith.constant dense<0.000000e+00> : vector<4xf32>
    %100 = vector.multi_reduction <add>, %71, %cst_37 [1] : vector<4x256xf32> to vector<4xf32>
    %101 = vector.shape_cast %100 : vector<4xf32> to vector<4x1xf32>
    %102 = vector.shape_cast %71 : vector<4x256xf32> to vector<4x1x256xf32>
    %103 = tpu.concatenate %102, %11 in 1 : vector<4x1x256xf32>, vector<4x1x256xf32> -> vector<4x2x256xf32>
    %104 = arith.truncf %103 : vector<4x2x256xf32> to vector<4x2x256xbf16>
    %c0_i32_38 = arith.constant 0 : i32
    %c2_i32_39 = arith.constant 2 : i32
    %105 = arith.addi %c0_i32_38, %c2_i32_39 : i32
    %c1_i32_40 = arith.constant 1 : i32
    scf.for %arg13 = %c0_i32_38 to %105 step %c1_i32_40  : i32 {
      %c128_i32 = arith.constant 128 : i32
      %158 = arith.muli %arg13, %c128_i32 : i32
      %159 = tpu.assume_multiple %158, 128 : i32
      %c0_64 = arith.constant 0 : index
      %160 = arith.index_cast %159 : i32 to index
      %161 = vector.load %arg10[%c0_64, %160] : memref<4x256xf32, #tpu.memory_space<vmem>>, vector<4x128xf32>
      %c0_65 = arith.constant 0 : index
      %162 = arith.index_cast %159 : i32 to index
      %163 = vector.load %arg11[%c0_65, %162] : memref<4x256xf32, #tpu.memory_space<vmem>>, vector<4x128xf32>
      %c0_66 = arith.constant 0 : index
      %164 = arith.index_cast %159 : i32 to index
      %165 = vector.load %arg12[%c0_66, %164] : memref<4x256xf32, #tpu.memory_space<vmem>>, vector<4x128xf32>
      %166 = vector.shape_cast %161 : vector<4x128xf32> to vector<4x128x1xf32>
      %167 = vector.shape_cast %69 : vector<4x256xf32> to vector<4x1x256xf32>
      %168 = vector.broadcast %166 : vector<4x128x1xf32> to vector<4x128x256xf32>
      %169 = vector.broadcast %167 : vector<4x1x256xf32> to vector<4x128x256xf32>
      %170 = arith.mulf %168, %169 : vector<4x128x256xf32>
      %171 = vector.broadcast %8 : vector<1x1x256xf32> to vector<4x128x256xf32>
      %172 = arith.addf %170, %171 : vector<4x128x256xf32>
      %173 = vector.shape_cast %163 : vector<4x128xf32> to vector<4x128x1xf32>
      %174 = vector.broadcast %173 : vector<4x128x1xf32> to vector<4x128x256xf32>
      %175 = arith.subf %172, %174 : vector<4x128x256xf32>
      %176 = math.exp %175 : vector<4x128x256xf32>
      %cst_67 = arith.constant 1.000000e+00 : f32
      %177 = vector.broadcast %cst_67 : f32 to vector<4x128x256xf32>
      %178 = arith.subf %176, %177 : vector<4x128x256xf32>
      %179 = arith.truncf %178 : vector<4x128x256xf32> to vector<4x128x256xbf16>
      "tpu.trace_start"() <{level = 10 : i32, message = "bcj,bij->bci"}> : () -> ()
      %cst_68 = arith.constant dense<0.000000e+00> : vector<4x2x128xf32>
      %180 = tpu.matmul %104, %179, %cst_68 {dimension_numbers = #tpu.dot_dimension_numbers<[2], [2], [1], [1], [0, 0, 0, 1, 1, 1], [0], [0]>} : vector<4x2x256xbf16>, vector<4x128x256xbf16>, vector<4x2x128xf32> -> vector<4x2x128xf32>
      "tpu.trace_stop"() : () -> ()
      %181 = vector.extract_strided_slice %180 {offsets = [0, 0, 0], sizes = [4, 1, 128], strides = [1, 1, 1]} : vector<4x2x128xf32> to vector<4x1x128xf32>
      %182 = vector.shape_cast %181 : vector<4x1x128xf32> to vector<4x128xf32>
      %183 = vector.broadcast %101 : vector<4x1xf32> to vector<4x128xf32>
      %184 = arith.addf %182, %183 : vector<4x128xf32>
      %185 = vector.extract_strided_slice %180 {offsets = [0, 1, 0], sizes = [4, 1, 128], strides = [1, 1, 1]} : vector<4x2x128xf32> to vector<4x1x128xf32>
      %186 = vector.shape_cast %185 : vector<4x1x128xf32> to vector<4x128xf32>
      %cst_69 = arith.constant 2.000000e+02 : f32
      %187 = vector.broadcast %cst_69 : f32 to vector<4x128xf32>
      %188 = arith.addf %186, %187 : vector<4x128xf32>
      %c0_70 = arith.constant 0 : index
      %189 = arith.index_cast %159 : i32 to index
      %190 = vector.load %arg9[%c0_70, %189] : memref<4x256xf32, #tpu.memory_space<vmem>>, vector<4x128xf32>
      %191 = arith.subf %184, %165 : vector<4x128xf32>
      %192 = arith.divf %191, %188 : vector<4x128xf32>
      %193 = arith.addf %190, %192 : vector<4x128xf32>
      %c0_71 = arith.constant 0 : index
      %194 = arith.index_cast %159 : i32 to index
      %195 = vector.load %arg9[%c0_71, %194] : memref<4x256xf32, #tpu.memory_space<vmem>>, vector<4x128xf32>
      tpu.vector_store %arg9[%c0_71, %194], %193 {strides = array<i32>} : memref<4x256xf32, #tpu.memory_space<vmem>>, vector<4x128xf32>,
    }
    %c2_i32_41 = arith.constant 2 : i32
    %c0_42 = arith.constant 0 : index
    %c0_43 = arith.constant 0 : index
    %106 = vector.load %arg9[%c0_42, %c0_43] : memref<4x256xf32, #tpu.memory_space<vmem>>, vector<4x256xf32>
    %107 = vector.broadcast %2 : vector<1x256xf32> to vector<4x256xf32>
    %108 = arith.mulf %106, %107 : vector<4x256xf32>
    %cst_44 = arith.constant dense<0.000000e+00> : vector<4xf32>
    %109 = vector.multi_reduction <add>, %108, %cst_44 [1] : vector<4x256xf32> to vector<4xf32>
    %110 = vector.shape_cast %109 : vector<4xf32> to vector<4x1xf32>
    %cst_45 = arith.constant 5.000000e-03 : f32
    %111 = vector.broadcast %cst_45 : f32 to vector<4x1xf32>
    %112 = arith.mulf %110, %111 : vector<4x1xf32>
    %113 = vector.broadcast %112 : vector<4x1xf32> to vector<4x256xf32>
    %114 = arith.subf %106, %113 : vector<4x256xf32>
    %115 = vector.broadcast %2 : vector<1x256xf32> to vector<4x256xf32>
    %116 = arith.mulf %114, %115 : vector<4x256xf32>
    %117 = arith.mulf %116, %116 : vector<4x256xf32>
    %cst_46 = arith.constant dense<0.000000e+00> : vector<4xf32>
    %118 = vector.multi_reduction <add>, %117, %cst_46 [1] : vector<4x256xf32> to vector<4xf32>
    %119 = vector.shape_cast %118 : vector<4xf32> to vector<4x1xf32>
    %cst_47 = arith.constant 0.00502512557 : f32
    %120 = vector.broadcast %cst_47 : f32 to vector<4x1xf32>
    %121 = arith.mulf %119, %120 : vector<4x1xf32>
    %c0_48 = arith.constant 0 : index
    %c0_49 = arith.constant 0 : index
    %122 = vector.load %arg4[%c0_48, %c0_49] : memref<1x256xf32, #tpu.memory_space<vmem>>, vector<1x256xf32>
    %123 = vector.broadcast %112 : vector<4x1xf32> to vector<4x256xf32>
    %124 = arith.subf %106, %123 : vector<4x256xf32>
    %125 = math.sqrt %121 : vector<4x1xf32>
    %cst_50 = arith.constant 9.99999997E-7 : f32
    %126 = vector.broadcast %cst_50 : f32 to vector<4x1xf32>
    %127 = arith.addf %125, %126 : vector<4x1xf32>
    %128 = vector.broadcast %127 : vector<4x1xf32> to vector<4x256xf32>
    %129 = arith.divf %124, %128 : vector<4x256xf32>
    %130 = vector.broadcast %122 : vector<1x256xf32> to vector<4x256xf32>
    %131 = arith.mulf %130, %129 : vector<4x256xf32>
    %c0_51 = arith.constant 0 : index
    %c0_52 = arith.constant 0 : index
    %132 = vector.load %arg5[%c0_51, %c0_52] : memref<1x256xf32, #tpu.memory_space<vmem>>, vector<1x256xf32>
    %133 = vector.broadcast %132 : vector<1x256xf32> to vector<4x256xf32>
    %134 = arith.addf %131, %133 : vector<4x256xf32>
    %135 = arith.addf %1, %134 : vector<4x256xf32>
    %136 = vector.broadcast %2 : vector<1x256xf32> to vector<4x256xf32>
    %137 = arith.mulf %135, %136 : vector<4x256xf32>
    %cst_53 = arith.constant 0.000000e+00 : f32
    %138 = vector.broadcast %cst_53 : f32 to vector<4x256xf32>
    %139 = arith.maximumf %137, %138 : vector<4x256xf32>
    %c0_54 = arith.constant 0 : index
    %c0_55 = arith.constant 0 : index
    %140 = vector.load %arg6[%c0_54, %c0_55] : memref<256x128xf32, #tpu.memory_space<vmem>>, vector<256x128xf32>
    %cst_56 = arith.constant dense<0.000000e+00> : vector<4x128xf32>
    %141 = tpu.matmul %139, %140, %cst_56 {dimension_numbers = #tpu.dot_dimension_numbers<[1], [0], [0], [1], [0, 0, 1, 1], [], []>} : vector<4x256xf32>, vector<256x128xf32>, vector<4x128xf32> -> vector<4x128xf32>
    %c0_57 = arith.constant 0 : index
    %c0_58 = arith.constant 0 : index
    %142 = vector.load %arg7[%c0_57, %c0_58] : memref<1x128xf32, #tpu.memory_space<vmem>>, vector<1x128xf32>
    %143 = vector.broadcast %142 : vector<1x128xf32> to vector<4x128xf32>
    %144 = arith.addf %141, %143 : vector<4x128xf32>
    %cst_59 = arith.constant dense<0xFF800000> : vector<4xf32>
    %145 = vector.multi_reduction <maximumf>, %144, %cst_59 [1] : vector<4x128xf32> to vector<4xf32>
    %146 = vector.shape_cast %145 : vector<4xf32> to vector<4x1xf32>
    %147 = vector.broadcast %146 : vector<4x1xf32> to vector<4x128xf32>
    %148 = arith.subf %144, %147 : vector<4x128xf32>
    %149 = math.exp %148 : vector<4x128xf32>
    %cst_60 = arith.constant dense<0.000000e+00> : vector<4xf32>
    %150 = vector.multi_reduction <add>, %149, %cst_60 [1] : vector<4x128xf32> to vector<4xf32>
    %151 = vector.shape_cast %150 : vector<4xf32> to vector<4x1xf32>
    %152 = math.log %151 : vector<4x1xf32>
    %153 = vector.broadcast %152 : vector<4x1xf32> to vector<4x128xf32>
    %154 = arith.subf %148, %153 : vector<4x128xf32>
    %c0_61 = arith.constant 0 : index
    %c0_62 = arith.constant 0 : index
    %c0_63 = arith.constant 0 : index
    %155 = vector.load %arg8[%c0_61, %c0_62, %c0_63] : memref<1x4x128xf32, #tpu.memory_space<vmem>>, vector<1x4x128xf32>
    %156 = vector.shape_cast %155 : vector<1x4x128xf32> to vector<4x128xf32>
    %157 = vector.shape_cast %154 : vector<4x128xf32> to vector<1x4x128xf32>
    tpu.vector_store %arg8[%c0_61, %c0_62, %c0_63], %157 {strides = array<i32>} : memref<1x4x128xf32, #tpu.memory_space<vmem>>, vector<1x4x128xf32>,
    return
  }
  func.func @transform_0(%arg0: i32) -> (i32, i32, i32) {
    %c0_i32 = arith.constant 0 : i32
    %c0_i32_0 = arith.constant 0 : i32
    %c0_i32_1 = arith.constant 0 : i32
    return %arg0, %c0_i32, %c0_i32_0 : i32, i32, i32
  }
  func.func @transform_1(%arg0: i32) -> (i32, i32, i32) {
    %c0_i32 = arith.constant 0 : i32
    %c0_i32_0 = arith.constant 0 : i32
    %c0_i32_1 = arith.constant 0 : i32
    %c0_i32_2 = arith.constant 0 : i32
    return %c0_i32, %c0_i32_0, %c0_i32_1 : i32, i32, i32
  }
  func.func @transform_2(%arg0: i32) -> (i32, i32) {
    %c0_i32 = arith.constant 0 : i32
    %c0_i32_0 = arith.constant 0 : i32
    %c0_i32_1 = arith.constant 0 : i32
    return %c0_i32, %c0_i32_0 : i32, i32
  }
  func.func @transform_3(%arg0: i32) -> (i32, i32) {
    %c0_i32 = arith.constant 0 : i32
    %c0_i32_0 = arith.constant 0 : i32
    %c0_i32_1 = arith.constant 0 : i32
    return %c0_i32, %c0_i32_0 : i32, i32
  }
  func.func @transform_4(%arg0: i32) -> (i32, i32) {
    %c0_i32 = arith.constant 0 : i32
    %c0_i32_0 = arith.constant 0 : i32
    %c0_i32_1 = arith.constant 0 : i32
    return %c0_i32, %c0_i32_0 : i32, i32
  }
  func.func @transform_5(%arg0: i32) -> (i32, i32) {
    %c0_i32 = arith.constant 0 : i32
    %c0_i32_0 = arith.constant 0 : i32
    %c0_i32_1 = arith.constant 0 : i32
    return %c0_i32, %c0_i32_0 : i32, i32
  }
  func.func @transform_6(%arg0: i32) -> (i32, i32) {
    %c0_i32 = arith.constant 0 : i32
    %c0_i32_0 = arith.constant 0 : i32
    %c0_i32_1 = arith.constant 0 : i32
    return %c0_i32, %c0_i32_0 : i32, i32
  }
  func.func @transform_7(%arg0: i32) -> (i32, i32, i32) {
    %c0_i32 = arith.constant 0 : i32
    %c0_i32_0 = arith.constant 0 : i32
    %c0_i32_1 = arith.constant 0 : i32
    return %arg0, %c0_i32, %c0_i32_0 : i32, i32, i32
  }
}

module attributes {stable_mosaic.version = 11 : i64} {
  func.func @kernel(%arg0: i32, %arg1: memref<1x4x256xf32, #tpu.memory_space<vmem>>, %arg2: memref<3x2x256xf32, #tpu.memory_space<vmem>>, %arg3: memref<1x256xf32, #tpu.memory_space<vmem>>, %arg4: memref<1x256xf32, #tpu.memory_space<vmem>>, %arg5: memref<1x256xf32, #tpu.memory_space<vmem>>, %arg6: memref<1x4x256xf32, #tpu.memory_space<vmem>>, %arg7: memref<4x256xf32, #tpu.memory_space<vmem>>, %arg8: memref<4x256xf32, #tpu.memory_space<vmem>>, %arg9: memref<4x256xf32, #tpu.memory_space<vmem>>, %arg10: memref<4x256xf32, #tpu.memory_space<vmem>>) attributes {dimension_semantics = [#tpu.dimension_semantics<parallel>], iteration_bounds = array<i64: 2>, scalar_prefetch = 0 : i64, scratch_operands = 4 : i64, tpu.core_type = #tpu.core_type<tc>, window_params = [{transform_indices = @transform_0, window_bounds = array<i64: 1, 4, 256>}, {pipeline_mode = #tpu.pipeline_mode<synchronous>, transform_indices = @transform_1, window_bounds = array<i64: 3, 2, 256>}, {pipeline_mode = #tpu.pipeline_mode<synchronous>, transform_indices = @transform_2, window_bounds = array<i64: 1, 256>}, {pipeline_mode = #tpu.pipeline_mode<synchronous>, transform_indices = @transform_3, window_bounds = array<i64: 1, 256>}, {pipeline_mode = #tpu.pipeline_mode<synchronous>, transform_indices = @transform_4, window_bounds = array<i64: 1, 256>}, {transform_indices = @transform_5, window_bounds = array<i64: 1, 4, 256>}]} {
    %c0 = arith.constant 0 : index
    %c0_0 = arith.constant 0 : index
    %c0_1 = arith.constant 0 : index
    %0 = vector.load %arg1[%c0, %c0_0, %c0_1] : memref<1x4x256xf32, #tpu.memory_space<vmem>>, vector<1x4x256xf32>
    %1 = vector.shape_cast %0 : vector<1x4x256xf32> to vector<4x256xf32>
    %c0_2 = arith.constant 0 : index
    %c0_3 = arith.constant 0 : index
    %2 = vector.load %arg3[%c0_2, %c0_3] : memref<1x256xf32, #tpu.memory_space<vmem>>, vector<1x256xf32>
    %c0_4 = arith.constant 0 : index
    %c0_5 = arith.constant 0 : index
    %c0_6 = arith.constant 0 : index
    %3 = vector.load %arg2[%c0_4, %c0_5, %c0_6] : memref<3x2x256xf32, #tpu.memory_space<vmem>>, vector<3x2x256xf32>
    %cst = arith.constant 1.000000e+00 : f32
    %4 = vector.broadcast %cst : f32 to vector<1x256xf32>
    %5 = arith.subf %2, %4 : vector<1x256xf32>
    %cst_7 = arith.constant 1.000000e+09 : f32
    %6 = vector.broadcast %cst_7 : f32 to vector<1x256xf32>
    %7 = arith.mulf %5, %6 : vector<1x256xf32>
    %8 = vector.shape_cast %7 : vector<1x256xf32> to vector<1x1x256xf32>
    %9 = vector.shape_cast %2 : vector<1x256xf32> to vector<1x1x256xf32>
    %10 = vector.shape_cast %9 : vector<1x1x256xf32> to vector<1x1x256xf32>
    %11 = vector.broadcast %10 : vector<1x1x256xf32> to vector<4x1x256xf32>
    %cst_8 = arith.constant 0.000000e+00 : f32
    %12 = vector.broadcast %cst_8 : f32 to vector<4x256xf32>
    %c0_9 = arith.constant 0 : index
    %c0_10 = arith.constant 0 : index
    %13 = vector.load %arg7[%c0_9, %c0_10] : memref<4x256xf32, #tpu.memory_space<vmem>>, vector<4x256xf32>
    tpu.vector_store %arg7[%c0_9, %c0_10], %12 {strides = array<i32>} : memref<4x256xf32, #tpu.memory_space<vmem>>, vector<4x256xf32>,
    %14 = vector.extract_strided_slice %3 {offsets = [0, 0, 0], sizes = [1, 1, 256], strides = [1, 1, 1]} : vector<3x2x256xf32> to vector<1x1x256xf32>
    %15 = vector.shape_cast %14 : vector<1x1x256xf32> to vector<1x256xf32>
    %16 = vector.extract_strided_slice %3 {offsets = [1, 0, 0], sizes = [1, 1, 256], strides = [1, 1, 1]} : vector<3x2x256xf32> to vector<1x1x256xf32>
    %17 = vector.shape_cast %16 : vector<1x1x256xf32> to vector<1x256xf32>
    %18 = vector.extract_strided_slice %3 {offsets = [2, 0, 0], sizes = [1, 1, 256], strides = [1, 1, 1]} : vector<3x2x256xf32> to vector<1x1x256xf32>
    %19 = vector.shape_cast %18 : vector<1x1x256xf32> to vector<1x256xf32>
    %20 = vector.broadcast %15 : vector<1x256xf32> to vector<4x256xf32>
    %21 = arith.mulf %1, %20 : vector<4x256xf32>
    %22 = vector.broadcast %17 : vector<1x256xf32> to vector<4x256xf32>
    %23 = arith.mulf %1, %22 : vector<4x256xf32>
    %24 = vector.broadcast %19 : vector<1x256xf32> to vector<4x256xf32>
    %25 = arith.mulf %1, %24 : vector<4x256xf32>
    %cst_11 = arith.constant 0.000000e+00 : f32
    %26 = vector.broadcast %cst_11 : f32 to vector<1x256xf32>
    %27 = arith.cmpf ogt, %2, %26 : vector<1x256xf32>
    %cst_12 = arith.constant -3.000000e+38 : f32
    %28 = vector.shape_cast %27 : vector<1x256xi1> to vector<1x256xi1>
    %29 = vector.broadcast %28 : vector<1x256xi1> to vector<4x256xi1>
    %30 = vector.broadcast %cst_12 : f32 to vector<4x256xf32>
    %31 = arith.select %29, %23, %30 : vector<4x256xi1>, vector<4x256xf32>
    %cst_13 = arith.constant dense<0xFF800000> : vector<4xf32>
    %32 = vector.multi_reduction <maximumf>, %31, %cst_13 [1] : vector<4x256xf32> to vector<4xf32>
    %33 = vector.shape_cast %32 : vector<4xf32> to vector<4x1xf32>
    %cst_14 = arith.constant 0.000000e+00 : f32
    %34 = vector.broadcast %cst_14 : f32 to vector<1x256xf32>
    %35 = arith.cmpf ogt, %2, %34 : vector<1x256xf32>
    %cst_15 = arith.constant 3.000000e+38 : f32
    %36 = vector.shape_cast %35 : vector<1x256xi1> to vector<1x256xi1>
    %37 = vector.broadcast %36 : vector<1x256xi1> to vector<4x256xi1>
    %38 = vector.broadcast %cst_15 : f32 to vector<4x256xf32>
    %39 = arith.select %37, %23, %38 : vector<4x256xi1>, vector<4x256xf32>
    %cst_16 = arith.constant dense<0x7F800000> : vector<4xf32>
    %40 = vector.multi_reduction <minimumf>, %39, %cst_16 [1] : vector<4x256xf32> to vector<4xf32>
    %41 = vector.shape_cast %40 : vector<4xf32> to vector<4x1xf32>
    %42 = vector.broadcast %33 : vector<4x1xf32> to vector<4x256xf32>
    %43 = arith.mulf %21, %42 : vector<4x256xf32>
    %44 = vector.broadcast %41 : vector<4x1xf32> to vector<4x256xf32>
    %45 = arith.mulf %21, %44 : vector<4x256xf32>
    %46 = arith.maximumf %43, %45 : vector<4x256xf32>
    %c0_17 = arith.constant 0 : index
    %c0_18 = arith.constant 0 : index
    %47 = vector.load %arg8[%c0_17, %c0_18] : memref<4x256xf32, #tpu.memory_space<vmem>>, vector<4x256xf32>
    tpu.vector_store %arg8[%c0_17, %c0_18], %21 {strides = array<i32>} : memref<4x256xf32, #tpu.memory_space<vmem>>, vector<4x256xf32>,
    %c0_19 = arith.constant 0 : index
    %c0_20 = arith.constant 0 : index
    %48 = vector.load %arg9[%c0_19, %c0_20] : memref<4x256xf32, #tpu.memory_space<vmem>>, vector<4x256xf32>
    tpu.vector_store %arg9[%c0_19, %c0_20], %46 {strides = array<i32>} : memref<4x256xf32, #tpu.memory_space<vmem>>, vector<4x256xf32>,
    %49 = arith.mulf %21, %23 : vector<4x256xf32>
    %50 = arith.subf %49, %46 : vector<4x256xf32>
    %51 = math.exp %50 : vector<4x256xf32>
    %52 = arith.mulf %51, %25 : vector<4x256xf32>
    %c0_21 = arith.constant 0 : index
    %c0_22 = arith.constant 0 : index
    %53 = vector.load %arg10[%c0_21, %c0_22] : memref<4x256xf32, #tpu.memory_space<vmem>>, vector<4x256xf32>
    tpu.vector_store %arg10[%c0_21, %c0_22], %52 {strides = array<i32>} : memref<4x256xf32, #tpu.memory_space<vmem>>, vector<4x256xf32>,
    %cst_23 = arith.constant dense<0.000000e+00> : vector<4xf32>
    %54 = vector.multi_reduction <add>, %25, %cst_23 [1] : vector<4x256xf32> to vector<4xf32>
    %55 = vector.shape_cast %54 : vector<4xf32> to vector<4x1xf32>
    %56 = vector.shape_cast %25 : vector<4x256xf32> to vector<4x1x256xf32>
    %57 = tpu.concatenate %56, %11 in 1 : vector<4x1x256xf32>, vector<4x1x256xf32> -> vector<4x2x256xf32>
    %58 = arith.truncf %57 : vector<4x2x256xf32> to vector<4x2x256xbf16>
    %c0_i32 = arith.constant 0 : i32
    %c2_i32 = arith.constant 2 : i32
    %59 = arith.addi %c0_i32, %c2_i32 : i32
    %c1_i32 = arith.constant 1 : i32
    scf.for %arg11 = %c0_i32 to %59 step %c1_i32  : i32 {
      %c128_i32 = arith.constant 128 : i32
      %141 = arith.muli %arg11, %c128_i32 : i32
      %142 = tpu.assume_multiple %141, 128 : i32
      %c0_56 = arith.constant 0 : index
      %143 = arith.index_cast %142 : i32 to index
      %144 = vector.load %arg8[%c0_56, %143] : memref<4x256xf32, #tpu.memory_space<vmem>>, vector<4x128xf32>
      %c0_57 = arith.constant 0 : index
      %145 = arith.index_cast %142 : i32 to index
      %146 = vector.load %arg9[%c0_57, %145] : memref<4x256xf32, #tpu.memory_space<vmem>>, vector<4x128xf32>
      %c0_58 = arith.constant 0 : index
      %147 = arith.index_cast %142 : i32 to index
      %148 = vector.load %arg10[%c0_58, %147] : memref<4x256xf32, #tpu.memory_space<vmem>>, vector<4x128xf32>
      %149 = vector.shape_cast %144 : vector<4x128xf32> to vector<4x128x1xf32>
      %150 = vector.shape_cast %23 : vector<4x256xf32> to vector<4x1x256xf32>
      %151 = vector.broadcast %149 : vector<4x128x1xf32> to vector<4x128x256xf32>
      %152 = vector.broadcast %150 : vector<4x1x256xf32> to vector<4x128x256xf32>
      %153 = arith.mulf %151, %152 : vector<4x128x256xf32>
      %154 = vector.broadcast %8 : vector<1x1x256xf32> to vector<4x128x256xf32>
      %155 = arith.addf %153, %154 : vector<4x128x256xf32>
      %156 = vector.shape_cast %146 : vector<4x128xf32> to vector<4x128x1xf32>
      %157 = vector.broadcast %156 : vector<4x128x1xf32> to vector<4x128x256xf32>
      %158 = arith.subf %155, %157 : vector<4x128x256xf32>
      %159 = math.exp %158 : vector<4x128x256xf32>
      %cst_59 = arith.constant 1.000000e+00 : f32
      %160 = vector.broadcast %cst_59 : f32 to vector<4x128x256xf32>
      %161 = arith.subf %159, %160 : vector<4x128x256xf32>
      %162 = arith.truncf %161 : vector<4x128x256xf32> to vector<4x128x256xbf16>
      "tpu.trace_start"() <{level = 10 : i32, message = "bcj,bij->bci"}> : () -> ()
      %cst_60 = arith.constant dense<0.000000e+00> : vector<4x2x128xf32>
      %163 = tpu.matmul %58, %162, %cst_60 {dimension_numbers = #tpu.dot_dimension_numbers<[2], [2], [1], [1], [0, 0, 0, 1, 1, 1], [0], [0]>} : vector<4x2x256xbf16>, vector<4x128x256xbf16>, vector<4x2x128xf32> -> vector<4x2x128xf32>
      "tpu.trace_stop"() : () -> ()
      %164 = vector.extract_strided_slice %163 {offsets = [0, 0, 0], sizes = [4, 1, 128], strides = [1, 1, 1]} : vector<4x2x128xf32> to vector<4x1x128xf32>
      %165 = vector.shape_cast %164 : vector<4x1x128xf32> to vector<4x128xf32>
      %166 = vector.broadcast %55 : vector<4x1xf32> to vector<4x128xf32>
      %167 = arith.addf %165, %166 : vector<4x128xf32>
      %168 = vector.extract_strided_slice %163 {offsets = [0, 1, 0], sizes = [4, 1, 128], strides = [1, 1, 1]} : vector<4x2x128xf32> to vector<4x1x128xf32>
      %169 = vector.shape_cast %168 : vector<4x1x128xf32> to vector<4x128xf32>
      %cst_61 = arith.constant 2.000000e+02 : f32
      %170 = vector.broadcast %cst_61 : f32 to vector<4x128xf32>
      %171 = arith.addf %169, %170 : vector<4x128xf32>
      %c0_62 = arith.constant 0 : index
      %172 = arith.index_cast %142 : i32 to index
      %173 = vector.load %arg7[%c0_62, %172] : memref<4x256xf32, #tpu.memory_space<vmem>>, vector<4x128xf32>
      %174 = arith.subf %167, %148 : vector<4x128xf32>
      %175 = arith.divf %174, %171 : vector<4x128xf32>
      %176 = arith.addf %173, %175 : vector<4x128xf32>
      %c0_63 = arith.constant 0 : index
      %177 = arith.index_cast %142 : i32 to index
      %178 = vector.load %arg7[%c0_63, %177] : memref<4x256xf32, #tpu.memory_space<vmem>>, vector<4x128xf32>
      tpu.vector_store %arg7[%c0_63, %177], %176 {strides = array<i32>} : memref<4x256xf32, #tpu.memory_space<vmem>>, vector<4x128xf32>,
    }
    %c2_i32_24 = arith.constant 2 : i32
    %60 = vector.extract_strided_slice %3 {offsets = [0, 1, 0], sizes = [1, 1, 256], strides = [1, 1, 1]} : vector<3x2x256xf32> to vector<1x1x256xf32>
    %61 = vector.shape_cast %60 : vector<1x1x256xf32> to vector<1x256xf32>
    %62 = vector.extract_strided_slice %3 {offsets = [1, 1, 0], sizes = [1, 1, 256], strides = [1, 1, 1]} : vector<3x2x256xf32> to vector<1x1x256xf32>
    %63 = vector.shape_cast %62 : vector<1x1x256xf32> to vector<1x256xf32>
    %64 = vector.extract_strided_slice %3 {offsets = [2, 1, 0], sizes = [1, 1, 256], strides = [1, 1, 1]} : vector<3x2x256xf32> to vector<1x1x256xf32>
    %65 = vector.shape_cast %64 : vector<1x1x256xf32> to vector<1x256xf32>
    %66 = vector.broadcast %61 : vector<1x256xf32> to vector<4x256xf32>
    %67 = arith.mulf %1, %66 : vector<4x256xf32>
    %68 = vector.broadcast %63 : vector<1x256xf32> to vector<4x256xf32>
    %69 = arith.mulf %1, %68 : vector<4x256xf32>
    %70 = vector.broadcast %65 : vector<1x256xf32> to vector<4x256xf32>
    %71 = arith.mulf %1, %70 : vector<4x256xf32>
    %cst_25 = arith.constant 0.000000e+00 : f32
    %72 = vector.broadcast %cst_25 : f32 to vector<1x256xf32>
    %73 = arith.cmpf ogt, %2, %72 : vector<1x256xf32>
    %cst_26 = arith.constant -3.000000e+38 : f32
    %74 = vector.shape_cast %73 : vector<1x256xi1> to vector<1x256xi1>
    %75 = vector.broadcast %74 : vector<1x256xi1> to vector<4x256xi1>
    %76 = vector.broadcast %cst_26 : f32 to vector<4x256xf32>
    %77 = arith.select %75, %69, %76 : vector<4x256xi1>, vector<4x256xf32>
    %cst_27 = arith.constant dense<0xFF800000> : vector<4xf32>
    %78 = vector.multi_reduction <maximumf>, %77, %cst_27 [1] : vector<4x256xf32> to vector<4xf32>
    %79 = vector.shape_cast %78 : vector<4xf32> to vector<4x1xf32>
    %cst_28 = arith.constant 0.000000e+00 : f32
    %80 = vector.broadcast %cst_28 : f32 to vector<1x256xf32>
    %81 = arith.cmpf ogt, %2, %80 : vector<1x256xf32>
    %cst_29 = arith.constant 3.000000e+38 : f32
    %82 = vector.shape_cast %81 : vector<1x256xi1> to vector<1x256xi1>
    %83 = vector.broadcast %82 : vector<1x256xi1> to vector<4x256xi1>
    %84 = vector.broadcast %cst_29 : f32 to vector<4x256xf32>
    %85 = arith.select %83, %69, %84 : vector<4x256xi1>, vector<4x256xf32>
    %cst_30 = arith.constant dense<0x7F800000> : vector<4xf32>
    %86 = vector.multi_reduction <minimumf>, %85, %cst_30 [1] : vector<4x256xf32> to vector<4xf32>
    %87 = vector.shape_cast %86 : vector<4xf32> to vector<4x1xf32>
    %88 = vector.broadcast %79 : vector<4x1xf32> to vector<4x256xf32>
    %89 = arith.mulf %67, %88 : vector<4x256xf32>
    %90 = vector.broadcast %87 : vector<4x1xf32> to vector<4x256xf32>
    %91 = arith.mulf %67, %90 : vector<4x256xf32>
    %92 = arith.maximumf %89, %91 : vector<4x256xf32>
    %c0_31 = arith.constant 0 : index
    %c0_32 = arith.constant 0 : index
    %93 = vector.load %arg8[%c0_31, %c0_32] : memref<4x256xf32, #tpu.memory_space<vmem>>, vector<4x256xf32>
    tpu.vector_store %arg8[%c0_31, %c0_32], %67 {strides = array<i32>} : memref<4x256xf32, #tpu.memory_space<vmem>>, vector<4x256xf32>,
    %c0_33 = arith.constant 0 : index
    %c0_34 = arith.constant 0 : index
    %94 = vector.load %arg9[%c0_33, %c0_34] : memref<4x256xf32, #tpu.memory_space<vmem>>, vector<4x256xf32>
    tpu.vector_store %arg9[%c0_33, %c0_34], %92 {strides = array<i32>} : memref<4x256xf32, #tpu.memory_space<vmem>>, vector<4x256xf32>,
    %95 = arith.mulf %67, %69 : vector<4x256xf32>
    %96 = arith.subf %95, %92 : vector<4x256xf32>
    %97 = math.exp %96 : vector<4x256xf32>
    %98 = arith.mulf %97, %71 : vector<4x256xf32>
    %c0_35 = arith.constant 0 : index
    %c0_36 = arith.constant 0 : index
    %99 = vector.load %arg10[%c0_35, %c0_36] : memref<4x256xf32, #tpu.memory_space<vmem>>, vector<4x256xf32>
    tpu.vector_store %arg10[%c0_35, %c0_36], %98 {strides = array<i32>} : memref<4x256xf32, #tpu.memory_space<vmem>>, vector<4x256xf32>,
    %cst_37 = arith.constant dense<0.000000e+00> : vector<4xf32>
    %100 = vector.multi_reduction <add>, %71, %cst_37 [1] : vector<4x256xf32> to vector<4xf32>
    %101 = vector.shape_cast %100 : vector<4xf32> to vector<4x1xf32>
    %102 = vector.shape_cast %71 : vector<4x256xf32> to vector<4x1x256xf32>
    %103 = tpu.concatenate %102, %11 in 1 : vector<4x1x256xf32>, vector<4x1x256xf32> -> vector<4x2x256xf32>
    %104 = arith.truncf %103 : vector<4x2x256xf32> to vector<4x2x256xbf16>
    %c0_i32_38 = arith.constant 0 : i32
    %c2_i32_39 = arith.constant 2 : i32
    %105 = arith.addi %c0_i32_38, %c2_i32_39 : i32
    %c1_i32_40 = arith.constant 1 : i32
    scf.for %arg11 = %c0_i32_38 to %105 step %c1_i32_40  : i32 {
      %c128_i32 = arith.constant 128 : i32
      %141 = arith.muli %arg11, %c128_i32 : i32
      %142 = tpu.assume_multiple %141, 128 : i32
      %c0_56 = arith.constant 0 : index
      %143 = arith.index_cast %142 : i32 to index
      %144 = vector.load %arg8[%c0_56, %143] : memref<4x256xf32, #tpu.memory_space<vmem>>, vector<4x128xf32>
      %c0_57 = arith.constant 0 : index
      %145 = arith.index_cast %142 : i32 to index
      %146 = vector.load %arg9[%c0_57, %145] : memref<4x256xf32, #tpu.memory_space<vmem>>, vector<4x128xf32>
      %c0_58 = arith.constant 0 : index
      %147 = arith.index_cast %142 : i32 to index
      %148 = vector.load %arg10[%c0_58, %147] : memref<4x256xf32, #tpu.memory_space<vmem>>, vector<4x128xf32>
      %149 = vector.shape_cast %144 : vector<4x128xf32> to vector<4x128x1xf32>
      %150 = vector.shape_cast %69 : vector<4x256xf32> to vector<4x1x256xf32>
      %151 = vector.broadcast %149 : vector<4x128x1xf32> to vector<4x128x256xf32>
      %152 = vector.broadcast %150 : vector<4x1x256xf32> to vector<4x128x256xf32>
      %153 = arith.mulf %151, %152 : vector<4x128x256xf32>
      %154 = vector.broadcast %8 : vector<1x1x256xf32> to vector<4x128x256xf32>
      %155 = arith.addf %153, %154 : vector<4x128x256xf32>
      %156 = vector.shape_cast %146 : vector<4x128xf32> to vector<4x128x1xf32>
      %157 = vector.broadcast %156 : vector<4x128x1xf32> to vector<4x128x256xf32>
      %158 = arith.subf %155, %157 : vector<4x128x256xf32>
      %159 = math.exp %158 : vector<4x128x256xf32>
      %cst_59 = arith.constant 1.000000e+00 : f32
      %160 = vector.broadcast %cst_59 : f32 to vector<4x128x256xf32>
      %161 = arith.subf %159, %160 : vector<4x128x256xf32>
      %162 = arith.truncf %161 : vector<4x128x256xf32> to vector<4x128x256xbf16>
      "tpu.trace_start"() <{level = 10 : i32, message = "bcj,bij->bci"}> : () -> ()
      %cst_60 = arith.constant dense<0.000000e+00> : vector<4x2x128xf32>
      %163 = tpu.matmul %104, %162, %cst_60 {dimension_numbers = #tpu.dot_dimension_numbers<[2], [2], [1], [1], [0, 0, 0, 1, 1, 1], [0], [0]>} : vector<4x2x256xbf16>, vector<4x128x256xbf16>, vector<4x2x128xf32> -> vector<4x2x128xf32>
      "tpu.trace_stop"() : () -> ()
      %164 = vector.extract_strided_slice %163 {offsets = [0, 0, 0], sizes = [4, 1, 128], strides = [1, 1, 1]} : vector<4x2x128xf32> to vector<4x1x128xf32>
      %165 = vector.shape_cast %164 : vector<4x1x128xf32> to vector<4x128xf32>
      %166 = vector.broadcast %101 : vector<4x1xf32> to vector<4x128xf32>
      %167 = arith.addf %165, %166 : vector<4x128xf32>
      %168 = vector.extract_strided_slice %163 {offsets = [0, 1, 0], sizes = [4, 1, 128], strides = [1, 1, 1]} : vector<4x2x128xf32> to vector<4x1x128xf32>
      %169 = vector.shape_cast %168 : vector<4x1x128xf32> to vector<4x128xf32>
      %cst_61 = arith.constant 2.000000e+02 : f32
      %170 = vector.broadcast %cst_61 : f32 to vector<4x128xf32>
      %171 = arith.addf %169, %170 : vector<4x128xf32>
      %c0_62 = arith.constant 0 : index
      %172 = arith.index_cast %142 : i32 to index
      %173 = vector.load %arg7[%c0_62, %172] : memref<4x256xf32, #tpu.memory_space<vmem>>, vector<4x128xf32>
      %174 = arith.subf %167, %148 : vector<4x128xf32>
      %175 = arith.divf %174, %171 : vector<4x128xf32>
      %176 = arith.addf %173, %175 : vector<4x128xf32>
      %c0_63 = arith.constant 0 : index
      %177 = arith.index_cast %142 : i32 to index
      %178 = vector.load %arg7[%c0_63, %177] : memref<4x256xf32, #tpu.memory_space<vmem>>, vector<4x128xf32>
      tpu.vector_store %arg7[%c0_63, %177], %176 {strides = array<i32>} : memref<4x256xf32, #tpu.memory_space<vmem>>, vector<4x128xf32>,
    }
    %c2_i32_41 = arith.constant 2 : i32
    %c0_42 = arith.constant 0 : index
    %c0_43 = arith.constant 0 : index
    %106 = vector.load %arg7[%c0_42, %c0_43] : memref<4x256xf32, #tpu.memory_space<vmem>>, vector<4x256xf32>
    %107 = vector.broadcast %2 : vector<1x256xf32> to vector<4x256xf32>
    %108 = arith.mulf %106, %107 : vector<4x256xf32>
    %cst_44 = arith.constant dense<0.000000e+00> : vector<4xf32>
    %109 = vector.multi_reduction <add>, %108, %cst_44 [1] : vector<4x256xf32> to vector<4xf32>
    %110 = vector.shape_cast %109 : vector<4xf32> to vector<4x1xf32>
    %cst_45 = arith.constant 5.000000e-03 : f32
    %111 = vector.broadcast %cst_45 : f32 to vector<4x1xf32>
    %112 = arith.mulf %110, %111 : vector<4x1xf32>
    %113 = vector.broadcast %112 : vector<4x1xf32> to vector<4x256xf32>
    %114 = arith.subf %106, %113 : vector<4x256xf32>
    %115 = vector.broadcast %2 : vector<1x256xf32> to vector<4x256xf32>
    %116 = arith.mulf %114, %115 : vector<4x256xf32>
    %117 = arith.mulf %116, %116 : vector<4x256xf32>
    %cst_46 = arith.constant dense<0.000000e+00> : vector<4xf32>
    %118 = vector.multi_reduction <add>, %117, %cst_46 [1] : vector<4x256xf32> to vector<4xf32>
    %119 = vector.shape_cast %118 : vector<4xf32> to vector<4x1xf32>
    %cst_47 = arith.constant 0.00502512557 : f32
    %120 = vector.broadcast %cst_47 : f32 to vector<4x1xf32>
    %121 = arith.mulf %119, %120 : vector<4x1xf32>
    %c0_48 = arith.constant 0 : index
    %c0_49 = arith.constant 0 : index
    %122 = vector.load %arg4[%c0_48, %c0_49] : memref<1x256xf32, #tpu.memory_space<vmem>>, vector<1x256xf32>
    %123 = vector.broadcast %112 : vector<4x1xf32> to vector<4x256xf32>
    %124 = arith.subf %106, %123 : vector<4x256xf32>
    %125 = math.sqrt %121 : vector<4x1xf32>
    %cst_50 = arith.constant 9.99999997E-7 : f32
    %126 = vector.broadcast %cst_50 : f32 to vector<4x1xf32>
    %127 = arith.addf %125, %126 : vector<4x1xf32>
    %128 = vector.broadcast %127 : vector<4x1xf32> to vector<4x256xf32>
    %129 = arith.divf %124, %128 : vector<4x256xf32>
    %130 = vector.broadcast %122 : vector<1x256xf32> to vector<4x256xf32>
    %131 = arith.mulf %130, %129 : vector<4x256xf32>
    %c0_51 = arith.constant 0 : index
    %c0_52 = arith.constant 0 : index
    %132 = vector.load %arg5[%c0_51, %c0_52] : memref<1x256xf32, #tpu.memory_space<vmem>>, vector<1x256xf32>
    %133 = vector.broadcast %132 : vector<1x256xf32> to vector<4x256xf32>
    %134 = arith.addf %131, %133 : vector<4x256xf32>
    %135 = arith.addf %1, %134 : vector<4x256xf32>
    %136 = vector.broadcast %2 : vector<1x256xf32> to vector<4x256xf32>
    %137 = arith.mulf %135, %136 : vector<4x256xf32>
    %c0_53 = arith.constant 0 : index
    %c0_54 = arith.constant 0 : index
    %c0_55 = arith.constant 0 : index
    %138 = vector.load %arg6[%c0_53, %c0_54, %c0_55] : memref<1x4x256xf32, #tpu.memory_space<vmem>>, vector<1x4x256xf32>
    %139 = vector.shape_cast %138 : vector<1x4x256xf32> to vector<4x256xf32>
    %140 = vector.shape_cast %137 : vector<4x256xf32> to vector<1x4x256xf32>
    tpu.vector_store %arg6[%c0_53, %c0_54, %c0_55], %140 {strides = array<i32>} : memref<1x4x256xf32, #tpu.memory_space<vmem>>, vector<1x4x256xf32>,
    return
  }
  func.func @transform_0(%arg0: i32) -> (i32, i32, i32) {
    %c0_i32 = arith.constant 0 : i32
    %c0_i32_0 = arith.constant 0 : i32
    %c0_i32_1 = arith.constant 0 : i32
    return %arg0, %c0_i32, %c0_i32_0 : i32, i32, i32
  }
  func.func @transform_1(%arg0: i32) -> (i32, i32, i32) {
    %c0_i32 = arith.constant 0 : i32
    %c0_i32_0 = arith.constant 0 : i32
    %c0_i32_1 = arith.constant 0 : i32
    %c0_i32_2 = arith.constant 0 : i32
    return %c0_i32, %c0_i32_0, %c0_i32_1 : i32, i32, i32
  }
  func.func @transform_2(%arg0: i32) -> (i32, i32) {
    %c0_i32 = arith.constant 0 : i32
    %c0_i32_0 = arith.constant 0 : i32
    %c0_i32_1 = arith.constant 0 : i32
    return %c0_i32, %c0_i32_0 : i32, i32
  }
  func.func @transform_3(%arg0: i32) -> (i32, i32) {
    %c0_i32 = arith.constant 0 : i32
    %c0_i32_0 = arith.constant 0 : i32
    %c0_i32_1 = arith.constant 0 : i32
    return %c0_i32, %c0_i32_0 : i32, i32
  }
  func.func @transform_4(%arg0: i32) -> (i32, i32) {
    %c0_i32 = arith.constant 0 : i32
    %c0_i32_0 = arith.constant 0 : i32
    %c0_i32_1 = arith.constant 0 : i32
    return %c0_i32, %c0_i32_0 : i32, i32
  }
  func.func @transform_5(%arg0: i32) -> (i32, i32, i32) {
    %c0_i32 = arith.constant 0 : i32
    %c0_i32_0 = arith.constant 0 : i32
    %c0_i32_1 = arith.constant 0 : i32
    return %arg0, %c0_i32, %c0_i32_0 : i32, i32, i32
  }
}

</mosaic_0001>

<llo_original>
// kernel: _lambda_.3
$region0: #{_lambda_.3}
  #allocation0 [shape = 'u32[]', space=smem, size = 0x4, offset = 0x4, fixed_abs, tag = 'smem constant byte address 0x4 - core index']
  #allocation1 [shape = 'u32[144,128]{1,0:T(1,128)}', space=vmem, size = 0x12000, scoped, tag = 'internal scratch']
  #allocation2 [shape = 'f32[4,256]{1,0:T(4,128)}', space=vmem, size = 0x1000, scoped, tag = 'scratch operand']
  #allocation3 [shape = 'f32[4,256]{1,0:T(4,128)}', space=vmem, size = 0x1000, scoped, tag = 'scratch operand']
  #allocation4 [shape = 'f32[4,256]{1,0:T(4,128)}', space=vmem, size = 0x1000, scoped, tag = 'scratch operand']
  #allocation5 [shape = 'f32[4,256]{1,0:T(4,128)}', space=vmem, size = 0x1000, scoped, tag = 'scratch operand']
  %s0 = inlined_call_operand.vmem [shape: f32[2,4,256], index: 0, kind: input, shape index: {}]
  %s1 = inlined_call_operand.vmem [shape: f32[3,2,256], index: 1, kind: input, shape index: {}]
  %s2 = inlined_call_operand.vmem [shape: f32[1,256], index: 2, kind: input, shape index: {}]
  %s3 = inlined_call_operand.vmem [shape: f32[1,256], index: 3, kind: input, shape index: {}]
  %s4 = inlined_call_operand.vmem [shape: f32[1,256], index: 4, kind: input, shape index: {}]
  %s5 = inlined_call_operand.vmem [shape: f32[2,4,256], index: 5, kind: output, shape index: {}]
  %s6 = sld [smem:[#allocation0]]
  $region67: #{_lambda_.3} parent=0
    _
  %s8 = ssub.s32 1, %s6
  %s9 = scalar_select 0, %s8, %s6
  loop: start=0, step=1, limit=4
  $region2: #{_lambda_.3} parent=0 // loop_pre_header
    _
  $region3: #{_lambda_.3} parent=0 // loop_header
    %s11 = sphi 0, %s15
    %p12 = scmp.ge.s32.totalorder %s11, 4
    %s21 = sphi 0, %s23
    %s24 = sphi 0, %s21
    %s25 = sphi 0, %s24
    %s41 = sphi 0, %s25
    %s45 = sphi 0, %s45
    %s47 = sphi 0, %s45
    %s48 = sphi 0, %s47
    %s62 = sphi 0, %s48
    %s66 = sphi 0, %s66
    %s68 = sphi 0, %s66
    %s69 = sphi 0, %s68
    %s83 = sphi 0, %s69
    %s87 = sphi 0, %s87
    %s89 = sphi 0, %s87
    %s90 = sphi 0, %s89
    %s104 = sphi 0, %s90
    %s108 = sphi 0, %s108
    %s110 = sphi 0, %s108
    %s111 = sphi 0, %s110
    %s125 = sphi 0, %s111
    %s131 = sphi 0, %s133
    %s134 = sphi 0, %s131
    %s135 = sphi 0, %s134
    %s151 = sphi 0, %s135
  $region4: #{_lambda_.3} parent=0 // loop_header_branch
    %14 = sbr.rel (%p12) target = $region8
  $region5: #{_lambda_.3} parent=0 // loop_body
    %s16 = ssub.s32 %s11, 1
    %s17 = ssub.s32 %s11, 2
    %s18 = sadd.s32 %s11, 1
    %s19 = ssub.s32 %s11, %s18
    %p20 = scmp.eq.s32.totalorder %s19, 0
    %s22 = sadd.s32 %s21, 1
    %s23 = scalar_select %p20, %s21, %s22
    %p26 = pneg %p20
    %p27 = scmp.eq.s32.totalorder %s11, 1
    %p28 = por %p26, %p27
    %p29 = scmp.ne.s32.totalorder %s21, %s24
    %p30 = scmp.eq.s32.totalorder %s11, 0
    %p31 = por %p29, %p30
    %p32 = scmp.ne.s32.totalorder %s21, %s24
    %p33 = scmp.eq.s32.totalorder %s16, 1
    %p34 = por %p32, %p33
    %p35 = scmp.ne.s32.totalorder %s24, %s25
    %p36 = scmp.eq.s32.totalorder %s16, 0
    %p37 = por %p35, %p36
    %p38 = scmp.ne.s32.totalorder %s24, %s25
    %p39 = scmp.eq.s32.totalorder %s17, 1
    %p40 = por %p38, %p39
    %p42 = scmp.ne.s32.totalorder %s25, %s41
    %p43 = scmp.eq.s32.totalorder %s17, 0
    %p44 = por %p42, %p43
    %s46 = sadd.s32 %s45, 1
    %p49 = scmp.eq.s32.totalorder %s11, 1
    %p50 = scmp.ne.s32.totalorder %s45, %s47
    %p51 = scmp.eq.s32.totalorder %s11, 0
    %p52 = por %p50, %p51
    %p53 = scmp.ne.s32.totalorder %s45, %s47
    %p54 = scmp.eq.s32.totalorder %s16, 1
    %p55 = por %p53, %p54
    %p56 = scmp.ne.s32.totalorder %s47, %s48
    %p57 = scmp.eq.s32.totalorder %s16, 0
    %p58 = por %p56, %p57
    %p59 = scmp.ne.s32.totalorder %s47, %s48
    %p60 = scmp.eq.s32.totalorder %s17, 1
    %p61 = por %p59, %p60
    %p63 = scmp.ne.s32.totalorder %s48, %s62
    %p64 = scmp.eq.s32.totalorder %s17, 0
    %p65 = por %p63, %p64
    %s67 = sadd.s32 %s66, 1
    %p70 = scmp.eq.s32.totalorder %s11, 1
    %p71 = scmp.ne.s32.totalorder %s66, %s68
    %p72 = scmp.eq.s32.totalorder %s11, 0
    %p73 = por %p71, %p72
    %p74 = scmp.ne.s32.totalorder %s66, %s68
    %p75 = scmp.eq.s32.totalorder %s16, 1
    %p76 = por %p74, %p75
    %p77 = scmp.ne.s32.totalorder %s68, %s69
    %p78 = scmp.eq.s32.totalorder %s16, 0
    %p79 = por %p77, %p78
    %p80 = scmp.ne.s32.totalorder %s68, %s69
    %p81 = scmp.eq.s32.totalorder %s17, 1
    %p82 = por %p80, %p81
    %p84 = scmp.ne.s32.totalorder %s69, %s83
    %p85 = scmp.eq.s32.totalorder %s17, 0
    %p86 = por %p84, %p85
    %s88 = sadd.s32 %s87, 1
    %p91 = scmp.eq.s32.totalorder %s11, 1
    %p92 = scmp.ne.s32.totalorder %s87, %s89
    %p93 = scmp.eq.s32.totalorder %s11, 0
    %p94 = por %p92, %p93
    %p95 = scmp.ne.s32.totalorder %s87, %s89
    %p96 = scmp.eq.s32.totalorder %s16, 1
    %p97 = por %p95, %p96
    %p98 = scmp.ne.s32.totalorder %s89, %s90
    %p99 = scmp.eq.s32.totalorder %s16, 0
    %p100 = por %p98, %p99
    %p101 = scmp.ne.s32.totalorder %s89, %s90
    %p102 = scmp.eq.s32.totalorder %s17, 1
    %p103 = por %p101, %p102
    %p105 = scmp.ne.s32.totalorder %s90, %s104
    %p106 = scmp.eq.s32.totalorder %s17, 0
    %p107 = por %p105, %p106
    %s109 = sadd.s32 %s108, 1
    %p112 = scmp.eq.s32.totalorder %s11, 1
    %p113 = scmp.ne.s32.totalorder %s108, %s110
    %p114 = scmp.eq.s32.totalorder %s11, 0
    %p115 = por %p113, %p114
    %p116 = scmp.ne.s32.totalorder %s108, %s110
    %p117 = scmp.eq.s32.totalorder %s16, 1
    %p118 = por %p116, %p117
    %p119 = scmp.ne.s32.totalorder %s110, %s111
    %p120 = scmp.eq.s32.totalorder %s16, 0
    %p121 = por %p119, %p120
    %p122 = scmp.ne.s32.totalorder %s110, %s111
    %p123 = scmp.eq.s32.totalorder %s17, 1
    %p124 = por %p122, %p123
    %p126 = scmp.ne.s32.totalorder %s111, %s125
    %p127 = scmp.eq.s32.totalorder %s17, 0
    %p128 = por %p126, %p127
    %s129 = ssub.s32 %s11, %s18
    %p130 = scmp.eq.s32.totalorder %s129, 0
    %s132 = sadd.s32 %s131, 1
    %s133 = scalar_select %p130, %s131, %s132
    %p136 = pneg %p130
    %p137 = scmp.eq.s32.totalorder %s11, 1
    %p138 = por %p136, %p137
    %p139 = scmp.ne.s32.totalorder %s131, %s134
    %p140 = scmp.eq.s32.totalorder %s11, 0
    %p141 = por %p139, %p140
    %p142 = scmp.ne.s32.totalorder %s131, %s134
    %p143 = scmp.eq.s32.totalorder %s16, 1
    %p144 = por %p142, %p143
    %p145 = scmp.ne.s32.totalorder %s134, %s135
    %p146 = scmp.eq.s32.totalorder %s16, 0
    %p147 = por %p145, %p146
    %p148 = scmp.ne.s32.totalorder %s134, %s135
    %p149 = scmp.eq.s32.totalorder %s17, 1
    %p150 = por %p148, %p149
    %p152 = scmp.ne.s32.totalorder %s135, %s151
    %p153 = scmp.eq.s32.totalorder %s17, 0
    %p154 = por %p152, %p153
    %p155 = scmp.le.s32.totalorder 1, %s11
    %p156 = scmp.lt.s32.totalorder %s11, 3
    %p157 = pnand %p155, %p156
    %p158 = pneg %p157
    // Predicated region
    $region9: #{_lambda_.3} parent=5 // pred_check
      _
    $region10: #{_lambda_.3} parent=5 // pred_check_branch
      %160 = sbr.rel (%p157) target = $region12
    $region11: #{_lambda_.3} parent=5 // pred_region
      %s161 = ssub.s32 %s11, 1
      // Predicated region
      $region13: #{_lambda_.3} parent=11 // pred_check
        %p162 = pneg %p58
      $region14: #{_lambda_.3} parent=11 // pred_check_branch
        %164 = sbr.rel (%p162) target = $region16
      $region15: #{_lambda_.3} parent=11 // pred_region
        _
      $region16: #{_lambda_.3} parent=11 // pred_fallthru
        _
      // Predicated region
      $region17: #{_lambda_.3} parent=11 // pred_check
        %p165 = pneg %p79
      $region18: #{_lambda_.3} parent=11 // pred_check_branch
        %167 = sbr.rel (%p165) target = $region20
      $region19: #{_lambda_.3} parent=11 // pred_region
        _
      $region20: #{_lambda_.3} parent=11 // pred_fallthru
        _
      // Predicated region
      $region21: #{_lambda_.3} parent=11 // pred_check
        %p168 = pneg %p100
      $region22: #{_lambda_.3} parent=11 // pred_check_branch
        %170 = sbr.rel (%p168) target = $region24
      $region23: #{_lambda_.3} parent=11 // pred_region
        _
      $region24: #{_lambda_.3} parent=11 // pred_fallthru
        _
      // Predicated region
      $region25: #{_lambda_.3} parent=11 // pred_check
        %p171 = pneg %p121
      $region26: #{_lambda_.3} parent=11 // pred_check_branch
        %173 = sbr.rel (%p171) target = $region28
      $region27: #{_lambda_.3} parent=11 // pred_region
        _
      $region28: #{_lambda_.3} parent=11 // pred_fallthru
        _
    $region12: #{_lambda_.3} parent=5 // pred_fallthru
      _
    %p174 = scmp.lt.s32.totalorder %s11, 2
    // Predicated region
    $region29: #{_lambda_.3} parent=5 // pred_check
      %p175 = pneg %p174
    $region30: #{_lambda_.3} parent=5 // pred_check_branch
      %177 = sbr.rel (%p175) target = $region32
    $region31: #{_lambda_.3} parent=5 // pred_region
      // Predicated region
      $region33: #{_lambda_.3} parent=31 // pred_check
        %p178 = pneg %p31
      $region34: #{_lambda_.3} parent=31 // pred_check_branch
        %180 = sbr.rel (%p178) target = $region36
      $region35: #{_lambda_.3} parent=31 // pred_region
        %p181 = scmp.lt.s32.totalorder %s11, 1
        %s182 = scalar_select %p181, %s11, 1
        %s183 = smul.addr %s182, 2
        %s184 = smul.addr %s183, 4
        %s185 = scalar_lea.vmem %s0, %s184
      $region36: #{_lambda_.3} parent=31 // pred_fallthru
        _
    $region32: #{_lambda_.3} parent=5 // pred_fallthru
      _
    %p186 = scmp.le.s32.totalorder 1, %s11
    %p187 = scmp.lt.s32.totalorder %s11, 3
    %p188 = pnand %p186, %p187
    %p189 = pneg %p188
    // Predicated region
    $region37: #{_lambda_.3} parent=5 // pred_check
      _
    $region38: #{_lambda_.3} parent=5 // pred_check_branch
      %191 = sbr.rel (%p188) target = $region40
    $region39: #{_lambda_.3} parent=5 // pred_region
      %s192 = ssub.s32 %s11, 1
      %p193 = scmp.lt.s32.totalorder %s16, 1
      %s194 = scalar_select %p193, %s16, 1
      %s195 = smul.addr %s194, 2
      %s196 = smul.addr %s195, 4
      %s197 = scalar_lea.vmem %s0, %s196
      %p198 = pneg %p37
      %p199 = pneg %p34
      %p200 = pneg %p58
      %p201 = pneg %p55
      %p202 = pneg %p79
      %p203 = pneg %p76
      %p204 = pneg %p100
      %p205 = pneg %p97
      %p206 = pneg %p121
      %p207 = pneg %p118
      %p208 = pneg %p147
      %p209 = pneg %p144
      %p210 = scmp.lt.s32.totalorder %s16, 1
      %s211 = scalar_select %p210, %s16, 1
      %s212 = smul.addr %s211, 2
      %s213 = smul.addr %s212, 4
      %s214 = scalar_lea.vmem %s5, %s213
      %p215 = scmp.lt.s32.totalorder %s16, 1
      %s216 = scalar_select %p215, %s16, 1
      %s217 = smul.addr %s216, 2
      %s218 = smul.addr %s217, 4
      %s219 = scalar_lea.vmem %s0, %s218
      %p220 = scmp.lt.s32.totalorder %s16, 1
      %s221 = scalar_select %p220, %s16, 1
      %s222 = smul.addr %s221, 2
      %s223 = smul.addr %s222, 4
      %s224 = scalar_lea.vmem %s5, %s223
      %v226 = vld [vmem:[%s219] sm:$0xff]
      %v227 = vld [vmem:[%s2] sm:$0x3]
      %v228 = vld [vmem:[%s1] sm:$0xf]
      %v229 = vld [vmem:[%s1 + $0x4] sm:$0xf]
      %v230 = vld [vmem:[%s1 + $0x8] sm:$0xf]
      %v231 = vsub.f32 %v227, 1.0
      %v232 = vmul.f32 %v231, 1e+09
      %233 = vst [vmem:[#allocation2] sm:$0xff] 0.0
      %v235 = vlaneseq
      %v236 = vshrl.u32 %v235, 7
      %v237 = vsub.s32 0, %v236
      %v238 = vrot.slane %v228, %v237
      %v239 = vlaneseq
      %v240 = vshrl.u32 %v239, 7
      %v241 = vsub.s32 2, %v240
      %v242 = vrot.slane %v228, %v241
      %v245 = vlaneseq
      %v246 = vshrl.u32 %v245, 7
      %v247 = vsub.s32 0, %v246
      %v248 = vrot.slane %v238, %v247
      %v249 = vlaneseq
      %v250 = vshrl.u32 %v249, 7
      %v251 = vsub.s32 0, %v250
      %v252 = vrot.slane %v242, %v251
      %v255 = vcombine.low %v248, %v252
      %v257 = vmul.f32 %v226, %v255
      %v259 = vlaneseq
      %v260 = vshrl.u32 %v259, 7
      %v261 = vsub.s32 0, %v260
      %v262 = vrot.slane %v229, %v261
      %v263 = vlaneseq
      %v264 = vshrl.u32 %v263, 7
      %v265 = vsub.s32 2, %v264
      %v266 = vrot.slane %v229, %v265
      %v269 = vlaneseq
      %v270 = vshrl.u32 %v269, 7
      %v271 = vsub.s32 0, %v270
      %v272 = vrot.slane %v262, %v271
      %v273 = vlaneseq
      %v274 = vshrl.u32 %v273, 7
      %v275 = vsub.s32 0, %v274
      %v276 = vrot.slane %v266, %v275
      %v279 = vcombine.low %v272, %v276
      %v281 = vmul.f32 %v226, %v279
      %v283 = vlaneseq
      %v284 = vshrl.u32 %v283, 7
      %v285 = vsub.s32 0, %v284
      %v286 = vrot.slane %v230, %v285
      %v287 = vlaneseq
      %v288 = vshrl.u32 %v287, 7
      %v289 = vsub.s32 2, %v288
      %v290 = vrot.slane %v230, %v289
      %v293 = vlaneseq
      %v294 = vshrl.u32 %v293, 7
      %v295 = vsub.s32 0, %v294
      %v296 = vrot.slane %v286, %v295
      %v297 = vlaneseq
      %v298 = vshrl.u32 %v297, 7
      %v299 = vsub.s32 0, %v298
      %v300 = vrot.slane %v290, %v299
      %v303 = vcombine.low %v296, %v300
      %v305 = vmul.f32 %v226, %v303
      %vm306 = vcmp.gt.f32.partialorder %v227, 0.0
      %v307 = vsel %vm306, 1, 0
      %v308 = vlaneseq
      %v309 = vshrl.u32 %v308, 7
      %v310 = vsub.s32 0, %v309
      %v311 = vrot.slane %v307, %v310
      %v312 = vlaneseq
      %v313 = vshrl.u32 %v312, 7
      %v314 = vsub.s32 1, %v313
      %v315 = vrot.slane %v307, %v314
      %vm316 = vcmp.eq.s32.totalorder %v311, 1
      %vm317 = vcmp.eq.s32.totalorder %v315, 1
      %v319 = vcombine.high %v281, %v281
      %v321 = vsel %vm316, %v281, -3e+38
      %v322 = vsel %vm317, %v319, -3e+38
      %vm323 = vcmask 1043456
      %v324 = vsel %vm323, %v321, -inf
      %v325 = vsel %vm323, %v322, -inf
      %v326 = vmax.f32 %v324, %v325
      %327 = vmax.xlane.f32.xlu0 %v326
      %v328 = vpop.xlane.xlu0 %327
      %v329 = vsel %vm316, %v281, 3e+38
      %v330 = vsel %vm317, %v319, 3e+38
      %v331 = vsel %vm323, %v329, inf
      %v332 = vsel %vm323, %v330, inf
      %v333 = vmin.f32 %v331, %v332
      %334 = vmin.xlane.f32.xlu0 %v333
      %v335 = vpop.xlane.xlu0 %334
      %v338 = vunpack.c.l.s4 839922192
      %v339 = vunpack.c.0.s8 %v338
      %v340 = vlaneseq
      %v341 = vshrl.u32 %v340, 7
      %v342 = vsub.s32 %v339, %v341
      %v343 = vrot.slane %v328, %v342
      %v345 = vmul.f32 %v257, %v343
      %v348 = vunpack.c.l.s4 839922192
      %v349 = vunpack.c.0.s8 %v348
      %v350 = vlaneseq
      %v351 = vshrl.u32 %v350, 7
      %v352 = vsub.s32 %v349, %v351
      %v353 = vrot.slane %v335, %v352
      %v355 = vmul.f32 %v257, %v353
      %v356 = vmax.f32 %v345, %v355
      %357 = vst [vmem:[#allocation3] sm:$0xff] %v257
      %358 = vst [vmem:[#allocation4] sm:$0xff] %v356
      %v359 = vmul.f32 %v257, %v281
      %v360 = vsub.f32 %v359, %v356
      %v361 = vmul.f32 %v360, 1.442695
      %v362 = vpow.pop %v361
      %v363 = vmul.f32 %v362, %v305
      %364 = vst [vmem:[#allocation5] sm:$0xff] %v363
      %v366 = vcombine.high %v305, %v305
      %v368 = vsel %vm323, %v305, 0.0
      %v369 = vsel %vm323, %v366, 0.0
      %v370 = vadd.f32 %v368, %v369
      %371 = vadd.xlane.f32.xlu0 %v370
      %v372 = vpop.xlane.xlu0 %371
      %v374 = vunpack.c.l.s4 1966171168
      %v375 = vunpack.c.0.s8 %v374
      %v376 = vlaneseq
      %v377 = vshrl.u32 %v376, 7
      %v378 = vsub.s32 %v375, %v377
      %v379 = vrot.slane %v305, %v378
      %v380 = vcombine.high %v379, %v379
      %v382 = vunpack.c.l.s4 1966171168
      %v383 = vunpack.c.0.s8 %v382
      %v384 = vlaneseq
      %v385 = vshrl.u32 %v384, 7
      %v386 = vsub.s32 %v383, %v385
      %v387 = vrot.slane %v379, %v386
      %v389 = vunpack.c.l.s4 1966171168
      %v390 = vunpack.c.0.s8 %v389
      %v391 = vlaneseq
      %v392 = vshrl.u32 %v391, 7
      %v393 = vsub.s32 %v390, %v392
      %v394 = vrot.slane %v380, %v393
      %v395 = vcombine.high %v387, %v387
      %v396 = vcombine.high %v394, %v394
      %v397 = vlaneseq
      %v398 = vshrl.u32 %v397, 7
      %v399 = vsub.s32 0, %v398
      %v400 = vrot.slane %v387, %v399
      %v401 = vlaneseq
      %v402 = vshrl.u32 %v401, 7
      %v403 = vsub.s32 1, %v402
      %v404 = vrot.slane %v387, %v403
      %v405 = vlaneseq
      %v406 = vshrl.u32 %v405, 7
      %v407 = vsub.s32 0, %v406
      %v408 = vrot.slane %v394, %v407
      %v409 = vlaneseq
      %v410 = vshrl.u32 %v409, 7
      %v411 = vsub.s32 1, %v410
      %v412 = vrot.slane %v394, %v411
      %v413 = vlaneseq
      %v414 = vshrl.u32 %v413, 7
      %v415 = vsub.s32 0, %v414
      %v416 = vrot.slane %v395, %v415
      %v417 = vlaneseq
      %v418 = vshrl.u32 %v417, 7
      %v419 = vsub.s32 1, %v418
      %v420 = vrot.slane %v395, %v419
      %v421 = vlaneseq
      %v422 = vshrl.u32 %v421, 7
      %v423 = vsub.s32 0, %v422
      %v424 = vrot.slane %v396, %v423
      %v425 = vlaneseq
      %v426 = vshrl.u32 %v425, 7
      %v427 = vsub.s32 1, %v426
      %v428 = vrot.slane %v396, %v427
      %v438 = vlaneseq
      %v439 = vshrl.u32 %v438, 7
      %v440 = vsub.s32 0, %v439
      %v441 = vrot.slane %v227, %v440
      %v442 = vlaneseq
      %v443 = vshrl.u32 %v442, 7
      %v444 = vsub.s32 1, %v443
      %v445 = vrot.slane %v227, %v444
      %vm448 = vcmask 1040384
      %v449 = vsel %vm448, %v400, %v441
      %v450 = vsel %vm448, %v404, %v445
      %v451 = vsel %vm448, %v408, %v441
      %v452 = vsel %vm448, %v412, %v445
      %v453 = vsel %vm448, %v416, %v441
      %v454 = vsel %vm448, %v420, %v445
      %v455 = vsel %vm448, %v424, %v441
      %v456 = vsel %vm448, %v428, %v445
      %v457 = vpack.c.bf16 %v449, %v449
      %v458 = vpack.c.bf16 %v450, %v450
      %v459 = vpack.c.bf16 %v451, %v451
      %v460 = vpack.c.bf16 %v452, %v452
      %v461 = vpack.c.bf16 %v453, %v453
      %v462 = vpack.c.bf16 %v454, %v454
      %v463 = vpack.c.bf16 %v455, %v455
      %v464 = vpack.c.bf16 %v456, %v456
      loop: start=0, step=1, limit=2
      $region41: #{_lambda_.3} parent=39 // loop_pre_header
        _
      $region42: #{_lambda_.3} parent=39 // loop_header
        %s466 = sphi 0, %s470
        %p467 = scmp.ge.s32.totalorder %s466, 2
      $region43: #{_lambda_.3} parent=39 // loop_header_branch
        %469 = sbr.rel (%p467) target = $region47
      $region44: #{_lambda_.3} parent=39 // loop_body
        %s471 = smul.u32 %s466, 128
        %s472 = sshra.s32 %s471, 7
        %s473 = sand.u32 %s471, 127
        %s474 = smul.addr %s472, 4
        %s475 = scalar_lea.vmem [#allocation3], %s474
        %v476 = vld [vmem:[%s475] sm:$0xf]
        %s477 = smul.addr %s472, 4
        %s478 = scalar_lea.vmem [#allocation4], %s477
        %v479 = vld [vmem:[%s478] sm:$0xf]
        %s480 = smul.addr %s472, 4
        %s481 = scalar_lea.vmem [#allocation5], %s480
        %v482 = vld [vmem:[%s481] sm:$0xf]
        %v483 = vlaneseq
        %v484 = vshrl.u32 %v483, 7
        %v485 = vsub.s32 0, %v484
        %v486 = vrot.slane %v476, %v485
        %488 = vbcast.lane.b32.xlu0 %v486, 256
        %v489 = vpop.permute.xlu0 %488
        %s491 = sor.u32 256, 8
        %492 = vbcast.lane.b32.xlu0 %v486, %s491
        %v493 = vpop.permute.xlu0 %492
        %s495 = sor.u32 256, 16
        %496 = vbcast.lane.b32.xlu0 %v486, %s495
        %v497 = vpop.permute.xlu0 %496
        %s499 = sor.u32 256, 24
        %500 = vbcast.lane.b32.xlu0 %v486, %s499
        %v501 = vpop.permute.xlu0 %500
        %s503 = sor.u32 256, 32
        %504 = vbcast.lane.b32.xlu0 %v486, %s503
        %v505 = vpop.permute.xlu0 %504
        %s507 = sor.u32 256, 40
        %508 = vbcast.lane.b32.xlu0 %v486, %s507
        %v509 = vpop.permute.xlu0 %508
        %s511 = sor.u32 256, 48
        %512 = vbcast.lane.b32.xlu0 %v486, %s511
        %v513 = vpop.permute.xlu0 %512
        %s515 = sor.u32 256, 56
        %516 = vbcast.lane.b32.xlu0 %v486, %s515
        %v517 = vpop.permute.xlu0 %516
        %s519 = sor.u32 256, 64
        %520 = vbcast.lane.b32.xlu0 %v486, %s519
        %v521 = vpop.permute.xlu0 %520
        %s523 = sor.u32 256, 72
        %524 = vbcast.lane.b32.xlu0 %v486, %s523
        %v525 = vpop.permute.xlu0 %524
        %s527 = sor.u32 256, 80
        %528 = vbcast.lane.b32.xlu0 %v486, %s527
        %v529 = vpop.permute.xlu0 %528
        %s531 = sor.u32 256, 88
        %532 = vbcast.lane.b32.xlu0 %v486, %s531
        %v533 = vpop.permute.xlu0 %532
        %s535 = sor.u32 256, 96
        %536 = vbcast.lane.b32.xlu0 %v486, %s535
        %v537 = vpop.permute.xlu0 %536
        %s539 = sor.u32 256, 104
        %540 = vbcast.lane.b32.xlu0 %v486, %s539
        %v541 = vpop.permute.xlu0 %540
        %s543 = sor.u32 256, 112
        %544 = vbcast.lane.b32.xlu0 %v486, %s543
        %v545 = vpop.permute.xlu0 %544
        %s547 = sor.u32 256, 120
        %548 = vbcast.lane.b32.xlu0 %v486, %s547
        %v549 = vpop.permute.xlu0 %548
        %v550 = vlaneseq
        %v551 = vshrl.u32 %v550, 7
        %v552 = vsub.s32 1, %v551
        %v553 = vrot.slane %v476, %v552
        %555 = vbcast.lane.b32.xlu0 %v553, 256
        %v556 = vpop.permute.xlu0 %555
        %s558 = sor.u32 256, 8
        %559 = vbcast.lane.b32.xlu0 %v553, %s558
        %v560 = vpop.permute.xlu0 %559
        %s562 = sor.u32 256, 16
        %563 = vbcast.lane.b32.xlu0 %v553, %s562
        %v564 = vpop.permute.xlu0 %563
        %s566 = sor.u32 256, 24
        %567 = vbcast.lane.b32.xlu0 %v553, %s566
        %v568 = vpop.permute.xlu0 %567
        %s570 = sor.u32 256, 32
        %571 = vbcast.lane.b32.xlu0 %v553, %s570
        %v572 = vpop.permute.xlu0 %571
        %s574 = sor.u32 256, 40
        %575 = vbcast.lane.b32.xlu0 %v553, %s574
        %v576 = vpop.permute.xlu0 %575
        %s578 = sor.u32 256, 48
        %579 = vbcast.lane.b32.xlu0 %v553, %s578
        %v580 = vpop.permute.xlu0 %579
        %s582 = sor.u32 256, 56
        %583 = vbcast.lane.b32.xlu0 %v553, %s582
        %v584 = vpop.permute.xlu0 %583
        %s586 = sor.u32 256, 64
        %587 = vbcast.lane.b32.xlu0 %v553, %s586
        %v588 = vpop.permute.xlu0 %587
        %s590 = sor.u32 256, 72
        %591 = vbcast.lane.b32.xlu0 %v553, %s590
        %v592 = vpop.permute.xlu0 %591
        %s594 = sor.u32 256, 80
        %595 = vbcast.lane.b32.xlu0 %v553, %s594
        %v596 = vpop.permute.xlu0 %595
        %s598 = sor.u32 256, 88
        %599 = vbcast.lane.b32.xlu0 %v553, %s598
        %v600 = vpop.permute.xlu0 %599
        %s602 = sor.u32 256, 96
        %603 = vbcast.lane.b32.xlu0 %v553, %s602
        %v604 = vpop.permute.xlu0 %603
        %s606 = sor.u32 256, 104
        %607 = vbcast.lane.b32.xlu0 %v553, %s606
        %v608 = vpop.permute.xlu0 %607
        %s610 = sor.u32 256, 112
        %611 = vbcast.lane.b32.xlu0 %v553, %s610
        %v612 = vpop.permute.xlu0 %611
        %s614 = sor.u32 256, 120
        %615 = vbcast.lane.b32.xlu0 %v553, %s614
        %v616 = vpop.permute.xlu0 %615
        %v617 = vlaneseq
        %v618 = vshrl.u32 %v617, 7
        %v619 = vsub.s32 2, %v618
        %v620 = vrot.slane %v476, %v619
        %622 = vbcast.lane.b32.xlu0 %v620, 256
        %v623 = vpop.permute.xlu0 %622
        %s625 = sor.u32 256, 8
        %626 = vbcast.lane.b32.xlu0 %v620, %s625
        %v627 = vpop.permute.xlu0 %626
        %s629 = sor.u32 256, 16
        %630 = vbcast.lane.b32.xlu0 %v620, %s629
        %v631 = vpop.permute.xlu0 %630
        %s633 = sor.u32 256, 24
        %634 = vbcast.lane.b32.xlu0 %v620, %s633
        %v635 = vpop.permute.xlu0 %634
        %s637 = sor.u32 256, 32
        %638 = vbcast.lane.b32.xlu0 %v620, %s637
        %v639 = vpop.permute.xlu0 %638
        %s641 = sor.u32 256, 40
        %642 = vbcast.lane.b32.xlu0 %v620, %s641
        %v643 = vpop.permute.xlu0 %642
        %s645 = sor.u32 256, 48
        %646 = vbcast.lane.b32.xlu0 %v620, %s645
        %v647 = vpop.permute.xlu0 %646
        %s649 = sor.u32 256, 56
        %650 = vbcast.lane.b32.xlu0 %v620, %s649
        %v651 = vpop.permute.xlu0 %650
        %s653 = sor.u32 256, 64
        %654 = vbcast.lane.b32.xlu0 %v620, %s653
        %v655 = vpop.permute.xlu0 %654
        %s657 = sor.u32 256, 72
        %658 = vbcast.lane.b32.xlu0 %v620, %s657
        %v659 = vpop.permute.xlu0 %658
        %s661 = sor.u32 256, 80
        %662 = vbcast.lane.b32.xlu0 %v620, %s661
        %v663 = vpop.permute.xlu0 %662
        %s665 = sor.u32 256, 88
        %666 = vbcast.lane.b32.xlu0 %v620, %s665
        %v667 = vpop.permute.xlu0 %666
        %s669 = sor.u32 256, 96
        %670 = vbcast.lane.b32.xlu0 %v620, %s669
        %v671 = vpop.permute.xlu0 %670
        %s673 = sor.u32 256, 104
        %674 = vbcast.lane.b32.xlu0 %v620, %s673
        %v675 = vpop.permute.xlu0 %674
        %s677 = sor.u32 256, 112
        %678 = vbcast.lane.b32.xlu0 %v620, %s677
        %v679 = vpop.permute.xlu0 %678
        %s681 = sor.u32 256, 120
        %682 = vbcast.lane.b32.xlu0 %v620, %s681
        %v683 = vpop.permute.xlu0 %682
        %v684 = vlaneseq
        %v685 = vshrl.u32 %v684, 7
        %v686 = vsub.s32 3, %v685
        %v687 = vrot.slane %v476, %v686
        %689 = vbcast.lane.b32.xlu0 %v687, 256
        %v690 = vpop.permute.xlu0 %689
        %s692 = sor.u32 256, 8
        %693 = vbcast.lane.b32.xlu0 %v687, %s692
        %v694 = vpop.permute.xlu0 %693
        %s696 = sor.u32 256, 16
        %697 = vbcast.lane.b32.xlu0 %v687, %s696
        %v698 = vpop.permute.xlu0 %697
        %s700 = sor.u32 256, 24
        %701 = vbcast.lane.b32.xlu0 %v687, %s700
        %v702 = vpop.permute.xlu0 %701
        %s704 = sor.u32 256, 32
        %705 = vbcast.lane.b32.xlu0 %v687, %s704
        %v706 = vpop.permute.xlu0 %705
        %s708 = sor.u32 256, 40
        %709 = vbcast.lane.b32.xlu0 %v687, %s708
        %v710 = vpop.permute.xlu0 %709
        %s712 = sor.u32 256, 48
        %713 = vbcast.lane.b32.xlu0 %v687, %s712
        %v714 = vpop.permute.xlu0 %713
        %s716 = sor.u32 256, 56
        %717 = vbcast.lane.b32.xlu0 %v687, %s716
        %v718 = vpop.permute.xlu0 %717
        %s720 = sor.u32 256, 64
        %721 = vbcast.lane.b32.xlu0 %v687, %s720
        %v722 = vpop.permute.xlu0 %721
        %s724 = sor.u32 256, 72
        %725 = vbcast.lane.b32.xlu0 %v687, %s724
        %v726 = vpop.permute.xlu0 %725
        %s728 = sor.u32 256, 80
        %729 = vbcast.lane.b32.xlu0 %v687, %s728
        %v730 = vpop.permute.xlu0 %729
        %s732 = sor.u32 256, 88
        %733 = vbcast.lane.b32.xlu0 %v687, %s732
        %v734 = vpop.permute.xlu0 %733
        %s736 = sor.u32 256, 96
        %737 = vbcast.lane.b32.xlu0 %v687, %s736
        %v738 = vpop.permute.xlu0 %737
        %s740 = sor.u32 256, 104
        %741 = vbcast.lane.b32.xlu0 %v687, %s740
        %v742 = vpop.permute.xlu0 %741
        %s744 = sor.u32 256, 112
        %745 = vbcast.lane.b32.xlu0 %v687, %s744
        %v746 = vpop.permute.xlu0 %745
        %s748 = sor.u32 256, 120
        %749 = vbcast.lane.b32.xlu0 %v687, %s748
        %v750 = vpop.permute.xlu0 %749
        %v752 = vunpack.c.l.s4 1966171168
        %v753 = vunpack.c.0.s8 %v752
        %v754 = vlaneseq
        %v755 = vshrl.u32 %v754, 7
        %v756 = vsub.s32 %v753, %v755
        %v757 = vrot.slane %v281, %v756
        %v758 = vcombine.high %v757, %v757
        %v760 = vunpack.c.l.s4 1966171168
        %v761 = vunpack.c.0.s8 %v760
        %v762 = vlaneseq
        %v763 = vshrl.u32 %v762, 7
        %v764 = vsub.s32 %v761, %v763
        %v765 = vrot.slane %v757, %v764
        %v767 = vunpack.c.l.s4 1966171168
        %v768 = vunpack.c.0.s8 %v767
        %v769 = vlaneseq
        %v770 = vshrl.u32 %v769, 7
        %v771 = vsub.s32 %v768, %v770
        %v772 = vrot.slane %v758, %v771
        %v773 = vcombine.high %v765, %v765
        %v774 = vcombine.high %v772, %v772
        %v775 = vlaneseq
        %v776 = vshrl.u32 %v775, 7
        %v777 = vsub.s32 0, %v776
        %v778 = vrot.slane %v765, %v777
        %v779 = vlaneseq
        %v780 = vshrl.u32 %v779, 7
        %v781 = vsub.s32 1, %v780
        %v782 = vrot.slane %v765, %v781
        %v783 = vlaneseq
        %v784 = vshrl.u32 %v783, 7
        %v785 = vsub.s32 0, %v784
        %v786 = vrot.slane %v772, %v785
        %v787 = vlaneseq
        %v788 = vshrl.u32 %v787, 7
        %v789 = vsub.s32 1, %v788
        %v790 = vrot.slane %v772, %v789
        %v791 = vlaneseq
        %v792 = vshrl.u32 %v791, 7
        %v793 = vsub.s32 0, %v792
        %v794 = vrot.slane %v773, %v793
        %v795 = vlaneseq
        %v796 = vshrl.u32 %v795, 7
        %v797 = vsub.s32 1, %v796
        %v798 = vrot.slane %v773, %v797
        %v799 = vlaneseq
        %v800 = vshrl.u32 %v799, 7
        %v801 = vsub.s32 0, %v800
        %v802 = vrot.slane %v774, %v801
        %v803 = vlaneseq
        %v804 = vshrl.u32 %v803, 7
        %v805 = vsub.s32 1, %v804
        %v806 = vrot.slane %v774, %v805
        %v815 = vmul.f32 %v489, %v778
        %v816 = vmul.f32 %v489, %v782
        %v817 = vmul.f32 %v493, %v778
        %v818 = vmul.f32 %v493, %v782
        %v819 = vmul.f32 %v497, %v778
        %v820 = vmul.f32 %v497, %v782
        %v821 = vmul.f32 %v501, %v778
        %v822 = vmul.f32 %v501, %v782
        %v823 = vmul.f32 %v505, %v778
        %v824 = vmul.f32 %v505, %v782
        %v825 = vmul.f32 %v509, %v778
        %v826 = vmul.f32 %v509, %v782
        %v827 = vmul.f32 %v513, %v778
        %v828 = vmul.f32 %v513, %v782
        %v829 = vmul.f32 %v517, %v778
        %v830 = vmul.f32 %v517, %v782
        %v831 = vmul.f32 %v521, %v778
        %v832 = vmul.f32 %v521, %v782
        %v833 = vmul.f32 %v525, %v778
        %v834 = vmul.f32 %v525, %v782
        %v835 = vmul.f32 %v529, %v778
        %v836 = vmul.f32 %v529, %v782
        %v837 = vmul.f32 %v533, %v778
        %v838 = vmul.f32 %v533, %v782
        %v839 = vmul.f32 %v537, %v778
        %v840 = vmul.f32 %v537, %v782
        %v841 = vmul.f32 %v541, %v778
        %v842 = vmul.f32 %v541, %v782
        %v843 = vmul.f32 %v545, %v778
        %v844 = vmul.f32 %v545, %v782
        %v845 = vmul.f32 %v549, %v778
        %v846 = vmul.f32 %v549, %v782
        %v847 = vmul.f32 %v556, %v786
        %v848 = vmul.f32 %v556, %v790
        %v849 = vmul.f32 %v560, %v786
        %v850 = vmul.f32 %v560, %v790
        %v851 = vmul.f32 %v564, %v786
        %v852 = vmul.f32 %v564, %v790
        %v853 = vmul.f32 %v568, %v786
        %v854 = vmul.f32 %v568, %v790
        %v855 = vmul.f32 %v572, %v786
        %v856 = vmul.f32 %v572, %v790
        %v857 = vmul.f32 %v576, %v786
        %v858 = vmul.f32 %v576, %v790
        %v859 = vmul.f32 %v580, %v786
        %v860 = vmul.f32 %v580, %v790
        %v861 = vmul.f32 %v584, %v786
        %v862 = vmul.f32 %v584, %v790
        %v863 = vmul.f32 %v588, %v786
        %v864 = vmul.f32 %v588, %v790
        %v865 = vmul.f32 %v592, %v786
        %v866 = vmul.f32 %v592, %v790
        %v867 = vmul.f32 %v596, %v786
        %v868 = vmul.f32 %v596, %v790
        %v869 = vmul.f32 %v600, %v786
        %v870 = vmul.f32 %v600, %v790
        %v871 = vmul.f32 %v604, %v786
        %v872 = vmul.f32 %v604, %v790
        %v873 = vmul.f32 %v608, %v786
        %v874 = vmul.f32 %v608, %v790
        %v875 = vmul.f32 %v612, %v786
        %v876 = vmul.f32 %v612, %v790
        %v877 = vmul.f32 %v616, %v786
        %v878 = vmul.f32 %v616, %v790
        %v879 = vmul.f32 %v623, %v794
        %v880 = vmul.f32 %v623, %v798
        %v881 = vmul.f32 %v627, %v794
        %v882 = vmul.f32 %v627, %v798
        %v883 = vmul.f32 %v631, %v794
        %v884 = vmul.f32 %v631, %v798
        %v885 = vmul.f32 %v635, %v794
        %v886 = vmul.f32 %v635, %v798
        %v887 = vmul.f32 %v639, %v794
        %v888 = vmul.f32 %v639, %v798
        %v889 = vmul.f32 %v643, %v794
        %v890 = vmul.f32 %v643, %v798
        %v891 = vmul.f32 %v647, %v794
        %v892 = vmul.f32 %v647, %v798
        %v893 = vmul.f32 %v651, %v794
        %v894 = vmul.f32 %v651, %v798
        %v895 = vmul.f32 %v655, %v794
        %v896 = vmul.f32 %v655, %v798
        %v897 = vmul.f32 %v659, %v794
        %v898 = vmul.f32 %v659, %v798
        %v899 = vmul.f32 %v663, %v794
        %v900 = vmul.f32 %v663, %v798
        %v901 = vmul.f32 %v667, %v794
        %v902 = vmul.f32 %v667, %v798
        %v903 = vmul.f32 %v671, %v794
        %v904 = vmul.f32 %v671, %v798
        %v905 = vmul.f32 %v675, %v794
        %v906 = vmul.f32 %v675, %v798
        %v907 = vmul.f32 %v679, %v794
        %v908 = vmul.f32 %v679, %v798
        %v909 = vmul.f32 %v683, %v794
        %v910 = vmul.f32 %v683, %v798
        %v911 = vmul.f32 %v690, %v802
        %v912 = vmul.f32 %v690, %v806
        %v913 = vmul.f32 %v694, %v802
        %v914 = vmul.f32 %v694, %v806
        %v915 = vmul.f32 %v698, %v802
        %v916 = vmul.f32 %v698, %v806
        %v917 = vmul.f32 %v702, %v802
        %v918 = vmul.f32 %v702, %v806
        %v919 = vmul.f32 %v706, %v802
        %v920 = vmul.f32 %v706, %v806
        %v921 = vmul.f32 %v710, %v802
        %v922 = vmul.f32 %v710, %v806
        %v923 = vmul.f32 %v714, %v802
        %v924 = vmul.f32 %v714, %v806
        %v925 = vmul.f32 %v718, %v802
        %v926 = vmul.f32 %v718, %v806
        %v927 = vmul.f32 %v722, %v802
        %v928 = vmul.f32 %v722, %v806
        %v929 = vmul.f32 %v726, %v802
        %v930 = vmul.f32 %v726, %v806
        %v931 = vmul.f32 %v730, %v802
        %v932 = vmul.f32 %v730, %v806
        %v933 = vmul.f32 %v734, %v802
        %v934 = vmul.f32 %v734, %v806
        %v935 = vmul.f32 %v738, %v802
        %v936 = vmul.f32 %v738, %v806
        %v937 = vmul.f32 %v742, %v802
        %v938 = vmul.f32 %v742, %v806
        %v939 = vmul.f32 %v746, %v802
        %v940 = vmul.f32 %v746, %v806
        %v941 = vmul.f32 %v750, %v802
        %v942 = vmul.f32 %v750, %v806
        %v944 = vlaneseq
        %v945 = vshrl.u32 %v944, 7
        %v946 = vsub.s32 0, %v945
        %v947 = vrot.slane %v232, %v946
        %v948 = vlaneseq
        %v949 = vshrl.u32 %v948, 7
        %v950 = vsub.s32 1, %v949
        %v951 = vrot.slane %v232, %v950
        %v954 = vadd.f32 %v815, %v947
        %v955 = vadd.f32 %v816, %v951
        %v956 = vadd.f32 %v817, %v947
        %v957 = vadd.f32 %v818, %v951
        %v958 = vadd.f32 %v819, %v947
        %v959 = vadd.f32 %v820, %v951
        %v960 = vadd.f32 %v821, %v947
        %v961 = vadd.f32 %v822, %v951
        %v962 = vadd.f32 %v823, %v947
        %v963 = vadd.f32 %v824, %v951
        %v964 = vadd.f32 %v825, %v947
        %v965 = vadd.f32 %v826, %v951
        %v966 = vadd.f32 %v827, %v947
        %v967 = vadd.f32 %v828, %v951
        %v968 = vadd.f32 %v829, %v947
        %v969 = vadd.f32 %v830, %v951
        %v970 = vadd.f32 %v831, %v947
        %v971 = vadd.f32 %v832, %v951
        %v972 = vadd.f32 %v833, %v947
        %v973 = vadd.f32 %v834, %v951
        %v974 = vadd.f32 %v835, %v947
        %v975 = vadd.f32 %v836, %v951
        %v976 = vadd.f32 %v837, %v947
        %v977 = vadd.f32 %v838, %v951
        %v978 = vadd.f32 %v839, %v947
        %v979 = vadd.f32 %v840, %v951
        %v980 = vadd.f32 %v841, %v947
        %v981 = vadd.f32 %v842, %v951
        %v982 = vadd.f32 %v843, %v947
        %v983 = vadd.f32 %v844, %v951
        %v984 = vadd.f32 %v845, %v947
        %v985 = vadd.f32 %v846, %v951
        %v986 = vadd.f32 %v847, %v947
        %v987 = vadd.f32 %v848, %v951
        %v988 = vadd.f32 %v849, %v947
        %v989 = vadd.f32 %v850, %v951
        %v990 = vadd.f32 %v851, %v947
        %v991 = vadd.f32 %v852, %v951
        %v992 = vadd.f32 %v853, %v947
        %v993 = vadd.f32 %v854, %v951
        %v994 = vadd.f32 %v855, %v947
        %v995 = vadd.f32 %v856, %v951
        %v996 = vadd.f32 %v857, %v947
        %v997 = vadd.f32 %v858, %v951
        %v998 = vadd.f32 %v859, %v947
        %v999 = vadd.f32 %v860, %v951
        %v1000 = vadd.f32 %v861, %v947
        %v1001 = vadd.f32 %v862, %v951
        %v1002 = vadd.f32 %v863, %v947
        %v1003 = vadd.f32 %v864, %v951
        %v1004 = vadd.f32 %v865, %v947
        %v1005 = vadd.f32 %v866, %v951
        %v1006 = vadd.f32 %v867, %v947
        %v1007 = vadd.f32 %v868, %v951
        %v1008 = vadd.f32 %v869, %v947
        %v1009 = vadd.f32 %v870, %v951
        %v1010 = vadd.f32 %v871, %v947
        %v1011 = vadd.f32 %v872, %v951
        %v1012 = vadd.f32 %v873, %v947
        %v1013 = vadd.f32 %v874, %v951
        %v1014 = vadd.f32 %v875, %v947
        %v1015 = vadd.f32 %v876, %v951
        %v1016 = vadd.f32 %v877, %v947
        %v1017 = vadd.f32 %v878, %v951
        %v1018 = vadd.f32 %v879, %v947
        %v1019 = vadd.f32 %v880, %v951
        %v1020 = vadd.f32 %v881, %v947
        %v1021 = vadd.f32 %v882, %v951
        %v1022 = vadd.f32 %v883, %v947
        %v1023 = vadd.f32 %v884, %v951
        %v1024 = vadd.f32 %v885, %v947
        %v1025 = vadd.f32 %v886, %v951
        %v1026 = vadd.f32 %v887, %v947
        %v1027 = vadd.f32 %v888, %v951
        %v1028 = vadd.f32 %v889, %v947
        %v1029 = vadd.f32 %v890, %v951
        %v1030 = vadd.f32 %v891, %v947
        %v1031 = vadd.f32 %v892, %v951
        %v1032 = vadd.f32 %v893, %v947
        %v1033 = vadd.f32 %v894, %v951
        %v1034 = vadd.f32 %v895, %v947
        %v1035 = vadd.f32 %v896, %v951
        %v1036 = vadd.f32 %v897, %v947
        %v1037 = vadd.f32 %v898, %v951
        %v1038 = vadd.f32 %v899, %v947
        %v1039 = vadd.f32 %v900, %v951
        %v1040 = vadd.f32 %v901, %v947
        %v1041 = vadd.f32 %v902, %v951
        %v1042 = vadd.f32 %v903, %v947
        %v1043 = vadd.f32 %v904, %v951
        %v1044 = vadd.f32 %v905, %v947
        %v1045 = vadd.f32 %v906, %v951
        %v1046 = vadd.f32 %v907, %v947
        %v1047 = vadd.f32 %v908, %v951
        %v1048 = vadd.f32 %v909, %v947
        %v1049 = vadd.f32 %v910, %v951
        %v1050 = vadd.f32 %v911, %v947
        %v1051 = vadd.f32 %v912, %v951
        %v1052 = vadd.f32 %v913, %v947
        %v1053 = vadd.f32 %v914, %v951
        %v1054 = vadd.f32 %v915, %v947
        %v1055 = vadd.f32 %v916, %v951
        %v1056 = vadd.f32 %v917, %v947
        %v1057 = vadd.f32 %v918, %v951
        %v1058 = vadd.f32 %v919, %v947
        %v1059 = vadd.f32 %v920, %v951
        %v1060 = vadd.f32 %v921, %v947
        %v1061 = vadd.f32 %v922, %v951
        %v1062 = vadd.f32 %v923, %v947
        %v1063 = vadd.f32 %v924, %v951
        %v1064 = vadd.f32 %v925, %v947
        %v1065 = vadd.f32 %v926, %v951
        %v1066 = vadd.f32 %v927, %v947
        %v1067 = vadd.f32 %v928, %v951
        %v1068 = vadd.f32 %v929, %v947
        %v1069 = vadd.f32 %v930, %v951
        %v1070 = vadd.f32 %v931, %v947
        %v1071 = vadd.f32 %v932, %v951
        %v1072 = vadd.f32 %v933, %v947
        %v1073 = vadd.f32 %v934, %v951
        %v1074 = vadd.f32 %v935, %v947
        %v1075 = vadd.f32 %v936, %v951
        %v1076 = vadd.f32 %v937, %v947
        %v1077 = vadd.f32 %v938, %v951
        %v1078 = vadd.f32 %v939, %v947
        %v1079 = vadd.f32 %v940, %v951
        %v1080 = vadd.f32 %v941, %v947
        %v1081 = vadd.f32 %v942, %v951
        %v1082 = vlaneseq
        %v1083 = vshrl.u32 %v1082, 7
        %v1084 = vsub.s32 0, %v1083
        %v1085 = vrot.slane %v479, %v1084
        %1087 = vbcast.lane.b32.xlu0 %v1085, 256
        %v1088 = vpop.permute.xlu0 %1087
        %s1090 = sor.u32 256, 8
        %1091 = vbcast.lane.b32.xlu0 %v1085, %s1090
        %v1092 = vpop.permute.xlu0 %1091
        %s1094 = sor.u32 256, 16
        %1095 = vbcast.lane.b32.xlu0 %v1085, %s1094
        %v1096 = vpop.permute.xlu0 %1095
        %s1098 = sor.u32 256, 24
        %1099 = vbcast.lane.b32.xlu0 %v1085, %s1098
        %v1100 = vpop.permute.xlu0 %1099
        %s1102 = sor.u32 256, 32
        %1103 = vbcast.lane.b32.xlu0 %v1085, %s1102
        %v1104 = vpop.permute.xlu0 %1103
        %s1106 = sor.u32 256, 40
        %1107 = vbcast.lane.b32.xlu0 %v1085, %s1106
        %v1108 = vpop.permute.xlu0 %1107
        %s1110 = sor.u32 256, 48
        %1111 = vbcast.lane.b32.xlu0 %v1085, %s1110
        %v1112 = vpop.permute.xlu0 %1111
        %s1114 = sor.u32 256, 56
        %1115 = vbcast.lane.b32.xlu0 %v1085, %s1114
        %v1116 = vpop.permute.xlu0 %1115
        %s1118 = sor.u32 256, 64
        %1119 = vbcast.lane.b32.xlu0 %v1085, %s1118
        %v1120 = vpop.permute.xlu0 %1119
        %s1122 = sor.u32 256, 72
        %1123 = vbcast.lane.b32.xlu0 %v1085, %s1122
        %v1124 = vpop.permute.xlu0 %1123
        %s1126 = sor.u32 256, 80
        %1127 = vbcast.lane.b32.xlu0 %v1085, %s1126
        %v1128 = vpop.permute.xlu0 %1127
        %s1130 = sor.u32 256, 88
        %1131 = vbcast.lane.b32.xlu0 %v1085, %s1130
        %v1132 = vpop.permute.xlu0 %1131
        %s1134 = sor.u32 256, 96
        %1135 = vbcast.lane.b32.xlu0 %v1085, %s1134
        %v1136 = vpop.permute.xlu0 %1135
        %s1138 = sor.u32 256, 104
        %1139 = vbcast.lane.b32.xlu0 %v1085, %s1138
        %v1140 = vpop.permute.xlu0 %1139
        %s1142 = sor.u32 256, 112
        %1143 = vbcast.lane.b32.xlu0 %v1085, %s1142
        %v1144 = vpop.permute.xlu0 %1143
        %s1146 = sor.u32 256, 120
        %1147 = vbcast.lane.b32.xlu0 %v1085, %s1146
        %v1148 = vpop.permute.xlu0 %1147
        %v1149 = vlaneseq
        %v1150 = vshrl.u32 %v1149, 7
        %v1151 = vsub.s32 1, %v1150
        %v1152 = vrot.slane %v479, %v1151
        %1154 = vbcast.lane.b32.xlu0 %v1152, 256
        %v1155 = vpop.permute.xlu0 %1154
        %s1157 = sor.u32 256, 8
        %1158 = vbcast.lane.b32.xlu0 %v1152, %s1157
        %v1159 = vpop.permute.xlu0 %1158
        %s1161 = sor.u32 256, 16
        %1162 = vbcast.lane.b32.xlu0 %v1152, %s1161
        %v1163 = vpop.permute.xlu0 %1162
        %s1165 = sor.u32 256, 24
        %1166 = vbcast.lane.b32.xlu0 %v1152, %s1165
        %v1167 = vpop.permute.xlu0 %1166
        %s1169 = sor.u32 256, 32
        %1170 = vbcast.lane.b32.xlu0 %v1152, %s1169
        %v1171 = vpop.permute.xlu0 %1170
        %s1173 = sor.u32 256, 40
        %1174 = vbcast.lane.b32.xlu0 %v1152, %s1173
        %v1175 = vpop.permute.xlu0 %1174
        %s1177 = sor.u32 256, 48
        %1178 = vbcast.lane.b32.xlu0 %v1152, %s1177
        %v1179 = vpop.permute.xlu0 %1178
        %s1181 = sor.u32 256, 56
        %1182 = vbcast.lane.b32.xlu0 %v1152, %s1181
        %v1183 = vpop.permute.xlu0 %1182
        %s1185 = sor.u32 256, 64
        %1186 = vbcast.lane.b32.xlu0 %v1152, %s1185
        %v1187 = vpop.permute.xlu0 %1186
        %s1189 = sor.u32 256, 72
        %1190 = vbcast.lane.b32.xlu0 %v1152, %s1189
        %v1191 = vpop.permute.xlu0 %1190
        %s1193 = sor.u32 256, 80
        %1194 = vbcast.lane.b32.xlu0 %v1152, %s1193
        %v1195 = vpop.permute.xlu0 %1194
        %s1197 = sor.u32 256, 88
        %1198 = vbcast.lane.b32.xlu0 %v1152, %s1197
        %v1199 = vpop.permute.xlu0 %1198
        %s1201 = sor.u32 256, 96
        %1202 = vbcast.lane.b32.xlu0 %v1152, %s1201
        %v1203 = vpop.permute.xlu0 %1202
        %s1205 = sor.u32 256, 104
        %1206 = vbcast.lane.b32.xlu0 %v1152, %s1205
        %v1207 = vpop.permute.xlu0 %1206
        %s1209 = sor.u32 256, 112
        %1210 = vbcast.lane.b32.xlu0 %v1152, %s1209
        %v1211 = vpop.permute.xlu0 %1210
        %s1213 = sor.u32 256, 120
        %1214 = vbcast.lane.b32.xlu0 %v1152, %s1213
        %v1215 = vpop.permute.xlu0 %1214
        %v1216 = vlaneseq
        %v1217 = vshrl.u32 %v1216, 7
        %v1218 = vsub.s32 2, %v1217
        %v1219 = vrot.slane %v479, %v1218
        %1221 = vbcast.lane.b32.xlu0 %v1219, 256
        %v1222 = vpop.permute.xlu0 %1221
        %s1224 = sor.u32 256, 8
        %1225 = vbcast.lane.b32.xlu0 %v1219, %s1224
        %v1226 = vpop.permute.xlu0 %1225
        %s1228 = sor.u32 256, 16
        %1229 = vbcast.lane.b32.xlu0 %v1219, %s1228
        %v1230 = vpop.permute.xlu0 %1229
        %s1232 = sor.u32 256, 24
        %1233 = vbcast.lane.b32.xlu0 %v1219, %s1232
        %v1234 = vpop.permute.xlu0 %1233
        %s1236 = sor.u32 256, 32
        %1237 = vbcast.lane.b32.xlu0 %v1219, %s1236
        %v1238 = vpop.permute.xlu0 %1237
        %s1240 = sor.u32 256, 40
        %1241 = vbcast.lane.b32.xlu0 %v1219, %s1240
        %v1242 = vpop.permute.xlu0 %1241
        %s1244 = sor.u32 256, 48
        %1245 = vbcast.lane.b32.xlu0 %v1219, %s1244
        %v1246 = vpop.permute.xlu0 %1245
        %s1248 = sor.u32 256, 56
        %1249 = vbcast.lane.b32.xlu0 %v1219, %s1248
        %v1250 = vpop.permute.xlu0 %1249
        %s1252 = sor.u32 256, 64
        %1253 = vbcast.lane.b32.xlu0 %v1219, %s1252
        %v1254 = vpop.permute.xlu0 %1253
        %s1256 = sor.u32 256, 72
        %1257 = vbcast.lane.b32.xlu0 %v1219, %s1256
        %v1258 = vpop.permute.xlu0 %1257
        %s1260 = sor.u32 256, 80
        %1261 = vbcast.lane.b32.xlu0 %v1219, %s1260
        %v1262 = vpop.permute.xlu0 %1261
        %s1264 = sor.u32 256, 88
        %1265 = vbcast.lane.b32.xlu0 %v1219, %s1264
        %v1266 = vpop.permute.xlu0 %1265
        %s1268 = sor.u32 256, 96
        %1269 = vbcast.lane.b32.xlu0 %v1219, %s1268
        %v1270 = vpop.permute.xlu0 %1269
        %s1272 = sor.u32 256, 104
        %1273 = vbcast.lane.b32.xlu0 %v1219, %s1272
        %v1274 = vpop.permute.xlu0 %1273
        %s1276 = sor.u32 256, 112
        %1277 = vbcast.lane.b32.xlu0 %v1219, %s1276
        %v1278 = vpop.permute.xlu0 %1277
        %s1280 = sor.u32 256, 120
        %1281 = vbcast.lane.b32.xlu0 %v1219, %s1280
        %v1282 = vpop.permute.xlu0 %1281
        %v1283 = vlaneseq
        %v1284 = vshrl.u32 %v1283, 7
        %v1285 = vsub.s32 3, %v1284
        %v1286 = vrot.slane %v479, %v1285
        %1288 = vbcast.lane.b32.xlu0 %v1286, 256
        %v1289 = vpop.permute.xlu0 %1288
        %s1291 = sor.u32 256, 8
        %1292 = vbcast.lane.b32.xlu0 %v1286, %s1291
        %v1293 = vpop.permute.xlu0 %1292
        %s1295 = sor.u32 256, 16
        %1296 = vbcast.lane.b32.xlu0 %v1286, %s1295
        %v1297 = vpop.permute.xlu0 %1296
        %s1299 = sor.u32 256, 24
        %1300 = vbcast.lane.b32.xlu0 %v1286, %s1299
        %v1301 = vpop.permute.xlu0 %1300
        %s1303 = sor.u32 256, 32
        %1304 = vbcast.lane.b32.xlu0 %v1286, %s1303
        %v1305 = vpop.permute.xlu0 %1304
        %s1307 = sor.u32 256, 40
        %1308 = vbcast.lane.b32.xlu0 %v1286, %s1307
        %v1309 = vpop.permute.xlu0 %1308
        %s1311 = sor.u32 256, 48
        %1312 = vbcast.lane.b32.xlu0 %v1286, %s1311
        %v1313 = vpop.permute.xlu0 %1312
        %s1315 = sor.u32 256, 56
        %1316 = vbcast.lane.b32.xlu0 %v1286, %s1315
        %v1317 = vpop.permute.xlu0 %1316
        %s1319 = sor.u32 256, 64
        %1320 = vbcast.lane.b32.xlu0 %v1286, %s1319
        %v1321 = vpop.permute.xlu0 %1320
        %s1323 = sor.u32 256, 72
        %1324 = vbcast.lane.b32.xlu0 %v1286, %s1323
        %v1325 = vpop.permute.xlu0 %1324
        %s1327 = sor.u32 256, 80
        %1328 = vbcast.lane.b32.xlu0 %v1286, %s1327
        %v1329 = vpop.permute.xlu0 %1328
        %s1331 = sor.u32 256, 88
        %1332 = vbcast.lane.b32.xlu0 %v1286, %s1331
        %v1333 = vpop.permute.xlu0 %1332
        %s1335 = sor.u32 256, 96
        %1336 = vbcast.lane.b32.xlu0 %v1286, %s1335
        %v1337 = vpop.permute.xlu0 %1336
        %s1339 = sor.u32 256, 104
        %1340 = vbcast.lane.b32.xlu0 %v1286, %s1339
        %v1341 = vpop.permute.xlu0 %1340
        %s1343 = sor.u32 256, 112
        %1344 = vbcast.lane.b32.xlu0 %v1286, %s1343
        %v1345 = vpop.permute.xlu0 %1344
        %s1347 = sor.u32 256, 120
        %1348 = vbcast.lane.b32.xlu0 %v1286, %s1347
        %v1349 = vpop.permute.xlu0 %1348
        %v1350 = vsub.f32 %v954, %v1088
        %v1351 = vsub.f32 %v955, %v1088
        %v1352 = vsub.f32 %v956, %v1092
        %v1353 = vsub.f32 %v957, %v1092
        %v1354 = vsub.f32 %v958, %v1096
        %v1355 = vsub.f32 %v959, %v1096
        %v1356 = vsub.f32 %v960, %v1100
        %v1357 = vsub.f32 %v961, %v1100
        %v1358 = vsub.f32 %v962, %v1104
        %v1359 = vsub.f32 %v963, %v1104
        %v1360 = vsub.f32 %v964, %v1108
        %v1361 = vsub.f32 %v965, %v1108
        %v1362 = vsub.f32 %v966, %v1112
        %v1363 = vsub.f32 %v967, %v1112
        %v1364 = vsub.f32 %v968, %v1116
        %v1365 = vsub.f32 %v969, %v1116
        %v1366 = vsub.f32 %v970, %v1120
        %v1367 = vsub.f32 %v971, %v1120
        %v1368 = vsub.f32 %v972, %v1124
        %v1369 = vsub.f32 %v973, %v1124
        %v1370 = vsub.f32 %v974, %v1128
        %v1371 = vsub.f32 %v975, %v1128
        %v1372 = vsub.f32 %v976, %v1132
        %v1373 = vsub.f32 %v977, %v1132
        %v1374 = vsub.f32 %v978, %v1136
        %v1375 = vsub.f32 %v979, %v1136
        %v1376 = vsub.f32 %v980, %v1140
        %v1377 = vsub.f32 %v981, %v1140
        %v1378 = vsub.f32 %v982, %v1144
        %v1379 = vsub.f32 %v983, %v1144
        %v1380 = vsub.f32 %v984, %v1148
        %v1381 = vsub.f32 %v985, %v1148
        %v1382 = vsub.f32 %v986, %v1155
        %v1383 = vsub.f32 %v987, %v1155
        %v1384 = vsub.f32 %v988, %v1159
        %v1385 = vsub.f32 %v989, %v1159
        %v1386 = vsub.f32 %v990, %v1163
        %v1387 = vsub.f32 %v991, %v1163
        %v1388 = vsub.f32 %v992, %v1167
        %v1389 = vsub.f32 %v993, %v1167
        %v1390 = vsub.f32 %v994, %v1171
        %v1391 = vsub.f32 %v995, %v1171
        %v1392 = vsub.f32 %v996, %v1175
        %v1393 = vsub.f32 %v997, %v1175
        %v1394 = vsub.f32 %v998, %v1179
        %v1395 = vsub.f32 %v999, %v1179
        %v1396 = vsub.f32 %v1000, %v1183
        %v1397 = vsub.f32 %v1001, %v1183
        %v1398 = vsub.f32 %v1002, %v1187
        %v1399 = vsub.f32 %v1003, %v1187
        %v1400 = vsub.f32 %v1004, %v1191
        %v1401 = vsub.f32 %v1005, %v1191
        %v1402 = vsub.f32 %v1006, %v1195
        %v1403 = vsub.f32 %v1007, %v1195
        %v1404 = vsub.f32 %v1008, %v1199
        %v1405 = vsub.f32 %v1009, %v1199
        %v1406 = vsub.f32 %v1010, %v1203
        %v1407 = vsub.f32 %v1011, %v1203
        %v1408 = vsub.f32 %v1012, %v1207
        %v1409 = vsub.f32 %v1013, %v1207
        %v1410 = vsub.f32 %v1014, %v1211
        %v1411 = vsub.f32 %v1015, %v1211
        %v1412 = vsub.f32 %v1016, %v1215
        %v1413 = vsub.f32 %v1017, %v1215
        %v1414 = vsub.f32 %v1018, %v1222
        %v1415 = vsub.f32 %v1019, %v1222
        %v1416 = vsub.f32 %v1020, %v1226
        %v1417 = vsub.f32 %v1021, %v1226
        %v1418 = vsub.f32 %v1022, %v1230
        %v1419 = vsub.f32 %v1023, %v1230
        %v1420 = vsub.f32 %v1024, %v1234
        %v1421 = vsub.f32 %v1025, %v1234
        %v1422 = vsub.f32 %v1026, %v1238
        %v1423 = vsub.f32 %v1027, %v1238
        %v1424 = vsub.f32 %v1028, %v1242
        %v1425 = vsub.f32 %v1029, %v1242
        %v1426 = vsub.f32 %v1030, %v1246
        %v1427 = vsub.f32 %v1031, %v1246
        %v1428 = vsub.f32 %v1032, %v1250
        %v1429 = vsub.f32 %v1033, %v1250
        %v1430 = vsub.f32 %v1034, %v1254
        %v1431 = vsub.f32 %v1035, %v1254
        %v1432 = vsub.f32 %v1036, %v1258
        %v1433 = vsub.f32 %v1037, %v1258
        %v1434 = vsub.f32 %v1038, %v1262
        %v1435 = vsub.f32 %v1039, %v1262
        %v1436 = vsub.f32 %v1040, %v1266
        %v1437 = vsub.f32 %v1041, %v1266
        %v1438 = vsub.f32 %v1042, %v1270
        %v1439 = vsub.f32 %v1043, %v1270
        %v1440 = vsub.f32 %v1044, %v1274
        %v1441 = vsub.f32 %v1045, %v1274
        %v1442 = vsub.f32 %v1046, %v1278
        %v1443 = vsub.f32 %v1047, %v1278
        %v1444 = vsub.f32 %v1048, %v1282
        %v1445 = vsub.f32 %v1049, %v1282
        %v1446 = vsub.f32 %v1050, %v1289
        %v1447 = vsub.f32 %v1051, %v1289
        %v1448 = vsub.f32 %v1052, %v1293
        %v1449 = vsub.f32 %v1053, %v1293
        %v1450 = vsub.f32 %v1054, %v1297
        %v1451 = vsub.f32 %v1055, %v1297
        %v1452 = vsub.f32 %v1056, %v1301
        %v1453 = vsub.f32 %v1057, %v1301
        %v1454 = vsub.f32 %v1058, %v1305
        %v1455 = vsub.f32 %v1059, %v1305
        %v1456 = vsub.f32 %v1060, %v1309
        %v1457 = vsub.f32 %v1061, %v1309
        %v1458 = vsub.f32 %v1062, %v1313
        %v1459 = vsub.f32 %v1063, %v1313
        %v1460 = vsub.f32 %v1064, %v1317
        %v1461 = vsub.f32 %v1065, %v1317
        %v1462 = vsub.f32 %v1066, %v1321
        %v1463 = vsub.f32 %v1067, %v1321
        %v1464 = vsub.f32 %v1068, %v1325
        %v1465 = vsub.f32 %v1069, %v1325
        %v1466 = vsub.f32 %v1070, %v1329
        %v1467 = vsub.f32 %v1071, %v1329
        %v1468 = vsub.f32 %v1072, %v1333
        %v1469 = vsub.f32 %v1073, %v1333
        %v1470 = vsub.f32 %v1074, %v1337
        %v1471 = vsub.f32 %v1075, %v1337
        %v1472 = vsub.f32 %v1076, %v1341
        %v1473 = vsub.f32 %v1077, %v1341
        %v1474 = vsub.f32 %v1078, %v1345
        %v1475 = vsub.f32 %v1079, %v1345
        %v1476 = vsub.f32 %v1080, %v1349
        %v1477 = vsub.f32 %v1081, %v1349
        %v1478 = vmul.f32 %v1350, 1.442695
        %v1479 = vpow.pop %v1478
        %v1480 = vmul.f32 %v1351, 1.442695
        %v1481 = vpow.pop %v1480
        %v1482 = vmul.f32 %v1352, 1.442695
        %v1483 = vpow.pop %v1482
        %v1484 = vmul.f32 %v1353, 1.442695
        %v1485 = vpow.pop %v1484
        %v1486 = vmul.f32 %v1354, 1.442695
        %v1487 = vpow.pop %v1486
        %v1488 = vmul.f32 %v1355, 1.442695
        %v1489 = vpow.pop %v1488
        %v1490 = vmul.f32 %v1356, 1.442695
        %v1491 = vpow.pop %v1490
        %v1492 = vmul.f32 %v1357, 1.442695
        %v1493 = vpow.pop %v1492
        %v1494 = vmul.f32 %v1358, 1.442695
        %v1495 = vpow.pop %v1494
        %v1496 = vmul.f32 %v1359, 1.442695
        %v1497 = vpow.pop %v1496
        %v1498 = vmul.f32 %v1360, 1.442695
        %v1499 = vpow.pop %v1498
        %v1500 = vmul.f32 %v1361, 1.442695
        %v1501 = vpow.pop %v1500
        %v1502 = vmul.f32 %v1362, 1.442695
        %v1503 = vpow.pop %v1502
        %v1504 = vmul.f32 %v1363, 1.442695
        %v1505 = vpow.pop %v1504
        %v1506 = vmul.f32 %v1364, 1.442695
        %v1507 = vpow.pop %v1506
        %v1508 = vmul.f32 %v1365, 1.442695
        %v1509 = vpow.pop %v1508
        %v1510 = vmul.f32 %v1366, 1.442695
        %v1511 = vpow.pop %v1510
        %v1512 = vmul.f32 %v1367, 1.442695
        %v1513 = vpow.pop %v1512
        %v1514 = vmul.f32 %v1368, 1.442695
        %v1515 = vpow.pop %v1514
        %v1516 = vmul.f32 %v1369, 1.442695
        %v1517 = vpow.pop %v1516
        %v1518 = vmul.f32 %v1370, 1.442695
        %v1519 = vpow.pop %v1518
        %v1520 = vmul.f32 %v1371, 1.442695
        %v1521 = vpow.pop %v1520
        %v1522 = vmul.f32 %v1372, 1.442695
        %v1523 = vpow.pop %v1522
        %v1524 = vmul.f32 %v1373, 1.442695
        %v1525 = vpow.pop %v1524
        %v1526 = vmul.f32 %v1374, 1.442695
        %v1527 = vpow.pop %v1526
        %v1528 = vmul.f32 %v1375, 1.442695
        %v1529 = vpow.pop %v1528
        %v1530 = vmul.f32 %v1376, 1.442695
        %v1531 = vpow.pop %v1530
        %v1532 = vmul.f32 %v1377, 1.442695
        %v1533 = vpow.pop %v1532
        %v1534 = vmul.f32 %v1378, 1.442695
        %v1535 = vpow.pop %v1534
        %v1536 = vmul.f32 %v1379, 1.442695
        %v1537 = vpow.pop %v1536
        %v1538 = vmul.f32 %v1380, 1.442695
        %v1539 = vpow.pop %v1538
        %v1540 = vmul.f32 %v1381, 1.442695
        %v1541 = vpow.pop %v1540
        %v1542 = vmul.f32 %v1382, 1.442695
        %v1543 = vpow.pop %v1542
        %v1544 = vmul.f32 %v1383, 1.442695
        %v1545 = vpow.pop %v1544
        %v1546 = vmul.f32 %v1384, 1.442695
        %v1547 = vpow.pop %v1546
        %v1548 = vmul.f32 %v1385, 1.442695
        %v1549 = vpow.pop %v1548
        %v1550 = vmul.f32 %v1386, 1.442695
        %v1551 = vpow.pop %v1550
        %v1552 = vmul.f32 %v1387, 1.442695
        %v1553 = vpow.pop %v1552
        %v1554 = vmul.f32 %v1388, 1.442695
        %v1555 = vpow.pop %v1554
        %v1556 = vmul.f32 %v1389, 1.442695
        %v1557 = vpow.pop %v1556
        %v1558 = vmul.f32 %v1390, 1.442695
        %v1559 = vpow.pop %v1558
        %v1560 = vmul.f32 %v1391, 1.442695
        %v1561 = vpow.pop %v1560
        %v1562 = vmul.f32 %v1392, 1.442695
        %v1563 = vpow.pop %v1562
        %v1564 = vmul.f32 %v1393, 1.442695
        %v1565 = vpow.pop %v1564
        %v1566 = vmul.f32 %v1394, 1.442695
        %v1567 = vpow.pop %v1566
        %v1568 = vmul.f32 %v1395, 1.442695
        %v1569 = vpow.pop %v1568
        %v1570 = vmul.f32 %v1396, 1.442695
        %v1571 = vpow.pop %v1570
        %v1572 = vmul.f32 %v1397, 1.442695
        %v1573 = vpow.pop %v1572
        %v1574 = vmul.f32 %v1398, 1.442695
        %v1575 = vpow.pop %v1574
        %v1576 = vmul.f32 %v1399, 1.442695
        %v1577 = vpow.pop %v1576
        %v1578 = vmul.f32 %v1400, 1.442695
        %v1579 = vpow.pop %v1578
        %v1580 = vmul.f32 %v1401, 1.442695
        %v1581 = vpow.pop %v1580
        %v1582 = vmul.f32 %v1402, 1.442695
        %v1583 = vpow.pop %v1582
        %v1584 = vmul.f32 %v1403, 1.442695
        %v1585 = vpow.pop %v1584
        %v1586 = vmul.f32 %v1404, 1.442695
        %v1587 = vpow.pop %v1586
        %v1588 = vmul.f32 %v1405, 1.442695
        %v1589 = vpow.pop %v1588
        %v1590 = vmul.f32 %v1406, 1.442695
        %v1591 = vpow.pop %v1590
        %v1592 = vmul.f32 %v1407, 1.442695
        %v1593 = vpow.pop %v1592
        %v1594 = vmul.f32 %v1408, 1.442695
        %v1595 = vpow.pop %v1594
        %v1596 = vmul.f32 %v1409, 1.442695
        %v1597 = vpow.pop %v1596
        %v1598 = vmul.f32 %v1410, 1.442695
        %v1599 = vpow.pop %v1598
        %v1600 = vmul.f32 %v1411, 1.442695
        %v1601 = vpow.pop %v1600
        %v1602 = vmul.f32 %v1412, 1.442695
        %v1603 = vpow.pop %v1602
        %v1604 = vmul.f32 %v1413, 1.442695
        %v1605 = vpow.pop %v1604
        %v1606 = vmul.f32 %v1414, 1.442695
        %v1607 = vpow.pop %v1606
        %v1608 = vmul.f32 %v1415, 1.442695
        %v1609 = vpow.pop %v1608
        %v1610 = vmul.f32 %v1416, 1.442695
        %v1611 = vpow.pop %v1610
        %v1612 = vmul.f32 %v1417, 1.442695
        %v1613 = vpow.pop %v1612
        %v1614 = vmul.f32 %v1418, 1.442695
        %v1615 = vpow.pop %v1614
        %v1616 = vmul.f32 %v1419, 1.442695
        %v1617 = vpow.pop %v1616
        %v1618 = vmul.f32 %v1420, 1.442695
        %v1619 = vpow.pop %v1618
        %v1620 = vmul.f32 %v1421, 1.442695
        %v1621 = vpow.pop %v1620
        %v1622 = vmul.f32 %v1422, 1.442695
        %v1623 = vpow.pop %v1622
        %v1624 = vmul.f32 %v1423, 1.442695
        %v1625 = vpow.pop %v1624
        %v1626 = vmul.f32 %v1424, 1.442695
        %v1627 = vpow.pop %v1626
        %v1628 = vmul.f32 %v1425, 1.442695
        %v1629 = vpow.pop %v1628
        %v1630 = vmul.f32 %v1426, 1.442695
        %v1631 = vpow.pop %v1630
        %v1632 = vmul.f32 %v1427, 1.442695
        %v1633 = vpow.pop %v1632
        %v1634 = vmul.f32 %v1428, 1.442695
        %v1635 = vpow.pop %v1634
        %v1636 = vmul.f32 %v1429, 1.442695
        %v1637 = vpow.pop %v1636
        %v1638 = vmul.f32 %v1430, 1.442695
        %v1639 = vpow.pop %v1638
        %v1640 = vmul.f32 %v1431, 1.442695
        %v1641 = vpow.pop %v1640
        %v1642 = vmul.f32 %v1432, 1.442695
        %v1643 = vpow.pop %v1642
        %v1644 = vmul.f32 %v1433, 1.442695
        %v1645 = vpow.pop %v1644
        %v1646 = vmul.f32 %v1434, 1.442695
        %v1647 = vpow.pop %v1646
        %v1648 = vmul.f32 %v1435, 1.442695
        %v1649 = vpow.pop %v1648
        %v1650 = vmul.f32 %v1436, 1.442695
        %v1651 = vpow.pop %v1650
        %v1652 = vmul.f32 %v1437, 1.442695
        %v1653 = vpow.pop %v1652
        %v1654 = vmul.f32 %v1438, 1.442695
        %v1655 = vpow.pop %v1654
        %v1656 = vmul.f32 %v1439, 1.442695
        %v1657 = vpow.pop %v1656
        %v1658 = vmul.f32 %v1440, 1.442695
        %v1659 = vpow.pop %v1658
        %v1660 = vmul.f32 %v1441, 1.442695
        %v1661 = vpow.pop %v1660
        %v1662 = vmul.f32 %v1442, 1.442695
        %v1663 = vpow.pop %v1662
        %v1664 = vmul.f32 %v1443, 1.442695
        %v1665 = vpow.pop %v1664
        %v1666 = vmul.f32 %v1444, 1.442695
        %v1667 = vpow.pop %v1666
        %v1668 = vmul.f32 %v1445, 1.442695
        %v1669 = vpow.pop %v1668
        %v1670 = vmul.f32 %v1446, 1.442695
        %v1671 = vpow.pop %v1670
        %v1672 = vmul.f32 %v1447, 1.442695
        %v1673 = vpow.pop %v1672
        %v1674 = vmul.f32 %v1448, 1.442695
        %v1675 = vpow.pop %v1674
        %v1676 = vmul.f32 %v1449, 1.442695
        %v1677 = vpow.pop %v1676
        %v1678 = vmul.f32 %v1450, 1.442695
        %v1679 = vpow.pop %v1678
        %v1680 = vmul.f32 %v1451, 1.442695
        %v1681 = vpow.pop %v1680
        %v1682 = vmul.f32 %v1452, 1.442695
        %v1683 = vpow.pop %v1682
        %v1684 = vmul.f32 %v1453, 1.442695
        %v1685 = vpow.pop %v1684
        %v1686 = vmul.f32 %v1454, 1.442695
        %v1687 = vpow.pop %v1686
        %v1688 = vmul.f32 %v1455, 1.442695
        %v1689 = vpow.pop %v1688
        %v1690 = vmul.f32 %v1456, 1.442695
        %v1691 = vpow.pop %v1690
        %v1692 = vmul.f32 %v1457, 1.442695
        %v1693 = vpow.pop %v1692
        %v1694 = vmul.f32 %v1458, 1.442695
        %v1695 = vpow.pop %v1694
        %v1696 = vmul.f32 %v1459, 1.442695
        %v1697 = vpow.pop %v1696
        %v1698 = vmul.f32 %v1460, 1.442695
        %v1699 = vpow.pop %v1698
        %v1700 = vmul.f32 %v1461, 1.442695
        %v1701 = vpow.pop %v1700
        %v1702 = vmul.f32 %v1462, 1.442695
        %v1703 = vpow.pop %v1702
        %v1704 = vmul.f32 %v1463, 1.442695
        %v1705 = vpow.pop %v1704
        %v1706 = vmul.f32 %v1464, 1.442695
        %v1707 = vpow.pop %v1706
        %v1708 = vmul.f32 %v1465, 1.442695
        %v1709 = vpow.pop %v1708
        %v1710 = vmul.f32 %v1466, 1.442695
        %v1711 = vpow.pop %v1710
        %v1712 = vmul.f32 %v1467, 1.442695
        %v1713 = vpow.pop %v1712
        %v1714 = vmul.f32 %v1468, 1.442695
        %v1715 = vpow.pop %v1714
        %v1716 = vmul.f32 %v1469, 1.442695
        %v1717 = vpow.pop %v1716
        %v1718 = vmul.f32 %v1470, 1.442695
        %v1719 = vpow.pop %v1718
        %v1720 = vmul.f32 %v1471, 1.442695
        %v1721 = vpow.pop %v1720
        %v1722 = vmul.f32 %v1472, 1.442695
        %v1723 = vpow.pop %v1722
        %v1724 = vmul.f32 %v1473, 1.442695
        %v1725 = vpow.pop %v1724
        %v1726 = vmul.f32 %v1474, 1.442695
        %v1727 = vpow.pop %v1726
        %v1728 = vmul.f32 %v1475, 1.442695
        %v1729 = vpow.pop %v1728
        %v1730 = vmul.f32 %v1476, 1.442695
        %v1731 = vpow.pop %v1730
        %v1732 = vmul.f32 %v1477, 1.442695
        %v1733 = vpow.pop %v1732
        %v1734 = vsub.f32 %v1479, 1.0
        %v1735 = vsub.f32 %v1481, 1.0
        %v1736 = vsub.f32 %v1483, 1.0
        %v1737 = vsub.f32 %v1485, 1.0
        %v1738 = vsub.f32 %v1487, 1.0
        %v1739 = vsub.f32 %v1489, 1.0
        %v1740 = vsub.f32 %v1491, 1.0
        %v1741 = vsub.f32 %v1493, 1.0
        %v1742 = vsub.f32 %v1495, 1.0
        %v1743 = vsub.f32 %v1497, 1.0
        %v1744 = vsub.f32 %v1499, 1.0
        %v1745 = vsub.f32 %v1501, 1.0
        %v1746 = vsub.f32 %v1503, 1.0
        %v1747 = vsub.f32 %v1505, 1.0
        %v1748 = vsub.f32 %v1507, 1.0
        %v1749 = vsub.f32 %v1509, 1.0
        %v1750 = vsub.f32 %v1511, 1.0
        %v1751 = vsub.f32 %v1513, 1.0
        %v1752 = vsub.f32 %v1515, 1.0
        %v1753 = vsub.f32 %v1517, 1.0
        %v1754 = vsub.f32 %v1519, 1.0
        %v1755 = vsub.f32 %v1521, 1.0
        %v1756 = vsub.f32 %v1523, 1.0
        %v1757 = vsub.f32 %v1525, 1.0
        %v1758 = vsub.f32 %v1527, 1.0
        %v1759 = vsub.f32 %v1529, 1.0
        %v1760 = vsub.f32 %v1531, 1.0
        %v1761 = vsub.f32 %v1533, 1.0
        %v1762 = vsub.f32 %v1535, 1.0
        %v1763 = vsub.f32 %v1537, 1.0
        %v1764 = vsub.f32 %v1539, 1.0
        %v1765 = vsub.f32 %v1541, 1.0
        %v1766 = vsub.f32 %v1543, 1.0
        %v1767 = vsub.f32 %v1545, 1.0
        %v1768 = vsub.f32 %v1547, 1.0
        %v1769 = vsub.f32 %v1549, 1.0
        %v1770 = vsub.f32 %v1551, 1.0
        %v1771 = vsub.f32 %v1553, 1.0
        %v1772 = vsub.f32 %v1555, 1.0
        %v1773 = vsub.f32 %v1557, 1.0
        %v1774 = vsub.f32 %v1559, 1.0
        %v1775 = vsub.f32 %v1561, 1.0
        %v1776 = vsub.f32 %v1563, 1.0
        %v1777 = vsub.f32 %v1565, 1.0
        %v1778 = vsub.f32 %v1567, 1.0
        %v1779 = vsub.f32 %v1569, 1.0
        %v1780 = vsub.f32 %v1571, 1.0
        %v1781 = vsub.f32 %v1573, 1.0
        %v1782 = vsub.f32 %v1575, 1.0
        %v1783 = vsub.f32 %v1577, 1.0
        %v1784 = vsub.f32 %v1579, 1.0
        %v1785 = vsub.f32 %v1581, 1.0
        %v1786 = vsub.f32 %v1583, 1.0
        %v1787 = vsub.f32 %v1585, 1.0
        %v1788 = vsub.f32 %v1587, 1.0
        %v1789 = vsub.f32 %v1589, 1.0
        %v1790 = vsub.f32 %v1591, 1.0
        %v1791 = vsub.f32 %v1593, 1.0
        %v1792 = vsub.f32 %v1595, 1.0
        %v1793 = vsub.f32 %v1597, 1.0
        %v1794 = vsub.f32 %v1599, 1.0
        %v1795 = vsub.f32 %v1601, 1.0
        %v1796 = vsub.f32 %v1603, 1.0
        %v1797 = vsub.f32 %v1605, 1.0
        %v1798 = vsub.f32 %v1607, 1.0
        %v1799 = vsub.f32 %v1609, 1.0
        %v1800 = vsub.f32 %v1611, 1.0
        %v1801 = vsub.f32 %v1613, 1.0
        %v1802 = vsub.f32 %v1615, 1.0
        %v1803 = vsub.f32 %v1617, 1.0
        %v1804 = vsub.f32 %v1619, 1.0
        %v1805 = vsub.f32 %v1621, 1.0
        %v1806 = vsub.f32 %v1623, 1.0
        %v1807 = vsub.f32 %v1625, 1.0
        %v1808 = vsub.f32 %v1627, 1.0
        %v1809 = vsub.f32 %v1629, 1.0
        %v1810 = vsub.f32 %v1631, 1.0
        %v1811 = vsub.f32 %v1633, 1.0
        %v1812 = vsub.f32 %v1635, 1.0
        %v1813 = vsub.f32 %v1637, 1.0
        %v1814 = vsub.f32 %v1639, 1.0
        %v1815 = vsub.f32 %v1641, 1.0
        %v1816 = vsub.f32 %v1643, 1.0
        %v1817 = vsub.f32 %v1645, 1.0
        %v1818 = vsub.f32 %v1647, 1.0
        %v1819 = vsub.f32 %v1649, 1.0
        %v1820 = vsub.f32 %v1651, 1.0
        %v1821 = vsub.f32 %v1653, 1.0
        %v1822 = vsub.f32 %v1655, 1.0
        %v1823 = vsub.f32 %v1657, 1.0
        %v1824 = vsub.f32 %v1659, 1.0
        %v1825 = vsub.f32 %v1661, 1.0
        %v1826 = vsub.f32 %v1663, 1.0
        %v1827 = vsub.f32 %v1665, 1.0
        %v1828 = vsub.f32 %v1667, 1.0
        %v1829 = vsub.f32 %v1669, 1.0
        %v1830 = vsub.f32 %v1671, 1.0
        %v1831 = vsub.f32 %v1673, 1.0
        %v1832 = vsub.f32 %v1675, 1.0
        %v1833 = vsub.f32 %v1677, 1.0
        %v1834 = vsub.f32 %v1679, 1.0
        %v1835 = vsub.f32 %v1681, 1.0
        %v1836 = vsub.f32 %v1683, 1.0
        %v1837 = vsub.f32 %v1685, 1.0
        %v1838 = vsub.f32 %v1687, 1.0
        %v1839 = vsub.f32 %v1689, 1.0
        %v1840 = vsub.f32 %v1691, 1.0
        %v1841 = vsub.f32 %v1693, 1.0
        %v1842 = vsub.f32 %v1695, 1.0
        %v1843 = vsub.f32 %v1697, 1.0
        %v1844 = vsub.f32 %v1699, 1.0
        %v1845 = vsub.f32 %v1701, 1.0
        %v1846 = vsub.f32 %v1703, 1.0
        %v1847 = vsub.f32 %v1705, 1.0
        %v1848 = vsub.f32 %v1707, 1.0
        %v1849 = vsub.f32 %v1709, 1.0
        %v1850 = vsub.f32 %v1711, 1.0
        %v1851 = vsub.f32 %v1713, 1.0
        %v1852 = vsub.f32 %v1715, 1.0
        %v1853 = vsub.f32 %v1717, 1.0
        %v1854 = vsub.f32 %v1719, 1.0
        %v1855 = vsub.f32 %v1721, 1.0
        %v1856 = vsub.f32 %v1723, 1.0
        %v1857 = vsub.f32 %v1725, 1.0
        %v1858 = vsub.f32 %v1727, 1.0
        %v1859 = vsub.f32 %v1729, 1.0
        %v1860 = vsub.f32 %v1731, 1.0
        %v1861 = vsub.f32 %v1733, 1.0
        %v1862 = vpack.c.bf16 %v1736, %v1734
        %v1863 = vpack.c.bf16 %v1737, %v1735
        %v1864 = vpack.c.bf16 %v1740, %v1738
        %v1865 = vpack.c.bf16 %v1741, %v1739
        %v1866 = vpack.c.bf16 %v1744, %v1742
        %v1867 = vpack.c.bf16 %v1745, %v1743
        %v1868 = vpack.c.bf16 %v1748, %v1746
        %v1869 = vpack.c.bf16 %v1749, %v1747
        %v1870 = vpack.c.bf16 %v1752, %v1750
        %v1871 = vpack.c.bf16 %v1753, %v1751
        %v1872 = vpack.c.bf16 %v1756, %v1754
        %v1873 = vpack.c.bf16 %v1757, %v1755
        %v1874 = vpack.c.bf16 %v1760, %v1758
        %v1875 = vpack.c.bf16 %v1761, %v1759
        %v1876 = vpack.c.bf16 %v1764, %v1762
        %v1877 = vpack.c.bf16 %v1765, %v1763
        %v1878 = vpack.c.bf16 %v1768, %v1766
        %v1879 = vpack.c.bf16 %v1769, %v1767
        %v1880 = vpack.c.bf16 %v1772, %v1770
        %v1881 = vpack.c.bf16 %v1773, %v1771
        %v1882 = vpack.c.bf16 %v1776, %v1774
        %v1883 = vpack.c.bf16 %v1777, %v1775
        %v1884 = vpack.c.bf16 %v1780, %v1778
        %v1885 = vpack.c.bf16 %v1781, %v1779
        %v1886 = vpack.c.bf16 %v1784, %v1782
        %v1887 = vpack.c.bf16 %v1785, %v1783
        %v1888 = vpack.c.bf16 %v1788, %v1786
        %v1889 = vpack.c.bf16 %v1789, %v1787
        %v1890 = vpack.c.bf16 %v1792, %v1790
        %v1891 = vpack.c.bf16 %v1793, %v1791
        %v1892 = vpack.c.bf16 %v1796, %v1794
        %v1893 = vpack.c.bf16 %v1797, %v1795
        %v1894 = vpack.c.bf16 %v1800, %v1798
        %v1895 = vpack.c.bf16 %v1801, %v1799
        %v1896 = vpack.c.bf16 %v1804, %v1802
        %v1897 = vpack.c.bf16 %v1805, %v1803
        %v1898 = vpack.c.bf16 %v1808, %v1806
        %v1899 = vpack.c.bf16 %v1809, %v1807
        %v1900 = vpack.c.bf16 %v1812, %v1810
        %v1901 = vpack.c.bf16 %v1813, %v1811
        %v1902 = vpack.c.bf16 %v1816, %v1814
        %v1903 = vpack.c.bf16 %v1817, %v1815
        %v1904 = vpack.c.bf16 %v1820, %v1818
        %v1905 = vpack.c.bf16 %v1821, %v1819
        %v1906 = vpack.c.bf16 %v1824, %v1822
        %v1907 = vpack.c.bf16 %v1825, %v1823
        %v1908 = vpack.c.bf16 %v1828, %v1826
        %v1909 = vpack.c.bf16 %v1829, %v1827
        %v1910 = vpack.c.bf16 %v1832, %v1830
        %v1911 = vpack.c.bf16 %v1833, %v1831
        %v1912 = vpack.c.bf16 %v1836, %v1834
        %v1913 = vpack.c.bf16 %v1837, %v1835
        %v1914 = vpack.c.bf16 %v1840, %v1838
        %v1915 = vpack.c.bf16 %v1841, %v1839
        %v1916 = vpack.c.bf16 %v1844, %v1842
        %v1917 = vpack.c.bf16 %v1845, %v1843
        %v1918 = vpack.c.bf16 %v1848, %v1846
        %v1919 = vpack.c.bf16 %v1849, %v1847
        %v1920 = vpack.c.bf16 %v1852, %v1850
        %v1921 = vpack.c.bf16 %v1853, %v1851
        %v1922 = vpack.c.bf16 %v1856, %v1854
        %v1923 = vpack.c.bf16 %v1857, %v1855
        %v1924 = vpack.c.bf16 %v1860, %v1858
        %v1925 = vpack.c.bf16 %v1861, %v1859
        %1926 = vmatprep.subr.bf16.mxu0 %v1863
        %1927 = vmatpush1.bf16.xpose.msra.mxu0 %v1862
        %1928 = vmatprep.subr.bf16.mxu0 %v1865
        %1929 = vmatpush1.bf16.xpose.msra.mxu0 %v1864
        %1930 = vmatprep.subr.bf16.mxu0 %v1867
        %1931 = vmatpush1.bf16.xpose.msra.mxu0 %v1866
        %1932 = vmatprep.subr.bf16.mxu0 %v1869
        %1933 = vmatpush1.bf16.xpose.msra.mxu0 %v1868
        %1934 = vmatprep.subr.bf16.mxu0 %v1871
        %1935 = vmatpush1.bf16.xpose.msra.mxu0 %v1870
        %1936 = vmatprep.subr.bf16.mxu0 %v1873
        %1937 = vmatpush1.bf16.xpose.msra.mxu0 %v1872
        %1938 = vmatprep.subr.bf16.mxu0 %v1875
        %1939 = vmatpush1.bf16.xpose.msra.mxu0 %v1874
        %1940 = vmatprep.subr.bf16.mxu0 %v1877
        %1941 = vmatpush1.bf16.xpose.msra.mxu0 %v1876
        %1942 = vmatprep.subr.bf16.mxu0 0
        %1943 = vmatpush1.bf16.xpose.msra.mxu0 0
        %1944 = vmatprep.subr.bf16.mxu0 0
        %1945 = vmatpush1.bf16.xpose.msra.mxu0 0
        %1946 = vmatprep.subr.bf16.mxu0 0
        %1947 = vmatpush1.bf16.xpose.msra.mxu0 0
        %1948 = vmatprep.subr.bf16.mxu0 0
        %1949 = vmatpush1.bf16.xpose.msra.mxu0 0
        %1950 = vmatprep.subr.bf16.mxu0 0
        %1951 = vmatpush1.bf16.xpose.msra.mxu0 0
        %1952 = vmatprep.subr.bf16.mxu0 0
        %1953 = vmatpush1.bf16.xpose.msra.mxu0 0
        %1954 = vmatprep.subr.bf16.mxu0 0
        %1955 = vmatpush1.bf16.xpose.msra.mxu0 0
        %1956 = vmatprep.subr.bf16.mxu0 0
        %1957 = vmatpush1.bf16.xpose.msra.mxu0 0
        %1958 = vmatprep.mubr.bf16.mxu0 %v458
        %1959 = vmatmul.mubr.bf16.gmra.mrb[0].mxu0 %v457
        %v1960 = vpop.f32.mrb[0].mxu0
        %v1961 = vadd.f32 0.0, %v1960
        %v1962 = vpop.f32.mrb[0].mxu0
        %v1963 = vpop.f32.mrb[0].mxu0
        %v1964 = vpop.f32.mrb[0].mxu0
        %1965 = vdwg.mxu0
        %1966 = vmatprep.subr.bf16.mxu0 %v1879
        %1967 = vmatpush1.bf16.xpose.msra.mxu0 %v1878
        %1968 = vmatprep.subr.bf16.mxu0 %v1881
        %1969 = vmatpush1.bf16.xpose.msra.mxu0 %v1880
        %1970 = vmatprep.subr.bf16.mxu0 %v1883
        %1971 = vmatpush1.bf16.xpose.msra.mxu0 %v1882
        %1972 = vmatprep.subr.bf16.mxu0 %v1885
        %1973 = vmatpush1.bf16.xpose.msra.mxu0 %v1884
        %1974 = vmatprep.subr.bf16.mxu0 %v1887
        %1975 = vmatpush1.bf16.xpose.msra.mxu0 %v1886
        %1976 = vmatprep.subr.bf16.mxu0 %v1889
        %1977 = vmatpush1.bf16.xpose.msra.mxu0 %v1888
        %1978 = vmatprep.subr.bf16.mxu0 %v1891
        %1979 = vmatpush1.bf16.xpose.msra.mxu0 %v1890
        %1980 = vmatprep.subr.bf16.mxu0 %v1893
        %1981 = vmatpush1.bf16.xpose.msra.mxu0 %v1892
        %1982 = vmatprep.subr.bf16.mxu0 0
        %1983 = vmatpush1.bf16.xpose.msra.mxu0 0
        %1984 = vmatprep.subr.bf16.mxu0 0
        %1985 = vmatpush1.bf16.xpose.msra.mxu0 0
        %1986 = vmatprep.subr.bf16.mxu0 0
        %1987 = vmatpush1.bf16.xpose.msra.mxu0 0
        %1988 = vmatprep.subr.bf16.mxu0 0
        %1989 = vmatpush1.bf16.xpose.msra.mxu0 0
        %1990 = vmatprep.subr.bf16.mxu0 0
        %1991 = vmatpush1.bf16.xpose.msra.mxu0 0
        %1992 = vmatprep.subr.bf16.mxu0 0
        %1993 = vmatpush1.bf16.xpose.msra.mxu0 0
        %1994 = vmatprep.subr.bf16.mxu0 0
        %1995 = vmatpush1.bf16.xpose.msra.mxu0 0
        %1996 = vmatprep.subr.bf16.mxu0 0
        %1997 = vmatpush1.bf16.xpose.msra.mxu0 0
        %1998 = vmatprep.mubr.bf16.mxu0 %v460
        %1999 = vmatmul.mubr.bf16.gmra.mrb[0].mxu0 %v459
        %v2000 = vpop.f32.mrb[0].mxu0
        %v2001 = vadd.f32 0.0, %v2000
        %v2002 = vpop.f32.mrb[0].mxu0
        %v2003 = vpop.f32.mrb[0].mxu0
        %v2004 = vpop.f32.mrb[0].mxu0
        %2005 = vdwg.mxu0
        %2006 = vmatprep.subr.bf16.mxu0 %v1895
        %2007 = vmatpush1.bf16.xpose.msra.mxu0 %v1894
        %2008 = vmatprep.subr.bf16.mxu0 %v1897
        %2009 = vmatpush1.bf16.xpose.msra.mxu0 %v1896
        %2010 = vmatprep.subr.bf16.mxu0 %v1899
        %2011 = vmatpush1.bf16.xpose.msra.mxu0 %v1898
        %2012 = vmatprep.subr.bf16.mxu0 %v1901
        %2013 = vmatpush1.bf16.xpose.msra.mxu0 %v1900
        %2014 = vmatprep.subr.bf16.mxu0 %v1903
        %2015 = vmatpush1.bf16.xpose.msra.mxu0 %v1902
        %2016 = vmatprep.subr.bf16.mxu0 %v1905
        %2017 = vmatpush1.bf16.xpose.msra.mxu0 %v1904
        %2018 = vmatprep.subr.bf16.mxu0 %v1907
        %2019 = vmatpush1.bf16.xpose.msra.mxu0 %v1906
        %2020 = vmatprep.subr.bf16.mxu0 %v1909
        %2021 = vmatpush1.bf16.xpose.msra.mxu0 %v1908
        %2022 = vmatprep.subr.bf16.mxu0 0
        %2023 = vmatpush1.bf16.xpose.msra.mxu0 0
        %2024 = vmatprep.subr.bf16.mxu0 0
        %2025 = vmatpush1.bf16.xpose.msra.mxu0 0
        %2026 = vmatprep.subr.bf16.mxu0 0
        %2027 = vmatpush1.bf16.xpose.msra.mxu0 0
        %2028 = vmatprep.subr.bf16.mxu0 0
        %2029 = vmatpush1.bf16.xpose.msra.mxu0 0
        %2030 = vmatprep.subr.bf16.mxu0 0
        %2031 = vmatpush1.bf16.xpose.msra.mxu0 0
        %2032 = vmatprep.subr.bf16.mxu0 0
        %2033 = vmatpush1.bf16.xpose.msra.mxu0 0
        %2034 = vmatprep.subr.bf16.mxu0 0
        %2035 = vmatpush1.bf16.xpose.msra.mxu0 0
        %2036 = vmatprep.subr.bf16.mxu0 0
        %2037 = vmatpush1.bf16.xpose.msra.mxu0 0
        %2038 = vmatprep.mubr.bf16.mxu0 %v462
        %2039 = vmatmul.mubr.bf16.gmra.mrb[0].mxu0 %v461
        %v2040 = vpop.f32.mrb[0].mxu0
        %v2041 = vadd.f32 0.0, %v2040
        %v2042 = vpop.f32.mrb[0].mxu0
        %v2043 = vpop.f32.mrb[0].mxu0
        %v2044 = vpop.f32.mrb[0].mxu0
        %2045 = vdwg.mxu0
        %2046 = vmatprep.subr.bf16.mxu0 %v1911
        %2047 = vmatpush1.bf16.xpose.msra.mxu0 %v1910
        %2048 = vmatprep.subr.bf16.mxu0 %v1913
        %2049 = vmatpush1.bf16.xpose.msra.mxu0 %v1912
        %2050 = vmatprep.subr.bf16.mxu0 %v1915
        %2051 = vmatpush1.bf16.xpose.msra.mxu0 %v1914
        %2052 = vmatprep.subr.bf16.mxu0 %v1917
        %2053 = vmatpush1.bf16.xpose.msra.mxu0 %v1916
        %2054 = vmatprep.subr.bf16.mxu0 %v1919
        %2055 = vmatpush1.bf16.xpose.msra.mxu0 %v1918
        %2056 = vmatprep.subr.bf16.mxu0 %v1921
        %2057 = vmatpush1.bf16.xpose.msra.mxu0 %v1920
        %2058 = vmatprep.subr.bf16.mxu0 %v1923
        %2059 = vmatpush1.bf16.xpose.msra.mxu0 %v1922
        %2060 = vmatprep.subr.bf16.mxu0 %v1925
        %2061 = vmatpush1.bf16.xpose.msra.mxu0 %v1924
        %2062 = vmatprep.subr.bf16.mxu0 0
        %2063 = vmatpush1.bf16.xpose.msra.mxu0 0
        %2064 = vmatprep.subr.bf16.mxu0 0
        %2065 = vmatpush1.bf16.xpose.msra.mxu0 0
        %2066 = vmatprep.subr.bf16.mxu0 0
        %2067 = vmatpush1.bf16.xpose.msra.mxu0 0
        %2068 = vmatprep.subr.bf16.mxu0 0
        %2069 = vmatpush1.bf16.xpose.msra.mxu0 0
        %2070 = vmatprep.subr.bf16.mxu0 0
        %2071 = vmatpush1.bf16.xpose.msra.mxu0 0
        %2072 = vmatprep.subr.bf16.mxu0 0
        %2073 = vmatpush1.bf16.xpose.msra.mxu0 0
        %2074 = vmatprep.subr.bf16.mxu0 0
        %2075 = vmatpush1.bf16.xpose.msra.mxu0 0
        %2076 = vmatprep.subr.bf16.mxu0 0
        %2077 = vmatpush1.bf16.xpose.msra.mxu0 0
        %2078 = vmatprep.mubr.bf16.mxu0 %v464
        %2079 = vmatmul.mubr.bf16.gmra.mrb[0].mxu0 %v463
        %v2080 = vpop.f32.mrb[0].mxu0
        %v2081 = vadd.f32 0.0, %v2080
        %v2082 = vpop.f32.mrb[0].mxu0
        %v2083 = vpop.f32.mrb[0].mxu0
        %v2084 = vpop.f32.mrb[0].mxu0
        %2085 = vdwg.mxu0
        %v2087 = vrot.slane %v372, 1
        %v2088 = vrot.slane %v372, 2
        %v2089 = vrot.slane %v372, 3
        %v2094 = vadd.f32 %v1961, %v372
        %v2095 = vadd.f32 %v2001, %v2087
        %v2096 = vadd.f32 %v2041, %v2088
        %v2097 = vadd.f32 %v2081, %v2089
        %v2098 = vadd.f32 %v1961, 200.0
        %v2099 = vadd.f32 %v2001, 200.0
        %v2100 = vadd.f32 %v2041, 200.0
        %v2101 = vadd.f32 %v2081, 200.0
        %s2102 = smul.addr %s472, 4
        %s2103 = scalar_lea.vmem [#allocation2], %s2102
        %v2104 = vld [vmem:[%s2103] sm:$0xf]
        %v2106 = vrot.slane %v482, 1
        %v2107 = vrot.slane %v482, 2
        %v2108 = vrot.slane %v482, 3
        %v2113 = vsub.f32 %v2094, %v482
        %v2114 = vsub.f32 %v2095, %v2106
        %v2115 = vsub.f32 %v2096, %v2107
        %v2116 = vsub.f32 %v2097, %v2108
        %v2121 = vrot.slane %v2098, 1
        %v2122 = vrot.slane %v2099, 1
        %v2123 = vrot.slane %v2100, 1
        %v2124 = vrot.slane %v2101, 1
        %v2129 = vrcp.pop %v2121
        %v2130 = vmul.f32 %v2113, %v2129
        %v2131 = vrcp.pop %v2122
        %v2132 = vmul.f32 %v2114, %v2131
        %v2133 = vrcp.pop %v2123
        %v2134 = vmul.f32 %v2115, %v2133
        %v2135 = vrcp.pop %v2124
        %v2136 = vmul.f32 %v2116, %v2135
        %v2141 = vrot.slane %v2132, 7
        %vm2142 = vcmask 1041409
        %v2143 = vsel %vm2142, %v2141, %v2130
        %vm2144 = vcmask 1045509
        %v2145 = vsel %vm2144, %v2141, %v2143
        %v2146 = vrot.slane %v2134, 6
        %vm2147 = vcmask 1042434
        %v2148 = vsel %vm2147, %v2146, %v2145
        %vm2149 = vcmask 1046534
        %v2150 = vsel %vm2149, %v2146, %v2148
        %v2151 = vrot.slane %v2136, 5
        %vm2152 = vcmask 1043459
        %v2153 = vsel %vm2152, %v2151, %v2150
        %vm2154 = vcmask 1047559
        %v2155 = vsel %vm2154, %v2151, %v2153
        %v2157 = vadd.f32 %v2104, %v2155
        %2158 = vst [vmem:[%s2103] sm:$0xf] %v2157
      $region45: #{_lambda_.3} parent=39 // loop_footer
        %s470 = sadd.s32 1, %s466
      $region46: #{_lambda_.3} parent=39 // loop_footer_branch
        %465 = sbr.rel target = $region42
      $region47: #{_lambda_.3} parent=39 // loop_exit
        _
      %v2159 = vlaneseq
      %v2160 = vshrl.u32 %v2159, 7
      %v2161 = vsub.s32 1, %v2160
      %v2162 = vrot.slane %v228, %v2161
      %v2163 = vlaneseq
      %v2164 = vshrl.u32 %v2163, 7
      %v2165 = vsub.s32 3, %v2164
      %v2166 = vrot.slane %v228, %v2165
      %v2169 = vlaneseq
      %v2170 = vshrl.u32 %v2169, 7
      %v2171 = vsub.s32 1, %v2170
      %v2172 = vrot.slane %v2162, %v2171
      %v2173 = vlaneseq
      %v2174 = vshrl.u32 %v2173, 7
      %v2175 = vsub.s32 1, %v2174
      %v2176 = vrot.slane %v2166, %v2175
      %v2179 = vcombine.low %v2172, %v2176
      %v2181 = vmul.f32 %v226, %v2179
      %v2182 = vlaneseq
      %v2183 = vshrl.u32 %v2182, 7
      %v2184 = vsub.s32 1, %v2183
      %v2185 = vrot.slane %v229, %v2184
      %v2186 = vlaneseq
      %v2187 = vshrl.u32 %v2186, 7
      %v2188 = vsub.s32 3, %v2187
      %v2189 = vrot.slane %v229, %v2188
      %v2192 = vlaneseq
      %v2193 = vshrl.u32 %v2192, 7
      %v2194 = vsub.s32 1, %v2193
      %v2195 = vrot.slane %v2185, %v2194
      %v2196 = vlaneseq
      %v2197 = vshrl.u32 %v2196, 7
      %v2198 = vsub.s32 1, %v2197
      %v2199 = vrot.slane %v2189, %v2198
      %v2202 = vcombine.low %v2195, %v2199
      %v2204 = vmul.f32 %v226, %v2202
      %v2205 = vlaneseq
      %v2206 = vshrl.u32 %v2205, 7
      %v2207 = vsub.s32 1, %v2206
      %v2208 = vrot.slane %v230, %v2207
      %v2209 = vlaneseq
      %v2210 = vshrl.u32 %v2209, 7
      %v2211 = vsub.s32 3, %v2210
      %v2212 = vrot.slane %v230, %v2211
      %v2215 = vlaneseq
      %v2216 = vshrl.u32 %v2215, 7
      %v2217 = vsub.s32 1, %v2216
      %v2218 = vrot.slane %v2208, %v2217
      %v2219 = vlaneseq
      %v2220 = vshrl.u32 %v2219, 7
      %v2221 = vsub.s32 1, %v2220
      %v2222 = vrot.slane %v2212, %v2221
      %v2225 = vcombine.low %v2218, %v2222
      %v2227 = vmul.f32 %v226, %v2225
      %v2229 = vcombine.high %v2204, %v2204
      %v2231 = vsel %vm316, %v2204, -3e+38
      %v2232 = vsel %vm317, %v2229, -3e+38
      %v2233 = vsel %vm323, %v2231, -inf
      %v2234 = vsel %vm323, %v2232, -inf
      %v2235 = vmax.f32 %v2233, %v2234
      %2236 = vmax.xlane.f32.xlu0 %v2235
      %v2237 = vpop.xlane.xlu0 %2236
      %v2238 = vsel %vm316, %v2204, 3e+38
      %v2239 = vsel %vm317, %v2229, 3e+38
      %v2240 = vsel %vm323, %v2238, inf
      %v2241 = vsel %vm323, %v2239, inf
      %v2242 = vmin.f32 %v2240, %v2241
      %2243 = vmin.xlane.f32.xlu0 %v2242
      %v2244 = vpop.xlane.xlu0 %2243
      %v2247 = vunpack.c.l.s4 839922192
      %v2248 = vunpack.c.0.s8 %v2247
      %v2249 = vlaneseq
      %v2250 = vshrl.u32 %v2249, 7
      %v2251 = vsub.s32 %v2248, %v2250
      %v2252 = vrot.slane %v2237, %v2251
      %v2254 = vmul.f32 %v2181, %v2252
      %v2257 = vunpack.c.l.s4 839922192
      %v2258 = vunpack.c.0.s8 %v2257
      %v2259 = vlaneseq
      %v2260 = vshrl.u32 %v2259, 7
      %v2261 = vsub.s32 %v2258, %v2260
      %v2262 = vrot.slane %v2244, %v2261
      %v2264 = vmul.f32 %v2181, %v2262
      %v2265 = vmax.f32 %v2254, %v2264
      %2266 = vst [vmem:[#allocation3] sm:$0xff] %v2181
      %2267 = vst [vmem:[#allocation4] sm:$0xff] %v2265
      %v2268 = vmul.f32 %v2181, %v2204
      %v2269 = vsub.f32 %v2268, %v2265
      %v2270 = vmul.f32 %v2269, 1.442695
      %v2271 = vpow.pop %v2270
      %v2272 = vmul.f32 %v2271, %v2227
      %2273 = vst [vmem:[#allocation5] sm:$0xff] %v2272
      %v2275 = vcombine.high %v2227, %v2227
      %v2277 = vsel %vm323, %v2227, 0.0
      %v2278 = vsel %vm323, %v2275, 0.0
      %v2279 = vadd.f32 %v2277, %v2278
      %2280 = vadd.xlane.f32.xlu0 %v2279
      %v2281 = vpop.xlane.xlu0 %2280
      %v2283 = vunpack.c.l.s4 1966171168
      %v2284 = vunpack.c.0.s8 %v2283
      %v2285 = vlaneseq
      %v2286 = vshrl.u32 %v2285, 7
      %v2287 = vsub.s32 %v2284, %v2286
      %v2288 = vrot.slane %v2227, %v2287
      %v2289 = vcombine.high %v2288, %v2288
      %v2291 = vunpack.c.l.s4 1966171168
      %v2292 = vunpack.c.0.s8 %v2291
      %v2293 = vlaneseq
      %v2294 = vshrl.u32 %v2293, 7
      %v2295 = vsub.s32 %v2292, %v2294
      %v2296 = vrot.slane %v2288, %v2295
      %v2298 = vunpack.c.l.s4 1966171168
      %v2299 = vunpack.c.0.s8 %v2298
      %v2300 = vlaneseq
      %v2301 = vshrl.u32 %v2300, 7
      %v2302 = vsub.s32 %v2299, %v2301
      %v2303 = vrot.slane %v2289, %v2302
      %v2304 = vcombine.high %v2296, %v2296
      %v2305 = vcombine.high %v2303, %v2303
      %v2306 = vlaneseq
      %v2307 = vshrl.u32 %v2306, 7
      %v2308 = vsub.s32 0, %v2307
      %v2309 = vrot.slane %v2296, %v2308
      %v2310 = vlaneseq
      %v2311 = vshrl.u32 %v2310, 7
      %v2312 = vsub.s32 1, %v2311
      %v2313 = vrot.slane %v2296, %v2312
      %v2314 = vlaneseq
      %v2315 = vshrl.u32 %v2314, 7
      %v2316 = vsub.s32 0, %v2315
      %v2317 = vrot.slane %v2303, %v2316
      %v2318 = vlaneseq
      %v2319 = vshrl.u32 %v2318, 7
      %v2320 = vsub.s32 1, %v2319
      %v2321 = vrot.slane %v2303, %v2320
      %v2322 = vlaneseq
      %v2323 = vshrl.u32 %v2322, 7
      %v2324 = vsub.s32 0, %v2323
      %v2325 = vrot.slane %v2304, %v2324
      %v2326 = vlaneseq
      %v2327 = vshrl.u32 %v2326, 7
      %v2328 = vsub.s32 1, %v2327
      %v2329 = vrot.slane %v2304, %v2328
      %v2330 = vlaneseq
      %v2331 = vshrl.u32 %v2330, 7
      %v2332 = vsub.s32 0, %v2331
      %v2333 = vrot.slane %v2305, %v2332
      %v2334 = vlaneseq
      %v2335 = vshrl.u32 %v2334, 7
      %v2336 = vsub.s32 1, %v2335
      %v2337 = vrot.slane %v2305, %v2336
      %v2346 = vsel %vm448, %v2309, %v441
      %v2347 = vsel %vm448, %v2313, %v445
      %v2348 = vsel %vm448, %v2317, %v441
      %v2349 = vsel %vm448, %v2321, %v445
      %v2350 = vsel %vm448, %v2325, %v441
      %v2351 = vsel %vm448, %v2329, %v445
      %v2352 = vsel %vm448, %v2333, %v441
      %v2353 = vsel %vm448, %v2337, %v445
      %v2354 = vpack.c.bf16 %v2346, %v2346
      %v2355 = vpack.c.bf16 %v2347, %v2347
      %v2356 = vpack.c.bf16 %v2348, %v2348
      %v2357 = vpack.c.bf16 %v2349, %v2349
      %v2358 = vpack.c.bf16 %v2350, %v2350
      %v2359 = vpack.c.bf16 %v2351, %v2351
      %v2360 = vpack.c.bf16 %v2352, %v2352
      %v2361 = vpack.c.bf16 %v2353, %v2353
      loop: start=0, step=1, limit=2
      $region48: #{_lambda_.3} parent=39 // loop_pre_header
        _
      $region49: #{_lambda_.3} parent=39 // loop_header
        %s2363 = sphi 0, %s2367
        %p2364 = scmp.ge.s32.totalorder %s2363, 2
      $region50: #{_lambda_.3} parent=39 // loop_header_branch
        %2366 = sbr.rel (%p2364) target = $region54
      $region51: #{_lambda_.3} parent=39 // loop_body
        %s2368 = smul.u32 %s2363, 128
        %s2369 = sshra.s32 %s2368, 7
        %s2370 = sand.u32 %s2368, 127
        %s2371 = smul.addr %s2369, 4
        %s2372 = scalar_lea.vmem [#allocation3], %s2371
        %v2373 = vld [vmem:[%s2372] sm:$0xf]
        %s2374 = smul.addr %s2369, 4
        %s2375 = scalar_lea.vmem [#allocation4], %s2374
        %v2376 = vld [vmem:[%s2375] sm:$0xf]
        %s2377 = smul.addr %s2369, 4
        %s2378 = scalar_lea.vmem [#allocation5], %s2377
        %v2379 = vld [vmem:[%s2378] sm:$0xf]
        %v2380 = vlaneseq
        %v2381 = vshrl.u32 %v2380, 7
        %v2382 = vsub.s32 0, %v2381
        %v2383 = vrot.slane %v2373, %v2382
        %2385 = vbcast.lane.b32.xlu0 %v2383, 256
        %v2386 = vpop.permute.xlu0 %2385
        %s2388 = sor.u32 256, 8
        %2389 = vbcast.lane.b32.xlu0 %v2383, %s2388
        %v2390 = vpop.permute.xlu0 %2389
        %s2392 = sor.u32 256, 16
        %2393 = vbcast.lane.b32.xlu0 %v2383, %s2392
        %v2394 = vpop.permute.xlu0 %2393
        %s2396 = sor.u32 256, 24
        %2397 = vbcast.lane.b32.xlu0 %v2383, %s2396
        %v2398 = vpop.permute.xlu0 %2397
        %s2400 = sor.u32 256, 32
        %2401 = vbcast.lane.b32.xlu0 %v2383, %s2400
        %v2402 = vpop.permute.xlu0 %2401
        %s2404 = sor.u32 256, 40
        %2405 = vbcast.lane.b32.xlu0 %v2383, %s2404
        %v2406 = vpop.permute.xlu0 %2405
        %s2408 = sor.u32 256, 48
        %2409 = vbcast.lane.b32.xlu0 %v2383, %s2408
        %v2410 = vpop.permute.xlu0 %2409
        %s2412 = sor.u32 256, 56
        %2413 = vbcast.lane.b32.xlu0 %v2383, %s2412
        %v2414 = vpop.permute.xlu0 %2413
        %s2416 = sor.u32 256, 64
        %2417 = vbcast.lane.b32.xlu0 %v2383, %s2416
        %v2418 = vpop.permute.xlu0 %2417
        %s2420 = sor.u32 256, 72
        %2421 = vbcast.lane.b32.xlu0 %v2383, %s2420
        %v2422 = vpop.permute.xlu0 %2421
        %s2424 = sor.u32 256, 80
        %2425 = vbcast.lane.b32.xlu0 %v2383, %s2424
        %v2426 = vpop.permute.xlu0 %2425
        %s2428 = sor.u32 256, 88
        %2429 = vbcast.lane.b32.xlu0 %v2383, %s2428
        %v2430 = vpop.permute.xlu0 %2429
        %s2432 = sor.u32 256, 96
        %2433 = vbcast.lane.b32.xlu0 %v2383, %s2432
        %v2434 = vpop.permute.xlu0 %2433
        %s2436 = sor.u32 256, 104
        %2437 = vbcast.lane.b32.xlu0 %v2383, %s2436
        %v2438 = vpop.permute.xlu0 %2437
        %s2440 = sor.u32 256, 112
        %2441 = vbcast.lane.b32.xlu0 %v2383, %s2440
        %v2442 = vpop.permute.xlu0 %2441
        %s2444 = sor.u32 256, 120
        %2445 = vbcast.lane.b32.xlu0 %v2383, %s2444
        %v2446 = vpop.permute.xlu0 %2445
        %v2447 = vlaneseq
        %v2448 = vshrl.u32 %v2447, 7
        %v2449 = vsub.s32 1, %v2448
        %v2450 = vrot.slane %v2373, %v2449
        %2452 = vbcast.lane.b32.xlu0 %v2450, 256
        %v2453 = vpop.permute.xlu0 %2452
        %s2455 = sor.u32 256, 8
        %2456 = vbcast.lane.b32.xlu0 %v2450, %s2455
        %v2457 = vpop.permute.xlu0 %2456
        %s2459 = sor.u32 256, 16
        %2460 = vbcast.lane.b32.xlu0 %v2450, %s2459
        %v2461 = vpop.permute.xlu0 %2460
        %s2463 = sor.u32 256, 24
        %2464 = vbcast.lane.b32.xlu0 %v2450, %s2463
        %v2465 = vpop.permute.xlu0 %2464
        %s2467 = sor.u32 256, 32
        %2468 = vbcast.lane.b32.xlu0 %v2450, %s2467
        %v2469 = vpop.permute.xlu0 %2468
        %s2471 = sor.u32 256, 40
        %2472 = vbcast.lane.b32.xlu0 %v2450, %s2471
        %v2473 = vpop.permute.xlu0 %2472
        %s2475 = sor.u32 256, 48
        %2476 = vbcast.lane.b32.xlu0 %v2450, %s2475
        %v2477 = vpop.permute.xlu0 %2476
        %s2479 = sor.u32 256, 56
        %2480 = vbcast.lane.b32.xlu0 %v2450, %s2479
        %v2481 = vpop.permute.xlu0 %2480
        %s2483 = sor.u32 256, 64
        %2484 = vbcast.lane.b32.xlu0 %v2450, %s2483
        %v2485 = vpop.permute.xlu0 %2484
        %s2487 = sor.u32 256, 72
        %2488 = vbcast.lane.b32.xlu0 %v2450, %s2487
        %v2489 = vpop.permute.xlu0 %2488
        %s2491 = sor.u32 256, 80
        %2492 = vbcast.lane.b32.xlu0 %v2450, %s2491
        %v2493 = vpop.permute.xlu0 %2492
        %s2495 = sor.u32 256, 88
        %2496 = vbcast.lane.b32.xlu0 %v2450, %s2495
        %v2497 = vpop.permute.xlu0 %2496
        %s2499 = sor.u32 256, 96
        %2500 = vbcast.lane.b32.xlu0 %v2450, %s2499
        %v2501 = vpop.permute.xlu0 %2500
        %s2503 = sor.u32 256, 104
        %2504 = vbcast.lane.b32.xlu0 %v2450, %s2503
        %v2505 = vpop.permute.xlu0 %2504
        %s2507 = sor.u32 256, 112
        %2508 = vbcast.lane.b32.xlu0 %v2450, %s2507
        %v2509 = vpop.permute.xlu0 %2508
        %s2511 = sor.u32 256, 120
        %2512 = vbcast.lane.b32.xlu0 %v2450, %s2511
        %v2513 = vpop.permute.xlu0 %2512
        %v2514 = vlaneseq
        %v2515 = vshrl.u32 %v2514, 7
        %v2516 = vsub.s32 2, %v2515
        %v2517 = vrot.slane %v2373, %v2516
        %2519 = vbcast.lane.b32.xlu0 %v2517, 256
        %v2520 = vpop.permute.xlu0 %2519
        %s2522 = sor.u32 256, 8
        %2523 = vbcast.lane.b32.xlu0 %v2517, %s2522
        %v2524 = vpop.permute.xlu0 %2523
        %s2526 = sor.u32 256, 16
        %2527 = vbcast.lane.b32.xlu0 %v2517, %s2526
        %v2528 = vpop.permute.xlu0 %2527
        %s2530 = sor.u32 256, 24
        %2531 = vbcast.lane.b32.xlu0 %v2517, %s2530
        %v2532 = vpop.permute.xlu0 %2531
        %s2534 = sor.u32 256, 32
        %2535 = vbcast.lane.b32.xlu0 %v2517, %s2534
        %v2536 = vpop.permute.xlu0 %2535
        %s2538 = sor.u32 256, 40
        %2539 = vbcast.lane.b32.xlu0 %v2517, %s2538
        %v2540 = vpop.permute.xlu0 %2539
        %s2542 = sor.u32 256, 48
        %2543 = vbcast.lane.b32.xlu0 %v2517, %s2542
        %v2544 = vpop.permute.xlu0 %2543
        %s2546 = sor.u32 256, 56
        %2547 = vbcast.lane.b32.xlu0 %v2517, %s2546
        %v2548 = vpop.permute.xlu0 %2547
        %s2550 = sor.u32 256, 64
        %2551 = vbcast.lane.b32.xlu0 %v2517, %s2550
        %v2552 = vpop.permute.xlu0 %2551
        %s2554 = sor.u32 256, 72
        %2555 = vbcast.lane.b32.xlu0 %v2517, %s2554
        %v2556 = vpop.permute.xlu0 %2555
        %s2558 = sor.u32 256, 80
        %2559 = vbcast.lane.b32.xlu0 %v2517, %s2558
        %v2560 = vpop.permute.xlu0 %2559
        %s2562 = sor.u32 256, 88
        %2563 = vbcast.lane.b32.xlu0 %v2517, %s2562
        %v2564 = vpop.permute.xlu0 %2563
        %s2566 = sor.u32 256, 96
        %2567 = vbcast.lane.b32.xlu0 %v2517, %s2566
        %v2568 = vpop.permute.xlu0 %2567
        %s2570 = sor.u32 256, 104
        %2571 = vbcast.lane.b32.xlu0 %v2517, %s2570
        %v2572 = vpop.permute.xlu0 %2571
        %s2574 = sor.u32 256, 112
        %2575 = vbcast.lane.b32.xlu0 %v2517, %s2574
        %v2576 = vpop.permute.xlu0 %2575
        %s2578 = sor.u32 256, 120
        %2579 = vbcast.lane.b32.xlu0 %v2517, %s2578
        %v2580 = vpop.permute.xlu0 %2579
        %v2581 = vlaneseq
        %v2582 = vshrl.u32 %v2581, 7
        %v2583 = vsub.s32 3, %v2582
        %v2584 = vrot.slane %v2373, %v2583
        %2586 = vbcast.lane.b32.xlu0 %v2584, 256
        %v2587 = vpop.permute.xlu0 %2586
        %s2589 = sor.u32 256, 8
        %2590 = vbcast.lane.b32.xlu0 %v2584, %s2589
        %v2591 = vpop.permute.xlu0 %2590
        %s2593 = sor.u32 256, 16
        %2594 = vbcast.lane.b32.xlu0 %v2584, %s2593
        %v2595 = vpop.permute.xlu0 %2594
        %s2597 = sor.u32 256, 24
        %2598 = vbcast.lane.b32.xlu0 %v2584, %s2597
        %v2599 = vpop.permute.xlu0 %2598
        %s2601 = sor.u32 256, 32
        %2602 = vbcast.lane.b32.xlu0 %v2584, %s2601
        %v2603 = vpop.permute.xlu0 %2602
        %s2605 = sor.u32 256, 40
        %2606 = vbcast.lane.b32.xlu0 %v2584, %s2605
        %v2607 = vpop.permute.xlu0 %2606
        %s2609 = sor.u32 256, 48
        %2610 = vbcast.lane.b32.xlu0 %v2584, %s2609
        %v2611 = vpop.permute.xlu0 %2610
        %s2613 = sor.u32 256, 56
        %2614 = vbcast.lane.b32.xlu0 %v2584, %s2613
        %v2615 = vpop.permute.xlu0 %2614
        %s2617 = sor.u32 256, 64
        %2618 = vbcast.lane.b32.xlu0 %v2584, %s2617
        %v2619 = vpop.permute.xlu0 %2618
        %s2621 = sor.u32 256, 72
        %2622 = vbcast.lane.b32.xlu0 %v2584, %s2621
        %v2623 = vpop.permute.xlu0 %2622
        %s2625 = sor.u32 256, 80
        %2626 = vbcast.lane.b32.xlu0 %v2584, %s2625
        %v2627 = vpop.permute.xlu0 %2626
        %s2629 = sor.u32 256, 88
        %2630 = vbcast.lane.b32.xlu0 %v2584, %s2629
        %v2631 = vpop.permute.xlu0 %2630
        %s2633 = sor.u32 256, 96
        %2634 = vbcast.lane.b32.xlu0 %v2584, %s2633
        %v2635 = vpop.permute.xlu0 %2634
        %s2637 = sor.u32 256, 104
        %2638 = vbcast.lane.b32.xlu0 %v2584, %s2637
        %v2639 = vpop.permute.xlu0 %2638
        %s2641 = sor.u32 256, 112
        %2642 = vbcast.lane.b32.xlu0 %v2584, %s2641
        %v2643 = vpop.permute.xlu0 %2642
        %s2645 = sor.u32 256, 120
        %2646 = vbcast.lane.b32.xlu0 %v2584, %s2645
        %v2647 = vpop.permute.xlu0 %2646
        %v2649 = vunpack.c.l.s4 1966171168
        %v2650 = vunpack.c.0.s8 %v2649
        %v2651 = vlaneseq
        %v2652 = vshrl.u32 %v2651, 7
        %v2653 = vsub.s32 %v2650, %v2652
        %v2654 = vrot.slane %v2204, %v2653
        %v2655 = vcombine.high %v2654, %v2654
        %v2657 = vunpack.c.l.s4 1966171168
        %v2658 = vunpack.c.0.s8 %v2657
        %v2659 = vlaneseq
        %v2660 = vshrl.u32 %v2659, 7
        %v2661 = vsub.s32 %v2658, %v2660
        %v2662 = vrot.slane %v2654, %v2661
        %v2664 = vunpack.c.l.s4 1966171168
        %v2665 = vunpack.c.0.s8 %v2664
        %v2666 = vlaneseq
        %v2667 = vshrl.u32 %v2666, 7
        %v2668 = vsub.s32 %v2665, %v2667
        %v2669 = vrot.slane %v2655, %v2668
        %v2670 = vcombine.high %v2662, %v2662
        %v2671 = vcombine.high %v2669, %v2669
        %v2672 = vlaneseq
        %v2673 = vshrl.u32 %v2672, 7
        %v2674 = vsub.s32 0, %v2673
        %v2675 = vrot.slane %v2662, %v2674
        %v2676 = vlaneseq
        %v2677 = vshrl.u32 %v2676, 7
        %v2678 = vsub.s32 1, %v2677
        %v2679 = vrot.slane %v2662, %v2678
        %v2680 = vlaneseq
        %v2681 = vshrl.u32 %v2680, 7
        %v2682 = vsub.s32 0, %v2681
        %v2683 = vrot.slane %v2669, %v2682
        %v2684 = vlaneseq
        %v2685 = vshrl.u32 %v2684, 7
        %v2686 = vsub.s32 1, %v2685
        %v2687 = vrot.slane %v2669, %v2686
        %v2688 = vlaneseq
        %v2689 = vshrl.u32 %v2688, 7
        %v2690 = vsub.s32 0, %v2689
        %v2691 = vrot.slane %v2670, %v2690
        %v2692 = vlaneseq
        %v2693 = vshrl.u32 %v2692, 7
        %v2694 = vsub.s32 1, %v2693
        %v2695 = vrot.slane %v2670, %v2694
        %v2696 = vlaneseq
        %v2697 = vshrl.u32 %v2696, 7
        %v2698 = vsub.s32 0, %v2697
        %v2699 = vrot.slane %v2671, %v2698
        %v2700 = vlaneseq
        %v2701 = vshrl.u32 %v2700, 7
        %v2702 = vsub.s32 1, %v2701
        %v2703 = vrot.slane %v2671, %v2702
        %v2712 = vmul.f32 %v2386, %v2675
        %v2713 = vmul.f32 %v2386, %v2679
        %v2714 = vmul.f32 %v2390, %v2675
        %v2715 = vmul.f32 %v2390, %v2679
        %v2716 = vmul.f32 %v2394, %v2675
        %v2717 = vmul.f32 %v2394, %v2679
        %v2718 = vmul.f32 %v2398, %v2675
        %v2719 = vmul.f32 %v2398, %v2679
        %v2720 = vmul.f32 %v2402, %v2675
        %v2721 = vmul.f32 %v2402, %v2679
        %v2722 = vmul.f32 %v2406, %v2675
        %v2723 = vmul.f32 %v2406, %v2679
        %v2724 = vmul.f32 %v2410, %v2675
        %v2725 = vmul.f32 %v2410, %v2679
        %v2726 = vmul.f32 %v2414, %v2675
        %v2727 = vmul.f32 %v2414, %v2679
        %v2728 = vmul.f32 %v2418, %v2675
        %v2729 = vmul.f32 %v2418, %v2679
        %v2730 = vmul.f32 %v2422, %v2675
        %v2731 = vmul.f32 %v2422, %v2679
        %v2732 = vmul.f32 %v2426, %v2675
        %v2733 = vmul.f32 %v2426, %v2679
        %v2734 = vmul.f32 %v2430, %v2675
        %v2735 = vmul.f32 %v2430, %v2679
        %v2736 = vmul.f32 %v2434, %v2675
        %v2737 = vmul.f32 %v2434, %v2679
        %v2738 = vmul.f32 %v2438, %v2675
        %v2739 = vmul.f32 %v2438, %v2679
        %v2740 = vmul.f32 %v2442, %v2675
        %v2741 = vmul.f32 %v2442, %v2679
        %v2742 = vmul.f32 %v2446, %v2675
        %v2743 = vmul.f32 %v2446, %v2679
        %v2744 = vmul.f32 %v2453, %v2683
        %v2745 = vmul.f32 %v2453, %v2687
        %v2746 = vmul.f32 %v2457, %v2683
        %v2747 = vmul.f32 %v2457, %v2687
        %v2748 = vmul.f32 %v2461, %v2683
        %v2749 = vmul.f32 %v2461, %v2687
        %v2750 = vmul.f32 %v2465, %v2683
        %v2751 = vmul.f32 %v2465, %v2687
        %v2752 = vmul.f32 %v2469, %v2683
        %v2753 = vmul.f32 %v2469, %v2687
        %v2754 = vmul.f32 %v2473, %v2683
        %v2755 = vmul.f32 %v2473, %v2687
        %v2756 = vmul.f32 %v2477, %v2683
        %v2757 = vmul.f32 %v2477, %v2687
        %v2758 = vmul.f32 %v2481, %v2683
        %v2759 = vmul.f32 %v2481, %v2687
        %v2760 = vmul.f32 %v2485, %v2683
        %v2761 = vmul.f32 %v2485, %v2687
        %v2762 = vmul.f32 %v2489, %v2683
        %v2763 = vmul.f32 %v2489, %v2687
        %v2764 = vmul.f32 %v2493, %v2683
        %v2765 = vmul.f32 %v2493, %v2687
        %v2766 = vmul.f32 %v2497, %v2683
        %v2767 = vmul.f32 %v2497, %v2687
        %v2768 = vmul.f32 %v2501, %v2683
        %v2769 = vmul.f32 %v2501, %v2687
        %v2770 = vmul.f32 %v2505, %v2683
        %v2771 = vmul.f32 %v2505, %v2687
        %v2772 = vmul.f32 %v2509, %v2683
        %v2773 = vmul.f32 %v2509, %v2687
        %v2774 = vmul.f32 %v2513, %v2683
        %v2775 = vmul.f32 %v2513, %v2687
        %v2776 = vmul.f32 %v2520, %v2691
        %v2777 = vmul.f32 %v2520, %v2695
        %v2778 = vmul.f32 %v2524, %v2691
        %v2779 = vmul.f32 %v2524, %v2695
        %v2780 = vmul.f32 %v2528, %v2691
        %v2781 = vmul.f32 %v2528, %v2695
        %v2782 = vmul.f32 %v2532, %v2691
        %v2783 = vmul.f32 %v2532, %v2695
        %v2784 = vmul.f32 %v2536, %v2691
        %v2785 = vmul.f32 %v2536, %v2695
        %v2786 = vmul.f32 %v2540, %v2691
        %v2787 = vmul.f32 %v2540, %v2695
        %v2788 = vmul.f32 %v2544, %v2691
        %v2789 = vmul.f32 %v2544, %v2695
        %v2790 = vmul.f32 %v2548, %v2691
        %v2791 = vmul.f32 %v2548, %v2695
        %v2792 = vmul.f32 %v2552, %v2691
        %v2793 = vmul.f32 %v2552, %v2695
        %v2794 = vmul.f32 %v2556, %v2691
        %v2795 = vmul.f32 %v2556, %v2695
        %v2796 = vmul.f32 %v2560, %v2691
        %v2797 = vmul.f32 %v2560, %v2695
        %v2798 = vmul.f32 %v2564, %v2691
        %v2799 = vmul.f32 %v2564, %v2695
        %v2800 = vmul.f32 %v2568, %v2691
        %v2801 = vmul.f32 %v2568, %v2695
        %v2802 = vmul.f32 %v2572, %v2691
        %v2803 = vmul.f32 %v2572, %v2695
        %v2804 = vmul.f32 %v2576, %v2691
        %v2805 = vmul.f32 %v2576, %v2695
        %v2806 = vmul.f32 %v2580, %v2691
        %v2807 = vmul.f32 %v2580, %v2695
        %v2808 = vmul.f32 %v2587, %v2699
        %v2809 = vmul.f32 %v2587, %v2703
        %v2810 = vmul.f32 %v2591, %v2699
        %v2811 = vmul.f32 %v2591, %v2703
        %v2812 = vmul.f32 %v2595, %v2699
        %v2813 = vmul.f32 %v2595, %v2703
        %v2814 = vmul.f32 %v2599, %v2699
        %v2815 = vmul.f32 %v2599, %v2703
        %v2816 = vmul.f32 %v2603, %v2699
        %v2817 = vmul.f32 %v2603, %v2703
        %v2818 = vmul.f32 %v2607, %v2699
        %v2819 = vmul.f32 %v2607, %v2703
        %v2820 = vmul.f32 %v2611, %v2699
        %v2821 = vmul.f32 %v2611, %v2703
        %v2822 = vmul.f32 %v2615, %v2699
        %v2823 = vmul.f32 %v2615, %v2703
        %v2824 = vmul.f32 %v2619, %v2699
        %v2825 = vmul.f32 %v2619, %v2703
        %v2826 = vmul.f32 %v2623, %v2699
        %v2827 = vmul.f32 %v2623, %v2703
        %v2828 = vmul.f32 %v2627, %v2699
        %v2829 = vmul.f32 %v2627, %v2703
        %v2830 = vmul.f32 %v2631, %v2699
        %v2831 = vmul.f32 %v2631, %v2703
        %v2832 = vmul.f32 %v2635, %v2699
        %v2833 = vmul.f32 %v2635, %v2703
        %v2834 = vmul.f32 %v2639, %v2699
        %v2835 = vmul.f32 %v2639, %v2703
        %v2836 = vmul.f32 %v2643, %v2699
        %v2837 = vmul.f32 %v2643, %v2703
        %v2838 = vmul.f32 %v2647, %v2699
        %v2839 = vmul.f32 %v2647, %v2703
        %v2841 = vlaneseq
        %v2842 = vshrl.u32 %v2841, 7
        %v2843 = vsub.s32 0, %v2842
        %v2844 = vrot.slane %v232, %v2843
        %v2845 = vlaneseq
        %v2846 = vshrl.u32 %v2845, 7
        %v2847 = vsub.s32 1, %v2846
        %v2848 = vrot.slane %v232, %v2847
        %v2851 = vadd.f32 %v2712, %v2844
        %v2852 = vadd.f32 %v2713, %v2848
        %v2853 = vadd.f32 %v2714, %v2844
        %v2854 = vadd.f32 %v2715, %v2848
        %v2855 = vadd.f32 %v2716, %v2844
        %v2856 = vadd.f32 %v2717, %v2848
        %v2857 = vadd.f32 %v2718, %v2844
        %v2858 = vadd.f32 %v2719, %v2848
        %v2859 = vadd.f32 %v2720, %v2844
        %v2860 = vadd.f32 %v2721, %v2848
        %v2861 = vadd.f32 %v2722, %v2844
        %v2862 = vadd.f32 %v2723, %v2848
        %v2863 = vadd.f32 %v2724, %v2844
        %v2864 = vadd.f32 %v2725, %v2848
        %v2865 = vadd.f32 %v2726, %v2844
        %v2866 = vadd.f32 %v2727, %v2848
        %v2867 = vadd.f32 %v2728, %v2844
        %v2868 = vadd.f32 %v2729, %v2848
        %v2869 = vadd.f32 %v2730, %v2844
        %v2870 = vadd.f32 %v2731, %v2848
        %v2871 = vadd.f32 %v2732, %v2844
        %v2872 = vadd.f32 %v2733, %v2848
        %v2873 = vadd.f32 %v2734, %v2844
        %v2874 = vadd.f32 %v2735, %v2848
        %v2875 = vadd.f32 %v2736, %v2844
        %v2876 = vadd.f32 %v2737, %v2848
        %v2877 = vadd.f32 %v2738, %v2844
        %v2878 = vadd.f32 %v2739, %v2848
        %v2879 = vadd.f32 %v2740, %v2844
        %v2880 = vadd.f32 %v2741, %v2848
        %v2881 = vadd.f32 %v2742, %v2844
        %v2882 = vadd.f32 %v2743, %v2848
        %v2883 = vadd.f32 %v2744, %v2844
        %v2884 = vadd.f32 %v2745, %v2848
        %v2885 = vadd.f32 %v2746, %v2844
        %v2886 = vadd.f32 %v2747, %v2848
        %v2887 = vadd.f32 %v2748, %v2844
        %v2888 = vadd.f32 %v2749, %v2848
        %v2889 = vadd.f32 %v2750, %v2844
        %v2890 = vadd.f32 %v2751, %v2848
        %v2891 = vadd.f32 %v2752, %v2844
        %v2892 = vadd.f32 %v2753, %v2848
        %v2893 = vadd.f32 %v2754, %v2844
        %v2894 = vadd.f32 %v2755, %v2848
        %v2895 = vadd.f32 %v2756, %v2844
        %v2896 = vadd.f32 %v2757, %v2848
        %v2897 = vadd.f32 %v2758, %v2844
        %v2898 = vadd.f32 %v2759, %v2848
        %v2899 = vadd.f32 %v2760, %v2844
        %v2900 = vadd.f32 %v2761, %v2848
        %v2901 = vadd.f32 %v2762, %v2844
        %v2902 = vadd.f32 %v2763, %v2848
        %v2903 = vadd.f32 %v2764, %v2844
        %v2904 = vadd.f32 %v2765, %v2848
        %v2905 = vadd.f32 %v2766, %v2844
        %v2906 = vadd.f32 %v2767, %v2848
        %v2907 = vadd.f32 %v2768, %v2844
        %v2908 = vadd.f32 %v2769, %v2848
        %v2909 = vadd.f32 %v2770, %v2844
        %v2910 = vadd.f32 %v2771, %v2848
        %v2911 = vadd.f32 %v2772, %v2844
        %v2912 = vadd.f32 %v2773, %v2848
        %v2913 = vadd.f32 %v2774, %v2844
        %v2914 = vadd.f32 %v2775, %v2848
        %v2915 = vadd.f32 %v2776, %v2844
        %v2916 = vadd.f32 %v2777, %v2848
        %v2917 = vadd.f32 %v2778, %v2844
        %v2918 = vadd.f32 %v2779, %v2848
        %v2919 = vadd.f32 %v2780, %v2844
        %v2920 = vadd.f32 %v2781, %v2848
        %v2921 = vadd.f32 %v2782, %v2844
        %v2922 = vadd.f32 %v2783, %v2848
        %v2923 = vadd.f32 %v2784, %v2844
        %v2924 = vadd.f32 %v2785, %v2848
        %v2925 = vadd.f32 %v2786, %v2844
        %v2926 = vadd.f32 %v2787, %v2848
        %v2927 = vadd.f32 %v2788, %v2844
        %v2928 = vadd.f32 %v2789, %v2848
        %v2929 = vadd.f32 %v2790, %v2844
        %v2930 = vadd.f32 %v2791, %v2848
        %v2931 = vadd.f32 %v2792, %v2844
        %v2932 = vadd.f32 %v2793, %v2848
        %v2933 = vadd.f32 %v2794, %v2844
        %v2934 = vadd.f32 %v2795, %v2848
        %v2935 = vadd.f32 %v2796, %v2844
        %v2936 = vadd.f32 %v2797, %v2848
        %v2937 = vadd.f32 %v2798, %v2844
        %v2938 = vadd.f32 %v2799, %v2848
        %v2939 = vadd.f32 %v2800, %v2844
        %v2940 = vadd.f32 %v2801, %v2848
        %v2941 = vadd.f32 %v2802, %v2844
        %v2942 = vadd.f32 %v2803, %v2848
        %v2943 = vadd.f32 %v2804, %v2844
        %v2944 = vadd.f32 %v2805, %v2848
        %v2945 = vadd.f32 %v2806, %v2844
        %v2946 = vadd.f32 %v2807, %v2848
        %v2947 = vadd.f32 %v2808, %v2844
        %v2948 = vadd.f32 %v2809, %v2848
        %v2949 = vadd.f32 %v2810, %v2844
        %v2950 = vadd.f32 %v2811, %v2848
        %v2951 = vadd.f32 %v2812, %v2844
        %v2952 = vadd.f32 %v2813, %v2848
        %v2953 = vadd.f32 %v2814, %v2844
        %v2954 = vadd.f32 %v2815, %v2848
        %v2955 = vadd.f32 %v2816, %v2844
        %v2956 = vadd.f32 %v2817, %v2848
        %v2957 = vadd.f32 %v2818, %v2844
        %v2958 = vadd.f32 %v2819, %v2848
        %v2959 = vadd.f32 %v2820, %v2844
        %v2960 = vadd.f32 %v2821, %v2848
        %v2961 = vadd.f32 %v2822, %v2844
        %v2962 = vadd.f32 %v2823, %v2848
        %v2963 = vadd.f32 %v2824, %v2844
        %v2964 = vadd.f32 %v2825, %v2848
        %v2965 = vadd.f32 %v2826, %v2844
        %v2966 = vadd.f32 %v2827, %v2848
        %v2967 = vadd.f32 %v2828, %v2844
        %v2968 = vadd.f32 %v2829, %v2848
        %v2969 = vadd.f32 %v2830, %v2844
        %v2970 = vadd.f32 %v2831, %v2848
        %v2971 = vadd.f32 %v2832, %v2844
        %v2972 = vadd.f32 %v2833, %v2848
        %v2973 = vadd.f32 %v2834, %v2844
        %v2974 = vadd.f32 %v2835, %v2848
        %v2975 = vadd.f32 %v2836, %v2844
        %v2976 = vadd.f32 %v2837, %v2848
        %v2977 = vadd.f32 %v2838, %v2844
        %v2978 = vadd.f32 %v2839, %v2848
        %v2979 = vlaneseq
        %v2980 = vshrl.u32 %v2979, 7
        %v2981 = vsub.s32 0, %v2980
        %v2982 = vrot.slane %v2376, %v2981
        %2984 = vbcast.lane.b32.xlu0 %v2982, 256
        %v2985 = vpop.permute.xlu0 %2984
        %s2987 = sor.u32 256, 8
        %2988 = vbcast.lane.b32.xlu0 %v2982, %s2987
        %v2989 = vpop.permute.xlu0 %2988
        %s2991 = sor.u32 256, 16
        %2992 = vbcast.lane.b32.xlu0 %v2982, %s2991
        %v2993 = vpop.permute.xlu0 %2992
        %s2995 = sor.u32 256, 24
        %2996 = vbcast.lane.b32.xlu0 %v2982, %s2995
        %v2997 = vpop.permute.xlu0 %2996
        %s2999 = sor.u32 256, 32
        %3000 = vbcast.lane.b32.xlu0 %v2982, %s2999
        %v3001 = vpop.permute.xlu0 %3000
        %s3003 = sor.u32 256, 40
        %3004 = vbcast.lane.b32.xlu0 %v2982, %s3003
        %v3005 = vpop.permute.xlu0 %3004
        %s3007 = sor.u32 256, 48
        %3008 = vbcast.lane.b32.xlu0 %v2982, %s3007
        %v3009 = vpop.permute.xlu0 %3008
        %s3011 = sor.u32 256, 56
        %3012 = vbcast.lane.b32.xlu0 %v2982, %s3011
        %v3013 = vpop.permute.xlu0 %3012
        %s3015 = sor.u32 256, 64
        %3016 = vbcast.lane.b32.xlu0 %v2982, %s3015
        %v3017 = vpop.permute.xlu0 %3016
        %s3019 = sor.u32 256, 72
        %3020 = vbcast.lane.b32.xlu0 %v2982, %s3019
        %v3021 = vpop.permute.xlu0 %3020
        %s3023 = sor.u32 256, 80
        %3024 = vbcast.lane.b32.xlu0 %v2982, %s3023
        %v3025 = vpop.permute.xlu0 %3024
        %s3027 = sor.u32 256, 88
        %3028 = vbcast.lane.b32.xlu0 %v2982, %s3027
        %v3029 = vpop.permute.xlu0 %3028
        %s3031 = sor.u32 256, 96
        %3032 = vbcast.lane.b32.xlu0 %v2982, %s3031
        %v3033 = vpop.permute.xlu0 %3032
        %s3035 = sor.u32 256, 104
        %3036 = vbcast.lane.b32.xlu0 %v2982, %s3035
        %v3037 = vpop.permute.xlu0 %3036
        %s3039 = sor.u32 256, 112
        %3040 = vbcast.lane.b32.xlu0 %v2982, %s3039
        %v3041 = vpop.permute.xlu0 %3040
        %s3043 = sor.u32 256, 120
        %3044 = vbcast.lane.b32.xlu0 %v2982, %s3043
        %v3045 = vpop.permute.xlu0 %3044
        %v3046 = vlaneseq
        %v3047 = vshrl.u32 %v3046, 7
        %v3048 = vsub.s32 1, %v3047
        %v3049 = vrot.slane %v2376, %v3048
        %3051 = vbcast.lane.b32.xlu0 %v3049, 256
        %v3052 = vpop.permute.xlu0 %3051
        %s3054 = sor.u32 256, 8
        %3055 = vbcast.lane.b32.xlu0 %v3049, %s3054
        %v3056 = vpop.permute.xlu0 %3055
        %s3058 = sor.u32 256, 16
        %3059 = vbcast.lane.b32.xlu0 %v3049, %s3058
        %v3060 = vpop.permute.xlu0 %3059
        %s3062 = sor.u32 256, 24
        %3063 = vbcast.lane.b32.xlu0 %v3049, %s3062
        %v3064 = vpop.permute.xlu0 %3063
        %s3066 = sor.u32 256, 32
        %3067 = vbcast.lane.b32.xlu0 %v3049, %s3066
        %v3068 = vpop.permute.xlu0 %3067
        %s3070 = sor.u32 256, 40
        %3071 = vbcast.lane.b32.xlu0 %v3049, %s3070
        %v3072 = vpop.permute.xlu0 %3071
        %s3074 = sor.u32 256, 48
        %3075 = vbcast.lane.b32.xlu0 %v3049, %s3074
        %v3076 = vpop.permute.xlu0 %3075
        %s3078 = sor.u32 256, 56
        %3079 = vbcast.lane.b32.xlu0 %v3049, %s3078
        %v3080 = vpop.permute.xlu0 %3079
        %s3082 = sor.u32 256, 64
        %3083 = vbcast.lane.b32.xlu0 %v3049, %s3082
        %v3084 = vpop.permute.xlu0 %3083
        %s3086 = sor.u32 256, 72
        %3087 = vbcast.lane.b32.xlu0 %v3049, %s3086
        %v3088 = vpop.permute.xlu0 %3087
        %s3090 = sor.u32 256, 80
        %3091 = vbcast.lane.b32.xlu0 %v3049, %s3090
        %v3092 = vpop.permute.xlu0 %3091
        %s3094 = sor.u32 256, 88
        %3095 = vbcast.lane.b32.xlu0 %v3049, %s3094
        %v3096 = vpop.permute.xlu0 %3095
        %s3098 = sor.u32 256, 96
        %3099 = vbcast.lane.b32.xlu0 %v3049, %s3098
        %v3100 = vpop.permute.xlu0 %3099
        %s3102 = sor.u32 256, 104
        %3103 = vbcast.lane.b32.xlu0 %v3049, %s3102
        %v3104 = vpop.permute.xlu0 %3103
        %s3106 = sor.u32 256, 112
        %3107 = vbcast.lane.b32.xlu0 %v3049, %s3106
        %v3108 = vpop.permute.xlu0 %3107
        %s3110 = sor.u32 256, 120
        %3111 = vbcast.lane.b32.xlu0 %v3049, %s3110
        %v3112 = vpop.permute.xlu0 %3111
        %v3113 = vlaneseq
        %v3114 = vshrl.u32 %v3113, 7
        %v3115 = vsub.s32 2, %v3114
        %v3116 = vrot.slane %v2376, %v3115
        %3118 = vbcast.lane.b32.xlu0 %v3116, 256
        %v3119 = vpop.permute.xlu0 %3118
        %s3121 = sor.u32 256, 8
        %3122 = vbcast.lane.b32.xlu0 %v3116, %s3121
        %v3123 = vpop.permute.xlu0 %3122
        %s3125 = sor.u32 256, 16
        %3126 = vbcast.lane.b32.xlu0 %v3116, %s3125
        %v3127 = vpop.permute.xlu0 %3126
        %s3129 = sor.u32 256, 24
        %3130 = vbcast.lane.b32.xlu0 %v3116, %s3129
        %v3131 = vpop.permute.xlu0 %3130
        %s3133 = sor.u32 256, 32
        %3134 = vbcast.lane.b32.xlu0 %v3116, %s3133
        %v3135 = vpop.permute.xlu0 %3134
        %s3137 = sor.u32 256, 40
        %3138 = vbcast.lane.b32.xlu0 %v3116, %s3137
        %v3139 = vpop.permute.xlu0 %3138
        %s3141 = sor.u32 256, 48
        %3142 = vbcast.lane.b32.xlu0 %v3116, %s3141
        %v3143 = vpop.permute.xlu0 %3142
        %s3145 = sor.u32 256, 56
        %3146 = vbcast.lane.b32.xlu0 %v3116, %s3145
        %v3147 = vpop.permute.xlu0 %3146
        %s3149 = sor.u32 256, 64
        %3150 = vbcast.lane.b32.xlu0 %v3116, %s3149
        %v3151 = vpop.permute.xlu0 %3150
        %s3153 = sor.u32 256, 72
        %3154 = vbcast.lane.b32.xlu0 %v3116, %s3153
        %v3155 = vpop.permute.xlu0 %3154
        %s3157 = sor.u32 256, 80
        %3158 = vbcast.lane.b32.xlu0 %v3116, %s3157
        %v3159 = vpop.permute.xlu0 %3158
        %s3161 = sor.u32 256, 88
        %3162 = vbcast.lane.b32.xlu0 %v3116, %s3161
        %v3163 = vpop.permute.xlu0 %3162
        %s3165 = sor.u32 256, 96
        %3166 = vbcast.lane.b32.xlu0 %v3116, %s3165
        %v3167 = vpop.permute.xlu0 %3166
        %s3169 = sor.u32 256, 104
        %3170 = vbcast.lane.b32.xlu0 %v3116, %s3169
        %v3171 = vpop.permute.xlu0 %3170
        %s3173 = sor.u32 256, 112
        %3174 = vbcast.lane.b32.xlu0 %v3116, %s3173
        %v3175 = vpop.permute.xlu0 %3174
        %s3177 = sor.u32 256, 120
        %3178 = vbcast.lane.b32.xlu0 %v3116, %s3177
        %v3179 = vpop.permute.xlu0 %3178
        %v3180 = vlaneseq
        %v3181 = vshrl.u32 %v3180, 7
        %v3182 = vsub.s32 3, %v3181
        %v3183 = vrot.slane %v2376, %v3182
        %3185 = vbcast.lane.b32.xlu0 %v3183, 256
        %v3186 = vpop.permute.xlu0 %3185
        %s3188 = sor.u32 256, 8
        %3189 = vbcast.lane.b32.xlu0 %v3183, %s3188
        %v3190 = vpop.permute.xlu0 %3189
        %s3192 = sor.u32 256, 16
        %3193 = vbcast.lane.b32.xlu0 %v3183, %s3192
        %v3194 = vpop.permute.xlu0 %3193
        %s3196 = sor.u32 256, 24
        %3197 = vbcast.lane.b32.xlu0 %v3183, %s3196
        %v3198 = vpop.permute.xlu0 %3197
        %s3200 = sor.u32 256, 32
        %3201 = vbcast.lane.b32.xlu0 %v3183, %s3200
        %v3202 = vpop.permute.xlu0 %3201
        %s3204 = sor.u32 256, 40
        %3205 = vbcast.lane.b32.xlu0 %v3183, %s3204
        %v3206 = vpop.permute.xlu0 %3205
        %s3208 = sor.u32 256, 48
        %3209 = vbcast.lane.b32.xlu0 %v3183, %s3208
        %v3210 = vpop.permute.xlu0 %3209
        %s3212 = sor.u32 256, 56
        %3213 = vbcast.lane.b32.xlu0 %v3183, %s3212
        %v3214 = vpop.permute.xlu0 %3213
        %s3216 = sor.u32 256, 64
        %3217 = vbcast.lane.b32.xlu0 %v3183, %s3216
        %v3218 = vpop.permute.xlu0 %3217
        %s3220 = sor.u32 256, 72
        %3221 = vbcast.lane.b32.xlu0 %v3183, %s3220
        %v3222 = vpop.permute.xlu0 %3221
        %s3224 = sor.u32 256, 80
        %3225 = vbcast.lane.b32.xlu0 %v3183, %s3224
        %v3226 = vpop.permute.xlu0 %3225
        %s3228 = sor.u32 256, 88
        %3229 = vbcast.lane.b32.xlu0 %v3183, %s3228
        %v3230 = vpop.permute.xlu0 %3229
        %s3232 = sor.u32 256, 96
        %3233 = vbcast.lane.b32.xlu0 %v3183, %s3232
        %v3234 = vpop.permute.xlu0 %3233
        %s3236 = sor.u32 256, 104
        %3237 = vbcast.lane.b32.xlu0 %v3183, %s3236
        %v3238 = vpop.permute.xlu0 %3237
        %s3240 = sor.u32 256, 112
        %3241 = vbcast.lane.b32.xlu0 %v3183, %s3240
        %v3242 = vpop.permute.xlu0 %3241
        %s3244 = sor.u32 256, 120
        %3245 = vbcast.lane.b32.xlu0 %v3183, %s3244
        %v3246 = vpop.permute.xlu0 %3245
        %v3247 = vsub.f32 %v2851, %v2985
        %v3248 = vsub.f32 %v2852, %v2985
        %v3249 = vsub.f32 %v2853, %v2989
        %v3250 = vsub.f32 %v2854, %v2989
        %v3251 = vsub.f32 %v2855, %v2993
        %v3252 = vsub.f32 %v2856, %v2993
        %v3253 = vsub.f32 %v2857, %v2997
        %v3254 = vsub.f32 %v2858, %v2997
        %v3255 = vsub.f32 %v2859, %v3001
        %v3256 = vsub.f32 %v2860, %v3001
        %v3257 = vsub.f32 %v2861, %v3005
        %v3258 = vsub.f32 %v2862, %v3005
        %v3259 = vsub.f32 %v2863, %v3009
        %v3260 = vsub.f32 %v2864, %v3009
        %v3261 = vsub.f32 %v2865, %v3013
        %v3262 = vsub.f32 %v2866, %v3013
        %v3263 = vsub.f32 %v2867, %v3017
        %v3264 = vsub.f32 %v2868, %v3017
        %v3265 = vsub.f32 %v2869, %v3021
        %v3266 = vsub.f32 %v2870, %v3021
        %v3267 = vsub.f32 %v2871, %v3025
        %v3268 = vsub.f32 %v2872, %v3025
        %v3269 = vsub.f32 %v2873, %v3029
        %v3270 = vsub.f32 %v2874, %v3029
        %v3271 = vsub.f32 %v2875, %v3033
        %v3272 = vsub.f32 %v2876, %v3033
        %v3273 = vsub.f32 %v2877, %v3037
        %v3274 = vsub.f32 %v2878, %v3037
        %v3275 = vsub.f32 %v2879, %v3041
        %v3276 = vsub.f32 %v2880, %v3041
        %v3277 = vsub.f32 %v2881, %v3045
        %v3278 = vsub.f32 %v2882, %v3045
        %v3279 = vsub.f32 %v2883, %v3052
        %v3280 = vsub.f32 %v2884, %v3052
        %v3281 = vsub.f32 %v2885, %v3056
        %v3282 = vsub.f32 %v2886, %v3056
        %v3283 = vsub.f32 %v2887, %v3060
        %v3284 = vsub.f32 %v2888, %v3060
        %v3285 = vsub.f32 %v2889, %v3064
        %v3286 = vsub.f32 %v2890, %v3064
        %v3287 = vsub.f32 %v2891, %v3068
        %v3288 = vsub.f32 %v2892, %v3068
        %v3289 = vsub.f32 %v2893, %v3072
        %v3290 = vsub.f32 %v2894, %v3072
        %v3291 = vsub.f32 %v2895, %v3076
        %v3292 = vsub.f32 %v2896, %v3076
        %v3293 = vsub.f32 %v2897, %v3080
        %v3294 = vsub.f32 %v2898, %v3080
        %v3295 = vsub.f32 %v2899, %v3084
        %v3296 = vsub.f32 %v2900, %v3084
        %v3297 = vsub.f32 %v2901, %v3088
        %v3298 = vsub.f32 %v2902, %v3088
        %v3299 = vsub.f32 %v2903, %v3092
        %v3300 = vsub.f32 %v2904, %v3092
        %v3301 = vsub.f32 %v2905, %v3096
        %v3302 = vsub.f32 %v2906, %v3096
        %v3303 = vsub.f32 %v2907, %v3100
        %v3304 = vsub.f32 %v2908, %v3100
        %v3305 = vsub.f32 %v2909, %v3104
        %v3306 = vsub.f32 %v2910, %v3104
        %v3307 = vsub.f32 %v2911, %v3108
        %v3308 = vsub.f32 %v2912, %v3108
        %v3309 = vsub.f32 %v2913, %v3112
        %v3310 = vsub.f32 %v2914, %v3112
        %v3311 = vsub.f32 %v2915, %v3119
        %v3312 = vsub.f32 %v2916, %v3119
        %v3313 = vsub.f32 %v2917, %v3123
        %v3314 = vsub.f32 %v2918, %v3123
        %v3315 = vsub.f32 %v2919, %v3127
        %v3316 = vsub.f32 %v2920, %v3127
        %v3317 = vsub.f32 %v2921, %v3131
        %v3318 = vsub.f32 %v2922, %v3131
        %v3319 = vsub.f32 %v2923, %v3135
        %v3320 = vsub.f32 %v2924, %v3135
        %v3321 = vsub.f32 %v2925, %v3139
        %v3322 = vsub.f32 %v2926, %v3139
        %v3323 = vsub.f32 %v2927, %v3143
        %v3324 = vsub.f32 %v2928, %v3143
        %v3325 = vsub.f32 %v2929, %v3147
        %v3326 = vsub.f32 %v2930, %v3147
        %v3327 = vsub.f32 %v2931, %v3151
        %v3328 = vsub.f32 %v2932, %v3151
        %v3329 = vsub.f32 %v2933, %v3155
        %v3330 = vsub.f32 %v2934, %v3155
        %v3331 = vsub.f32 %v2935, %v3159
        %v3332 = vsub.f32 %v2936, %v3159
        %v3333 = vsub.f32 %v2937, %v3163
        %v3334 = vsub.f32 %v2938, %v3163
        %v3335 = vsub.f32 %v2939, %v3167
        %v3336 = vsub.f32 %v2940, %v3167
        %v3337 = vsub.f32 %v2941, %v3171
        %v3338 = vsub.f32 %v2942, %v3171
        %v3339 = vsub.f32 %v2943, %v3175
        %v3340 = vsub.f32 %v2944, %v3175
        %v3341 = vsub.f32 %v2945, %v3179
        %v3342 = vsub.f32 %v2946, %v3179
        %v3343 = vsub.f32 %v2947, %v3186
        %v3344 = vsub.f32 %v2948, %v3186
        %v3345 = vsub.f32 %v2949, %v3190
        %v3346 = vsub.f32 %v2950, %v3190
        %v3347 = vsub.f32 %v2951, %v3194
        %v3348 = vsub.f32 %v2952, %v3194
        %v3349 = vsub.f32 %v2953, %v3198
        %v3350 = vsub.f32 %v2954, %v3198
        %v3351 = vsub.f32 %v2955, %v3202
        %v3352 = vsub.f32 %v2956, %v3202
        %v3353 = vsub.f32 %v2957, %v3206
        %v3354 = vsub.f32 %v2958, %v3206
        %v3355 = vsub.f32 %v2959, %v3210
        %v3356 = vsub.f32 %v2960, %v3210
        %v3357 = vsub.f32 %v2961, %v3214
        %v3358 = vsub.f32 %v2962, %v3214
        %v3359 = vsub.f32 %v2963, %v3218
        %v3360 = vsub.f32 %v2964, %v3218
        %v3361 = vsub.f32 %v2965, %v3222
        %v3362 = vsub.f32 %v2966, %v3222
        %v3363 = vsub.f32 %v2967, %v3226
        %v3364 = vsub.f32 %v2968, %v3226
        %v3365 = vsub.f32 %v2969, %v3230
        %v3366 = vsub.f32 %v2970, %v3230
        %v3367 = vsub.f32 %v2971, %v3234
        %v3368 = vsub.f32 %v2972, %v3234
        %v3369 = vsub.f32 %v2973, %v3238
        %v3370 = vsub.f32 %v2974, %v3238
        %v3371 = vsub.f32 %v2975, %v3242
        %v3372 = vsub.f32 %v2976, %v3242
        %v3373 = vsub.f32 %v2977, %v3246
        %v3374 = vsub.f32 %v2978, %v3246
        %v3375 = vmul.f32 %v3247, 1.442695
        %v3376 = vpow.pop %v3375
        %v3377 = vmul.f32 %v3248, 1.442695
        %v3378 = vpow.pop %v3377
        %v3379 = vmul.f32 %v3249, 1.442695
        %v3380 = vpow.pop %v3379
        %v3381 = vmul.f32 %v3250, 1.442695
        %v3382 = vpow.pop %v3381
        %v3383 = vmul.f32 %v3251, 1.442695
        %v3384 = vpow.pop %v3383
        %v3385 = vmul.f32 %v3252, 1.442695
        %v3386 = vpow.pop %v3385
        %v3387 = vmul.f32 %v3253, 1.442695
        %v3388 = vpow.pop %v3387
        %v3389 = vmul.f32 %v3254, 1.442695
        %v3390 = vpow.pop %v3389
        %v3391 = vmul.f32 %v3255, 1.442695
        %v3392 = vpow.pop %v3391
        %v3393 = vmul.f32 %v3256, 1.442695
        %v3394 = vpow.pop %v3393
        %v3395 = vmul.f32 %v3257, 1.442695
        %v3396 = vpow.pop %v3395
        %v3397 = vmul.f32 %v3258, 1.442695
        %v3398 = vpow.pop %v3397
        %v3399 = vmul.f32 %v3259, 1.442695
        %v3400 = vpow.pop %v3399
        %v3401 = vmul.f32 %v3260, 1.442695
        %v3402 = vpow.pop %v3401
        %v3403 = vmul.f32 %v3261, 1.442695
        %v3404 = vpow.pop %v3403
        %v3405 = vmul.f32 %v3262, 1.442695
        %v3406 = vpow.pop %v3405
        %v3407 = vmul.f32 %v3263, 1.442695
        %v3408 = vpow.pop %v3407
        %v3409 = vmul.f32 %v3264, 1.442695
        %v3410 = vpow.pop %v3409
        %v3411 = vmul.f32 %v3265, 1.442695
        %v3412 = vpow.pop %v3411
        %v3413 = vmul.f32 %v3266, 1.442695
        %v3414 = vpow.pop %v3413
        %v3415 = vmul.f32 %v3267, 1.442695
        %v3416 = vpow.pop %v3415
        %v3417 = vmul.f32 %v3268, 1.442695
        %v3418 = vpow.pop %v3417
        %v3419 = vmul.f32 %v3269, 1.442695
        %v3420 = vpow.pop %v3419
        %v3421 = vmul.f32 %v3270, 1.442695
        %v3422 = vpow.pop %v3421
        %v3423 = vmul.f32 %v3271, 1.442695
        %v3424 = vpow.pop %v3423
        %v3425 = vmul.f32 %v3272, 1.442695
        %v3426 = vpow.pop %v3425
        %v3427 = vmul.f32 %v3273, 1.442695
        %v3428 = vpow.pop %v3427
        %v3429 = vmul.f32 %v3274, 1.442695
        %v3430 = vpow.pop %v3429
        %v3431 = vmul.f32 %v3275, 1.442695
        %v3432 = vpow.pop %v3431
        %v3433 = vmul.f32 %v3276, 1.442695
        %v3434 = vpow.pop %v3433
        %v3435 = vmul.f32 %v3277, 1.442695
        %v3436 = vpow.pop %v3435
        %v3437 = vmul.f32 %v3278, 1.442695
        %v3438 = vpow.pop %v3437
        %v3439 = vmul.f32 %v3279, 1.442695
        %v3440 = vpow.pop %v3439
        %v3441 = vmul.f32 %v3280, 1.442695
        %v3442 = vpow.pop %v3441
        %v3443 = vmul.f32 %v3281, 1.442695
        %v3444 = vpow.pop %v3443
        %v3445 = vmul.f32 %v3282, 1.442695
        %v3446 = vpow.pop %v3445
        %v3447 = vmul.f32 %v3283, 1.442695
        %v3448 = vpow.pop %v3447
        %v3449 = vmul.f32 %v3284, 1.442695
        %v3450 = vpow.pop %v3449
        %v3451 = vmul.f32 %v3285, 1.442695
        %v3452 = vpow.pop %v3451
        %v3453 = vmul.f32 %v3286, 1.442695
        %v3454 = vpow.pop %v3453
        %v3455 = vmul.f32 %v3287, 1.442695
        %v3456 = vpow.pop %v3455
        %v3457 = vmul.f32 %v3288, 1.442695
        %v3458 = vpow.pop %v3457
        %v3459 = vmul.f32 %v3289, 1.442695
        %v3460 = vpow.pop %v3459
        %v3461 = vmul.f32 %v3290, 1.442695
        %v3462 = vpow.pop %v3461
        %v3463 = vmul.f32 %v3291, 1.442695
        %v3464 = vpow.pop %v3463
        %v3465 = vmul.f32 %v3292, 1.442695
        %v3466 = vpow.pop %v3465
        %v3467 = vmul.f32 %v3293, 1.442695
        %v3468 = vpow.pop %v3467
        %v3469 = vmul.f32 %v3294, 1.442695
        %v3470 = vpow.pop %v3469
        %v3471 = vmul.f32 %v3295, 1.442695
        %v3472 = vpow.pop %v3471
        %v3473 = vmul.f32 %v3296, 1.442695
        %v3474 = vpow.pop %v3473
        %v3475 = vmul.f32 %v3297, 1.442695
        %v3476 = vpow.pop %v3475
        %v3477 = vmul.f32 %v3298, 1.442695
        %v3478 = vpow.pop %v3477
        %v3479 = vmul.f32 %v3299, 1.442695
        %v3480 = vpow.pop %v3479
        %v3481 = vmul.f32 %v3300, 1.442695
        %v3482 = vpow.pop %v3481
        %v3483 = vmul.f32 %v3301, 1.442695
        %v3484 = vpow.pop %v3483
        %v3485 = vmul.f32 %v3302, 1.442695
        %v3486 = vpow.pop %v3485
        %v3487 = vmul.f32 %v3303, 1.442695
        %v3488 = vpow.pop %v3487
        %v3489 = vmul.f32 %v3304, 1.442695
        %v3490 = vpow.pop %v3489
        %v3491 = vmul.f32 %v3305, 1.442695
        %v3492 = vpow.pop %v3491
        %v3493 = vmul.f32 %v3306, 1.442695
        %v3494 = vpow.pop %v3493
        %v3495 = vmul.f32 %v3307, 1.442695
        %v3496 = vpow.pop %v3495
        %v3497 = vmul.f32 %v3308, 1.442695
        %v3498 = vpow.pop %v3497
        %v3499 = vmul.f32 %v3309, 1.442695
        %v3500 = vpow.pop %v3499
        %v3501 = vmul.f32 %v3310, 1.442695
        %v3502 = vpow.pop %v3501
        %v3503 = vmul.f32 %v3311, 1.442695
        %v3504 = vpow.pop %v3503
        %v3505 = vmul.f32 %v3312, 1.442695
        %v3506 = vpow.pop %v3505
        %v3507 = vmul.f32 %v3313, 1.442695
        %v3508 = vpow.pop %v3507
        %v3509 = vmul.f32 %v3314, 1.442695
        %v3510 = vpow.pop %v3509
        %v3511 = vmul.f32 %v3315, 1.442695
        %v3512 = vpow.pop %v3511
        %v3513 = vmul.f32 %v3316, 1.442695
        %v3514 = vpow.pop %v3513
        %v3515 = vmul.f32 %v3317, 1.442695
        %v3516 = vpow.pop %v3515
        %v3517 = vmul.f32 %v3318, 1.442695
        %v3518 = vpow.pop %v3517
        %v3519 = vmul.f32 %v3319, 1.442695
        %v3520 = vpow.pop %v3519
        %v3521 = vmul.f32 %v3320, 1.442695
        %v3522 = vpow.pop %v3521
        %v3523 = vmul.f32 %v3321, 1.442695
        %v3524 = vpow.pop %v3523
        %v3525 = vmul.f32 %v3322, 1.442695
        %v3526 = vpow.pop %v3525
        %v3527 = vmul.f32 %v3323, 1.442695
        %v3528 = vpow.pop %v3527
        %v3529 = vmul.f32 %v3324, 1.442695
        %v3530 = vpow.pop %v3529
        %v3531 = vmul.f32 %v3325, 1.442695
        %v3532 = vpow.pop %v3531
        %v3533 = vmul.f32 %v3326, 1.442695
        %v3534 = vpow.pop %v3533
        %v3535 = vmul.f32 %v3327, 1.442695
        %v3536 = vpow.pop %v3535
        %v3537 = vmul.f32 %v3328, 1.442695
        %v3538 = vpow.pop %v3537
        %v3539 = vmul.f32 %v3329, 1.442695
        %v3540 = vpow.pop %v3539
        %v3541 = vmul.f32 %v3330, 1.442695
        %v3542 = vpow.pop %v3541
        %v3543 = vmul.f32 %v3331, 1.442695
        %v3544 = vpow.pop %v3543
        %v3545 = vmul.f32 %v3332, 1.442695
        %v3546 = vpow.pop %v3545
        %v3547 = vmul.f32 %v3333, 1.442695
        %v3548 = vpow.pop %v3547
        %v3549 = vmul.f32 %v3334, 1.442695
        %v3550 = vpow.pop %v3549
        %v3551 = vmul.f32 %v3335, 1.442695
        %v3552 = vpow.pop %v3551
        %v3553 = vmul.f32 %v3336, 1.442695
        %v3554 = vpow.pop %v3553
        %v3555 = vmul.f32 %v3337, 1.442695
        %v3556 = vpow.pop %v3555
        %v3557 = vmul.f32 %v3338, 1.442695
        %v3558 = vpow.pop %v3557
        %v3559 = vmul.f32 %v3339, 1.442695
        %v3560 = vpow.pop %v3559
        %v3561 = vmul.f32 %v3340, 1.442695
        %v3562 = vpow.pop %v3561
        %v3563 = vmul.f32 %v3341, 1.442695
        %v3564 = vpow.pop %v3563
        %v3565 = vmul.f32 %v3342, 1.442695
        %v3566 = vpow.pop %v3565
        %v3567 = vmul.f32 %v3343, 1.442695
        %v3568 = vpow.pop %v3567
        %v3569 = vmul.f32 %v3344, 1.442695
        %v3570 = vpow.pop %v3569
        %v3571 = vmul.f32 %v3345, 1.442695
        %v3572 = vpow.pop %v3571
        %v3573 = vmul.f32 %v3346, 1.442695
        %v3574 = vpow.pop %v3573
        %v3575 = vmul.f32 %v3347, 1.442695
        %v3576 = vpow.pop %v3575
        %v3577 = vmul.f32 %v3348, 1.442695
        %v3578 = vpow.pop %v3577
        %v3579 = vmul.f32 %v3349, 1.442695
        %v3580 = vpow.pop %v3579
        %v3581 = vmul.f32 %v3350, 1.442695
        %v3582 = vpow.pop %v3581
        %v3583 = vmul.f32 %v3351, 1.442695
        %v3584 = vpow.pop %v3583
        %v3585 = vmul.f32 %v3352, 1.442695
        %v3586 = vpow.pop %v3585
        %v3587 = vmul.f32 %v3353, 1.442695
        %v3588 = vpow.pop %v3587
        %v3589 = vmul.f32 %v3354, 1.442695
        %v3590 = vpow.pop %v3589
        %v3591 = vmul.f32 %v3355, 1.442695
        %v3592 = vpow.pop %v3591
        %v3593 = vmul.f32 %v3356, 1.442695
        %v3594 = vpow.pop %v3593
        %v3595 = vmul.f32 %v3357, 1.442695
        %v3596 = vpow.pop %v3595
        %v3597 = vmul.f32 %v3358, 1.442695
        %v3598 = vpow.pop %v3597
        %v3599 = vmul.f32 %v3359, 1.442695
        %v3600 = vpow.pop %v3599
        %v3601 = vmul.f32 %v3360, 1.442695
        %v3602 = vpow.pop %v3601
        %v3603 = vmul.f32 %v3361, 1.442695
        %v3604 = vpow.pop %v3603
        %v3605 = vmul.f32 %v3362, 1.442695
        %v3606 = vpow.pop %v3605
        %v3607 = vmul.f32 %v3363, 1.442695
        %v3608 = vpow.pop %v3607
        %v3609 = vmul.f32 %v3364, 1.442695
        %v3610 = vpow.pop %v3609
        %v3611 = vmul.f32 %v3365, 1.442695
        %v3612 = vpow.pop %v3611
        %v3613 = vmul.f32 %v3366, 1.442695
        %v3614 = vpow.pop %v3613
        %v3615 = vmul.f32 %v3367, 1.442695
        %v3616 = vpow.pop %v3615
        %v3617 = vmul.f32 %v3368, 1.442695
        %v3618 = vpow.pop %v3617
        %v3619 = vmul.f32 %v3369, 1.442695
        %v3620 = vpow.pop %v3619
        %v3621 = vmul.f32 %v3370, 1.442695
        %v3622 = vpow.pop %v3621
        %v3623 = vmul.f32 %v3371, 1.442695
        %v3624 = vpow.pop %v3623
        %v3625 = vmul.f32 %v3372, 1.442695
        %v3626 = vpow.pop %v3625
        %v3627 = vmul.f32 %v3373, 1.442695
        %v3628 = vpow.pop %v3627
        %v3629 = vmul.f32 %v3374, 1.442695
        %v3630 = vpow.pop %v3629
        %v3631 = vsub.f32 %v3376, 1.0
        %v3632 = vsub.f32 %v3378, 1.0
        %v3633 = vsub.f32 %v3380, 1.0
        %v3634 = vsub.f32 %v3382, 1.0
        %v3635 = vsub.f32 %v3384, 1.0
        %v3636 = vsub.f32 %v3386, 1.0
        %v3637 = vsub.f32 %v3388, 1.0
        %v3638 = vsub.f32 %v3390, 1.0
        %v3639 = vsub.f32 %v3392, 1.0
        %v3640 = vsub.f32 %v3394, 1.0
        %v3641 = vsub.f32 %v3396, 1.0
        %v3642 = vsub.f32 %v3398, 1.0
        %v3643 = vsub.f32 %v3400, 1.0
        %v3644 = vsub.f32 %v3402, 1.0
        %v3645 = vsub.f32 %v3404, 1.0
        %v3646 = vsub.f32 %v3406, 1.0
        %v3647 = vsub.f32 %v3408, 1.0
        %v3648 = vsub.f32 %v3410, 1.0
        %v3649 = vsub.f32 %v3412, 1.0
        %v3650 = vsub.f32 %v3414, 1.0
        %v3651 = vsub.f32 %v3416, 1.0
        %v3652 = vsub.f32 %v3418, 1.0
        %v3653 = vsub.f32 %v3420, 1.0
        %v3654 = vsub.f32 %v3422, 1.0
        %v3655 = vsub.f32 %v3424, 1.0
        %v3656 = vsub.f32 %v3426, 1.0
        %v3657 = vsub.f32 %v3428, 1.0
        %v3658 = vsub.f32 %v3430, 1.0
        %v3659 = vsub.f32 %v3432, 1.0
        %v3660 = vsub.f32 %v3434, 1.0
        %v3661 = vsub.f32 %v3436, 1.0
        %v3662 = vsub.f32 %v3438, 1.0
        %v3663 = vsub.f32 %v3440, 1.0
        %v3664 = vsub.f32 %v3442, 1.0
        %v3665 = vsub.f32 %v3444, 1.0
        %v3666 = vsub.f32 %v3446, 1.0
        %v3667 = vsub.f32 %v3448, 1.0
        %v3668 = vsub.f32 %v3450, 1.0
        %v3669 = vsub.f32 %v3452, 1.0
        %v3670 = vsub.f32 %v3454, 1.0
        %v3671 = vsub.f32 %v3456, 1.0
        %v3672 = vsub.f32 %v3458, 1.0
        %v3673 = vsub.f32 %v3460, 1.0
        %v3674 = vsub.f32 %v3462, 1.0
        %v3675 = vsub.f32 %v3464, 1.0
        %v3676 = vsub.f32 %v3466, 1.0
        %v3677 = vsub.f32 %v3468, 1.0
        %v3678 = vsub.f32 %v3470, 1.0
        %v3679 = vsub.f32 %v3472, 1.0
        %v3680 = vsub.f32 %v3474, 1.0
        %v3681 = vsub.f32 %v3476, 1.0
        %v3682 = vsub.f32 %v3478, 1.0
        %v3683 = vsub.f32 %v3480, 1.0
        %v3684 = vsub.f32 %v3482, 1.0
        %v3685 = vsub.f32 %v3484, 1.0
        %v3686 = vsub.f32 %v3486, 1.0
        %v3687 = vsub.f32 %v3488, 1.0
        %v3688 = vsub.f32 %v3490, 1.0
        %v3689 = vsub.f32 %v3492, 1.0
        %v3690 = vsub.f32 %v3494, 1.0
        %v3691 = vsub.f32 %v3496, 1.0
        %v3692 = vsub.f32 %v3498, 1.0
        %v3693 = vsub.f32 %v3500, 1.0
        %v3694 = vsub.f32 %v3502, 1.0
        %v3695 = vsub.f32 %v3504, 1.0
        %v3696 = vsub.f32 %v3506, 1.0
        %v3697 = vsub.f32 %v3508, 1.0
        %v3698 = vsub.f32 %v3510, 1.0
        %v3699 = vsub.f32 %v3512, 1.0
        %v3700 = vsub.f32 %v3514, 1.0
        %v3701 = vsub.f32 %v3516, 1.0
        %v3702 = vsub.f32 %v3518, 1.0
        %v3703 = vsub.f32 %v3520, 1.0
        %v3704 = vsub.f32 %v3522, 1.0
        %v3705 = vsub.f32 %v3524, 1.0
        %v3706 = vsub.f32 %v3526, 1.0
        %v3707 = vsub.f32 %v3528, 1.0
        %v3708 = vsub.f32 %v3530, 1.0
        %v3709 = vsub.f32 %v3532, 1.0
        %v3710 = vsub.f32 %v3534, 1.0
        %v3711 = vsub.f32 %v3536, 1.0
        %v3712 = vsub.f32 %v3538, 1.0
        %v3713 = vsub.f32 %v3540, 1.0
        %v3714 = vsub.f32 %v3542, 1.0
        %v3715 = vsub.f32 %v3544, 1.0
        %v3716 = vsub.f32 %v3546, 1.0
        %v3717 = vsub.f32 %v3548, 1.0
        %v3718 = vsub.f32 %v3550, 1.0
        %v3719 = vsub.f32 %v3552, 1.0
        %v3720 = vsub.f32 %v3554, 1.0
        %v3721 = vsub.f32 %v3556, 1.0
        %v3722 = vsub.f32 %v3558, 1.0
        %v3723 = vsub.f32 %v3560, 1.0
        %v3724 = vsub.f32 %v3562, 1.0
        %v3725 = vsub.f32 %v3564, 1.0
        %v3726 = vsub.f32 %v3566, 1.0
        %v3727 = vsub.f32 %v3568, 1.0
        %v3728 = vsub.f32 %v3570, 1.0
        %v3729 = vsub.f32 %v3572, 1.0
        %v3730 = vsub.f32 %v3574, 1.0
        %v3731 = vsub.f32 %v3576, 1.0
        %v3732 = vsub.f32 %v3578, 1.0
        %v3733 = vsub.f32 %v3580, 1.0
        %v3734 = vsub.f32 %v3582, 1.0
        %v3735 = vsub.f32 %v3584, 1.0
        %v3736 = vsub.f32 %v3586, 1.0
        %v3737 = vsub.f32 %v3588, 1.0
        %v3738 = vsub.f32 %v3590, 1.0
        %v3739 = vsub.f32 %v3592, 1.0
        %v3740 = vsub.f32 %v3594, 1.0
        %v3741 = vsub.f32 %v3596, 1.0
        %v3742 = vsub.f32 %v3598, 1.0
        %v3743 = vsub.f32 %v3600, 1.0
        %v3744 = vsub.f32 %v3602, 1.0
        %v3745 = vsub.f32 %v3604, 1.0
        %v3746 = vsub.f32 %v3606, 1.0
        %v3747 = vsub.f32 %v3608, 1.0
        %v3748 = vsub.f32 %v3610, 1.0
        %v3749 = vsub.f32 %v3612, 1.0
        %v3750 = vsub.f32 %v3614, 1.0
        %v3751 = vsub.f32 %v3616, 1.0
        %v3752 = vsub.f32 %v3618, 1.0
        %v3753 = vsub.f32 %v3620, 1.0
        %v3754 = vsub.f32 %v3622, 1.0
        %v3755 = vsub.f32 %v3624, 1.0
        %v3756 = vsub.f32 %v3626, 1.0
        %v3757 = vsub.f32 %v3628, 1.0
        %v3758 = vsub.f32 %v3630, 1.0
        %v3759 = vpack.c.bf16 %v3633, %v3631
        %v3760 = vpack.c.bf16 %v3634, %v3632
        %v3761 = vpack.c.bf16 %v3637, %v3635
        %v3762 = vpack.c.bf16 %v3638, %v3636
        %v3763 = vpack.c.bf16 %v3641, %v3639
        %v3764 = vpack.c.bf16 %v3642, %v3640
        %v3765 = vpack.c.bf16 %v3645, %v3643
        %v3766 = vpack.c.bf16 %v3646, %v3644
        %v3767 = vpack.c.bf16 %v3649, %v3647
        %v3768 = vpack.c.bf16 %v3650, %v3648
        %v3769 = vpack.c.bf16 %v3653, %v3651
        %v3770 = vpack.c.bf16 %v3654, %v3652
        %v3771 = vpack.c.bf16 %v3657, %v3655
        %v3772 = vpack.c.bf16 %v3658, %v3656
        %v3773 = vpack.c.bf16 %v3661, %v3659
        %v3774 = vpack.c.bf16 %v3662, %v3660
        %v3775 = vpack.c.bf16 %v3665, %v3663
        %v3776 = vpack.c.bf16 %v3666, %v3664
        %v3777 = vpack.c.bf16 %v3669, %v3667
        %v3778 = vpack.c.bf16 %v3670, %v3668
        %v3779 = vpack.c.bf16 %v3673, %v3671
        %v3780 = vpack.c.bf16 %v3674, %v3672
        %v3781 = vpack.c.bf16 %v3677, %v3675
        %v3782 = vpack.c.bf16 %v3678, %v3676
        %v3783 = vpack.c.bf16 %v3681, %v3679
        %v3784 = vpack.c.bf16 %v3682, %v3680
        %v3785 = vpack.c.bf16 %v3685, %v3683
        %v3786 = vpack.c.bf16 %v3686, %v3684
        %v3787 = vpack.c.bf16 %v3689, %v3687
        %v3788 = vpack.c.bf16 %v3690, %v3688
        %v3789 = vpack.c.bf16 %v3693, %v3691
        %v3790 = vpack.c.bf16 %v3694, %v3692
        %v3791 = vpack.c.bf16 %v3697, %v3695
        %v3792 = vpack.c.bf16 %v3698, %v3696
        %v3793 = vpack.c.bf16 %v3701, %v3699
        %v3794 = vpack.c.bf16 %v3702, %v3700
        %v3795 = vpack.c.bf16 %v3705, %v3703
        %v3796 = vpack.c.bf16 %v3706, %v3704
        %v3797 = vpack.c.bf16 %v3709, %v3707
        %v3798 = vpack.c.bf16 %v3710, %v3708
        %v3799 = vpack.c.bf16 %v3713, %v3711
        %v3800 = vpack.c.bf16 %v3714, %v3712
        %v3801 = vpack.c.bf16 %v3717, %v3715
        %v3802 = vpack.c.bf16 %v3718, %v3716
        %v3803 = vpack.c.bf16 %v3721, %v3719
        %v3804 = vpack.c.bf16 %v3722, %v3720
        %v3805 = vpack.c.bf16 %v3725, %v3723
        %v3806 = vpack.c.bf16 %v3726, %v3724
        %v3807 = vpack.c.bf16 %v3729, %v3727
        %v3808 = vpack.c.bf16 %v3730, %v3728
        %v3809 = vpack.c.bf16 %v3733, %v3731
        %v3810 = vpack.c.bf16 %v3734, %v3732
        %v3811 = vpack.c.bf16 %v3737, %v3735
        %v3812 = vpack.c.bf16 %v3738, %v3736
        %v3813 = vpack.c.bf16 %v3741, %v3739
        %v3814 = vpack.c.bf16 %v3742, %v3740
        %v3815 = vpack.c.bf16 %v3745, %v3743
        %v3816 = vpack.c.bf16 %v3746, %v3744
        %v3817 = vpack.c.bf16 %v3749, %v3747
        %v3818 = vpack.c.bf16 %v3750, %v3748
        %v3819 = vpack.c.bf16 %v3753, %v3751
        %v3820 = vpack.c.bf16 %v3754, %v3752
        %v3821 = vpack.c.bf16 %v3757, %v3755
        %v3822 = vpack.c.bf16 %v3758, %v3756
        %3823 = vmatprep.subr.bf16.mxu0 %v3760
        %3824 = vmatpush1.bf16.xpose.msra.mxu0 %v3759
        %3825 = vmatprep.subr.bf16.mxu0 %v3762
        %3826 = vmatpush1.bf16.xpose.msra.mxu0 %v3761
        %3827 = vmatprep.subr.bf16.mxu0 %v3764
        %3828 = vmatpush1.bf16.xpose.msra.mxu0 %v3763
        %3829 = vmatprep.subr.bf16.mxu0 %v3766
        %3830 = vmatpush1.bf16.xpose.msra.mxu0 %v3765
        %3831 = vmatprep.subr.bf16.mxu0 %v3768
        %3832 = vmatpush1.bf16.xpose.msra.mxu0 %v3767
        %3833 = vmatprep.subr.bf16.mxu0 %v3770
        %3834 = vmatpush1.bf16.xpose.msra.mxu0 %v3769
        %3835 = vmatprep.subr.bf16.mxu0 %v3772
        %3836 = vmatpush1.bf16.xpose.msra.mxu0 %v3771
        %3837 = vmatprep.subr.bf16.mxu0 %v3774
        %3838 = vmatpush1.bf16.xpose.msra.mxu0 %v3773
        %3839 = vmatprep.subr.bf16.mxu0 0
        %3840 = vmatpush1.bf16.xpose.msra.mxu0 0
        %3841 = vmatprep.subr.bf16.mxu0 0
        %3842 = vmatpush1.bf16.xpose.msra.mxu0 0
        %3843 = vmatprep.subr.bf16.mxu0 0
        %3844 = vmatpush1.bf16.xpose.msra.mxu0 0
        %3845 = vmatprep.subr.bf16.mxu0 0
        %3846 = vmatpush1.bf16.xpose.msra.mxu0 0
        %3847 = vmatprep.subr.bf16.mxu0 0
        %3848 = vmatpush1.bf16.xpose.msra.mxu0 0
        %3849 = vmatprep.subr.bf16.mxu0 0
        %3850 = vmatpush1.bf16.xpose.msra.mxu0 0
        %3851 = vmatprep.subr.bf16.mxu0 0
        %3852 = vmatpush1.bf16.xpose.msra.mxu0 0
        %3853 = vmatprep.subr.bf16.mxu0 0
        %3854 = vmatpush1.bf16.xpose.msra.mxu0 0
        %3855 = vmatprep.mubr.bf16.mxu0 %v2355
        %3856 = vmatmul.mubr.bf16.gmra.mrb[0].mxu0 %v2354
        %v3857 = vpop.f32.mrb[0].mxu0
        %v3858 = vadd.f32 0.0, %v3857
        %v3859 = vpop.f32.mrb[0].mxu0
        %v3860 = vpop.f32.mrb[0].mxu0
        %v3861 = vpop.f32.mrb[0].mxu0
        %3862 = vdwg.mxu0
        %3863 = vmatprep.subr.bf16.mxu0 %v3776
        %3864 = vmatpush1.bf16.xpose.msra.mxu0 %v3775
        %3865 = vmatprep.subr.bf16.mxu0 %v3778
        %3866 = vmatpush1.bf16.xpose.msra.mxu0 %v3777
        %3867 = vmatprep.subr.bf16.mxu0 %v3780
        %3868 = vmatpush1.bf16.xpose.msra.mxu0 %v3779
        %3869 = vmatprep.subr.bf16.mxu0 %v3782
        %3870 = vmatpush1.bf16.xpose.msra.mxu0 %v3781
        %3871 = vmatprep.subr.bf16.mxu0 %v3784
        %3872 = vmatpush1.bf16.xpose.msra.mxu0 %v3783
        %3873 = vmatprep.subr.bf16.mxu0 %v3786
        %3874 = vmatpush1.bf16.xpose.msra.mxu0 %v3785
        %3875 = vmatprep.subr.bf16.mxu0 %v3788
        %3876 = vmatpush1.bf16.xpose.msra.mxu0 %v3787
        %3877 = vmatprep.subr.bf16.mxu0 %v3790
        %3878 = vmatpush1.bf16.xpose.msra.mxu0 %v3789
        %3879 = vmatprep.subr.bf16.mxu0 0
        %3880 = vmatpush1.bf16.xpose.msra.mxu0 0
        %3881 = vmatprep.subr.bf16.mxu0 0
        %3882 = vmatpush1.bf16.xpose.msra.mxu0 0
        %3883 = vmatprep.subr.bf16.mxu0 0
        %3884 = vmatpush1.bf16.xpose.msra.mxu0 0
        %3885 = vmatprep.subr.bf16.mxu0 0
        %3886 = vmatpush1.bf16.xpose.msra.mxu0 0
        %3887 = vmatprep.subr.bf16.mxu0 0
        %3888 = vmatpush1.bf16.xpose.msra.mxu0 0
        %3889 = vmatprep.subr.bf16.mxu0 0
        %3890 = vmatpush1.bf16.xpose.msra.mxu0 0
        %3891 = vmatprep.subr.bf16.mxu0 0
        %3892 = vmatpush1.bf16.xpose.msra.mxu0 0
        %3893 = vmatprep.subr.bf16.mxu0 0
        %3894 = vmatpush1.bf16.xpose.msra.mxu0 0
        %3895 = vmatprep.mubr.bf16.mxu0 %v2357
        %3896 = vmatmul.mubr.bf16.gmra.mrb[0].mxu0 %v2356
        %v3897 = vpop.f32.mrb[0].mxu0
        %v3898 = vadd.f32 0.0, %v3897
        %v3899 = vpop.f32.mrb[0].mxu0
        %v3900 = vpop.f32.mrb[0].mxu0
        %v3901 = vpop.f32.mrb[0].mxu0
        %3902 = vdwg.mxu0
        %3903 = vmatprep.subr.bf16.mxu0 %v3792
        %3904 = vmatpush1.bf16.xpose.msra.mxu0 %v3791
        %3905 = vmatprep.subr.bf16.mxu0 %v3794
        %3906 = vmatpush1.bf16.xpose.msra.mxu0 %v3793
        %3907 = vmatprep.subr.bf16.mxu0 %v3796
        %3908 = vmatpush1.bf16.xpose.msra.mxu0 %v3795
        %3909 = vmatprep.subr.bf16.mxu0 %v3798
        %3910 = vmatpush1.bf16.xpose.msra.mxu0 %v3797
        %3911 = vmatprep.subr.bf16.mxu0 %v3800
        %3912 = vmatpush1.bf16.xpose.msra.mxu0 %v3799
        %3913 = vmatprep.subr.bf16.mxu0 %v3802
        %3914 = vmatpush1.bf16.xpose.msra.mxu0 %v3801
        %3915 = vmatprep.subr.bf16.mxu0 %v3804
        %3916 = vmatpush1.bf16.xpose.msra.mxu0 %v3803
        %3917 = vmatprep.subr.bf16.mxu0 %v3806
        %3918 = vmatpush1.bf16.xpose.msra.mxu0 %v3805
        %3919 = vmatprep.subr.bf16.mxu0 0
        %3920 = vmatpush1.bf16.xpose.msra.mxu0 0
        %3921 = vmatprep.subr.bf16.mxu0 0
        %3922 = vmatpush1.bf16.xpose.msra.mxu0 0
        %3923 = vmatprep.subr.bf16.mxu0 0
        %3924 = vmatpush1.bf16.xpose.msra.mxu0 0
        %3925 = vmatprep.subr.bf16.mxu0 0
        %3926 = vmatpush1.bf16.xpose.msra.mxu0 0
        %3927 = vmatprep.subr.bf16.mxu0 0
        %3928 = vmatpush1.bf16.xpose.msra.mxu0 0
        %3929 = vmatprep.subr.bf16.mxu0 0
        %3930 = vmatpush1.bf16.xpose.msra.mxu0 0
        %3931 = vmatprep.subr.bf16.mxu0 0
        %3932 = vmatpush1.bf16.xpose.msra.mxu0 0
        %3933 = vmatprep.subr.bf16.mxu0 0
        %3934 = vmatpush1.bf16.xpose.msra.mxu0 0
        %3935 = vmatprep.mubr.bf16.mxu0 %v2359
        %3936 = vmatmul.mubr.bf16.gmra.mrb[0].mxu0 %v2358
        %v3937 = vpop.f32.mrb[0].mxu0
        %v3938 = vadd.f32 0.0, %v3937
        %v3939 = vpop.f32.mrb[0].mxu0
        %v3940 = vpop.f32.mrb[0].mxu0
        %v3941 = vpop.f32.mrb[0].mxu0
        %3942 = vdwg.mxu0
        %3943 = vmatprep.subr.bf16.mxu0 %v3808
        %3944 = vmatpush1.bf16.xpose.msra.mxu0 %v3807
        %3945 = vmatprep.subr.bf16.mxu0 %v3810
        %3946 = vmatpush1.bf16.xpose.msra.mxu0 %v3809
        %3947 = vmatprep.subr.bf16.mxu0 %v3812
        %3948 = vmatpush1.bf16.xpose.msra.mxu0 %v3811
        %3949 = vmatprep.subr.bf16.mxu0 %v3814
        %3950 = vmatpush1.bf16.xpose.msra.mxu0 %v3813
        %3951 = vmatprep.subr.bf16.mxu0 %v3816
        %3952 = vmatpush1.bf16.xpose.msra.mxu0 %v3815
        %3953 = vmatprep.subr.bf16.mxu0 %v3818
        %3954 = vmatpush1.bf16.xpose.msra.mxu0 %v3817
        %3955 = vmatprep.subr.bf16.mxu0 %v3820
        %3956 = vmatpush1.bf16.xpose.msra.mxu0 %v3819
        %3957 = vmatprep.subr.bf16.mxu0 %v3822
        %3958 = vmatpush1.bf16.xpose.msra.mxu0 %v3821
        %3959 = vmatprep.subr.bf16.mxu0 0
        %3960 = vmatpush1.bf16.xpose.msra.mxu0 0
        %3961 = vmatprep.subr.bf16.mxu0 0
        %3962 = vmatpush1.bf16.xpose.msra.mxu0 0
        %3963 = vmatprep.subr.bf16.mxu0 0
        %3964 = vmatpush1.bf16.xpose.msra.mxu0 0
        %3965 = vmatprep.subr.bf16.mxu0 0
        %3966 = vmatpush1.bf16.xpose.msra.mxu0 0
        %3967 = vmatprep.subr.bf16.mxu0 0
        %3968 = vmatpush1.bf16.xpose.msra.mxu0 0
        %3969 = vmatprep.subr.bf16.mxu0 0
        %3970 = vmatpush1.bf16.xpose.msra.mxu0 0
        %3971 = vmatprep.subr.bf16.mxu0 0
        %3972 = vmatpush1.bf16.xpose.msra.mxu0 0
        %3973 = vmatprep.subr.bf16.mxu0 0
        %3974 = vmatpush1.bf16.xpose.msra.mxu0 0
        %3975 = vmatprep.mubr.bf16.mxu0 %v2361
        %3976 = vmatmul.mubr.bf16.gmra.mrb[0].mxu0 %v2360
        %v3977 = vpop.f32.mrb[0].mxu0
        %v3978 = vadd.f32 0.0, %v3977
        %v3979 = vpop.f32.mrb[0].mxu0
        %v3980 = vpop.f32.mrb[0].mxu0
        %v3981 = vpop.f32.mrb[0].mxu0
        %3982 = vdwg.mxu0
        %v3984 = vrot.slane %v2281, 1
        %v3985 = vrot.slane %v2281, 2
        %v3986 = vrot.slane %v2281, 3
        %v3991 = vadd.f32 %v3858, %v2281
        %v3992 = vadd.f32 %v3898, %v3984
        %v3993 = vadd.f32 %v3938, %v3985
        %v3994 = vadd.f32 %v3978, %v3986
        %v3995 = vadd.f32 %v3858, 200.0
        %v3996 = vadd.f32 %v3898, 200.0
        %v3997 = vadd.f32 %v3938, 200.0
        %v3998 = vadd.f32 %v3978, 200.0
        %s3999 = smul.addr %s2369, 4
        %s4000 = scalar_lea.vmem [#allocation2], %s3999
        %v4001 = vld [vmem:[%s4000] sm:$0xf]
        %v4003 = vrot.slane %v2379, 1
        %v4004 = vrot.slane %v2379, 2
        %v4005 = vrot.slane %v2379, 3
        %v4010 = vsub.f32 %v3991, %v2379
        %v4011 = vsub.f32 %v3992, %v4003
        %v4012 = vsub.f32 %v3993, %v4004
        %v4013 = vsub.f32 %v3994, %v4005
        %v4018 = vrot.slane %v3995, 1
        %v4019 = vrot.slane %v3996, 1
        %v4020 = vrot.slane %v3997, 1
        %v4021 = vrot.slane %v3998, 1
        %v4026 = vrcp.pop %v4018
        %v4027 = vmul.f32 %v4010, %v4026
        %v4028 = vrcp.pop %v4019
        %v4029 = vmul.f32 %v4011, %v4028
        %v4030 = vrcp.pop %v4020
        %v4031 = vmul.f32 %v4012, %v4030
        %v4032 = vrcp.pop %v4021
        %v4033 = vmul.f32 %v4013, %v4032
        %v4038 = vrot.slane %v4029, 7
        %vm4039 = vcmask 1041409
        %v4040 = vsel %vm4039, %v4038, %v4027
        %vm4041 = vcmask 1045509
        %v4042 = vsel %vm4041, %v4038, %v4040
        %v4043 = vrot.slane %v4031, 6
        %vm4044 = vcmask 1042434
        %v4045 = vsel %vm4044, %v4043, %v4042
        %vm4046 = vcmask 1046534
        %v4047 = vsel %vm4046, %v4043, %v4045
        %v4048 = vrot.slane %v4033, 5
        %vm4049 = vcmask 1043459
        %v4050 = vsel %vm4049, %v4048, %v4047
        %vm4051 = vcmask 1047559
        %v4052 = vsel %vm4051, %v4048, %v4050
        %v4054 = vadd.f32 %v4001, %v4052
        %4055 = vst [vmem:[%s4000] sm:$0xf] %v4054
      $region52: #{_lambda_.3} parent=39 // loop_footer
        %s2367 = sadd.s32 1, %s2363
      $region53: #{_lambda_.3} parent=39 // loop_footer_branch
        %2362 = sbr.rel target = $region49
      $region54: #{_lambda_.3} parent=39 // loop_exit
        _
      %v4056 = vld [vmem:[#allocation2] sm:$0xff]
      %v4057 = vcombine.low %v441, %v445
      %v4059 = vmul.f32 %v4056, %v4057
      %v4061 = vcombine.high %v4059, %v4059
      %v4063 = vsel %vm323, %v4059, 0.0
      %v4064 = vsel %vm323, %v4061, 0.0
      %v4065 = vadd.f32 %v4063, %v4064
      %4066 = vadd.xlane.f32.xlu0 %v4065
      %v4067 = vpop.xlane.xlu0 %4066
      %v4068 = vmul.f32 %v4067, 0.005
      %v4071 = vunpack.c.l.s4 839922192
      %v4072 = vunpack.c.0.s8 %v4071
      %v4073 = vlaneseq
      %v4074 = vshrl.u32 %v4073, 7
      %v4075 = vsub.s32 %v4072, %v4074
      %v4076 = vrot.slane %v4068, %v4075
      %v4078 = vsub.f32 %v4056, %v4076
      %v4079 = vmul.f32 %v4078, %v4057
      %v4080 = vmul.f32 %v4079, %v4079
      %v4082 = vcombine.high %v4080, %v4080
      %v4084 = vsel %vm323, %v4080, 0.0
      %v4085 = vsel %vm323, %v4082, 0.0
      %v4086 = vadd.f32 %v4084, %v4085
      %4087 = vadd.xlane.f32.xlu0 %v4086
      %v4088 = vpop.xlane.xlu0 %4087
      %v4089 = vmul.f32 %v4088, 0.0050251256
      %v4090 = vld [vmem:[%s3] sm:$0x3]
      %v4091 = vrsqrt.pop %v4089
      %v4092 = vmul.f32 %v4089, %v4091
      %vm4093 = vcmp.eq.f32.partialorder %v4089, inf
      %v4094 = vsel %vm4093, %v4089, %v4092
      %vm4095 = vcmp.eq.f32.partialorder %v4089, 0.0
      %v4096 = vand.u32 %v4089, 2147483648
      %v4097 = vsel %vm4095, %v4096, %v4094
      %v4098 = vadd.f32 %v4097, 1e-06
      %v4101 = vunpack.c.l.s4 839922192
      %v4102 = vunpack.c.0.s8 %v4101
      %v4103 = vlaneseq
      %v4104 = vshrl.u32 %v4103, 7
      %v4105 = vsub.s32 %v4102, %v4104
      %v4106 = vrot.slane %v4098, %v4105
      %v4108 = vrcp.pop %v4106
      %v4109 = vmul.f32 %v4078, %v4108
      %v4111 = vlaneseq
      %v4112 = vshrl.u32 %v4111, 7
      %v4113 = vsub.s32 0, %v4112
      %v4114 = vrot.slane %v4090, %v4113
      %v4115 = vlaneseq
      %v4116 = vshrl.u32 %v4115, 7
      %v4117 = vsub.s32 1, %v4116
      %v4118 = vrot.slane %v4090, %v4117
      %v4122 = vcombine.high %v4109, %v4109
      %v4124 = vmul.f32 %v4114, %v4109
      %v4125 = vmul.f32 %v4118, %v4122
      %v4126 = vld [vmem:[%s4] sm:$0x3]
      %v4128 = vlaneseq
      %v4129 = vshrl.u32 %v4128, 7
      %v4130 = vsub.s32 0, %v4129
      %v4131 = vrot.slane %v4126, %v4130
      %v4132 = vlaneseq
      %v4133 = vshrl.u32 %v4132, 7
      %v4134 = vsub.s32 1, %v4133
      %v4135 = vrot.slane %v4126, %v4134
      %v4138 = vadd.f32 %v4124, %v4131
      %v4139 = vadd.f32 %v4125, %v4135
      %v4142 = vcombine.low %v4138, %v4139
      %v4144 = vadd.f32 %v226, %v4142
      %v4145 = vmul.f32 %v4144, %v4057
      %4146 = vst [vmem:[%s224] sm:$0xff] %v4145
      %p4147 = scmp.lt.s32.totalorder %s16, 1
      %s4148 = scalar_select %p4147, %s16, 1
      %s4149 = smul.addr %s4148, 2
      %s4150 = smul.addr %s4149, 4
      %s4151 = scalar_lea.vmem %s5, %s4150
      // Predicated region
      $region55: #{_lambda_.3} parent=39 // pred_check
        %p4152 = pneg %p144
      $region56: #{_lambda_.3} parent=39 // pred_check_branch
        %4154 = sbr.rel (%p4152) target = $region58
      $region57: #{_lambda_.3} parent=39 // pred_region
        _
      $region58: #{_lambda_.3} parent=39 // pred_fallthru
        _
    $region40: #{_lambda_.3} parent=5 // pred_fallthru
      _
    %p4155 = scmp.le.s32.totalorder 2, %s11
    // Predicated region
    $region59: #{_lambda_.3} parent=5 // pred_check
      %p4156 = pneg %p4155
    $region60: #{_lambda_.3} parent=5 // pred_check_branch
      %4158 = sbr.rel (%p4156) target = $region62
    $region61: #{_lambda_.3} parent=5 // pred_region
      %s4159 = ssub.s32 %s11, 2
      // Predicated region
      $region63: #{_lambda_.3} parent=61 // pred_check
        %p4160 = pneg %p150
      $region64: #{_lambda_.3} parent=61 // pred_check_branch
        %4162 = sbr.rel (%p4160) target = $region66
      $region65: #{_lambda_.3} parent=61 // pred_region
        %p4163 = scmp.lt.s32.totalorder %s17, 1
        %s4164 = scalar_select %p4163, %s17, 1
        %s4165 = smul.addr %s4164, 2
        %s4166 = smul.addr %s4165, 4
        %s4167 = scalar_lea.vmem %s5, %s4166
      $region66: #{_lambda_.3} parent=61 // pred_fallthru
        _
    $region62: #{_lambda_.3} parent=5 // pred_fallthru
      _
  $region6: #{_lambda_.3} parent=0 // loop_footer
    %s15 = sadd.s32 1, %s11
  $region7: #{_lambda_.3} parent=0 // loop_footer_branch
    %10 = sbr.rel target = $region3
  $region8: #{_lambda_.3} parent=0 // loop_exit
    _

// kernel: _lambda_.5
$region0: #{_lambda_.5}
  #allocation0 [shape = 'u32[]', space=smem, size = 0x4, offset = 0x4, fixed_abs, tag = 'smem constant byte address 0x4 - core index']
  #allocation1 [shape = 'u32[144,128]{1,0:T(1,128)}', space=vmem, size = 0x12000, scoped, tag = 'internal scratch']
  #allocation2 [shape = 'f32[4,256]{1,0:T(4,128)}', space=vmem, size = 0x1000, scoped, tag = 'scratch operand']
  #allocation3 [shape = 'f32[4,256]{1,0:T(4,128)}', space=vmem, size = 0x1000, scoped, tag = 'scratch operand']
  #allocation4 [shape = 'f32[4,256]{1,0:T(4,128)}', space=vmem, size = 0x1000, scoped, tag = 'scratch operand']
  #allocation5 [shape = 'f32[4,256]{1,0:T(4,128)}', space=vmem, size = 0x1000, scoped, tag = 'scratch operand']
  %s0 = inlined_call_operand.vmem [shape: f32[2,4,256], index: 0, kind: input, shape index: {}]
  %s1 = inlined_call_operand.vmem [shape: f32[3,2,256], index: 1, kind: input, shape index: {}]
  %s2 = inlined_call_operand.vmem [shape: f32[1,256], index: 2, kind: input, shape index: {}]
  %s3 = inlined_call_operand.vmem [shape: f32[1,256], index: 3, kind: input, shape index: {}]
  %s4 = inlined_call_operand.vmem [shape: f32[1,256], index: 4, kind: input, shape index: {}]
  %s5 = inlined_call_operand.vmem [shape: f32[256,128], index: 5, kind: input, shape index: {}]
  %s6 = inlined_call_operand.vmem [shape: f32[1,128], index: 6, kind: input, shape index: {}]
  %s7 = inlined_call_operand.hbm [shape: f32[2,4,128], index: 7, kind: output, shape index: {}]
  %s8 = sld [smem:[#allocation0]]
  $region75: #{_lambda_.5} parent=0
    _
  %s10 = ssub.s32 1, %s8
  %s11 = scalar_select 0, %s10, %s8
  $region1: #{_lambda_.5} parent=0
    #allocation6 [shape = 'u8[4096]{0}', space=vmem, size = 0x1000, scoped, tag = 'output window, operand 0']
    #allocation7 [shape = 's32[2]{0}', space=sflag, size = 0x8, scoped, tag = 'scoped memory for _lambda_.5']
    %12 = vsyncpa [#allocation7], 0
    %s13 = scalar_lea.sflag [#allocation7], 1
    %14 = vsyncpa %s13, 0
    loop: start=0, step=1, limit=4
    $region2: #{_lambda_.5} parent=1 // loop_pre_header
      _
    $region3: #{_lambda_.5} parent=1 // loop_header
      %s16 = sphi 0, %s20
      %p17 = scmp.ge.s32.totalorder %s16, 4
      %s26 = sphi 0, %s28
      %s29 = sphi 0, %s26
      %s30 = sphi 0, %s29
      %s46 = sphi 0, %s30
      %s50 = sphi 0, %s50
      %s52 = sphi 0, %s50
      %s53 = sphi 0, %s52
      %s67 = sphi 0, %s53
      %s71 = sphi 0, %s71
      %s73 = sphi 0, %s71
      %s74 = sphi 0, %s73
      %s88 = sphi 0, %s74
      %s92 = sphi 0, %s92
      %s94 = sphi 0, %s92
      %s95 = sphi 0, %s94
      %s109 = sphi 0, %s95
      %s113 = sphi 0, %s113
      %s115 = sphi 0, %s113
      %s116 = sphi 0, %s115
      %s130 = sphi 0, %s116
      %s134 = sphi 0, %s134
      %s136 = sphi 0, %s134
      %s137 = sphi 0, %s136
      %s151 = sphi 0, %s137
      %s155 = sphi 0, %s155
      %s157 = sphi 0, %s155
      %s158 = sphi 0, %s157
      %s172 = sphi 0, %s158
      %s178 = sphi 0, %s180
      %s181 = sphi 0, %s178
      %s182 = sphi 0, %s181
      %s198 = sphi 0, %s182
    $region4: #{_lambda_.5} parent=1 // loop_header_branch
      %19 = sbr.rel (%p17) target = $region8
    $region5: #{_lambda_.5} parent=1 // loop_body
      %s21 = ssub.s32 %s16, 1
      %s22 = ssub.s32 %s16, 2
      %s23 = sadd.s32 %s16, 1
      %s24 = ssub.s32 %s16, %s23
      %p25 = scmp.eq.s32.totalorder %s24, 0
      %s27 = sadd.s32 %s26, 1
      %s28 = scalar_select %p25, %s26, %s27
      %p31 = pneg %p25
      %p32 = scmp.eq.s32.totalorder %s16, 1
      %p33 = por %p31, %p32
      %p34 = scmp.ne.s32.totalorder %s26, %s29
      %p35 = scmp.eq.s32.totalorder %s16, 0
      %p36 = por %p34, %p35
      %p37 = scmp.ne.s32.totalorder %s26, %s29
      %p38 = scmp.eq.s32.totalorder %s21, 1
      %p39 = por %p37, %p38
      %p40 = scmp.ne.s32.totalorder %s29, %s30
      %p41 = scmp.eq.s32.totalorder %s21, 0
      %p42 = por %p40, %p41
      %p43 = scmp.ne.s32.totalorder %s29, %s30
      %p44 = scmp.eq.s32.totalorder %s22, 1
      %p45 = por %p43, %p44
      %p47 = scmp.ne.s32.totalorder %s30, %s46
      %p48 = scmp.eq.s32.totalorder %s22, 0
      %p49 = por %p47, %p48
      %s51 = sadd.s32 %s50, 1
      %p54 = scmp.eq.s32.totalorder %s16, 1
      %p55 = scmp.ne.s32.totalorder %s50, %s52
      %p56 = scmp.eq.s32.totalorder %s16, 0
      %p57 = por %p55, %p56
      %p58 = scmp.ne.s32.totalorder %s50, %s52
      %p59 = scmp.eq.s32.totalorder %s21, 1
      %p60 = por %p58, %p59
      %p61 = scmp.ne.s32.totalorder %s52, %s53
      %p62 = scmp.eq.s32.totalorder %s21, 0
      %p63 = por %p61, %p62
      %p64 = scmp.ne.s32.totalorder %s52, %s53
      %p65 = scmp.eq.s32.totalorder %s22, 1
      %p66 = por %p64, %p65
      %p68 = scmp.ne.s32.totalorder %s53, %s67
      %p69 = scmp.eq.s32.totalorder %s22, 0
      %p70 = por %p68, %p69
      %s72 = sadd.s32 %s71, 1
      %p75 = scmp.eq.s32.totalorder %s16, 1
      %p76 = scmp.ne.s32.totalorder %s71, %s73
      %p77 = scmp.eq.s32.totalorder %s16, 0
      %p78 = por %p76, %p77
      %p79 = scmp.ne.s32.totalorder %s71, %s73
      %p80 = scmp.eq.s32.totalorder %s21, 1
      %p81 = por %p79, %p80
      %p82 = scmp.ne.s32.totalorder %s73, %s74
      %p83 = scmp.eq.s32.totalorder %s21, 0
      %p84 = por %p82, %p83
      %p85 = scmp.ne.s32.totalorder %s73, %s74
      %p86 = scmp.eq.s32.totalorder %s22, 1
      %p87 = por %p85, %p86
      %p89 = scmp.ne.s32.totalorder %s74, %s88
      %p90 = scmp.eq.s32.totalorder %s22, 0
      %p91 = por %p89, %p90
      %s93 = sadd.s32 %s92, 1
      %p96 = scmp.eq.s32.totalorder %s16, 1
      %p97 = scmp.ne.s32.totalorder %s92, %s94
      %p98 = scmp.eq.s32.totalorder %s16, 0
      %p99 = por %p97, %p98
      %p100 = scmp.ne.s32.totalorder %s92, %s94
      %p101 = scmp.eq.s32.totalorder %s21, 1
      %p102 = por %p100, %p101
      %p103 = scmp.ne.s32.totalorder %s94, %s95
      %p104 = scmp.eq.s32.totalorder %s21, 0
      %p105 = por %p103, %p104
      %p106 = scmp.ne.s32.totalorder %s94, %s95
      %p107 = scmp.eq.s32.totalorder %s22, 1
      %p108 = por %p106, %p107
      %p110 = scmp.ne.s32.totalorder %s95, %s109
      %p111 = scmp.eq.s32.totalorder %s22, 0
      %p112 = por %p110, %p111
      %s114 = sadd.s32 %s113, 1
      %p117 = scmp.eq.s32.totalorder %s16, 1
      %p118 = scmp.ne.s32.totalorder %s113, %s115
      %p119 = scmp.eq.s32.totalorder %s16, 0
      %p120 = por %p118, %p119
      %p121 = scmp.ne.s32.totalorder %s113, %s115
      %p122 = scmp.eq.s32.totalorder %s21, 1
      %p123 = por %p121, %p122
      %p124 = scmp.ne.s32.totalorder %s115, %s116
      %p125 = scmp.eq.s32.totalorder %s21, 0
      %p126 = por %p124, %p125
      %p127 = scmp.ne.s32.totalorder %s115, %s116
      %p128 = scmp.eq.s32.totalorder %s22, 1
      %p129 = por %p127, %p128
      %p131 = scmp.ne.s32.totalorder %s116, %s130
      %p132 = scmp.eq.s32.totalorder %s22, 0
      %p133 = por %p131, %p132
      %s135 = sadd.s32 %s134, 1
      %p138 = scmp.eq.s32.totalorder %s16, 1
      %p139 = scmp.ne.s32.totalorder %s134, %s136
      %p140 = scmp.eq.s32.totalorder %s16, 0
      %p141 = por %p139, %p140
      %p142 = scmp.ne.s32.totalorder %s134, %s136
      %p143 = scmp.eq.s32.totalorder %s21, 1
      %p144 = por %p142, %p143
      %p145 = scmp.ne.s32.totalorder %s136, %s137
      %p146 = scmp.eq.s32.totalorder %s21, 0
      %p147 = por %p145, %p146
      %p148 = scmp.ne.s32.totalorder %s136, %s137
      %p149 = scmp.eq.s32.totalorder %s22, 1
      %p150 = por %p148, %p149
      %p152 = scmp.ne.s32.totalorder %s137, %s151
      %p153 = scmp.eq.s32.totalorder %s22, 0
      %p154 = por %p152, %p153
      %s156 = sadd.s32 %s155, 1
      %p159 = scmp.eq.s32.totalorder %s16, 1
      %p160 = scmp.ne.s32.totalorder %s155, %s157
      %p161 = scmp.eq.s32.totalorder %s16, 0
      %p162 = por %p160, %p161
      %p163 = scmp.ne.s32.totalorder %s155, %s157
      %p164 = scmp.eq.s32.totalorder %s21, 1
      %p165 = por %p163, %p164
      %p166 = scmp.ne.s32.totalorder %s157, %s158
      %p167 = scmp.eq.s32.totalorder %s21, 0
      %p168 = por %p166, %p167
      %p169 = scmp.ne.s32.totalorder %s157, %s158
      %p170 = scmp.eq.s32.totalorder %s22, 1
      %p171 = por %p169, %p170
      %p173 = scmp.ne.s32.totalorder %s158, %s172
      %p174 = scmp.eq.s32.totalorder %s22, 0
      %p175 = por %p173, %p174
      %s176 = ssub.s32 %s16, %s23
      %p177 = scmp.eq.s32.totalorder %s176, 0
      %s179 = sadd.s32 %s178, 1
      %s180 = scalar_select %p177, %s178, %s179
      %p183 = pneg %p177
      %p184 = scmp.eq.s32.totalorder %s16, 1
      %p185 = por %p183, %p184
      %p186 = scmp.ne.s32.totalorder %s178, %s181
      %p187 = scmp.eq.s32.totalorder %s16, 0
      %p188 = por %p186, %p187
      %p189 = scmp.ne.s32.totalorder %s178, %s181
      %p190 = scmp.eq.s32.totalorder %s21, 1
      %p191 = por %p189, %p190
      %p192 = scmp.ne.s32.totalorder %s181, %s182
      %p193 = scmp.eq.s32.totalorder %s21, 0
      %p194 = por %p192, %p193
      %p195 = scmp.ne.s32.totalorder %s181, %s182
      %p196 = scmp.eq.s32.totalorder %s22, 1
      %p197 = por %p195, %p196
      %p199 = scmp.ne.s32.totalorder %s182, %s198
      %p200 = scmp.eq.s32.totalorder %s22, 0
      %p201 = por %p199, %p200
      %p202 = scmp.le.s32.totalorder 1, %s16
      %p203 = scmp.lt.s32.totalorder %s16, 3
      %p204 = pnand %p202, %p203
      %p205 = pneg %p204
      // Predicated region
      $region9: #{_lambda_.5} parent=5 // pred_check
        _
      $region10: #{_lambda_.5} parent=5 // pred_check_branch
        %207 = sbr.rel (%p204) target = $region12
      $region11: #{_lambda_.5} parent=5 // pred_region
        %s208 = ssub.s32 %s16, 1
        // Predicated region
        $region13: #{_lambda_.5} parent=11 // pred_check
          %p209 = pneg %p63
        $region14: #{_lambda_.5} parent=11 // pred_check_branch
          %211 = sbr.rel (%p209) target = $region16
        $region15: #{_lambda_.5} parent=11 // pred_region
          _
        $region16: #{_lambda_.5} parent=11 // pred_fallthru
          _
        // Predicated region
        $region17: #{_lambda_.5} parent=11 // pred_check
          %p212 = pneg %p84
        $region18: #{_lambda_.5} parent=11 // pred_check_branch
          %214 = sbr.rel (%p212) target = $region20
        $region19: #{_lambda_.5} parent=11 // pred_region
          _
        $region20: #{_lambda_.5} parent=11 // pred_fallthru
          _
        // Predicated region
        $region21: #{_lambda_.5} parent=11 // pred_check
          %p215 = pneg %p105
        $region22: #{_lambda_.5} parent=11 // pred_check_branch
          %217 = sbr.rel (%p215) target = $region24
        $region23: #{_lambda_.5} parent=11 // pred_region
          _
        $region24: #{_lambda_.5} parent=11 // pred_fallthru
          _
        // Predicated region
        $region25: #{_lambda_.5} parent=11 // pred_check
          %p218 = pneg %p126
        $region26: #{_lambda_.5} parent=11 // pred_check_branch
          %220 = sbr.rel (%p218) target = $region28
        $region27: #{_lambda_.5} parent=11 // pred_region
          _
        $region28: #{_lambda_.5} parent=11 // pred_fallthru
          _
        // Predicated region
        $region29: #{_lambda_.5} parent=11 // pred_check
          %p221 = pneg %p147
        $region30: #{_lambda_.5} parent=11 // pred_check_branch
          %223 = sbr.rel (%p221) target = $region32
        $region31: #{_lambda_.5} parent=11 // pred_region
          _
        $region32: #{_lambda_.5} parent=11 // pred_fallthru
          _
        // Predicated region
        $region33: #{_lambda_.5} parent=11 // pred_check
          %p224 = pneg %p168
        $region34: #{_lambda_.5} parent=11 // pred_check_branch
          %226 = sbr.rel (%p224) target = $region36
        $region35: #{_lambda_.5} parent=11 // pred_region
          _
        $region36: #{_lambda_.5} parent=11 // pred_fallthru
          _
      $region12: #{_lambda_.5} parent=5 // pred_fallthru
        _
      %p227 = scmp.lt.s32.totalorder %s16, 2
      // Predicated region
      $region37: #{_lambda_.5} parent=5 // pred_check
        %p228 = pneg %p227
      $region38: #{_lambda_.5} parent=5 // pred_check_branch
        %230 = sbr.rel (%p228) target = $region40
      $region39: #{_lambda_.5} parent=5 // pred_region
        // Predicated region
        $region41: #{_lambda_.5} parent=39 // pred_check
          %p231 = pneg %p36
        $region42: #{_lambda_.5} parent=39 // pred_check_branch
          %233 = sbr.rel (%p231) target = $region44
        $region43: #{_lambda_.5} parent=39 // pred_region
          %p234 = scmp.lt.s32.totalorder %s16, 1
          %s235 = scalar_select %p234, %s16, 1
          %s236 = smul.addr %s235, 2
          %s237 = smul.addr %s236, 4
          %s238 = scalar_lea.vmem %s0, %s237
        $region44: #{_lambda_.5} parent=39 // pred_fallthru
          _
      $region40: #{_lambda_.5} parent=5 // pred_fallthru
        _
      %p239 = scmp.le.s32.totalorder 1, %s16
      %p240 = scmp.lt.s32.totalorder %s16, 3
      %p241 = pnand %p239, %p240
      %p242 = pneg %p241
      // Predicated region
      $region45: #{_lambda_.5} parent=5 // pred_check
        _
      $region46: #{_lambda_.5} parent=5 // pred_check_branch
        %244 = sbr.rel (%p241) target = $region48
      $region47: #{_lambda_.5} parent=5 // pred_region
        %s245 = ssub.s32 %s16, 1
        %p246 = scmp.lt.s32.totalorder %s21, 1
        %s247 = scalar_select %p246, %s21, 1
        %s248 = smul.addr %s247, 2
        %s249 = smul.addr %s248, 4
        %s250 = scalar_lea.vmem %s0, %s249
        %p251 = pneg %p42
        %p252 = pneg %p39
        %p253 = pneg %p63
        %p254 = pneg %p60
        %p255 = pneg %p84
        %p256 = pneg %p81
        %p257 = pneg %p105
        %p258 = pneg %p102
        %p259 = pneg %p126
        %p260 = pneg %p123
        %p261 = pneg %p147
        %p262 = pneg %p144
        %p263 = pneg %p168
        %p264 = pneg %p165
        %p265 = pneg %p194
        %p266 = pneg %p191
        %s267 = sand.u32 %s181, 1
        %s268 = scalar_lea.sflag [#allocation7], %s267
        %s269 = sand.u32 %s181, 1
        %s270 = smul.addr %s269, 4
        %s271 = scalar_lea.vmem [#allocation6], %s270
        %p272 = scmp.lt.s32.totalorder %s21, 1
        %s273 = scalar_select %p272, %s21, 1
        %s274 = smul.addr %s273, 2
        %s275 = smul.addr %s274, 4
        %s276 = scalar_lea.vmem %s0, %s275
        %v278 = vld [vmem:[%s276] sm:$0xff]
        %v279 = vld [vmem:[%s2] sm:$0x3]
        %v280 = vld [vmem:[%s1] sm:$0xf]
        %v281 = vld [vmem:[%s1 + $0x4] sm:$0xf]
        %v282 = vld [vmem:[%s1 + $0x8] sm:$0xf]
        %v283 = vsub.f32 %v279, 1.0
        %v284 = vmul.f32 %v283, 1e+09
        %285 = vst [vmem:[#allocation2] sm:$0xff] 0.0
        %v287 = vlaneseq
        %v288 = vshrl.u32 %v287, 7
        %v289 = vsub.s32 0, %v288
        %v290 = vrot.slane %v280, %v289
        %v291 = vlaneseq
        %v292 = vshrl.u32 %v291, 7
        %v293 = vsub.s32 2, %v292
        %v294 = vrot.slane %v280, %v293
        %v297 = vlaneseq
        %v298 = vshrl.u32 %v297, 7
        %v299 = vsub.s32 0, %v298
        %v300 = vrot.slane %v290, %v299
        %v301 = vlaneseq
        %v302 = vshrl.u32 %v301, 7
        %v303 = vsub.s32 0, %v302
        %v304 = vrot.slane %v294, %v303
        %v307 = vcombine.low %v300, %v304
        %v309 = vmul.f32 %v278, %v307
        %v311 = vlaneseq
        %v312 = vshrl.u32 %v311, 7
        %v313 = vsub.s32 0, %v312
        %v314 = vrot.slane %v281, %v313
        %v315 = vlaneseq
        %v316 = vshrl.u32 %v315, 7
        %v317 = vsub.s32 2, %v316
        %v318 = vrot.slane %v281, %v317
        %v321 = vlaneseq
        %v322 = vshrl.u32 %v321, 7
        %v323 = vsub.s32 0, %v322
        %v324 = vrot.slane %v314, %v323
        %v325 = vlaneseq
        %v326 = vshrl.u32 %v325, 7
        %v327 = vsub.s32 0, %v326
        %v328 = vrot.slane %v318, %v327
        %v331 = vcombine.low %v324, %v328
        %v333 = vmul.f32 %v278, %v331
        %v335 = vlaneseq
        %v336 = vshrl.u32 %v335, 7
        %v337 = vsub.s32 0, %v336
        %v338 = vrot.slane %v282, %v337
        %v339 = vlaneseq
        %v340 = vshrl.u32 %v339, 7
        %v341 = vsub.s32 2, %v340
        %v342 = vrot.slane %v282, %v341
        %v345 = vlaneseq
        %v346 = vshrl.u32 %v345, 7
        %v347 = vsub.s32 0, %v346
        %v348 = vrot.slane %v338, %v347
        %v349 = vlaneseq
        %v350 = vshrl.u32 %v349, 7
        %v351 = vsub.s32 0, %v350
        %v352 = vrot.slane %v342, %v351
        %v355 = vcombine.low %v348, %v352
        %v357 = vmul.f32 %v278, %v355
        %vm358 = vcmp.gt.f32.partialorder %v279, 0.0
        %v359 = vsel %vm358, 1, 0
        %v360 = vlaneseq
        %v361 = vshrl.u32 %v360, 7
        %v362 = vsub.s32 0, %v361
        %v363 = vrot.slane %v359, %v362
        %v364 = vlaneseq
        %v365 = vshrl.u32 %v364, 7
        %v366 = vsub.s32 1, %v365
        %v367 = vrot.slane %v359, %v366
        %vm368 = vcmp.eq.s32.totalorder %v363, 1
        %vm369 = vcmp.eq.s32.totalorder %v367, 1
        %v371 = vcombine.high %v333, %v333
        %v373 = vsel %vm368, %v333, -3e+38
        %v374 = vsel %vm369, %v371, -3e+38
        %vm375 = vcmask 1043456
        %v376 = vsel %vm375, %v373, -inf
        %v377 = vsel %vm375, %v374, -inf
        %v378 = vmax.f32 %v376, %v377
        %379 = vmax.xlane.f32.xlu0 %v378
        %v380 = vpop.xlane.xlu0 %379
        %v381 = vsel %vm368, %v333, 3e+38
        %v382 = vsel %vm369, %v371, 3e+38
        %v383 = vsel %vm375, %v381, inf
        %v384 = vsel %vm375, %v382, inf
        %v385 = vmin.f32 %v383, %v384
        %386 = vmin.xlane.f32.xlu0 %v385
        %v387 = vpop.xlane.xlu0 %386
        %v390 = vunpack.c.l.s4 839922192
        %v391 = vunpack.c.0.s8 %v390
        %v392 = vlaneseq
        %v393 = vshrl.u32 %v392, 7
        %v394 = vsub.s32 %v391, %v393
        %v395 = vrot.slane %v380, %v394
        %v397 = vmul.f32 %v309, %v395
        %v400 = vunpack.c.l.s4 839922192
        %v401 = vunpack.c.0.s8 %v400
        %v402 = vlaneseq
        %v403 = vshrl.u32 %v402, 7
        %v404 = vsub.s32 %v401, %v403
        %v405 = vrot.slane %v387, %v404
        %v407 = vmul.f32 %v309, %v405
        %v408 = vmax.f32 %v397, %v407
        %409 = vst [vmem:[#allocation3] sm:$0xff] %v309
        %410 = vst [vmem:[#allocation4] sm:$0xff] %v408
        %v411 = vmul.f32 %v309, %v333
        %v412 = vsub.f32 %v411, %v408
        %v413 = vmul.f32 %v412, 1.442695
        %v414 = vpow.pop %v413
        %v415 = vmul.f32 %v414, %v357
        %416 = vst [vmem:[#allocation5] sm:$0xff] %v415
        %v418 = vcombine.high %v357, %v357
        %v420 = vsel %vm375, %v357, 0.0
        %v421 = vsel %vm375, %v418, 0.0
        %v422 = vadd.f32 %v420, %v421
        %423 = vadd.xlane.f32.xlu0 %v422
        %v424 = vpop.xlane.xlu0 %423
        %v426 = vunpack.c.l.s4 1966171168
        %v427 = vunpack.c.0.s8 %v426
        %v428 = vlaneseq
        %v429 = vshrl.u32 %v428, 7
        %v430 = vsub.s32 %v427, %v429
        %v431 = vrot.slane %v357, %v430
        %v432 = vcombine.high %v431, %v431
        %v434 = vunpack.c.l.s4 1966171168
        %v435 = vunpack.c.0.s8 %v434
        %v436 = vlaneseq
        %v437 = vshrl.u32 %v436, 7
        %v438 = vsub.s32 %v435, %v437
        %v439 = vrot.slane %v431, %v438
        %v441 = vunpack.c.l.s4 1966171168
        %v442 = vunpack.c.0.s8 %v441
        %v443 = vlaneseq
        %v444 = vshrl.u32 %v443, 7
        %v445 = vsub.s32 %v442, %v444
        %v446 = vrot.slane %v432, %v445
        %v447 = vcombine.high %v439, %v439
        %v448 = vcombine.high %v446, %v446
        %v449 = vlaneseq
        %v450 = vshrl.u32 %v449, 7
        %v451 = vsub.s32 0, %v450
        %v452 = vrot.slane %v439, %v451
        %v453 = vlaneseq
        %v454 = vshrl.u32 %v453, 7
        %v455 = vsub.s32 1, %v454
        %v456 = vrot.slane %v439, %v455
        %v457 = vlaneseq
        %v458 = vshrl.u32 %v457, 7
        %v459 = vsub.s32 0, %v458
        %v460 = vrot.slane %v446, %v459
        %v461 = vlaneseq
        %v462 = vshrl.u32 %v461, 7
        %v463 = vsub.s32 1, %v462
        %v464 = vrot.slane %v446, %v463
        %v465 = vlaneseq
        %v466 = vshrl.u32 %v465, 7
        %v467 = vsub.s32 0, %v466
        %v468 = vrot.slane %v447, %v467
        %v469 = vlaneseq
        %v470 = vshrl.u32 %v469, 7
        %v471 = vsub.s32 1, %v470
        %v472 = vrot.slane %v447, %v471
        %v473 = vlaneseq
        %v474 = vshrl.u32 %v473, 7
        %v475 = vsub.s32 0, %v474
        %v476 = vrot.slane %v448, %v475
        %v477 = vlaneseq
        %v478 = vshrl.u32 %v477, 7
        %v479 = vsub.s32 1, %v478
        %v480 = vrot.slane %v448, %v479
        %v490 = vlaneseq
        %v491 = vshrl.u32 %v490, 7
        %v492 = vsub.s32 0, %v491
        %v493 = vrot.slane %v279, %v492
        %v494 = vlaneseq
        %v495 = vshrl.u32 %v494, 7
        %v496 = vsub.s32 1, %v495
        %v497 = vrot.slane %v279, %v496
        %vm500 = vcmask 1040384
        %v501 = vsel %vm500, %v452, %v493
        %v502 = vsel %vm500, %v456, %v497
        %v503 = vsel %vm500, %v460, %v493
        %v504 = vsel %vm500, %v464, %v497
        %v505 = vsel %vm500, %v468, %v493
        %v506 = vsel %vm500, %v472, %v497
        %v507 = vsel %vm500, %v476, %v493
        %v508 = vsel %vm500, %v480, %v497
        %v509 = vpack.c.bf16 %v501, %v501
        %v510 = vpack.c.bf16 %v502, %v502
        %v511 = vpack.c.bf16 %v503, %v503
        %v512 = vpack.c.bf16 %v504, %v504
        %v513 = vpack.c.bf16 %v505, %v505
        %v514 = vpack.c.bf16 %v506, %v506
        %v515 = vpack.c.bf16 %v507, %v507
        %v516 = vpack.c.bf16 %v508, %v508
        loop: start=0, step=1, limit=2
        $region49: #{_lambda_.5} parent=47 // loop_pre_header
          _
        $region50: #{_lambda_.5} parent=47 // loop_header
          %s518 = sphi 0, %s522
          %p519 = scmp.ge.s32.totalorder %s518, 2
        $region51: #{_lambda_.5} parent=47 // loop_header_branch
          %521 = sbr.rel (%p519) target = $region55
        $region52: #{_lambda_.5} parent=47 // loop_body
          %s523 = smul.u32 %s518, 128
          %s524 = sshra.s32 %s523, 7
          %s525 = sand.u32 %s523, 127
          %s526 = smul.addr %s524, 4
          %s527 = scalar_lea.vmem [#allocation3], %s526
          %v528 = vld [vmem:[%s527] sm:$0xf]
          %s529 = smul.addr %s524, 4
          %s530 = scalar_lea.vmem [#allocation4], %s529
          %v531 = vld [vmem:[%s530] sm:$0xf]
          %s532 = smul.addr %s524, 4
          %s533 = scalar_lea.vmem [#allocation5], %s532
          %v534 = vld [vmem:[%s533] sm:$0xf]
          %v535 = vlaneseq
          %v536 = vshrl.u32 %v535, 7
          %v537 = vsub.s32 0, %v536
          %v538 = vrot.slane %v528, %v537
          %540 = vbcast.lane.b32.xlu0 %v538, 256
          %v541 = vpop.permute.xlu0 %540
          %s543 = sor.u32 256, 8
          %544 = vbcast.lane.b32.xlu0 %v538, %s543
          %v545 = vpop.permute.xlu0 %544
          %s547 = sor.u32 256, 16
          %548 = vbcast.lane.b32.xlu0 %v538, %s547
          %v549 = vpop.permute.xlu0 %548
          %s551 = sor.u32 256, 24
          %552 = vbcast.lane.b32.xlu0 %v538, %s551
          %v553 = vpop.permute.xlu0 %552
          %s555 = sor.u32 256, 32
          %556 = vbcast.lane.b32.xlu0 %v538, %s555
          %v557 = vpop.permute.xlu0 %556
          %s559 = sor.u32 256, 40
          %560 = vbcast.lane.b32.xlu0 %v538, %s559
          %v561 = vpop.permute.xlu0 %560
          %s563 = sor.u32 256, 48
          %564 = vbcast.lane.b32.xlu0 %v538, %s563
          %v565 = vpop.permute.xlu0 %564
          %s567 = sor.u32 256, 56
          %568 = vbcast.lane.b32.xlu0 %v538, %s567
          %v569 = vpop.permute.xlu0 %568
          %s571 = sor.u32 256, 64
          %572 = vbcast.lane.b32.xlu0 %v538, %s571
          %v573 = vpop.permute.xlu0 %572
          %s575 = sor.u32 256, 72
          %576 = vbcast.lane.b32.xlu0 %v538, %s575
          %v577 = vpop.permute.xlu0 %576
          %s579 = sor.u32 256, 80
          %580 = vbcast.lane.b32.xlu0 %v538, %s579
          %v581 = vpop.permute.xlu0 %580
          %s583 = sor.u32 256, 88
          %584 = vbcast.lane.b32.xlu0 %v538, %s583
          %v585 = vpop.permute.xlu0 %584
          %s587 = sor.u32 256, 96
          %588 = vbcast.lane.b32.xlu0 %v538, %s587
          %v589 = vpop.permute.xlu0 %588
          %s591 = sor.u32 256, 104
          %592 = vbcast.lane.b32.xlu0 %v538, %s591
          %v593 = vpop.permute.xlu0 %592
          %s595 = sor.u32 256, 112
          %596 = vbcast.lane.b32.xlu0 %v538, %s595
          %v597 = vpop.permute.xlu0 %596
          %s599 = sor.u32 256, 120
          %600 = vbcast.lane.b32.xlu0 %v538, %s599
          %v601 = vpop.permute.xlu0 %600
          %v602 = vlaneseq
          %v603 = vshrl.u32 %v602, 7
          %v604 = vsub.s32 1, %v603
          %v605 = vrot.slane %v528, %v604
          %607 = vbcast.lane.b32.xlu0 %v605, 256
          %v608 = vpop.permute.xlu0 %607
          %s610 = sor.u32 256, 8
          %611 = vbcast.lane.b32.xlu0 %v605, %s610
          %v612 = vpop.permute.xlu0 %611
          %s614 = sor.u32 256, 16
          %615 = vbcast.lane.b32.xlu0 %v605, %s614
          %v616 = vpop.permute.xlu0 %615
          %s618 = sor.u32 256, 24
          %619 = vbcast.lane.b32.xlu0 %v605, %s618
          %v620 = vpop.permute.xlu0 %619
          %s622 = sor.u32 256, 32
          %623 = vbcast.lane.b32.xlu0 %v605, %s622
          %v624 = vpop.permute.xlu0 %623
          %s626 = sor.u32 256, 40
          %627 = vbcast.lane.b32.xlu0 %v605, %s626
          %v628 = vpop.permute.xlu0 %627
          %s630 = sor.u32 256, 48
          %631 = vbcast.lane.b32.xlu0 %v605, %s630
          %v632 = vpop.permute.xlu0 %631
          %s634 = sor.u32 256, 56
          %635 = vbcast.lane.b32.xlu0 %v605, %s634
          %v636 = vpop.permute.xlu0 %635
          %s638 = sor.u32 256, 64
          %639 = vbcast.lane.b32.xlu0 %v605, %s638
          %v640 = vpop.permute.xlu0 %639
          %s642 = sor.u32 256, 72
          %643 = vbcast.lane.b32.xlu0 %v605, %s642
          %v644 = vpop.permute.xlu0 %643
          %s646 = sor.u32 256, 80
          %647 = vbcast.lane.b32.xlu0 %v605, %s646
          %v648 = vpop.permute.xlu0 %647
          %s650 = sor.u32 256, 88
          %651 = vbcast.lane.b32.xlu0 %v605, %s650
          %v652 = vpop.permute.xlu0 %651
          %s654 = sor.u32 256, 96
          %655 = vbcast.lane.b32.xlu0 %v605, %s654
          %v656 = vpop.permute.xlu0 %655
          %s658 = sor.u32 256, 104
          %659 = vbcast.lane.b32.xlu0 %v605, %s658
          %v660 = vpop.permute.xlu0 %659
          %s662 = sor.u32 256, 112
          %663 = vbcast.lane.b32.xlu0 %v605, %s662
          %v664 = vpop.permute.xlu0 %663
          %s666 = sor.u32 256, 120
          %667 = vbcast.lane.b32.xlu0 %v605, %s666
          %v668 = vpop.permute.xlu0 %667
          %v669 = vlaneseq
          %v670 = vshrl.u32 %v669, 7
          %v671 = vsub.s32 2, %v670
          %v672 = vrot.slane %v528, %v671
          %674 = vbcast.lane.b32.xlu0 %v672, 256
          %v675 = vpop.permute.xlu0 %674
          %s677 = sor.u32 256, 8
          %678 = vbcast.lane.b32.xlu0 %v672, %s677
          %v679 = vpop.permute.xlu0 %678
          %s681 = sor.u32 256, 16
          %682 = vbcast.lane.b32.xlu0 %v672, %s681
          %v683 = vpop.permute.xlu0 %682
          %s685 = sor.u32 256, 24
          %686 = vbcast.lane.b32.xlu0 %v672, %s685
          %v687 = vpop.permute.xlu0 %686
          %s689 = sor.u32 256, 32
          %690 = vbcast.lane.b32.xlu0 %v672, %s689
          %v691 = vpop.permute.xlu0 %690
          %s693 = sor.u32 256, 40
          %694 = vbcast.lane.b32.xlu0 %v672, %s693
          %v695 = vpop.permute.xlu0 %694
          %s697 = sor.u32 256, 48
          %698 = vbcast.lane.b32.xlu0 %v672, %s697
          %v699 = vpop.permute.xlu0 %698
          %s701 = sor.u32 256, 56
          %702 = vbcast.lane.b32.xlu0 %v672, %s701
          %v703 = vpop.permute.xlu0 %702
          %s705 = sor.u32 256, 64
          %706 = vbcast.lane.b32.xlu0 %v672, %s705
          %v707 = vpop.permute.xlu0 %706
          %s709 = sor.u32 256, 72
          %710 = vbcast.lane.b32.xlu0 %v672, %s709
          %v711 = vpop.permute.xlu0 %710
          %s713 = sor.u32 256, 80
          %714 = vbcast.lane.b32.xlu0 %v672, %s713
          %v715 = vpop.permute.xlu0 %714
          %s717 = sor.u32 256, 88
          %718 = vbcast.lane.b32.xlu0 %v672, %s717
          %v719 = vpop.permute.xlu0 %718
          %s721 = sor.u32 256, 96
          %722 = vbcast.lane.b32.xlu0 %v672, %s721
          %v723 = vpop.permute.xlu0 %722
          %s725 = sor.u32 256, 104
          %726 = vbcast.lane.b32.xlu0 %v672, %s725
          %v727 = vpop.permute.xlu0 %726
          %s729 = sor.u32 256, 112
          %730 = vbcast.lane.b32.xlu0 %v672, %s729
          %v731 = vpop.permute.xlu0 %730
          %s733 = sor.u32 256, 120
          %734 = vbcast.lane.b32.xlu0 %v672, %s733
          %v735 = vpop.permute.xlu0 %734
          %v736 = vlaneseq
          %v737 = vshrl.u32 %v736, 7
          %v738 = vsub.s32 3, %v737
          %v739 = vrot.slane %v528, %v738
          %741 = vbcast.lane.b32.xlu0 %v739, 256
          %v742 = vpop.permute.xlu0 %741
          %s744 = sor.u32 256, 8
          %745 = vbcast.lane.b32.xlu0 %v739, %s744
          %v746 = vpop.permute.xlu0 %745
          %s748 = sor.u32 256, 16
          %749 = vbcast.lane.b32.xlu0 %v739, %s748
          %v750 = vpop.permute.xlu0 %749
          %s752 = sor.u32 256, 24
          %753 = vbcast.lane.b32.xlu0 %v739, %s752
          %v754 = vpop.permute.xlu0 %753
          %s756 = sor.u32 256, 32
          %757 = vbcast.lane.b32.xlu0 %v739, %s756
          %v758 = vpop.permute.xlu0 %757
          %s760 = sor.u32 256, 40
          %761 = vbcast.lane.b32.xlu0 %v739, %s760
          %v762 = vpop.permute.xlu0 %761
          %s764 = sor.u32 256, 48
          %765 = vbcast.lane.b32.xlu0 %v739, %s764
          %v766 = vpop.permute.xlu0 %765
          %s768 = sor.u32 256, 56
          %769 = vbcast.lane.b32.xlu0 %v739, %s768
          %v770 = vpop.permute.xlu0 %769
          %s772 = sor.u32 256, 64
          %773 = vbcast.lane.b32.xlu0 %v739, %s772
          %v774 = vpop.permute.xlu0 %773
          %s776 = sor.u32 256, 72
          %777 = vbcast.lane.b32.xlu0 %v739, %s776
          %v778 = vpop.permute.xlu0 %777
          %s780 = sor.u32 256, 80
          %781 = vbcast.lane.b32.xlu0 %v739, %s780
          %v782 = vpop.permute.xlu0 %781
          %s784 = sor.u32 256, 88
          %785 = vbcast.lane.b32.xlu0 %v739, %s784
          %v786 = vpop.permute.xlu0 %785
          %s788 = sor.u32 256, 96
          %789 = vbcast.lane.b32.xlu0 %v739, %s788
          %v790 = vpop.permute.xlu0 %789
          %s792 = sor.u32 256, 104
          %793 = vbcast.lane.b32.xlu0 %v739, %s792
          %v794 = vpop.permute.xlu0 %793
          %s796 = sor.u32 256, 112
          %797 = vbcast.lane.b32.xlu0 %v739, %s796
          %v798 = vpop.permute.xlu0 %797
          %s800 = sor.u32 256, 120
          %801 = vbcast.lane.b32.xlu0 %v739, %s800
          %v802 = vpop.permute.xlu0 %801
          %v804 = vunpack.c.l.s4 1966171168
          %v805 = vunpack.c.0.s8 %v804
          %v806 = vlaneseq
          %v807 = vshrl.u32 %v806, 7
          %v808 = vsub.s32 %v805, %v807
          %v809 = vrot.slane %v333, %v808
          %v810 = vcombine.high %v809, %v809
          %v812 = vunpack.c.l.s4 1966171168
          %v813 = vunpack.c.0.s8 %v812
          %v814 = vlaneseq
          %v815 = vshrl.u32 %v814, 7
          %v816 = vsub.s32 %v813, %v815
          %v817 = vrot.slane %v809, %v816
          %v819 = vunpack.c.l.s4 1966171168
          %v820 = vunpack.c.0.s8 %v819
          %v821 = vlaneseq
          %v822 = vshrl.u32 %v821, 7
          %v823 = vsub.s32 %v820, %v822
          %v824 = vrot.slane %v810, %v823
          %v825 = vcombine.high %v817, %v817
          %v826 = vcombine.high %v824, %v824
          %v827 = vlaneseq
          %v828 = vshrl.u32 %v827, 7
          %v829 = vsub.s32 0, %v828
          %v830 = vrot.slane %v817, %v829
          %v831 = vlaneseq
          %v832 = vshrl.u32 %v831, 7
          %v833 = vsub.s32 1, %v832
          %v834 = vrot.slane %v817, %v833
          %v835 = vlaneseq
          %v836 = vshrl.u32 %v835, 7
          %v837 = vsub.s32 0, %v836
          %v838 = vrot.slane %v824, %v837
          %v839 = vlaneseq
          %v840 = vshrl.u32 %v839, 7
          %v841 = vsub.s32 1, %v840
          %v842 = vrot.slane %v824, %v841
          %v843 = vlaneseq
          %v844 = vshrl.u32 %v843, 7
          %v845 = vsub.s32 0, %v844
          %v846 = vrot.slane %v825, %v845
          %v847 = vlaneseq
          %v848 = vshrl.u32 %v847, 7
          %v849 = vsub.s32 1, %v848
          %v850 = vrot.slane %v825, %v849
          %v851 = vlaneseq
          %v852 = vshrl.u32 %v851, 7
          %v853 = vsub.s32 0, %v852
          %v854 = vrot.slane %v826, %v853
          %v855 = vlaneseq
          %v856 = vshrl.u32 %v855, 7
          %v857 = vsub.s32 1, %v856
          %v858 = vrot.slane %v826, %v857
          %v867 = vmul.f32 %v541, %v830
          %v868 = vmul.f32 %v541, %v834
          %v869 = vmul.f32 %v545, %v830
          %v870 = vmul.f32 %v545, %v834
          %v871 = vmul.f32 %v549, %v830
          %v872 = vmul.f32 %v549, %v834
          %v873 = vmul.f32 %v553, %v830
          %v874 = vmul.f32 %v553, %v834
          %v875 = vmul.f32 %v557, %v830
          %v876 = vmul.f32 %v557, %v834
          %v877 = vmul.f32 %v561, %v830
          %v878 = vmul.f32 %v561, %v834
          %v879 = vmul.f32 %v565, %v830
          %v880 = vmul.f32 %v565, %v834
          %v881 = vmul.f32 %v569, %v830
          %v882 = vmul.f32 %v569, %v834
          %v883 = vmul.f32 %v573, %v830
          %v884 = vmul.f32 %v573, %v834
          %v885 = vmul.f32 %v577, %v830
          %v886 = vmul.f32 %v577, %v834
          %v887 = vmul.f32 %v581, %v830
          %v888 = vmul.f32 %v581, %v834
          %v889 = vmul.f32 %v585, %v830
          %v890 = vmul.f32 %v585, %v834
          %v891 = vmul.f32 %v589, %v830
          %v892 = vmul.f32 %v589, %v834
          %v893 = vmul.f32 %v593, %v830
          %v894 = vmul.f32 %v593, %v834
          %v895 = vmul.f32 %v597, %v830
          %v896 = vmul.f32 %v597, %v834
          %v897 = vmul.f32 %v601, %v830
          %v898 = vmul.f32 %v601, %v834
          %v899 = vmul.f32 %v608, %v838
          %v900 = vmul.f32 %v608, %v842
          %v901 = vmul.f32 %v612, %v838
          %v902 = vmul.f32 %v612, %v842
          %v903 = vmul.f32 %v616, %v838
          %v904 = vmul.f32 %v616, %v842
          %v905 = vmul.f32 %v620, %v838
          %v906 = vmul.f32 %v620, %v842
          %v907 = vmul.f32 %v624, %v838
          %v908 = vmul.f32 %v624, %v842
          %v909 = vmul.f32 %v628, %v838
          %v910 = vmul.f32 %v628, %v842
          %v911 = vmul.f32 %v632, %v838
          %v912 = vmul.f32 %v632, %v842
          %v913 = vmul.f32 %v636, %v838
          %v914 = vmul.f32 %v636, %v842
          %v915 = vmul.f32 %v640, %v838
          %v916 = vmul.f32 %v640, %v842
          %v917 = vmul.f32 %v644, %v838
          %v918 = vmul.f32 %v644, %v842
          %v919 = vmul.f32 %v648, %v838
          %v920 = vmul.f32 %v648, %v842
          %v921 = vmul.f32 %v652, %v838
          %v922 = vmul.f32 %v652, %v842
          %v923 = vmul.f32 %v656, %v838
          %v924 = vmul.f32 %v656, %v842
          %v925 = vmul.f32 %v660, %v838
          %v926 = vmul.f32 %v660, %v842
          %v927 = vmul.f32 %v664, %v838
          %v928 = vmul.f32 %v664, %v842
          %v929 = vmul.f32 %v668, %v838
          %v930 = vmul.f32 %v668, %v842
          %v931 = vmul.f32 %v675, %v846
          %v932 = vmul.f32 %v675, %v850
          %v933 = vmul.f32 %v679, %v846
          %v934 = vmul.f32 %v679, %v850
          %v935 = vmul.f32 %v683, %v846
          %v936 = vmul.f32 %v683, %v850
          %v937 = vmul.f32 %v687, %v846
          %v938 = vmul.f32 %v687, %v850
          %v939 = vmul.f32 %v691, %v846
          %v940 = vmul.f32 %v691, %v850
          %v941 = vmul.f32 %v695, %v846
          %v942 = vmul.f32 %v695, %v850
          %v943 = vmul.f32 %v699, %v846
          %v944 = vmul.f32 %v699, %v850
          %v945 = vmul.f32 %v703, %v846
          %v946 = vmul.f32 %v703, %v850
          %v947 = vmul.f32 %v707, %v846
          %v948 = vmul.f32 %v707, %v850
          %v949 = vmul.f32 %v711, %v846
          %v950 = vmul.f32 %v711, %v850
          %v951 = vmul.f32 %v715, %v846
          %v952 = vmul.f32 %v715, %v850
          %v953 = vmul.f32 %v719, %v846
          %v954 = vmul.f32 %v719, %v850
          %v955 = vmul.f32 %v723, %v846
          %v956 = vmul.f32 %v723, %v850
          %v957 = vmul.f32 %v727, %v846
          %v958 = vmul.f32 %v727, %v850
          %v959 = vmul.f32 %v731, %v846
          %v960 = vmul.f32 %v731, %v850
          %v961 = vmul.f32 %v735, %v846
          %v962 = vmul.f32 %v735, %v850
          %v963 = vmul.f32 %v742, %v854
          %v964 = vmul.f32 %v742, %v858
          %v965 = vmul.f32 %v746, %v854
          %v966 = vmul.f32 %v746, %v858
          %v967 = vmul.f32 %v750, %v854
          %v968 = vmul.f32 %v750, %v858
          %v969 = vmul.f32 %v754, %v854
          %v970 = vmul.f32 %v754, %v858
          %v971 = vmul.f32 %v758, %v854
          %v972 = vmul.f32 %v758, %v858
          %v973 = vmul.f32 %v762, %v854
          %v974 = vmul.f32 %v762, %v858
          %v975 = vmul.f32 %v766, %v854
          %v976 = vmul.f32 %v766, %v858
          %v977 = vmul.f32 %v770, %v854
          %v978 = vmul.f32 %v770, %v858
          %v979 = vmul.f32 %v774, %v854
          %v980 = vmul.f32 %v774, %v858
          %v981 = vmul.f32 %v778, %v854
          %v982 = vmul.f32 %v778, %v858
          %v983 = vmul.f32 %v782, %v854
          %v984 = vmul.f32 %v782, %v858
          %v985 = vmul.f32 %v786, %v854
          %v986 = vmul.f32 %v786, %v858
          %v987 = vmul.f32 %v790, %v854
          %v988 = vmul.f32 %v790, %v858
          %v989 = vmul.f32 %v794, %v854
          %v990 = vmul.f32 %v794, %v858
          %v991 = vmul.f32 %v798, %v854
          %v992 = vmul.f32 %v798, %v858
          %v993 = vmul.f32 %v802, %v854
          %v994 = vmul.f32 %v802, %v858
          %v996 = vlaneseq
          %v997 = vshrl.u32 %v996, 7
          %v998 = vsub.s32 0, %v997
          %v999 = vrot.slane %v284, %v998
          %v1000 = vlaneseq
          %v1001 = vshrl.u32 %v1000, 7
          %v1002 = vsub.s32 1, %v1001
          %v1003 = vrot.slane %v284, %v1002
          %v1006 = vadd.f32 %v867, %v999
          %v1007 = vadd.f32 %v868, %v1003
          %v1008 = vadd.f32 %v869, %v999
          %v1009 = vadd.f32 %v870, %v1003
          %v1010 = vadd.f32 %v871, %v999
          %v1011 = vadd.f32 %v872, %v1003
          %v1012 = vadd.f32 %v873, %v999
          %v1013 = vadd.f32 %v874, %v1003
          %v1014 = vadd.f32 %v875, %v999
          %v1015 = vadd.f32 %v876, %v1003
          %v1016 = vadd.f32 %v877, %v999
          %v1017 = vadd.f32 %v878, %v1003
          %v1018 = vadd.f32 %v879, %v999
          %v1019 = vadd.f32 %v880, %v1003
          %v1020 = vadd.f32 %v881, %v999
          %v1021 = vadd.f32 %v882, %v1003
          %v1022 = vadd.f32 %v883, %v999
          %v1023 = vadd.f32 %v884, %v1003
          %v1024 = vadd.f32 %v885, %v999
          %v1025 = vadd.f32 %v886, %v1003
          %v1026 = vadd.f32 %v887, %v999
          %v1027 = vadd.f32 %v888, %v1003
          %v1028 = vadd.f32 %v889, %v999
          %v1029 = vadd.f32 %v890, %v1003
          %v1030 = vadd.f32 %v891, %v999
          %v1031 = vadd.f32 %v892, %v1003
          %v1032 = vadd.f32 %v893, %v999
          %v1033 = vadd.f32 %v894, %v1003
          %v1034 = vadd.f32 %v895, %v999
          %v1035 = vadd.f32 %v896, %v1003
          %v1036 = vadd.f32 %v897, %v999
          %v1037 = vadd.f32 %v898, %v1003
          %v1038 = vadd.f32 %v899, %v999
          %v1039 = vadd.f32 %v900, %v1003
          %v1040 = vadd.f32 %v901, %v999
          %v1041 = vadd.f32 %v902, %v1003
          %v1042 = vadd.f32 %v903, %v999
          %v1043 = vadd.f32 %v904, %v1003
          %v1044 = vadd.f32 %v905, %v999
          %v1045 = vadd.f32 %v906, %v1003
          %v1046 = vadd.f32 %v907, %v999
          %v1047 = vadd.f32 %v908, %v1003
          %v1048 = vadd.f32 %v909, %v999
          %v1049 = vadd.f32 %v910, %v1003
          %v1050 = vadd.f32 %v911, %v999
          %v1051 = vadd.f32 %v912, %v1003
          %v1052 = vadd.f32 %v913, %v999
          %v1053 = vadd.f32 %v914, %v1003
          %v1054 = vadd.f32 %v915, %v999
          %v1055 = vadd.f32 %v916, %v1003
          %v1056 = vadd.f32 %v917, %v999
          %v1057 = vadd.f32 %v918, %v1003
          %v1058 = vadd.f32 %v919, %v999
          %v1059 = vadd.f32 %v920, %v1003
          %v1060 = vadd.f32 %v921, %v999
          %v1061 = vadd.f32 %v922, %v1003
          %v1062 = vadd.f32 %v923, %v999
          %v1063 = vadd.f32 %v924, %v1003
          %v1064 = vadd.f32 %v925, %v999
          %v1065 = vadd.f32 %v926, %v1003
          %v1066 = vadd.f32 %v927, %v999
          %v1067 = vadd.f32 %v928, %v1003
          %v1068 = vadd.f32 %v929, %v999
          %v1069 = vadd.f32 %v930, %v1003
          %v1070 = vadd.f32 %v931, %v999
          %v1071 = vadd.f32 %v932, %v1003
          %v1072 = vadd.f32 %v933, %v999
          %v1073 = vadd.f32 %v934, %v1003
          %v1074 = vadd.f32 %v935, %v999
          %v1075 = vadd.f32 %v936, %v1003
          %v1076 = vadd.f32 %v937, %v999
          %v1077 = vadd.f32 %v938, %v1003
          %v1078 = vadd.f32 %v939, %v999
          %v1079 = vadd.f32 %v940, %v1003
          %v1080 = vadd.f32 %v941, %v999
          %v1081 = vadd.f32 %v942, %v1003
          %v1082 = vadd.f32 %v943, %v999
          %v1083 = vadd.f32 %v944, %v1003
          %v1084 = vadd.f32 %v945, %v999
          %v1085 = vadd.f32 %v946, %v1003
          %v1086 = vadd.f32 %v947, %v999
          %v1087 = vadd.f32 %v948, %v1003
          %v1088 = vadd.f32 %v949, %v999
          %v1089 = vadd.f32 %v950, %v1003
          %v1090 = vadd.f32 %v951, %v999
          %v1091 = vadd.f32 %v952, %v1003
          %v1092 = vadd.f32 %v953, %v999
          %v1093 = vadd.f32 %v954, %v1003
          %v1094 = vadd.f32 %v955, %v999
          %v1095 = vadd.f32 %v956, %v1003
          %v1096 = vadd.f32 %v957, %v999
          %v1097 = vadd.f32 %v958, %v1003
          %v1098 = vadd.f32 %v959, %v999
          %v1099 = vadd.f32 %v960, %v1003
          %v1100 = vadd.f32 %v961, %v999
          %v1101 = vadd.f32 %v962, %v1003
          %v1102 = vadd.f32 %v963, %v999
          %v1103 = vadd.f32 %v964, %v1003
          %v1104 = vadd.f32 %v965, %v999
          %v1105 = vadd.f32 %v966, %v1003
          %v1106 = vadd.f32 %v967, %v999
          %v1107 = vadd.f32 %v968, %v1003
          %v1108 = vadd.f32 %v969, %v999
          %v1109 = vadd.f32 %v970, %v1003
          %v1110 = vadd.f32 %v971, %v999
          %v1111 = vadd.f32 %v972, %v1003
          %v1112 = vadd.f32 %v973, %v999
          %v1113 = vadd.f32 %v974, %v1003
          %v1114 = vadd.f32 %v975, %v999
          %v1115 = vadd.f32 %v976, %v1003
          %v1116 = vadd.f32 %v977, %v999
          %v1117 = vadd.f32 %v978, %v1003
          %v1118 = vadd.f32 %v979, %v999
          %v1119 = vadd.f32 %v980, %v1003
          %v1120 = vadd.f32 %v981, %v999
          %v1121 = vadd.f32 %v982, %v1003
          %v1122 = vadd.f32 %v983, %v999
          %v1123 = vadd.f32 %v984, %v1003
          %v1124 = vadd.f32 %v985, %v999
          %v1125 = vadd.f32 %v986, %v1003
          %v1126 = vadd.f32 %v987, %v999
          %v1127 = vadd.f32 %v988, %v1003
          %v1128 = vadd.f32 %v989, %v999
          %v1129 = vadd.f32 %v990, %v1003
          %v1130 = vadd.f32 %v991, %v999
          %v1131 = vadd.f32 %v992, %v1003
          %v1132 = vadd.f32 %v993, %v999
          %v1133 = vadd.f32 %v994, %v1003
          %v1134 = vlaneseq
          %v1135 = vshrl.u32 %v1134, 7
          %v1136 = vsub.s32 0, %v1135
          %v1137 = vrot.slane %v531, %v1136
          %1139 = vbcast.lane.b32.xlu0 %v1137, 256
          %v1140 = vpop.permute.xlu0 %1139
          %s1142 = sor.u32 256, 8
          %1143 = vbcast.lane.b32.xlu0 %v1137, %s1142
          %v1144 = vpop.permute.xlu0 %1143
          %s1146 = sor.u32 256, 16
          %1147 = vbcast.lane.b32.xlu0 %v1137, %s1146
          %v1148 = vpop.permute.xlu0 %1147
          %s1150 = sor.u32 256, 24
          %1151 = vbcast.lane.b32.xlu0 %v1137, %s1150
          %v1152 = vpop.permute.xlu0 %1151
          %s1154 = sor.u32 256, 32
          %1155 = vbcast.lane.b32.xlu0 %v1137, %s1154
          %v1156 = vpop.permute.xlu0 %1155
          %s1158 = sor.u32 256, 40
          %1159 = vbcast.lane.b32.xlu0 %v1137, %s1158
          %v1160 = vpop.permute.xlu0 %1159
          %s1162 = sor.u32 256, 48
          %1163 = vbcast.lane.b32.xlu0 %v1137, %s1162
          %v1164 = vpop.permute.xlu0 %1163
          %s1166 = sor.u32 256, 56
          %1167 = vbcast.lane.b32.xlu0 %v1137, %s1166
          %v1168 = vpop.permute.xlu0 %1167
          %s1170 = sor.u32 256, 64
          %1171 = vbcast.lane.b32.xlu0 %v1137, %s1170
          %v1172 = vpop.permute.xlu0 %1171
          %s1174 = sor.u32 256, 72
          %1175 = vbcast.lane.b32.xlu0 %v1137, %s1174
          %v1176 = vpop.permute.xlu0 %1175
          %s1178 = sor.u32 256, 80
          %1179 = vbcast.lane.b32.xlu0 %v1137, %s1178
          %v1180 = vpop.permute.xlu0 %1179
          %s1182 = sor.u32 256, 88
          %1183 = vbcast.lane.b32.xlu0 %v1137, %s1182
          %v1184 = vpop.permute.xlu0 %1183
          %s1186 = sor.u32 256, 96
          %1187 = vbcast.lane.b32.xlu0 %v1137, %s1186
          %v1188 = vpop.permute.xlu0 %1187
          %s1190 = sor.u32 256, 104
          %1191 = vbcast.lane.b32.xlu0 %v1137, %s1190
          %v1192 = vpop.permute.xlu0 %1191
          %s1194 = sor.u32 256, 112
          %1195 = vbcast.lane.b32.xlu0 %v1137, %s1194
          %v1196 = vpop.permute.xlu0 %1195
          %s1198 = sor.u32 256, 120
          %1199 = vbcast.lane.b32.xlu0 %v1137, %s1198
          %v1200 = vpop.permute.xlu0 %1199
          %v1201 = vlaneseq
          %v1202 = vshrl.u32 %v1201, 7
          %v1203 = vsub.s32 1, %v1202
          %v1204 = vrot.slane %v531, %v1203
          %1206 = vbcast.lane.b32.xlu0 %v1204, 256
          %v1207 = vpop.permute.xlu0 %1206
          %s1209 = sor.u32 256, 8
          %1210 = vbcast.lane.b32.xlu0 %v1204, %s1209
          %v1211 = vpop.permute.xlu0 %1210
          %s1213 = sor.u32 256, 16
          %1214 = vbcast.lane.b32.xlu0 %v1204, %s1213
          %v1215 = vpop.permute.xlu0 %1214
          %s1217 = sor.u32 256, 24
          %1218 = vbcast.lane.b32.xlu0 %v1204, %s1217
          %v1219 = vpop.permute.xlu0 %1218
          %s1221 = sor.u32 256, 32
          %1222 = vbcast.lane.b32.xlu0 %v1204, %s1221
          %v1223 = vpop.permute.xlu0 %1222
          %s1225 = sor.u32 256, 40
          %1226 = vbcast.lane.b32.xlu0 %v1204, %s1225
          %v1227 = vpop.permute.xlu0 %1226
          %s1229 = sor.u32 256, 48
          %1230 = vbcast.lane.b32.xlu0 %v1204, %s1229
          %v1231 = vpop.permute.xlu0 %1230
          %s1233 = sor.u32 256, 56
          %1234 = vbcast.lane.b32.xlu0 %v1204, %s1233
          %v1235 = vpop.permute.xlu0 %1234
          %s1237 = sor.u32 256, 64
          %1238 = vbcast.lane.b32.xlu0 %v1204, %s1237
          %v1239 = vpop.permute.xlu0 %1238
          %s1241 = sor.u32 256, 72
          %1242 = vbcast.lane.b32.xlu0 %v1204, %s1241
          %v1243 = vpop.permute.xlu0 %1242
          %s1245 = sor.u32 256, 80
          %1246 = vbcast.lane.b32.xlu0 %v1204, %s1245
          %v1247 = vpop.permute.xlu0 %1246
          %s1249 = sor.u32 256, 88
          %1250 = vbcast.lane.b32.xlu0 %v1204, %s1249
          %v1251 = vpop.permute.xlu0 %1250
          %s1253 = sor.u32 256, 96
          %1254 = vbcast.lane.b32.xlu0 %v1204, %s1253
          %v1255 = vpop.permute.xlu0 %1254
          %s1257 = sor.u32 256, 104
          %1258 = vbcast.lane.b32.xlu0 %v1204, %s1257
          %v1259 = vpop.permute.xlu0 %1258
          %s1261 = sor.u32 256, 112
          %1262 = vbcast.lane.b32.xlu0 %v1204, %s1261
          %v1263 = vpop.permute.xlu0 %1262
          %s1265 = sor.u32 256, 120
          %1266 = vbcast.lane.b32.xlu0 %v1204, %s1265
          %v1267 = vpop.permute.xlu0 %1266
          %v1268 = vlaneseq
          %v1269 = vshrl.u32 %v1268, 7
          %v1270 = vsub.s32 2, %v1269
          %v1271 = vrot.slane %v531, %v1270
          %1273 = vbcast.lane.b32.xlu0 %v1271, 256
          %v1274 = vpop.permute.xlu0 %1273
          %s1276 = sor.u32 256, 8
          %1277 = vbcast.lane.b32.xlu0 %v1271, %s1276
          %v1278 = vpop.permute.xlu0 %1277
          %s1280 = sor.u32 256, 16
          %1281 = vbcast.lane.b32.xlu0 %v1271, %s1280
          %v1282 = vpop.permute.xlu0 %1281
          %s1284 = sor.u32 256, 24
          %1285 = vbcast.lane.b32.xlu0 %v1271, %s1284
          %v1286 = vpop.permute.xlu0 %1285
          %s1288 = sor.u32 256, 32
          %1289 = vbcast.lane.b32.xlu0 %v1271, %s1288
          %v1290 = vpop.permute.xlu0 %1289
          %s1292 = sor.u32 256, 40
          %1293 = vbcast.lane.b32.xlu0 %v1271, %s1292
          %v1294 = vpop.permute.xlu0 %1293
          %s1296 = sor.u32 256, 48
          %1297 = vbcast.lane.b32.xlu0 %v1271, %s1296
          %v1298 = vpop.permute.xlu0 %1297
          %s1300 = sor.u32 256, 56
          %1301 = vbcast.lane.b32.xlu0 %v1271, %s1300
          %v1302 = vpop.permute.xlu0 %1301
          %s1304 = sor.u32 256, 64
          %1305 = vbcast.lane.b32.xlu0 %v1271, %s1304
          %v1306 = vpop.permute.xlu0 %1305
          %s1308 = sor.u32 256, 72
          %1309 = vbcast.lane.b32.xlu0 %v1271, %s1308
          %v1310 = vpop.permute.xlu0 %1309
          %s1312 = sor.u32 256, 80
          %1313 = vbcast.lane.b32.xlu0 %v1271, %s1312
          %v1314 = vpop.permute.xlu0 %1313
          %s1316 = sor.u32 256, 88
          %1317 = vbcast.lane.b32.xlu0 %v1271, %s1316
          %v1318 = vpop.permute.xlu0 %1317
          %s1320 = sor.u32 256, 96
          %1321 = vbcast.lane.b32.xlu0 %v1271, %s1320
          %v1322 = vpop.permute.xlu0 %1321
          %s1324 = sor.u32 256, 104
          %1325 = vbcast.lane.b32.xlu0 %v1271, %s1324
          %v1326 = vpop.permute.xlu0 %1325
          %s1328 = sor.u32 256, 112
          %1329 = vbcast.lane.b32.xlu0 %v1271, %s1328
          %v1330 = vpop.permute.xlu0 %1329
          %s1332 = sor.u32 256, 120
          %1333 = vbcast.lane.b32.xlu0 %v1271, %s1332
          %v1334 = vpop.permute.xlu0 %1333
          %v1335 = vlaneseq
          %v1336 = vshrl.u32 %v1335, 7
          %v1337 = vsub.s32 3, %v1336
          %v1338 = vrot.slane %v531, %v1337
          %1340 = vbcast.lane.b32.xlu0 %v1338, 256
          %v1341 = vpop.permute.xlu0 %1340
          %s1343 = sor.u32 256, 8
          %1344 = vbcast.lane.b32.xlu0 %v1338, %s1343
          %v1345 = vpop.permute.xlu0 %1344
          %s1347 = sor.u32 256, 16
          %1348 = vbcast.lane.b32.xlu0 %v1338, %s1347
          %v1349 = vpop.permute.xlu0 %1348
          %s1351 = sor.u32 256, 24
          %1352 = vbcast.lane.b32.xlu0 %v1338, %s1351
          %v1353 = vpop.permute.xlu0 %1352
          %s1355 = sor.u32 256, 32
          %1356 = vbcast.lane.b32.xlu0 %v1338, %s1355
          %v1357 = vpop.permute.xlu0 %1356
          %s1359 = sor.u32 256, 40
          %1360 = vbcast.lane.b32.xlu0 %v1338, %s1359
          %v1361 = vpop.permute.xlu0 %1360
          %s1363 = sor.u32 256, 48
          %1364 = vbcast.lane.b32.xlu0 %v1338, %s1363
          %v1365 = vpop.permute.xlu0 %1364
          %s1367 = sor.u32 256, 56
          %1368 = vbcast.lane.b32.xlu0 %v1338, %s1367
          %v1369 = vpop.permute.xlu0 %1368
          %s1371 = sor.u32 256, 64
          %1372 = vbcast.lane.b32.xlu0 %v1338, %s1371
          %v1373 = vpop.permute.xlu0 %1372
          %s1375 = sor.u32 256, 72
          %1376 = vbcast.lane.b32.xlu0 %v1338, %s1375
          %v1377 = vpop.permute.xlu0 %1376
          %s1379 = sor.u32 256, 80
          %1380 = vbcast.lane.b32.xlu0 %v1338, %s1379
          %v1381 = vpop.permute.xlu0 %1380
          %s1383 = sor.u32 256, 88
          %1384 = vbcast.lane.b32.xlu0 %v1338, %s1383
          %v1385 = vpop.permute.xlu0 %1384
          %s1387 = sor.u32 256, 96
          %1388 = vbcast.lane.b32.xlu0 %v1338, %s1387
          %v1389 = vpop.permute.xlu0 %1388
          %s1391 = sor.u32 256, 104
          %1392 = vbcast.lane.b32.xlu0 %v1338, %s1391
          %v1393 = vpop.permute.xlu0 %1392
          %s1395 = sor.u32 256, 112
          %1396 = vbcast.lane.b32.xlu0 %v1338, %s1395
          %v1397 = vpop.permute.xlu0 %1396
          %s1399 = sor.u32 256, 120
          %1400 = vbcast.lane.b32.xlu0 %v1338, %s1399
          %v1401 = vpop.permute.xlu0 %1400
          %v1402 = vsub.f32 %v1006, %v1140
          %v1403 = vsub.f32 %v1007, %v1140
          %v1404 = vsub.f32 %v1008, %v1144
          %v1405 = vsub.f32 %v1009, %v1144
          %v1406 = vsub.f32 %v1010, %v1148
          %v1407 = vsub.f32 %v1011, %v1148
          %v1408 = vsub.f32 %v1012, %v1152
          %v1409 = vsub.f32 %v1013, %v1152
          %v1410 = vsub.f32 %v1014, %v1156
          %v1411 = vsub.f32 %v1015, %v1156
          %v1412 = vsub.f32 %v1016, %v1160
          %v1413 = vsub.f32 %v1017, %v1160
          %v1414 = vsub.f32 %v1018, %v1164
          %v1415 = vsub.f32 %v1019, %v1164
          %v1416 = vsub.f32 %v1020, %v1168
          %v1417 = vsub.f32 %v1021, %v1168
          %v1418 = vsub.f32 %v1022, %v1172
          %v1419 = vsub.f32 %v1023, %v1172
          %v1420 = vsub.f32 %v1024, %v1176
          %v1421 = vsub.f32 %v1025, %v1176
          %v1422 = vsub.f32 %v1026, %v1180
          %v1423 = vsub.f32 %v1027, %v1180
          %v1424 = vsub.f32 %v1028, %v1184
          %v1425 = vsub.f32 %v1029, %v1184
          %v1426 = vsub.f32 %v1030, %v1188
          %v1427 = vsub.f32 %v1031, %v1188
          %v1428 = vsub.f32 %v1032, %v1192
          %v1429 = vsub.f32 %v1033, %v1192
          %v1430 = vsub.f32 %v1034, %v1196
          %v1431 = vsub.f32 %v1035, %v1196
          %v1432 = vsub.f32 %v1036, %v1200
          %v1433 = vsub.f32 %v1037, %v1200
          %v1434 = vsub.f32 %v1038, %v1207
          %v1435 = vsub.f32 %v1039, %v1207
          %v1436 = vsub.f32 %v1040, %v1211
          %v1437 = vsub.f32 %v1041, %v1211
          %v1438 = vsub.f32 %v1042, %v1215
          %v1439 = vsub.f32 %v1043, %v1215
          %v1440 = vsub.f32 %v1044, %v1219
          %v1441 = vsub.f32 %v1045, %v1219
          %v1442 = vsub.f32 %v1046, %v1223
          %v1443 = vsub.f32 %v1047, %v1223
          %v1444 = vsub.f32 %v1048, %v1227
          %v1445 = vsub.f32 %v1049, %v1227
          %v1446 = vsub.f32 %v1050, %v1231
          %v1447 = vsub.f32 %v1051, %v1231
          %v1448 = vsub.f32 %v1052, %v1235
          %v1449 = vsub.f32 %v1053, %v1235
          %v1450 = vsub.f32 %v1054, %v1239
          %v1451 = vsub.f32 %v1055, %v1239
          %v1452 = vsub.f32 %v1056, %v1243
          %v1453 = vsub.f32 %v1057, %v1243
          %v1454 = vsub.f32 %v1058, %v1247
          %v1455 = vsub.f32 %v1059, %v1247
          %v1456 = vsub.f32 %v1060, %v1251
          %v1457 = vsub.f32 %v1061, %v1251
          %v1458 = vsub.f32 %v1062, %v1255
          %v1459 = vsub.f32 %v1063, %v1255
          %v1460 = vsub.f32 %v1064, %v1259
          %v1461 = vsub.f32 %v1065, %v1259
          %v1462 = vsub.f32 %v1066, %v1263
          %v1463 = vsub.f32 %v1067, %v1263
          %v1464 = vsub.f32 %v1068, %v1267
          %v1465 = vsub.f32 %v1069, %v1267
          %v1466 = vsub.f32 %v1070, %v1274
          %v1467 = vsub.f32 %v1071, %v1274
          %v1468 = vsub.f32 %v1072, %v1278
          %v1469 = vsub.f32 %v1073, %v1278
          %v1470 = vsub.f32 %v1074, %v1282
          %v1471 = vsub.f32 %v1075, %v1282
          %v1472 = vsub.f32 %v1076, %v1286
          %v1473 = vsub.f32 %v1077, %v1286
          %v1474 = vsub.f32 %v1078, %v1290
          %v1475 = vsub.f32 %v1079, %v1290
          %v1476 = vsub.f32 %v1080, %v1294
          %v1477 = vsub.f32 %v1081, %v1294
          %v1478 = vsub.f32 %v1082, %v1298
          %v1479 = vsub.f32 %v1083, %v1298
          %v1480 = vsub.f32 %v1084, %v1302
          %v1481 = vsub.f32 %v1085, %v1302
          %v1482 = vsub.f32 %v1086, %v1306
          %v1483 = vsub.f32 %v1087, %v1306
          %v1484 = vsub.f32 %v1088, %v1310
          %v1485 = vsub.f32 %v1089, %v1310
          %v1486 = vsub.f32 %v1090, %v1314
          %v1487 = vsub.f32 %v1091, %v1314
          %v1488 = vsub.f32 %v1092, %v1318
          %v1489 = vsub.f32 %v1093, %v1318
          %v1490 = vsub.f32 %v1094, %v1322
          %v1491 = vsub.f32 %v1095, %v1322
          %v1492 = vsub.f32 %v1096, %v1326
          %v1493 = vsub.f32 %v1097, %v1326
          %v1494 = vsub.f32 %v1098, %v1330
          %v1495 = vsub.f32 %v1099, %v1330
          %v1496 = vsub.f32 %v1100, %v1334
          %v1497 = vsub.f32 %v1101, %v1334
          %v1498 = vsub.f32 %v1102, %v1341
          %v1499 = vsub.f32 %v1103, %v1341
          %v1500 = vsub.f32 %v1104, %v1345
          %v1501 = vsub.f32 %v1105, %v1345
          %v1502 = vsub.f32 %v1106, %v1349
          %v1503 = vsub.f32 %v1107, %v1349
          %v1504 = vsub.f32 %v1108, %v1353
          %v1505 = vsub.f32 %v1109, %v1353
          %v1506 = vsub.f32 %v1110, %v1357
          %v1507 = vsub.f32 %v1111, %v1357
          %v1508 = vsub.f32 %v1112, %v1361
          %v1509 = vsub.f32 %v1113, %v1361
          %v1510 = vsub.f32 %v1114, %v1365
          %v1511 = vsub.f32 %v1115, %v1365
          %v1512 = vsub.f32 %v1116, %v1369
          %v1513 = vsub.f32 %v1117, %v1369
          %v1514 = vsub.f32 %v1118, %v1373
          %v1515 = vsub.f32 %v1119, %v1373
          %v1516 = vsub.f32 %v1120, %v1377
          %v1517 = vsub.f32 %v1121, %v1377
          %v1518 = vsub.f32 %v1122, %v1381
          %v1519 = vsub.f32 %v1123, %v1381
          %v1520 = vsub.f32 %v1124, %v1385
          %v1521 = vsub.f32 %v1125, %v1385
          %v1522 = vsub.f32 %v1126, %v1389
          %v1523 = vsub.f32 %v1127, %v1389
          %v1524 = vsub.f32 %v1128, %v1393
          %v1525 = vsub.f32 %v1129, %v1393
          %v1526 = vsub.f32 %v1130, %v1397
          %v1527 = vsub.f32 %v1131, %v1397
          %v1528 = vsub.f32 %v1132, %v1401
          %v1529 = vsub.f32 %v1133, %v1401
          %v1530 = vmul.f32 %v1402, 1.442695
          %v1531 = vpow.pop %v1530
          %v1532 = vmul.f32 %v1403, 1.442695
          %v1533 = vpow.pop %v1532
          %v1534 = vmul.f32 %v1404, 1.442695
          %v1535 = vpow.pop %v1534
          %v1536 = vmul.f32 %v1405, 1.442695
          %v1537 = vpow.pop %v1536
          %v1538 = vmul.f32 %v1406, 1.442695
          %v1539 = vpow.pop %v1538
          %v1540 = vmul.f32 %v1407, 1.442695
          %v1541 = vpow.pop %v1540
          %v1542 = vmul.f32 %v1408, 1.442695
          %v1543 = vpow.pop %v1542
          %v1544 = vmul.f32 %v1409, 1.442695
          %v1545 = vpow.pop %v1544
          %v1546 = vmul.f32 %v1410, 1.442695
          %v1547 = vpow.pop %v1546
          %v1548 = vmul.f32 %v1411, 1.442695
          %v1549 = vpow.pop %v1548
          %v1550 = vmul.f32 %v1412, 1.442695
          %v1551 = vpow.pop %v1550
          %v1552 = vmul.f32 %v1413, 1.442695
          %v1553 = vpow.pop %v1552
          %v1554 = vmul.f32 %v1414, 1.442695
          %v1555 = vpow.pop %v1554
          %v1556 = vmul.f32 %v1415, 1.442695
          %v1557 = vpow.pop %v1556
          %v1558 = vmul.f32 %v1416, 1.442695
          %v1559 = vpow.pop %v1558
          %v1560 = vmul.f32 %v1417, 1.442695
          %v1561 = vpow.pop %v1560
          %v1562 = vmul.f32 %v1418, 1.442695
          %v1563 = vpow.pop %v1562
          %v1564 = vmul.f32 %v1419, 1.442695
          %v1565 = vpow.pop %v1564
          %v1566 = vmul.f32 %v1420, 1.442695
          %v1567 = vpow.pop %v1566
          %v1568 = vmul.f32 %v1421, 1.442695
          %v1569 = vpow.pop %v1568
          %v1570 = vmul.f32 %v1422, 1.442695
          %v1571 = vpow.pop %v1570
          %v1572 = vmul.f32 %v1423, 1.442695
          %v1573 = vpow.pop %v1572
          %v1574 = vmul.f32 %v1424, 1.442695
          %v1575 = vpow.pop %v1574
          %v1576 = vmul.f32 %v1425, 1.442695
          %v1577 = vpow.pop %v1576
          %v1578 = vmul.f32 %v1426, 1.442695
          %v1579 = vpow.pop %v1578
          %v1580 = vmul.f32 %v1427, 1.442695
          %v1581 = vpow.pop %v1580
          %v1582 = vmul.f32 %v1428, 1.442695
          %v1583 = vpow.pop %v1582
          %v1584 = vmul.f32 %v1429, 1.442695
          %v1585 = vpow.pop %v1584
          %v1586 = vmul.f32 %v1430, 1.442695
          %v1587 = vpow.pop %v1586
          %v1588 = vmul.f32 %v1431, 1.442695
          %v1589 = vpow.pop %v1588
          %v1590 = vmul.f32 %v1432, 1.442695
          %v1591 = vpow.pop %v1590
          %v1592 = vmul.f32 %v1433, 1.442695
          %v1593 = vpow.pop %v1592
          %v1594 = vmul.f32 %v1434, 1.442695
          %v1595 = vpow.pop %v1594
          %v1596 = vmul.f32 %v1435, 1.442695
          %v1597 = vpow.pop %v1596
          %v1598 = vmul.f32 %v1436, 1.442695
          %v1599 = vpow.pop %v1598
          %v1600 = vmul.f32 %v1437, 1.442695
          %v1601 = vpow.pop %v1600
          %v1602 = vmul.f32 %v1438, 1.442695
          %v1603 = vpow.pop %v1602
          %v1604 = vmul.f32 %v1439, 1.442695
          %v1605 = vpow.pop %v1604
          %v1606 = vmul.f32 %v1440, 1.442695
          %v1607 = vpow.pop %v1606
          %v1608 = vmul.f32 %v1441, 1.442695
          %v1609 = vpow.pop %v1608
          %v1610 = vmul.f32 %v1442, 1.442695
          %v1611 = vpow.pop %v1610
          %v1612 = vmul.f32 %v1443, 1.442695
          %v1613 = vpow.pop %v1612
          %v1614 = vmul.f32 %v1444, 1.442695
          %v1615 = vpow.pop %v1614
          %v1616 = vmul.f32 %v1445, 1.442695
          %v1617 = vpow.pop %v1616
          %v1618 = vmul.f32 %v1446, 1.442695
          %v1619 = vpow.pop %v1618
          %v1620 = vmul.f32 %v1447, 1.442695
          %v1621 = vpow.pop %v1620
          %v1622 = vmul.f32 %v1448, 1.442695
          %v1623 = vpow.pop %v1622
          %v1624 = vmul.f32 %v1449, 1.442695
          %v1625 = vpow.pop %v1624
          %v1626 = vmul.f32 %v1450, 1.442695
          %v1627 = vpow.pop %v1626
          %v1628 = vmul.f32 %v1451, 1.442695
          %v1629 = vpow.pop %v1628
          %v1630 = vmul.f32 %v1452, 1.442695
          %v1631 = vpow.pop %v1630
          %v1632 = vmul.f32 %v1453, 1.442695
          %v1633 = vpow.pop %v1632
          %v1634 = vmul.f32 %v1454, 1.442695
          %v1635 = vpow.pop %v1634
          %v1636 = vmul.f32 %v1455, 1.442695
          %v1637 = vpow.pop %v1636
          %v1638 = vmul.f32 %v1456, 1.442695
          %v1639 = vpow.pop %v1638
          %v1640 = vmul.f32 %v1457, 1.442695
          %v1641 = vpow.pop %v1640
          %v1642 = vmul.f32 %v1458, 1.442695
          %v1643 = vpow.pop %v1642
          %v1644 = vmul.f32 %v1459, 1.442695
          %v1645 = vpow.pop %v1644
          %v1646 = vmul.f32 %v1460, 1.442695
          %v1647 = vpow.pop %v1646
          %v1648 = vmul.f32 %v1461, 1.442695
          %v1649 = vpow.pop %v1648
          %v1650 = vmul.f32 %v1462, 1.442695
          %v1651 = vpow.pop %v1650
          %v1652 = vmul.f32 %v1463, 1.442695
          %v1653 = vpow.pop %v1652
          %v1654 = vmul.f32 %v1464, 1.442695
          %v1655 = vpow.pop %v1654
          %v1656 = vmul.f32 %v1465, 1.442695
          %v1657 = vpow.pop %v1656
          %v1658 = vmul.f32 %v1466, 1.442695
          %v1659 = vpow.pop %v1658
          %v1660 = vmul.f32 %v1467, 1.442695
          %v1661 = vpow.pop %v1660
          %v1662 = vmul.f32 %v1468, 1.442695
          %v1663 = vpow.pop %v1662
          %v1664 = vmul.f32 %v1469, 1.442695
          %v1665 = vpow.pop %v1664
          %v1666 = vmul.f32 %v1470, 1.442695
          %v1667 = vpow.pop %v1666
          %v1668 = vmul.f32 %v1471, 1.442695
          %v1669 = vpow.pop %v1668
          %v1670 = vmul.f32 %v1472, 1.442695
          %v1671 = vpow.pop %v1670
          %v1672 = vmul.f32 %v1473, 1.442695
          %v1673 = vpow.pop %v1672
          %v1674 = vmul.f32 %v1474, 1.442695
          %v1675 = vpow.pop %v1674
          %v1676 = vmul.f32 %v1475, 1.442695
          %v1677 = vpow.pop %v1676
          %v1678 = vmul.f32 %v1476, 1.442695
          %v1679 = vpow.pop %v1678
          %v1680 = vmul.f32 %v1477, 1.442695
          %v1681 = vpow.pop %v1680
          %v1682 = vmul.f32 %v1478, 1.442695
          %v1683 = vpow.pop %v1682
          %v1684 = vmul.f32 %v1479, 1.442695
          %v1685 = vpow.pop %v1684
          %v1686 = vmul.f32 %v1480, 1.442695
          %v1687 = vpow.pop %v1686
          %v1688 = vmul.f32 %v1481, 1.442695
          %v1689 = vpow.pop %v1688
          %v1690 = vmul.f32 %v1482, 1.442695
          %v1691 = vpow.pop %v1690
          %v1692 = vmul.f32 %v1483, 1.442695
          %v1693 = vpow.pop %v1692
          %v1694 = vmul.f32 %v1484, 1.442695
          %v1695 = vpow.pop %v1694
          %v1696 = vmul.f32 %v1485, 1.442695
          %v1697 = vpow.pop %v1696
          %v1698 = vmul.f32 %v1486, 1.442695
          %v1699 = vpow.pop %v1698
          %v1700 = vmul.f32 %v1487, 1.442695
          %v1701 = vpow.pop %v1700
          %v1702 = vmul.f32 %v1488, 1.442695
          %v1703 = vpow.pop %v1702
          %v1704 = vmul.f32 %v1489, 1.442695
          %v1705 = vpow.pop %v1704
          %v1706 = vmul.f32 %v1490, 1.442695
          %v1707 = vpow.pop %v1706
          %v1708 = vmul.f32 %v1491, 1.442695
          %v1709 = vpow.pop %v1708
          %v1710 = vmul.f32 %v1492, 1.442695
          %v1711 = vpow.pop %v1710
          %v1712 = vmul.f32 %v1493, 1.442695
          %v1713 = vpow.pop %v1712
          %v1714 = vmul.f32 %v1494, 1.442695
          %v1715 = vpow.pop %v1714
          %v1716 = vmul.f32 %v1495, 1.442695
          %v1717 = vpow.pop %v1716
          %v1718 = vmul.f32 %v1496, 1.442695
          %v1719 = vpow.pop %v1718
          %v1720 = vmul.f32 %v1497, 1.442695
          %v1721 = vpow.pop %v1720
          %v1722 = vmul.f32 %v1498, 1.442695
          %v1723 = vpow.pop %v1722
          %v1724 = vmul.f32 %v1499, 1.442695
          %v1725 = vpow.pop %v1724
          %v1726 = vmul.f32 %v1500, 1.442695
          %v1727 = vpow.pop %v1726
          %v1728 = vmul.f32 %v1501, 1.442695
          %v1729 = vpow.pop %v1728
          %v1730 = vmul.f32 %v1502, 1.442695
          %v1731 = vpow.pop %v1730
          %v1732 = vmul.f32 %v1503, 1.442695
          %v1733 = vpow.pop %v1732
          %v1734 = vmul.f32 %v1504, 1.442695
          %v1735 = vpow.pop %v1734
          %v1736 = vmul.f32 %v1505, 1.442695
          %v1737 = vpow.pop %v1736
          %v1738 = vmul.f32 %v1506, 1.442695
          %v1739 = vpow.pop %v1738
          %v1740 = vmul.f32 %v1507, 1.442695
          %v1741 = vpow.pop %v1740
          %v1742 = vmul.f32 %v1508, 1.442695
          %v1743 = vpow.pop %v1742
          %v1744 = vmul.f32 %v1509, 1.442695
          %v1745 = vpow.pop %v1744
          %v1746 = vmul.f32 %v1510, 1.442695
          %v1747 = vpow.pop %v1746
          %v1748 = vmul.f32 %v1511, 1.442695
          %v1749 = vpow.pop %v1748
          %v1750 = vmul.f32 %v1512, 1.442695
          %v1751 = vpow.pop %v1750
          %v1752 = vmul.f32 %v1513, 1.442695
          %v1753 = vpow.pop %v1752
          %v1754 = vmul.f32 %v1514, 1.442695
          %v1755 = vpow.pop %v1754
          %v1756 = vmul.f32 %v1515, 1.442695
          %v1757 = vpow.pop %v1756
          %v1758 = vmul.f32 %v1516, 1.442695
          %v1759 = vpow.pop %v1758
          %v1760 = vmul.f32 %v1517, 1.442695
          %v1761 = vpow.pop %v1760
          %v1762 = vmul.f32 %v1518, 1.442695
          %v1763 = vpow.pop %v1762
          %v1764 = vmul.f32 %v1519, 1.442695
          %v1765 = vpow.pop %v1764
          %v1766 = vmul.f32 %v1520, 1.442695
          %v1767 = vpow.pop %v1766
          %v1768 = vmul.f32 %v1521, 1.442695
          %v1769 = vpow.pop %v1768
          %v1770 = vmul.f32 %v1522, 1.442695
          %v1771 = vpow.pop %v1770
          %v1772 = vmul.f32 %v1523, 1.442695
          %v1773 = vpow.pop %v1772
          %v1774 = vmul.f32 %v1524, 1.442695
          %v1775 = vpow.pop %v1774
          %v1776 = vmul.f32 %v1525, 1.442695
          %v1777 = vpow.pop %v1776
          %v1778 = vmul.f32 %v1526, 1.442695
          %v1779 = vpow.pop %v1778
          %v1780 = vmul.f32 %v1527, 1.442695
          %v1781 = vpow.pop %v1780
          %v1782 = vmul.f32 %v1528, 1.442695
          %v1783 = vpow.pop %v1782
          %v1784 = vmul.f32 %v1529, 1.442695
          %v1785 = vpow.pop %v1784
          %v1786 = vsub.f32 %v1531, 1.0
          %v1787 = vsub.f32 %v1533, 1.0
          %v1788 = vsub.f32 %v1535, 1.0
          %v1789 = vsub.f32 %v1537, 1.0
          %v1790 = vsub.f32 %v1539, 1.0
          %v1791 = vsub.f32 %v1541, 1.0
          %v1792 = vsub.f32 %v1543, 1.0
          %v1793 = vsub.f32 %v1545, 1.0
          %v1794 = vsub.f32 %v1547, 1.0
          %v1795 = vsub.f32 %v1549, 1.0
          %v1796 = vsub.f32 %v1551, 1.0
          %v1797 = vsub.f32 %v1553, 1.0
          %v1798 = vsub.f32 %v1555, 1.0
          %v1799 = vsub.f32 %v1557, 1.0
          %v1800 = vsub.f32 %v1559, 1.0
          %v1801 = vsub.f32 %v1561, 1.0
          %v1802 = vsub.f32 %v1563, 1.0
          %v1803 = vsub.f32 %v1565, 1.0
          %v1804 = vsub.f32 %v1567, 1.0
          %v1805 = vsub.f32 %v1569, 1.0
          %v1806 = vsub.f32 %v1571, 1.0
          %v1807 = vsub.f32 %v1573, 1.0
          %v1808 = vsub.f32 %v1575, 1.0
          %v1809 = vsub.f32 %v1577, 1.0
          %v1810 = vsub.f32 %v1579, 1.0
          %v1811 = vsub.f32 %v1581, 1.0
          %v1812 = vsub.f32 %v1583, 1.0
          %v1813 = vsub.f32 %v1585, 1.0
          %v1814 = vsub.f32 %v1587, 1.0
          %v1815 = vsub.f32 %v1589, 1.0
          %v1816 = vsub.f32 %v1591, 1.0
          %v1817 = vsub.f32 %v1593, 1.0
          %v1818 = vsub.f32 %v1595, 1.0
          %v1819 = vsub.f32 %v1597, 1.0
          %v1820 = vsub.f32 %v1599, 1.0
          %v1821 = vsub.f32 %v1601, 1.0
          %v1822 = vsub.f32 %v1603, 1.0
          %v1823 = vsub.f32 %v1605, 1.0
          %v1824 = vsub.f32 %v1607, 1.0
          %v1825 = vsub.f32 %v1609, 1.0
          %v1826 = vsub.f32 %v1611, 1.0
          %v1827 = vsub.f32 %v1613, 1.0
          %v1828 = vsub.f32 %v1615, 1.0
          %v1829 = vsub.f32 %v1617, 1.0
          %v1830 = vsub.f32 %v1619, 1.0
          %v1831 = vsub.f32 %v1621, 1.0
          %v1832 = vsub.f32 %v1623, 1.0
          %v1833 = vsub.f32 %v1625, 1.0
          %v1834 = vsub.f32 %v1627, 1.0
          %v1835 = vsub.f32 %v1629, 1.0
          %v1836 = vsub.f32 %v1631, 1.0
          %v1837 = vsub.f32 %v1633, 1.0
          %v1838 = vsub.f32 %v1635, 1.0
          %v1839 = vsub.f32 %v1637, 1.0
          %v1840 = vsub.f32 %v1639, 1.0
          %v1841 = vsub.f32 %v1641, 1.0
          %v1842 = vsub.f32 %v1643, 1.0
          %v1843 = vsub.f32 %v1645, 1.0
          %v1844 = vsub.f32 %v1647, 1.0
          %v1845 = vsub.f32 %v1649, 1.0
          %v1846 = vsub.f32 %v1651, 1.0
          %v1847 = vsub.f32 %v1653, 1.0
          %v1848 = vsub.f32 %v1655, 1.0
          %v1849 = vsub.f32 %v1657, 1.0
          %v1850 = vsub.f32 %v1659, 1.0
          %v1851 = vsub.f32 %v1661, 1.0
          %v1852 = vsub.f32 %v1663, 1.0
          %v1853 = vsub.f32 %v1665, 1.0
          %v1854 = vsub.f32 %v1667, 1.0
          %v1855 = vsub.f32 %v1669, 1.0
          %v1856 = vsub.f32 %v1671, 1.0
          %v1857 = vsub.f32 %v1673, 1.0
          %v1858 = vsub.f32 %v1675, 1.0
          %v1859 = vsub.f32 %v1677, 1.0
          %v1860 = vsub.f32 %v1679, 1.0
          %v1861 = vsub.f32 %v1681, 1.0
          %v1862 = vsub.f32 %v1683, 1.0
          %v1863 = vsub.f32 %v1685, 1.0
          %v1864 = vsub.f32 %v1687, 1.0
          %v1865 = vsub.f32 %v1689, 1.0
          %v1866 = vsub.f32 %v1691, 1.0
          %v1867 = vsub.f32 %v1693, 1.0
          %v1868 = vsub.f32 %v1695, 1.0
          %v1869 = vsub.f32 %v1697, 1.0
          %v1870 = vsub.f32 %v1699, 1.0
          %v1871 = vsub.f32 %v1701, 1.0
          %v1872 = vsub.f32 %v1703, 1.0
          %v1873 = vsub.f32 %v1705, 1.0
          %v1874 = vsub.f32 %v1707, 1.0
          %v1875 = vsub.f32 %v1709, 1.0
          %v1876 = vsub.f32 %v1711, 1.0
          %v1877 = vsub.f32 %v1713, 1.0
          %v1878 = vsub.f32 %v1715, 1.0
          %v1879 = vsub.f32 %v1717, 1.0
          %v1880 = vsub.f32 %v1719, 1.0
          %v1881 = vsub.f32 %v1721, 1.0
          %v1882 = vsub.f32 %v1723, 1.0
          %v1883 = vsub.f32 %v1725, 1.0
          %v1884 = vsub.f32 %v1727, 1.0
          %v1885 = vsub.f32 %v1729, 1.0
          %v1886 = vsub.f32 %v1731, 1.0
          %v1887 = vsub.f32 %v1733, 1.0
          %v1888 = vsub.f32 %v1735, 1.0
          %v1889 = vsub.f32 %v1737, 1.0
          %v1890 = vsub.f32 %v1739, 1.0
          %v1891 = vsub.f32 %v1741, 1.0
          %v1892 = vsub.f32 %v1743, 1.0
          %v1893 = vsub.f32 %v1745, 1.0
          %v1894 = vsub.f32 %v1747, 1.0
          %v1895 = vsub.f32 %v1749, 1.0
          %v1896 = vsub.f32 %v1751, 1.0
          %v1897 = vsub.f32 %v1753, 1.0
          %v1898 = vsub.f32 %v1755, 1.0
          %v1899 = vsub.f32 %v1757, 1.0
          %v1900 = vsub.f32 %v1759, 1.0
          %v1901 = vsub.f32 %v1761, 1.0
          %v1902 = vsub.f32 %v1763, 1.0
          %v1903 = vsub.f32 %v1765, 1.0
          %v1904 = vsub.f32 %v1767, 1.0
          %v1905 = vsub.f32 %v1769, 1.0
          %v1906 = vsub.f32 %v1771, 1.0
          %v1907 = vsub.f32 %v1773, 1.0
          %v1908 = vsub.f32 %v1775, 1.0
          %v1909 = vsub.f32 %v1777, 1.0
          %v1910 = vsub.f32 %v1779, 1.0
          %v1911 = vsub.f32 %v1781, 1.0
          %v1912 = vsub.f32 %v1783, 1.0
          %v1913 = vsub.f32 %v1785, 1.0
          %v1914 = vpack.c.bf16 %v1788, %v1786
          %v1915 = vpack.c.bf16 %v1789, %v1787
          %v1916 = vpack.c.bf16 %v1792, %v1790
          %v1917 = vpack.c.bf16 %v1793, %v1791
          %v1918 = vpack.c.bf16 %v1796, %v1794
          %v1919 = vpack.c.bf16 %v1797, %v1795
          %v1920 = vpack.c.bf16 %v1800, %v1798
          %v1921 = vpack.c.bf16 %v1801, %v1799
          %v1922 = vpack.c.bf16 %v1804, %v1802
          %v1923 = vpack.c.bf16 %v1805, %v1803
          %v1924 = vpack.c.bf16 %v1808, %v1806
          %v1925 = vpack.c.bf16 %v1809, %v1807
          %v1926 = vpack.c.bf16 %v1812, %v1810
          %v1927 = vpack.c.bf16 %v1813, %v1811
          %v1928 = vpack.c.bf16 %v1816, %v1814
          %v1929 = vpack.c.bf16 %v1817, %v1815
          %v1930 = vpack.c.bf16 %v1820, %v1818
          %v1931 = vpack.c.bf16 %v1821, %v1819
          %v1932 = vpack.c.bf16 %v1824, %v1822
          %v1933 = vpack.c.bf16 %v1825, %v1823
          %v1934 = vpack.c.bf16 %v1828, %v1826
          %v1935 = vpack.c.bf16 %v1829, %v1827
          %v1936 = vpack.c.bf16 %v1832, %v1830
          %v1937 = vpack.c.bf16 %v1833, %v1831
          %v1938 = vpack.c.bf16 %v1836, %v1834
          %v1939 = vpack.c.bf16 %v1837, %v1835
          %v1940 = vpack.c.bf16 %v1840, %v1838
          %v1941 = vpack.c.bf16 %v1841, %v1839
          %v1942 = vpack.c.bf16 %v1844, %v1842
          %v1943 = vpack.c.bf16 %v1845, %v1843
          %v1944 = vpack.c.bf16 %v1848, %v1846
          %v1945 = vpack.c.bf16 %v1849, %v1847
          %v1946 = vpack.c.bf16 %v1852, %v1850
          %v1947 = vpack.c.bf16 %v1853, %v1851
          %v1948 = vpack.c.bf16 %v1856, %v1854
          %v1949 = vpack.c.bf16 %v1857, %v1855
          %v1950 = vpack.c.bf16 %v1860, %v1858
          %v1951 = vpack.c.bf16 %v1861, %v1859
          %v1952 = vpack.c.bf16 %v1864, %v1862
          %v1953 = vpack.c.bf16 %v1865, %v1863
          %v1954 = vpack.c.bf16 %v1868, %v1866
          %v1955 = vpack.c.bf16 %v1869, %v1867
          %v1956 = vpack.c.bf16 %v1872, %v1870
          %v1957 = vpack.c.bf16 %v1873, %v1871
          %v1958 = vpack.c.bf16 %v1876, %v1874
          %v1959 = vpack.c.bf16 %v1877, %v1875
          %v1960 = vpack.c.bf16 %v1880, %v1878
          %v1961 = vpack.c.bf16 %v1881, %v1879
          %v1962 = vpack.c.bf16 %v1884, %v1882
          %v1963 = vpack.c.bf16 %v1885, %v1883
          %v1964 = vpack.c.bf16 %v1888, %v1886
          %v1965 = vpack.c.bf16 %v1889, %v1887
          %v1966 = vpack.c.bf16 %v1892, %v1890
          %v1967 = vpack.c.bf16 %v1893, %v1891
          %v1968 = vpack.c.bf16 %v1896, %v1894
          %v1969 = vpack.c.bf16 %v1897, %v1895
          %v1970 = vpack.c.bf16 %v1900, %v1898
          %v1971 = vpack.c.bf16 %v1901, %v1899
          %v1972 = vpack.c.bf16 %v1904, %v1902
          %v1973 = vpack.c.bf16 %v1905, %v1903
          %v1974 = vpack.c.bf16 %v1908, %v1906
          %v1975 = vpack.c.bf16 %v1909, %v1907
          %v1976 = vpack.c.bf16 %v1912, %v1910
          %v1977 = vpack.c.bf16 %v1913, %v1911
          %1978 = vmatprep.subr.bf16.mxu0 %v1915
          %1979 = vmatpush1.bf16.xpose.msra.mxu0 %v1914
          %1980 = vmatprep.subr.bf16.mxu0 %v1917
          %1981 = vmatpush1.bf16.xpose.msra.mxu0 %v1916
          %1982 = vmatprep.subr.bf16.mxu0 %v1919
          %1983 = vmatpush1.bf16.xpose.msra.mxu0 %v1918
          %1984 = vmatprep.subr.bf16.mxu0 %v1921
          %1985 = vmatpush1.bf16.xpose.msra.mxu0 %v1920
          %1986 = vmatprep.subr.bf16.mxu0 %v1923
          %1987 = vmatpush1.bf16.xpose.msra.mxu0 %v1922
          %1988 = vmatprep.subr.bf16.mxu0 %v1925
          %1989 = vmatpush1.bf16.xpose.msra.mxu0 %v1924
          %1990 = vmatprep.subr.bf16.mxu0 %v1927
          %1991 = vmatpush1.bf16.xpose.msra.mxu0 %v1926
          %1992 = vmatprep.subr.bf16.mxu0 %v1929
          %1993 = vmatpush1.bf16.xpose.msra.mxu0 %v1928
          %1994 = vmatprep.subr.bf16.mxu0 0
          %1995 = vmatpush1.bf16.xpose.msra.mxu0 0
          %1996 = vmatprep.subr.bf16.mxu0 0
          %1997 = vmatpush1.bf16.xpose.msra.mxu0 0
          %1998 = vmatprep.subr.bf16.mxu0 0
          %1999 = vmatpush1.bf16.xpose.msra.mxu0 0
          %2000 = vmatprep.subr.bf16.mxu0 0
          %2001 = vmatpush1.bf16.xpose.msra.mxu0 0
          %2002 = vmatprep.subr.bf16.mxu0 0
          %2003 = vmatpush1.bf16.xpose.msra.mxu0 0
          %2004 = vmatprep.subr.bf16.mxu0 0
          %2005 = vmatpush1.bf16.xpose.msra.mxu0 0
          %2006 = vmatprep.subr.bf16.mxu0 0
          %2007 = vmatpush1.bf16.xpose.msra.mxu0 0
          %2008 = vmatprep.subr.bf16.mxu0 0
          %2009 = vmatpush1.bf16.xpose.msra.mxu0 0
          %2010 = vmatprep.mubr.bf16.mxu0 %v510
          %2011 = vmatmul.mubr.bf16.gmra.mrb[0].mxu0 %v509
          %v2012 = vpop.f32.mrb[0].mxu0
          %v2013 = vadd.f32 0.0, %v2012
          %v2014 = vpop.f32.mrb[0].mxu0
          %v2015 = vpop.f32.mrb[0].mxu0
          %v2016 = vpop.f32.mrb[0].mxu0
          %2017 = vdwg.mxu0
          %2018 = vmatprep.subr.bf16.mxu0 %v1931
          %2019 = vmatpush1.bf16.xpose.msra.mxu0 %v1930
          %2020 = vmatprep.subr.bf16.mxu0 %v1933
          %2021 = vmatpush1.bf16.xpose.msra.mxu0 %v1932
          %2022 = vmatprep.subr.bf16.mxu0 %v1935
          %2023 = vmatpush1.bf16.xpose.msra.mxu0 %v1934
          %2024 = vmatprep.subr.bf16.mxu0 %v1937
          %2025 = vmatpush1.bf16.xpose.msra.mxu0 %v1936
          %2026 = vmatprep.subr.bf16.mxu0 %v1939
          %2027 = vmatpush1.bf16.xpose.msra.mxu0 %v1938
          %2028 = vmatprep.subr.bf16.mxu0 %v1941
          %2029 = vmatpush1.bf16.xpose.msra.mxu0 %v1940
          %2030 = vmatprep.subr.bf16.mxu0 %v1943
          %2031 = vmatpush1.bf16.xpose.msra.mxu0 %v1942
          %2032 = vmatprep.subr.bf16.mxu0 %v1945
          %2033 = vmatpush1.bf16.xpose.msra.mxu0 %v1944
          %2034 = vmatprep.subr.bf16.mxu0 0
          %2035 = vmatpush1.bf16.xpose.msra.mxu0 0
          %2036 = vmatprep.subr.bf16.mxu0 0
          %2037 = vmatpush1.bf16.xpose.msra.mxu0 0
          %2038 = vmatprep.subr.bf16.mxu0 0
          %2039 = vmatpush1.bf16.xpose.msra.mxu0 0
          %2040 = vmatprep.subr.bf16.mxu0 0
          %2041 = vmatpush1.bf16.xpose.msra.mxu0 0
          %2042 = vmatprep.subr.bf16.mxu0 0
          %2043 = vmatpush1.bf16.xpose.msra.mxu0 0
          %2044 = vmatprep.subr.bf16.mxu0 0
          %2045 = vmatpush1.bf16.xpose.msra.mxu0 0
          %2046 = vmatprep.subr.bf16.mxu0 0
          %2047 = vmatpush1.bf16.xpose.msra.mxu0 0
          %2048 = vmatprep.subr.bf16.mxu0 0
          %2049 = vmatpush1.bf16.xpose.msra.mxu0 0
          %2050 = vmatprep.mubr.bf16.mxu0 %v512
          %2051 = vmatmul.mubr.bf16.gmra.mrb[0].mxu0 %v511
          %v2052 = vpop.f32.mrb[0].mxu0
          %v2053 = vadd.f32 0.0, %v2052
          %v2054 = vpop.f32.mrb[0].mxu0
          %v2055 = vpop.f32.mrb[0].mxu0
          %v2056 = vpop.f32.mrb[0].mxu0
          %2057 = vdwg.mxu0
          %2058 = vmatprep.subr.bf16.mxu0 %v1947
          %2059 = vmatpush1.bf16.xpose.msra.mxu0 %v1946
          %2060 = vmatprep.subr.bf16.mxu0 %v1949
          %2061 = vmatpush1.bf16.xpose.msra.mxu0 %v1948
          %2062 = vmatprep.subr.bf16.mxu0 %v1951
          %2063 = vmatpush1.bf16.xpose.msra.mxu0 %v1950
          %2064 = vmatprep.subr.bf16.mxu0 %v1953
          %2065 = vmatpush1.bf16.xpose.msra.mxu0 %v1952
          %2066 = vmatprep.subr.bf16.mxu0 %v1955
          %2067 = vmatpush1.bf16.xpose.msra.mxu0 %v1954
          %2068 = vmatprep.subr.bf16.mxu0 %v1957
          %2069 = vmatpush1.bf16.xpose.msra.mxu0 %v1956
          %2070 = vmatprep.subr.bf16.mxu0 %v1959
          %2071 = vmatpush1.bf16.xpose.msra.mxu0 %v1958
          %2072 = vmatprep.subr.bf16.mxu0 %v1961
          %2073 = vmatpush1.bf16.xpose.msra.mxu0 %v1960
          %2074 = vmatprep.subr.bf16.mxu0 0
          %2075 = vmatpush1.bf16.xpose.msra.mxu0 0
          %2076 = vmatprep.subr.bf16.mxu0 0
          %2077 = vmatpush1.bf16.xpose.msra.mxu0 0
          %2078 = vmatprep.subr.bf16.mxu0 0
          %2079 = vmatpush1.bf16.xpose.msra.mxu0 0
          %2080 = vmatprep.subr.bf16.mxu0 0
          %2081 = vmatpush1.bf16.xpose.msra.mxu0 0
          %2082 = vmatprep.subr.bf16.mxu0 0
          %2083 = vmatpush1.bf16.xpose.msra.mxu0 0
          %2084 = vmatprep.subr.bf16.mxu0 0
          %2085 = vmatpush1.bf16.xpose.msra.mxu0 0
          %2086 = vmatprep.subr.bf16.mxu0 0
          %2087 = vmatpush1.bf16.xpose.msra.mxu0 0
          %2088 = vmatprep.subr.bf16.mxu0 0
          %2089 = vmatpush1.bf16.xpose.msra.mxu0 0
          %2090 = vmatprep.mubr.bf16.mxu0 %v514
          %2091 = vmatmul.mubr.bf16.gmra.mrb[0].mxu0 %v513
          %v2092 = vpop.f32.mrb[0].mxu0
          %v2093 = vadd.f32 0.0, %v2092
          %v2094 = vpop.f32.mrb[0].mxu0
          %v2095 = vpop.f32.mrb[0].mxu0
          %v2096 = vpop.f32.mrb[0].mxu0
          %2097 = vdwg.mxu0
          %2098 = vmatprep.subr.bf16.mxu0 %v1963
          %2099 = vmatpush1.bf16.xpose.msra.mxu0 %v1962
          %2100 = vmatprep.subr.bf16.mxu0 %v1965
          %2101 = vmatpush1.bf16.xpose.msra.mxu0 %v1964
          %2102 = vmatprep.subr.bf16.mxu0 %v1967
          %2103 = vmatpush1.bf16.xpose.msra.mxu0 %v1966
          %2104 = vmatprep.subr.bf16.mxu0 %v1969
          %2105 = vmatpush1.bf16.xpose.msra.mxu0 %v1968
          %2106 = vmatprep.subr.bf16.mxu0 %v1971
          %2107 = vmatpush1.bf16.xpose.msra.mxu0 %v1970
          %2108 = vmatprep.subr.bf16.mxu0 %v1973
          %2109 = vmatpush1.bf16.xpose.msra.mxu0 %v1972
          %2110 = vmatprep.subr.bf16.mxu0 %v1975
          %2111 = vmatpush1.bf16.xpose.msra.mxu0 %v1974
          %2112 = vmatprep.subr.bf16.mxu0 %v1977
          %2113 = vmatpush1.bf16.xpose.msra.mxu0 %v1976
          %2114 = vmatprep.subr.bf16.mxu0 0
          %2115 = vmatpush1.bf16.xpose.msra.mxu0 0
          %2116 = vmatprep.subr.bf16.mxu0 0
          %2117 = vmatpush1.bf16.xpose.msra.mxu0 0
          %2118 = vmatprep.subr.bf16.mxu0 0
          %2119 = vmatpush1.bf16.xpose.msra.mxu0 0
          %2120 = vmatprep.subr.bf16.mxu0 0
          %2121 = vmatpush1.bf16.xpose.msra.mxu0 0
          %2122 = vmatprep.subr.bf16.mxu0 0
          %2123 = vmatpush1.bf16.xpose.msra.mxu0 0
          %2124 = vmatprep.subr.bf16.mxu0 0
          %2125 = vmatpush1.bf16.xpose.msra.mxu0 0
          %2126 = vmatprep.subr.bf16.mxu0 0
          %2127 = vmatpush1.bf16.xpose.msra.mxu0 0
          %2128 = vmatprep.subr.bf16.mxu0 0
          %2129 = vmatpush1.bf16.xpose.msra.mxu0 0
          %2130 = vmatprep.mubr.bf16.mxu0 %v516
          %2131 = vmatmul.mubr.bf16.gmra.mrb[0].mxu0 %v515
          %v2132 = vpop.f32.mrb[0].mxu0
          %v2133 = vadd.f32 0.0, %v2132
          %v2134 = vpop.f32.mrb[0].mxu0
          %v2135 = vpop.f32.mrb[0].mxu0
          %v2136 = vpop.f32.mrb[0].mxu0
          %2137 = vdwg.mxu0
          %v2139 = vrot.slane %v424, 1
          %v2140 = vrot.slane %v424, 2
          %v2141 = vrot.slane %v424, 3
          %v2146 = vadd.f32 %v2013, %v424
          %v2147 = vadd.f32 %v2053, %v2139
          %v2148 = vadd.f32 %v2093, %v2140
          %v2149 = vadd.f32 %v2133, %v2141
          %v2150 = vadd.f32 %v2013, 200.0
          %v2151 = vadd.f32 %v2053, 200.0
          %v2152 = vadd.f32 %v2093, 200.0
          %v2153 = vadd.f32 %v2133, 200.0
          %s2154 = smul.addr %s524, 4
          %s2155 = scalar_lea.vmem [#allocation2], %s2154
          %v2156 = vld [vmem:[%s2155] sm:$0xf]
          %v2158 = vrot.slane %v534, 1
          %v2159 = vrot.slane %v534, 2
          %v2160 = vrot.slane %v534, 3
          %v2165 = vsub.f32 %v2146, %v534
          %v2166 = vsub.f32 %v2147, %v2158
          %v2167 = vsub.f32 %v2148, %v2159
          %v2168 = vsub.f32 %v2149, %v2160
          %v2173 = vrot.slane %v2150, 1
          %v2174 = vrot.slane %v2151, 1
          %v2175 = vrot.slane %v2152, 1
          %v2176 = vrot.slane %v2153, 1
          %v2181 = vrcp.pop %v2173
          %v2182 = vmul.f32 %v2165, %v2181
          %v2183 = vrcp.pop %v2174
          %v2184 = vmul.f32 %v2166, %v2183
          %v2185 = vrcp.pop %v2175
          %v2186 = vmul.f32 %v2167, %v2185
          %v2187 = vrcp.pop %v2176
          %v2188 = vmul.f32 %v2168, %v2187
          %v2193 = vrot.slane %v2184, 7
          %vm2194 = vcmask 1041409
          %v2195 = vsel %vm2194, %v2193, %v2182
          %vm2196 = vcmask 1045509
          %v2197 = vsel %vm2196, %v2193, %v2195
          %v2198 = vrot.slane %v2186, 6
          %vm2199 = vcmask 1042434
          %v2200 = vsel %vm2199, %v2198, %v2197
          %vm2201 = vcmask 1046534
          %v2202 = vsel %vm2201, %v2198, %v2200
          %v2203 = vrot.slane %v2188, 5
          %vm2204 = vcmask 1043459
          %v2205 = vsel %vm2204, %v2203, %v2202
          %vm2206 = vcmask 1047559
          %v2207 = vsel %vm2206, %v2203, %v2205
          %v2209 = vadd.f32 %v2156, %v2207
          %2210 = vst [vmem:[%s2155] sm:$0xf] %v2209
        $region53: #{_lambda_.5} parent=47 // loop_footer
          %s522 = sadd.s32 1, %s518
        $region54: #{_lambda_.5} parent=47 // loop_footer_branch
          %517 = sbr.rel target = $region50
        $region55: #{_lambda_.5} parent=47 // loop_exit
          _
        %v2211 = vlaneseq
        %v2212 = vshrl.u32 %v2211, 7
        %v2213 = vsub.s32 1, %v2212
        %v2214 = vrot.slane %v280, %v2213
        %v2215 = vlaneseq
        %v2216 = vshrl.u32 %v2215, 7
        %v2217 = vsub.s32 3, %v2216
        %v2218 = vrot.slane %v280, %v2217
        %v2221 = vlaneseq
        %v2222 = vshrl.u32 %v2221, 7
        %v2223 = vsub.s32 1, %v2222
        %v2224 = vrot.slane %v2214, %v2223
        %v2225 = vlaneseq
        %v2226 = vshrl.u32 %v2225, 7
        %v2227 = vsub.s32 1, %v2226
        %v2228 = vrot.slane %v2218, %v2227
        %v2231 = vcombine.low %v2224, %v2228
        %v2233 = vmul.f32 %v278, %v2231
        %v2234 = vlaneseq
        %v2235 = vshrl.u32 %v2234, 7
        %v2236 = vsub.s32 1, %v2235
        %v2237 = vrot.slane %v281, %v2236
        %v2238 = vlaneseq
        %v2239 = vshrl.u32 %v2238, 7
        %v2240 = vsub.s32 3, %v2239
        %v2241 = vrot.slane %v281, %v2240
        %v2244 = vlaneseq
        %v2245 = vshrl.u32 %v2244, 7
        %v2246 = vsub.s32 1, %v2245
        %v2247 = vrot.slane %v2237, %v2246
        %v2248 = vlaneseq
        %v2249 = vshrl.u32 %v2248, 7
        %v2250 = vsub.s32 1, %v2249
        %v2251 = vrot.slane %v2241, %v2250
        %v2254 = vcombine.low %v2247, %v2251
        %v2256 = vmul.f32 %v278, %v2254
        %v2257 = vlaneseq
        %v2258 = vshrl.u32 %v2257, 7
        %v2259 = vsub.s32 1, %v2258
        %v2260 = vrot.slane %v282, %v2259
        %v2261 = vlaneseq
        %v2262 = vshrl.u32 %v2261, 7
        %v2263 = vsub.s32 3, %v2262
        %v2264 = vrot.slane %v282, %v2263
        %v2267 = vlaneseq
        %v2268 = vshrl.u32 %v2267, 7
        %v2269 = vsub.s32 1, %v2268
        %v2270 = vrot.slane %v2260, %v2269
        %v2271 = vlaneseq
        %v2272 = vshrl.u32 %v2271, 7
        %v2273 = vsub.s32 1, %v2272
        %v2274 = vrot.slane %v2264, %v2273
        %v2277 = vcombine.low %v2270, %v2274
        %v2279 = vmul.f32 %v278, %v2277
        %v2281 = vcombine.high %v2256, %v2256
        %v2283 = vsel %vm368, %v2256, -3e+38
        %v2284 = vsel %vm369, %v2281, -3e+38
        %v2285 = vsel %vm375, %v2283, -inf
        %v2286 = vsel %vm375, %v2284, -inf
        %v2287 = vmax.f32 %v2285, %v2286
        %2288 = vmax.xlane.f32.xlu0 %v2287
        %v2289 = vpop.xlane.xlu0 %2288
        %v2290 = vsel %vm368, %v2256, 3e+38
        %v2291 = vsel %vm369, %v2281, 3e+38
        %v2292 = vsel %vm375, %v2290, inf
        %v2293 = vsel %vm375, %v2291, inf
        %v2294 = vmin.f32 %v2292, %v2293
        %2295 = vmin.xlane.f32.xlu0 %v2294
        %v2296 = vpop.xlane.xlu0 %2295
        %v2299 = vunpack.c.l.s4 839922192
        %v2300 = vunpack.c.0.s8 %v2299
        %v2301 = vlaneseq
        %v2302 = vshrl.u32 %v2301, 7
        %v2303 = vsub.s32 %v2300, %v2302
        %v2304 = vrot.slane %v2289, %v2303
        %v2306 = vmul.f32 %v2233, %v2304
        %v2309 = vunpack.c.l.s4 839922192
        %v2310 = vunpack.c.0.s8 %v2309
        %v2311 = vlaneseq
        %v2312 = vshrl.u32 %v2311, 7
        %v2313 = vsub.s32 %v2310, %v2312
        %v2314 = vrot.slane %v2296, %v2313
        %v2316 = vmul.f32 %v2233, %v2314
        %v2317 = vmax.f32 %v2306, %v2316
        %2318 = vst [vmem:[#allocation3] sm:$0xff] %v2233
        %2319 = vst [vmem:[#allocation4] sm:$0xff] %v2317
        %v2320 = vmul.f32 %v2233, %v2256
        %v2321 = vsub.f32 %v2320, %v2317
        %v2322 = vmul.f32 %v2321, 1.442695
        %v2323 = vpow.pop %v2322
        %v2324 = vmul.f32 %v2323, %v2279
        %2325 = vst [vmem:[#allocation5] sm:$0xff] %v2324
        %v2327 = vcombine.high %v2279, %v2279
        %v2329 = vsel %vm375, %v2279, 0.0
        %v2330 = vsel %vm375, %v2327, 0.0
        %v2331 = vadd.f32 %v2329, %v2330
        %2332 = vadd.xlane.f32.xlu0 %v2331
        %v2333 = vpop.xlane.xlu0 %2332
        %v2335 = vunpack.c.l.s4 1966171168
        %v2336 = vunpack.c.0.s8 %v2335
        %v2337 = vlaneseq
        %v2338 = vshrl.u32 %v2337, 7
        %v2339 = vsub.s32 %v2336, %v2338
        %v2340 = vrot.slane %v2279, %v2339
        %v2341 = vcombine.high %v2340, %v2340
        %v2343 = vunpack.c.l.s4 1966171168
        %v2344 = vunpack.c.0.s8 %v2343
        %v2345 = vlaneseq
        %v2346 = vshrl.u32 %v2345, 7
        %v2347 = vsub.s32 %v2344, %v2346
        %v2348 = vrot.slane %v2340, %v2347
        %v2350 = vunpack.c.l.s4 1966171168
        %v2351 = vunpack.c.0.s8 %v2350
        %v2352 = vlaneseq
        %v2353 = vshrl.u32 %v2352, 7
        %v2354 = vsub.s32 %v2351, %v2353
        %v2355 = vrot.slane %v2341, %v2354
        %v2356 = vcombine.high %v2348, %v2348
        %v2357 = vcombine.high %v2355, %v2355
        %v2358 = vlaneseq
        %v2359 = vshrl.u32 %v2358, 7
        %v2360 = vsub.s32 0, %v2359
        %v2361 = vrot.slane %v2348, %v2360
        %v2362 = vlaneseq
        %v2363 = vshrl.u32 %v2362, 7
        %v2364 = vsub.s32 1, %v2363
        %v2365 = vrot.slane %v2348, %v2364
        %v2366 = vlaneseq
        %v2367 = vshrl.u32 %v2366, 7
        %v2368 = vsub.s32 0, %v2367
        %v2369 = vrot.slane %v2355, %v2368
        %v2370 = vlaneseq
        %v2371 = vshrl.u32 %v2370, 7
        %v2372 = vsub.s32 1, %v2371
        %v2373 = vrot.slane %v2355, %v2372
        %v2374 = vlaneseq
        %v2375 = vshrl.u32 %v2374, 7
        %v2376 = vsub.s32 0, %v2375
        %v2377 = vrot.slane %v2356, %v2376
        %v2378 = vlaneseq
        %v2379 = vshrl.u32 %v2378, 7
        %v2380 = vsub.s32 1, %v2379
        %v2381 = vrot.slane %v2356, %v2380
        %v2382 = vlaneseq
        %v2383 = vshrl.u32 %v2382, 7
        %v2384 = vsub.s32 0, %v2383
        %v2385 = vrot.slane %v2357, %v2384
        %v2386 = vlaneseq
        %v2387 = vshrl.u32 %v2386, 7
        %v2388 = vsub.s32 1, %v2387
        %v2389 = vrot.slane %v2357, %v2388
        %v2398 = vsel %vm500, %v2361, %v493
        %v2399 = vsel %vm500, %v2365, %v497
        %v2400 = vsel %vm500, %v2369, %v493
        %v2401 = vsel %vm500, %v2373, %v497
        %v2402 = vsel %vm500, %v2377, %v493
        %v2403 = vsel %vm500, %v2381, %v497
        %v2404 = vsel %vm500, %v2385, %v493
        %v2405 = vsel %vm500, %v2389, %v497
        %v2406 = vpack.c.bf16 %v2398, %v2398
        %v2407 = vpack.c.bf16 %v2399, %v2399
        %v2408 = vpack.c.bf16 %v2400, %v2400
        %v2409 = vpack.c.bf16 %v2401, %v2401
        %v2410 = vpack.c.bf16 %v2402, %v2402
        %v2411 = vpack.c.bf16 %v2403, %v2403
        %v2412 = vpack.c.bf16 %v2404, %v2404
        %v2413 = vpack.c.bf16 %v2405, %v2405
        loop: start=0, step=1, limit=2
        $region56: #{_lambda_.5} parent=47 // loop_pre_header
          _
        $region57: #{_lambda_.5} parent=47 // loop_header
          %s2415 = sphi 0, %s2419
          %p2416 = scmp.ge.s32.totalorder %s2415, 2
        $region58: #{_lambda_.5} parent=47 // loop_header_branch
          %2418 = sbr.rel (%p2416) target = $region62
        $region59: #{_lambda_.5} parent=47 // loop_body
          %s2420 = smul.u32 %s2415, 128
          %s2421 = sshra.s32 %s2420, 7
          %s2422 = sand.u32 %s2420, 127
          %s2423 = smul.addr %s2421, 4
          %s2424 = scalar_lea.vmem [#allocation3], %s2423
          %v2425 = vld [vmem:[%s2424] sm:$0xf]
          %s2426 = smul.addr %s2421, 4
          %s2427 = scalar_lea.vmem [#allocation4], %s2426
          %v2428 = vld [vmem:[%s2427] sm:$0xf]
          %s2429 = smul.addr %s2421, 4
          %s2430 = scalar_lea.vmem [#allocation5], %s2429
          %v2431 = vld [vmem:[%s2430] sm:$0xf]
          %v2432 = vlaneseq
          %v2433 = vshrl.u32 %v2432, 7
          %v2434 = vsub.s32 0, %v2433
          %v2435 = vrot.slane %v2425, %v2434
          %2437 = vbcast.lane.b32.xlu0 %v2435, 256
          %v2438 = vpop.permute.xlu0 %2437
          %s2440 = sor.u32 256, 8
          %2441 = vbcast.lane.b32.xlu0 %v2435, %s2440
          %v2442 = vpop.permute.xlu0 %2441
          %s2444 = sor.u32 256, 16
          %2445 = vbcast.lane.b32.xlu0 %v2435, %s2444
          %v2446 = vpop.permute.xlu0 %2445
          %s2448 = sor.u32 256, 24
          %2449 = vbcast.lane.b32.xlu0 %v2435, %s2448
          %v2450 = vpop.permute.xlu0 %2449
          %s2452 = sor.u32 256, 32
          %2453 = vbcast.lane.b32.xlu0 %v2435, %s2452
          %v2454 = vpop.permute.xlu0 %2453
          %s2456 = sor.u32 256, 40
          %2457 = vbcast.lane.b32.xlu0 %v2435, %s2456
          %v2458 = vpop.permute.xlu0 %2457
          %s2460 = sor.u32 256, 48
          %2461 = vbcast.lane.b32.xlu0 %v2435, %s2460
          %v2462 = vpop.permute.xlu0 %2461
          %s2464 = sor.u32 256, 56
          %2465 = vbcast.lane.b32.xlu0 %v2435, %s2464
          %v2466 = vpop.permute.xlu0 %2465
          %s2468 = sor.u32 256, 64
          %2469 = vbcast.lane.b32.xlu0 %v2435, %s2468
          %v2470 = vpop.permute.xlu0 %2469
          %s2472 = sor.u32 256, 72
          %2473 = vbcast.lane.b32.xlu0 %v2435, %s2472
          %v2474 = vpop.permute.xlu0 %2473
          %s2476 = sor.u32 256, 80
          %2477 = vbcast.lane.b32.xlu0 %v2435, %s2476
          %v2478 = vpop.permute.xlu0 %2477
          %s2480 = sor.u32 256, 88
          %2481 = vbcast.lane.b32.xlu0 %v2435, %s2480
          %v2482 = vpop.permute.xlu0 %2481
          %s2484 = sor.u32 256, 96
          %2485 = vbcast.lane.b32.xlu0 %v2435, %s2484
          %v2486 = vpop.permute.xlu0 %2485
          %s2488 = sor.u32 256, 104
          %2489 = vbcast.lane.b32.xlu0 %v2435, %s2488
          %v2490 = vpop.permute.xlu0 %2489
          %s2492 = sor.u32 256, 112
          %2493 = vbcast.lane.b32.xlu0 %v2435, %s2492
          %v2494 = vpop.permute.xlu0 %2493
          %s2496 = sor.u32 256, 120
          %2497 = vbcast.lane.b32.xlu0 %v2435, %s2496
          %v2498 = vpop.permute.xlu0 %2497
          %v2499 = vlaneseq
          %v2500 = vshrl.u32 %v2499, 7
          %v2501 = vsub.s32 1, %v2500
          %v2502 = vrot.slane %v2425, %v2501
          %2504 = vbcast.lane.b32.xlu0 %v2502, 256
          %v2505 = vpop.permute.xlu0 %2504
          %s2507 = sor.u32 256, 8
          %2508 = vbcast.lane.b32.xlu0 %v2502, %s2507
          %v2509 = vpop.permute.xlu0 %2508
          %s2511 = sor.u32 256, 16
          %2512 = vbcast.lane.b32.xlu0 %v2502, %s2511
          %v2513 = vpop.permute.xlu0 %2512
          %s2515 = sor.u32 256, 24
          %2516 = vbcast.lane.b32.xlu0 %v2502, %s2515
          %v2517 = vpop.permute.xlu0 %2516
          %s2519 = sor.u32 256, 32
          %2520 = vbcast.lane.b32.xlu0 %v2502, %s2519
          %v2521 = vpop.permute.xlu0 %2520
          %s2523 = sor.u32 256, 40
          %2524 = vbcast.lane.b32.xlu0 %v2502, %s2523
          %v2525 = vpop.permute.xlu0 %2524
          %s2527 = sor.u32 256, 48
          %2528 = vbcast.lane.b32.xlu0 %v2502, %s2527
          %v2529 = vpop.permute.xlu0 %2528
          %s2531 = sor.u32 256, 56
          %2532 = vbcast.lane.b32.xlu0 %v2502, %s2531
          %v2533 = vpop.permute.xlu0 %2532
          %s2535 = sor.u32 256, 64
          %2536 = vbcast.lane.b32.xlu0 %v2502, %s2535
          %v2537 = vpop.permute.xlu0 %2536
          %s2539 = sor.u32 256, 72
          %2540 = vbcast.lane.b32.xlu0 %v2502, %s2539
          %v2541 = vpop.permute.xlu0 %2540
          %s2543 = sor.u32 256, 80
          %2544 = vbcast.lane.b32.xlu0 %v2502, %s2543
          %v2545 = vpop.permute.xlu0 %2544
          %s2547 = sor.u32 256, 88
          %2548 = vbcast.lane.b32.xlu0 %v2502, %s2547
          %v2549 = vpop.permute.xlu0 %2548
          %s2551 = sor.u32 256, 96
          %2552 = vbcast.lane.b32.xlu0 %v2502, %s2551
          %v2553 = vpop.permute.xlu0 %2552
          %s2555 = sor.u32 256, 104
          %2556 = vbcast.lane.b32.xlu0 %v2502, %s2555
          %v2557 = vpop.permute.xlu0 %2556
          %s2559 = sor.u32 256, 112
          %2560 = vbcast.lane.b32.xlu0 %v2502, %s2559
          %v2561 = vpop.permute.xlu0 %2560
          %s2563 = sor.u32 256, 120
          %2564 = vbcast.lane.b32.xlu0 %v2502, %s2563
          %v2565 = vpop.permute.xlu0 %2564
          %v2566 = vlaneseq
          %v2567 = vshrl.u32 %v2566, 7
          %v2568 = vsub.s32 2, %v2567
          %v2569 = vrot.slane %v2425, %v2568
          %2571 = vbcast.lane.b32.xlu0 %v2569, 256
          %v2572 = vpop.permute.xlu0 %2571
          %s2574 = sor.u32 256, 8
          %2575 = vbcast.lane.b32.xlu0 %v2569, %s2574
          %v2576 = vpop.permute.xlu0 %2575
          %s2578 = sor.u32 256, 16
          %2579 = vbcast.lane.b32.xlu0 %v2569, %s2578
          %v2580 = vpop.permute.xlu0 %2579
          %s2582 = sor.u32 256, 24
          %2583 = vbcast.lane.b32.xlu0 %v2569, %s2582
          %v2584 = vpop.permute.xlu0 %2583
          %s2586 = sor.u32 256, 32
          %2587 = vbcast.lane.b32.xlu0 %v2569, %s2586
          %v2588 = vpop.permute.xlu0 %2587
          %s2590 = sor.u32 256, 40
          %2591 = vbcast.lane.b32.xlu0 %v2569, %s2590
          %v2592 = vpop.permute.xlu0 %2591
          %s2594 = sor.u32 256, 48
          %2595 = vbcast.lane.b32.xlu0 %v2569, %s2594
          %v2596 = vpop.permute.xlu0 %2595
          %s2598 = sor.u32 256, 56
          %2599 = vbcast.lane.b32.xlu0 %v2569, %s2598
          %v2600 = vpop.permute.xlu0 %2599
          %s2602 = sor.u32 256, 64
          %2603 = vbcast.lane.b32.xlu0 %v2569, %s2602
          %v2604 = vpop.permute.xlu0 %2603
          %s2606 = sor.u32 256, 72
          %2607 = vbcast.lane.b32.xlu0 %v2569, %s2606
          %v2608 = vpop.permute.xlu0 %2607
          %s2610 = sor.u32 256, 80
          %2611 = vbcast.lane.b32.xlu0 %v2569, %s2610
          %v2612 = vpop.permute.xlu0 %2611
          %s2614 = sor.u32 256, 88
          %2615 = vbcast.lane.b32.xlu0 %v2569, %s2614
          %v2616 = vpop.permute.xlu0 %2615
          %s2618 = sor.u32 256, 96
          %2619 = vbcast.lane.b32.xlu0 %v2569, %s2618
          %v2620 = vpop.permute.xlu0 %2619
          %s2622 = sor.u32 256, 104
          %2623 = vbcast.lane.b32.xlu0 %v2569, %s2622
          %v2624 = vpop.permute.xlu0 %2623
          %s2626 = sor.u32 256, 112
          %2627 = vbcast.lane.b32.xlu0 %v2569, %s2626
          %v2628 = vpop.permute.xlu0 %2627
          %s2630 = sor.u32 256, 120
          %2631 = vbcast.lane.b32.xlu0 %v2569, %s2630
          %v2632 = vpop.permute.xlu0 %2631
          %v2633 = vlaneseq
          %v2634 = vshrl.u32 %v2633, 7
          %v2635 = vsub.s32 3, %v2634
          %v2636 = vrot.slane %v2425, %v2635
          %2638 = vbcast.lane.b32.xlu0 %v2636, 256
          %v2639 = vpop.permute.xlu0 %2638
          %s2641 = sor.u32 256, 8
          %2642 = vbcast.lane.b32.xlu0 %v2636, %s2641
          %v2643 = vpop.permute.xlu0 %2642
          %s2645 = sor.u32 256, 16
          %2646 = vbcast.lane.b32.xlu0 %v2636, %s2645
          %v2647 = vpop.permute.xlu0 %2646
          %s2649 = sor.u32 256, 24
          %2650 = vbcast.lane.b32.xlu0 %v2636, %s2649
          %v2651 = vpop.permute.xlu0 %2650
          %s2653 = sor.u32 256, 32
          %2654 = vbcast.lane.b32.xlu0 %v2636, %s2653
          %v2655 = vpop.permute.xlu0 %2654
          %s2657 = sor.u32 256, 40
          %2658 = vbcast.lane.b32.xlu0 %v2636, %s2657
          %v2659 = vpop.permute.xlu0 %2658
          %s2661 = sor.u32 256, 48
          %2662 = vbcast.lane.b32.xlu0 %v2636, %s2661
          %v2663 = vpop.permute.xlu0 %2662
          %s2665 = sor.u32 256, 56
          %2666 = vbcast.lane.b32.xlu0 %v2636, %s2665
          %v2667 = vpop.permute.xlu0 %2666
          %s2669 = sor.u32 256, 64
          %2670 = vbcast.lane.b32.xlu0 %v2636, %s2669
          %v2671 = vpop.permute.xlu0 %2670
          %s2673 = sor.u32 256, 72
          %2674 = vbcast.lane.b32.xlu0 %v2636, %s2673
          %v2675 = vpop.permute.xlu0 %2674
          %s2677 = sor.u32 256, 80
          %2678 = vbcast.lane.b32.xlu0 %v2636, %s2677
          %v2679 = vpop.permute.xlu0 %2678
          %s2681 = sor.u32 256, 88
          %2682 = vbcast.lane.b32.xlu0 %v2636, %s2681
          %v2683 = vpop.permute.xlu0 %2682
          %s2685 = sor.u32 256, 96
          %2686 = vbcast.lane.b32.xlu0 %v2636, %s2685
          %v2687 = vpop.permute.xlu0 %2686
          %s2689 = sor.u32 256, 104
          %2690 = vbcast.lane.b32.xlu0 %v2636, %s2689
          %v2691 = vpop.permute.xlu0 %2690
          %s2693 = sor.u32 256, 112
          %2694 = vbcast.lane.b32.xlu0 %v2636, %s2693
          %v2695 = vpop.permute.xlu0 %2694
          %s2697 = sor.u32 256, 120
          %2698 = vbcast.lane.b32.xlu0 %v2636, %s2697
          %v2699 = vpop.permute.xlu0 %2698
          %v2701 = vunpack.c.l.s4 1966171168
          %v2702 = vunpack.c.0.s8 %v2701
          %v2703 = vlaneseq
          %v2704 = vshrl.u32 %v2703, 7
          %v2705 = vsub.s32 %v2702, %v2704
          %v2706 = vrot.slane %v2256, %v2705
          %v2707 = vcombine.high %v2706, %v2706
          %v2709 = vunpack.c.l.s4 1966171168
          %v2710 = vunpack.c.0.s8 %v2709
          %v2711 = vlaneseq
          %v2712 = vshrl.u32 %v2711, 7
          %v2713 = vsub.s32 %v2710, %v2712
          %v2714 = vrot.slane %v2706, %v2713
          %v2716 = vunpack.c.l.s4 1966171168
          %v2717 = vunpack.c.0.s8 %v2716
          %v2718 = vlaneseq
          %v2719 = vshrl.u32 %v2718, 7
          %v2720 = vsub.s32 %v2717, %v2719
          %v2721 = vrot.slane %v2707, %v2720
          %v2722 = vcombine.high %v2714, %v2714
          %v2723 = vcombine.high %v2721, %v2721
          %v2724 = vlaneseq
          %v2725 = vshrl.u32 %v2724, 7
          %v2726 = vsub.s32 0, %v2725
          %v2727 = vrot.slane %v2714, %v2726
          %v2728 = vlaneseq
          %v2729 = vshrl.u32 %v2728, 7
          %v2730 = vsub.s32 1, %v2729
          %v2731 = vrot.slane %v2714, %v2730
          %v2732 = vlaneseq
          %v2733 = vshrl.u32 %v2732, 7
          %v2734 = vsub.s32 0, %v2733
          %v2735 = vrot.slane %v2721, %v2734
          %v2736 = vlaneseq
          %v2737 = vshrl.u32 %v2736, 7
          %v2738 = vsub.s32 1, %v2737
          %v2739 = vrot.slane %v2721, %v2738
          %v2740 = vlaneseq
          %v2741 = vshrl.u32 %v2740, 7
          %v2742 = vsub.s32 0, %v2741
          %v2743 = vrot.slane %v2722, %v2742
          %v2744 = vlaneseq
          %v2745 = vshrl.u32 %v2744, 7
          %v2746 = vsub.s32 1, %v2745
          %v2747 = vrot.slane %v2722, %v2746
          %v2748 = vlaneseq
          %v2749 = vshrl.u32 %v2748, 7
          %v2750 = vsub.s32 0, %v2749
          %v2751 = vrot.slane %v2723, %v2750
          %v2752 = vlaneseq
          %v2753 = vshrl.u32 %v2752, 7
          %v2754 = vsub.s32 1, %v2753
          %v2755 = vrot.slane %v2723, %v2754
          %v2764 = vmul.f32 %v2438, %v2727
          %v2765 = vmul.f32 %v2438, %v2731
          %v2766 = vmul.f32 %v2442, %v2727
          %v2767 = vmul.f32 %v2442, %v2731
          %v2768 = vmul.f32 %v2446, %v2727
          %v2769 = vmul.f32 %v2446, %v2731
          %v2770 = vmul.f32 %v2450, %v2727
          %v2771 = vmul.f32 %v2450, %v2731
          %v2772 = vmul.f32 %v2454, %v2727
          %v2773 = vmul.f32 %v2454, %v2731
          %v2774 = vmul.f32 %v2458, %v2727
          %v2775 = vmul.f32 %v2458, %v2731
          %v2776 = vmul.f32 %v2462, %v2727
          %v2777 = vmul.f32 %v2462, %v2731
          %v2778 = vmul.f32 %v2466, %v2727
          %v2779 = vmul.f32 %v2466, %v2731
          %v2780 = vmul.f32 %v2470, %v2727
          %v2781 = vmul.f32 %v2470, %v2731
          %v2782 = vmul.f32 %v2474, %v2727
          %v2783 = vmul.f32 %v2474, %v2731
          %v2784 = vmul.f32 %v2478, %v2727
          %v2785 = vmul.f32 %v2478, %v2731
          %v2786 = vmul.f32 %v2482, %v2727
          %v2787 = vmul.f32 %v2482, %v2731
          %v2788 = vmul.f32 %v2486, %v2727
          %v2789 = vmul.f32 %v2486, %v2731
          %v2790 = vmul.f32 %v2490, %v2727
          %v2791 = vmul.f32 %v2490, %v2731
          %v2792 = vmul.f32 %v2494, %v2727
          %v2793 = vmul.f32 %v2494, %v2731
          %v2794 = vmul.f32 %v2498, %v2727
          %v2795 = vmul.f32 %v2498, %v2731
          %v2796 = vmul.f32 %v2505, %v2735
          %v2797 = vmul.f32 %v2505, %v2739
          %v2798 = vmul.f32 %v2509, %v2735
          %v2799 = vmul.f32 %v2509, %v2739
          %v2800 = vmul.f32 %v2513, %v2735
          %v2801 = vmul.f32 %v2513, %v2739
          %v2802 = vmul.f32 %v2517, %v2735
          %v2803 = vmul.f32 %v2517, %v2739
          %v2804 = vmul.f32 %v2521, %v2735
          %v2805 = vmul.f32 %v2521, %v2739
          %v2806 = vmul.f32 %v2525, %v2735
          %v2807 = vmul.f32 %v2525, %v2739
          %v2808 = vmul.f32 %v2529, %v2735
          %v2809 = vmul.f32 %v2529, %v2739
          %v2810 = vmul.f32 %v2533, %v2735
          %v2811 = vmul.f32 %v2533, %v2739
          %v2812 = vmul.f32 %v2537, %v2735
          %v2813 = vmul.f32 %v2537, %v2739
          %v2814 = vmul.f32 %v2541, %v2735
          %v2815 = vmul.f32 %v2541, %v2739
          %v2816 = vmul.f32 %v2545, %v2735
          %v2817 = vmul.f32 %v2545, %v2739
          %v2818 = vmul.f32 %v2549, %v2735
          %v2819 = vmul.f32 %v2549, %v2739
          %v2820 = vmul.f32 %v2553, %v2735
          %v2821 = vmul.f32 %v2553, %v2739
          %v2822 = vmul.f32 %v2557, %v2735
          %v2823 = vmul.f32 %v2557, %v2739
          %v2824 = vmul.f32 %v2561, %v2735
          %v2825 = vmul.f32 %v2561, %v2739
          %v2826 = vmul.f32 %v2565, %v2735
          %v2827 = vmul.f32 %v2565, %v2739
          %v2828 = vmul.f32 %v2572, %v2743
          %v2829 = vmul.f32 %v2572, %v2747
          %v2830 = vmul.f32 %v2576, %v2743
          %v2831 = vmul.f32 %v2576, %v2747
          %v2832 = vmul.f32 %v2580, %v2743
          %v2833 = vmul.f32 %v2580, %v2747
          %v2834 = vmul.f32 %v2584, %v2743
          %v2835 = vmul.f32 %v2584, %v2747
          %v2836 = vmul.f32 %v2588, %v2743
          %v2837 = vmul.f32 %v2588, %v2747
          %v2838 = vmul.f32 %v2592, %v2743
          %v2839 = vmul.f32 %v2592, %v2747
          %v2840 = vmul.f32 %v2596, %v2743
          %v2841 = vmul.f32 %v2596, %v2747
          %v2842 = vmul.f32 %v2600, %v2743
          %v2843 = vmul.f32 %v2600, %v2747
          %v2844 = vmul.f32 %v2604, %v2743
          %v2845 = vmul.f32 %v2604, %v2747
          %v2846 = vmul.f32 %v2608, %v2743
          %v2847 = vmul.f32 %v2608, %v2747
          %v2848 = vmul.f32 %v2612, %v2743
          %v2849 = vmul.f32 %v2612, %v2747
          %v2850 = vmul.f32 %v2616, %v2743
          %v2851 = vmul.f32 %v2616, %v2747
          %v2852 = vmul.f32 %v2620, %v2743
          %v2853 = vmul.f32 %v2620, %v2747
          %v2854 = vmul.f32 %v2624, %v2743
          %v2855 = vmul.f32 %v2624, %v2747
          %v2856 = vmul.f32 %v2628, %v2743
          %v2857 = vmul.f32 %v2628, %v2747
          %v2858 = vmul.f32 %v2632, %v2743
          %v2859 = vmul.f32 %v2632, %v2747
          %v2860 = vmul.f32 %v2639, %v2751
          %v2861 = vmul.f32 %v2639, %v2755
          %v2862 = vmul.f32 %v2643, %v2751
          %v2863 = vmul.f32 %v2643, %v2755
          %v2864 = vmul.f32 %v2647, %v2751
          %v2865 = vmul.f32 %v2647, %v2755
          %v2866 = vmul.f32 %v2651, %v2751
          %v2867 = vmul.f32 %v2651, %v2755
          %v2868 = vmul.f32 %v2655, %v2751
          %v2869 = vmul.f32 %v2655, %v2755
          %v2870 = vmul.f32 %v2659, %v2751
          %v2871 = vmul.f32 %v2659, %v2755
          %v2872 = vmul.f32 %v2663, %v2751
          %v2873 = vmul.f32 %v2663, %v2755
          %v2874 = vmul.f32 %v2667, %v2751
          %v2875 = vmul.f32 %v2667, %v2755
          %v2876 = vmul.f32 %v2671, %v2751
          %v2877 = vmul.f32 %v2671, %v2755
          %v2878 = vmul.f32 %v2675, %v2751
          %v2879 = vmul.f32 %v2675, %v2755
          %v2880 = vmul.f32 %v2679, %v2751
          %v2881 = vmul.f32 %v2679, %v2755
          %v2882 = vmul.f32 %v2683, %v2751
          %v2883 = vmul.f32 %v2683, %v2755
          %v2884 = vmul.f32 %v2687, %v2751
          %v2885 = vmul.f32 %v2687, %v2755
          %v2886 = vmul.f32 %v2691, %v2751
          %v2887 = vmul.f32 %v2691, %v2755
          %v2888 = vmul.f32 %v2695, %v2751
          %v2889 = vmul.f32 %v2695, %v2755
          %v2890 = vmul.f32 %v2699, %v2751
          %v2891 = vmul.f32 %v2699, %v2755
          %v2893 = vlaneseq
          %v2894 = vshrl.u32 %v2893, 7
          %v2895 = vsub.s32 0, %v2894
          %v2896 = vrot.slane %v284, %v2895
          %v2897 = vlaneseq
          %v2898 = vshrl.u32 %v2897, 7
          %v2899 = vsub.s32 1, %v2898
          %v2900 = vrot.slane %v284, %v2899
          %v2903 = vadd.f32 %v2764, %v2896
          %v2904 = vadd.f32 %v2765, %v2900
          %v2905 = vadd.f32 %v2766, %v2896
          %v2906 = vadd.f32 %v2767, %v2900
          %v2907 = vadd.f32 %v2768, %v2896
          %v2908 = vadd.f32 %v2769, %v2900
          %v2909 = vadd.f32 %v2770, %v2896
          %v2910 = vadd.f32 %v2771, %v2900
          %v2911 = vadd.f32 %v2772, %v2896
          %v2912 = vadd.f32 %v2773, %v2900
          %v2913 = vadd.f32 %v2774, %v2896
          %v2914 = vadd.f32 %v2775, %v2900
          %v2915 = vadd.f32 %v2776, %v2896
          %v2916 = vadd.f32 %v2777, %v2900
          %v2917 = vadd.f32 %v2778, %v2896
          %v2918 = vadd.f32 %v2779, %v2900
          %v2919 = vadd.f32 %v2780, %v2896
          %v2920 = vadd.f32 %v2781, %v2900
          %v2921 = vadd.f32 %v2782, %v2896
          %v2922 = vadd.f32 %v2783, %v2900
          %v2923 = vadd.f32 %v2784, %v2896
          %v2924 = vadd.f32 %v2785, %v2900
          %v2925 = vadd.f32 %v2786, %v2896
          %v2926 = vadd.f32 %v2787, %v2900
          %v2927 = vadd.f32 %v2788, %v2896
          %v2928 = vadd.f32 %v2789, %v2900
          %v2929 = vadd.f32 %v2790, %v2896
          %v2930 = vadd.f32 %v2791, %v2900
          %v2931 = vadd.f32 %v2792, %v2896
          %v2932 = vadd.f32 %v2793, %v2900
          %v2933 = vadd.f32 %v2794, %v2896
          %v2934 = vadd.f32 %v2795, %v2900
          %v2935 = vadd.f32 %v2796, %v2896
          %v2936 = vadd.f32 %v2797, %v2900
          %v2937 = vadd.f32 %v2798, %v2896
          %v2938 = vadd.f32 %v2799, %v2900
          %v2939 = vadd.f32 %v2800, %v2896
          %v2940 = vadd.f32 %v2801, %v2900
          %v2941 = vadd.f32 %v2802, %v2896
          %v2942 = vadd.f32 %v2803, %v2900
          %v2943 = vadd.f32 %v2804, %v2896
          %v2944 = vadd.f32 %v2805, %v2900
          %v2945 = vadd.f32 %v2806, %v2896
          %v2946 = vadd.f32 %v2807, %v2900
          %v2947 = vadd.f32 %v2808, %v2896
          %v2948 = vadd.f32 %v2809, %v2900
          %v2949 = vadd.f32 %v2810, %v2896
          %v2950 = vadd.f32 %v2811, %v2900
          %v2951 = vadd.f32 %v2812, %v2896
          %v2952 = vadd.f32 %v2813, %v2900
          %v2953 = vadd.f32 %v2814, %v2896
          %v2954 = vadd.f32 %v2815, %v2900
          %v2955 = vadd.f32 %v2816, %v2896
          %v2956 = vadd.f32 %v2817, %v2900
          %v2957 = vadd.f32 %v2818, %v2896
          %v2958 = vadd.f32 %v2819, %v2900
          %v2959 = vadd.f32 %v2820, %v2896
          %v2960 = vadd.f32 %v2821, %v2900
          %v2961 = vadd.f32 %v2822, %v2896
          %v2962 = vadd.f32 %v2823, %v2900
          %v2963 = vadd.f32 %v2824, %v2896
          %v2964 = vadd.f32 %v2825, %v2900
          %v2965 = vadd.f32 %v2826, %v2896
          %v2966 = vadd.f32 %v2827, %v2900
          %v2967 = vadd.f32 %v2828, %v2896
          %v2968 = vadd.f32 %v2829, %v2900
          %v2969 = vadd.f32 %v2830, %v2896
          %v2970 = vadd.f32 %v2831, %v2900
          %v2971 = vadd.f32 %v2832, %v2896
          %v2972 = vadd.f32 %v2833, %v2900
          %v2973 = vadd.f32 %v2834, %v2896
          %v2974 = vadd.f32 %v2835, %v2900
          %v2975 = vadd.f32 %v2836, %v2896
          %v2976 = vadd.f32 %v2837, %v2900
          %v2977 = vadd.f32 %v2838, %v2896
          %v2978 = vadd.f32 %v2839, %v2900
          %v2979 = vadd.f32 %v2840, %v2896
          %v2980 = vadd.f32 %v2841, %v2900
          %v2981 = vadd.f32 %v2842, %v2896
          %v2982 = vadd.f32 %v2843, %v2900
          %v2983 = vadd.f32 %v2844, %v2896
          %v2984 = vadd.f32 %v2845, %v2900
          %v2985 = vadd.f32 %v2846, %v2896
          %v2986 = vadd.f32 %v2847, %v2900
          %v2987 = vadd.f32 %v2848, %v2896
          %v2988 = vadd.f32 %v2849, %v2900
          %v2989 = vadd.f32 %v2850, %v2896
          %v2990 = vadd.f32 %v2851, %v2900
          %v2991 = vadd.f32 %v2852, %v2896
          %v2992 = vadd.f32 %v2853, %v2900
          %v2993 = vadd.f32 %v2854, %v2896
          %v2994 = vadd.f32 %v2855, %v2900
          %v2995 = vadd.f32 %v2856, %v2896
          %v2996 = vadd.f32 %v2857, %v2900
          %v2997 = vadd.f32 %v2858, %v2896
          %v2998 = vadd.f32 %v2859, %v2900
          %v2999 = vadd.f32 %v2860, %v2896
          %v3000 = vadd.f32 %v2861, %v2900
          %v3001 = vadd.f32 %v2862, %v2896
          %v3002 = vadd.f32 %v2863, %v2900
          %v3003 = vadd.f32 %v2864, %v2896
          %v3004 = vadd.f32 %v2865, %v2900
          %v3005 = vadd.f32 %v2866, %v2896
          %v3006 = vadd.f32 %v2867, %v2900
          %v3007 = vadd.f32 %v2868, %v2896
          %v3008 = vadd.f32 %v2869, %v2900
          %v3009 = vadd.f32 %v2870, %v2896
          %v3010 = vadd.f32 %v2871, %v2900
          %v3011 = vadd.f32 %v2872, %v2896
          %v3012 = vadd.f32 %v2873, %v2900
          %v3013 = vadd.f32 %v2874, %v2896
          %v3014 = vadd.f32 %v2875, %v2900
          %v3015 = vadd.f32 %v2876, %v2896
          %v3016 = vadd.f32 %v2877, %v2900
          %v3017 = vadd.f32 %v2878, %v2896
          %v3018 = vadd.f32 %v2879, %v2900
          %v3019 = vadd.f32 %v2880, %v2896
          %v3020 = vadd.f32 %v2881, %v2900
          %v3021 = vadd.f32 %v2882, %v2896
          %v3022 = vadd.f32 %v2883, %v2900
          %v3023 = vadd.f32 %v2884, %v2896
          %v3024 = vadd.f32 %v2885, %v2900
          %v3025 = vadd.f32 %v2886, %v2896
          %v3026 = vadd.f32 %v2887, %v2900
          %v3027 = vadd.f32 %v2888, %v2896
          %v3028 = vadd.f32 %v2889, %v2900
          %v3029 = vadd.f32 %v2890, %v2896
          %v3030 = vadd.f32 %v2891, %v2900
          %v3031 = vlaneseq
          %v3032 = vshrl.u32 %v3031, 7
          %v3033 = vsub.s32 0, %v3032
          %v3034 = vrot.slane %v2428, %v3033
          %3036 = vbcast.lane.b32.xlu0 %v3034, 256
          %v3037 = vpop.permute.xlu0 %3036
          %s3039 = sor.u32 256, 8
          %3040 = vbcast.lane.b32.xlu0 %v3034, %s3039
          %v3041 = vpop.permute.xlu0 %3040
          %s3043 = sor.u32 256, 16
          %3044 = vbcast.lane.b32.xlu0 %v3034, %s3043
          %v3045 = vpop.permute.xlu0 %3044
          %s3047 = sor.u32 256, 24
          %3048 = vbcast.lane.b32.xlu0 %v3034, %s3047
          %v3049 = vpop.permute.xlu0 %3048
          %s3051 = sor.u32 256, 32
          %3052 = vbcast.lane.b32.xlu0 %v3034, %s3051
          %v3053 = vpop.permute.xlu0 %3052
          %s3055 = sor.u32 256, 40
          %3056 = vbcast.lane.b32.xlu0 %v3034, %s3055
          %v3057 = vpop.permute.xlu0 %3056
          %s3059 = sor.u32 256, 48
          %3060 = vbcast.lane.b32.xlu0 %v3034, %s3059
          %v3061 = vpop.permute.xlu0 %3060
          %s3063 = sor.u32 256, 56
          %3064 = vbcast.lane.b32.xlu0 %v3034, %s3063
          %v3065 = vpop.permute.xlu0 %3064
          %s3067 = sor.u32 256, 64
          %3068 = vbcast.lane.b32.xlu0 %v3034, %s3067
          %v3069 = vpop.permute.xlu0 %3068
          %s3071 = sor.u32 256, 72
          %3072 = vbcast.lane.b32.xlu0 %v3034, %s3071
          %v3073 = vpop.permute.xlu0 %3072
          %s3075 = sor.u32 256, 80
          %3076 = vbcast.lane.b32.xlu0 %v3034, %s3075
          %v3077 = vpop.permute.xlu0 %3076
          %s3079 = sor.u32 256, 88
          %3080 = vbcast.lane.b32.xlu0 %v3034, %s3079
          %v3081 = vpop.permute.xlu0 %3080
          %s3083 = sor.u32 256, 96
          %3084 = vbcast.lane.b32.xlu0 %v3034, %s3083
          %v3085 = vpop.permute.xlu0 %3084
          %s3087 = sor.u32 256, 104
          %3088 = vbcast.lane.b32.xlu0 %v3034, %s3087
          %v3089 = vpop.permute.xlu0 %3088
          %s3091 = sor.u32 256, 112
          %3092 = vbcast.lane.b32.xlu0 %v3034, %s3091
          %v3093 = vpop.permute.xlu0 %3092
          %s3095 = sor.u32 256, 120
          %3096 = vbcast.lane.b32.xlu0 %v3034, %s3095
          %v3097 = vpop.permute.xlu0 %3096
          %v3098 = vlaneseq
          %v3099 = vshrl.u32 %v3098, 7
          %v3100 = vsub.s32 1, %v3099
          %v3101 = vrot.slane %v2428, %v3100
          %3103 = vbcast.lane.b32.xlu0 %v3101, 256
          %v3104 = vpop.permute.xlu0 %3103
          %s3106 = sor.u32 256, 8
          %3107 = vbcast.lane.b32.xlu0 %v3101, %s3106
          %v3108 = vpop.permute.xlu0 %3107
          %s3110 = sor.u32 256, 16
          %3111 = vbcast.lane.b32.xlu0 %v3101, %s3110
          %v3112 = vpop.permute.xlu0 %3111
          %s3114 = sor.u32 256, 24
          %3115 = vbcast.lane.b32.xlu0 %v3101, %s3114
          %v3116 = vpop.permute.xlu0 %3115
          %s3118 = sor.u32 256, 32
          %3119 = vbcast.lane.b32.xlu0 %v3101, %s3118
          %v3120 = vpop.permute.xlu0 %3119
          %s3122 = sor.u32 256, 40
          %3123 = vbcast.lane.b32.xlu0 %v3101, %s3122
          %v3124 = vpop.permute.xlu0 %3123
          %s3126 = sor.u32 256, 48
          %3127 = vbcast.lane.b32.xlu0 %v3101, %s3126
          %v3128 = vpop.permute.xlu0 %3127
          %s3130 = sor.u32 256, 56
          %3131 = vbcast.lane.b32.xlu0 %v3101, %s3130
          %v3132 = vpop.permute.xlu0 %3131
          %s3134 = sor.u32 256, 64
          %3135 = vbcast.lane.b32.xlu0 %v3101, %s3134
          %v3136 = vpop.permute.xlu0 %3135
          %s3138 = sor.u32 256, 72
          %3139 = vbcast.lane.b32.xlu0 %v3101, %s3138
          %v3140 = vpop.permute.xlu0 %3139
          %s3142 = sor.u32 256, 80
          %3143 = vbcast.lane.b32.xlu0 %v3101, %s3142
          %v3144 = vpop.permute.xlu0 %3143
          %s3146 = sor.u32 256, 88
          %3147 = vbcast.lane.b32.xlu0 %v3101, %s3146
          %v3148 = vpop.permute.xlu0 %3147
          %s3150 = sor.u32 256, 96
          %3151 = vbcast.lane.b32.xlu0 %v3101, %s3150
          %v3152 = vpop.permute.xlu0 %3151
          %s3154 = sor.u32 256, 104
          %3155 = vbcast.lane.b32.xlu0 %v3101, %s3154
          %v3156 = vpop.permute.xlu0 %3155
          %s3158 = sor.u32 256, 112
          %3159 = vbcast.lane.b32.xlu0 %v3101, %s3158
          %v3160 = vpop.permute.xlu0 %3159
          %s3162 = sor.u32 256, 120
          %3163 = vbcast.lane.b32.xlu0 %v3101, %s3162
          %v3164 = vpop.permute.xlu0 %3163
          %v3165 = vlaneseq
          %v3166 = vshrl.u32 %v3165, 7
          %v3167 = vsub.s32 2, %v3166
          %v3168 = vrot.slane %v2428, %v3167
          %3170 = vbcast.lane.b32.xlu0 %v3168, 256
          %v3171 = vpop.permute.xlu0 %3170
          %s3173 = sor.u32 256, 8
          %3174 = vbcast.lane.b32.xlu0 %v3168, %s3173
          %v3175 = vpop.permute.xlu0 %3174
          %s3177 = sor.u32 256, 16
          %3178 = vbcast.lane.b32.xlu0 %v3168, %s3177
          %v3179 = vpop.permute.xlu0 %3178
          %s3181 = sor.u32 256, 24
          %3182 = vbcast.lane.b32.xlu0 %v3168, %s3181
          %v3183 = vpop.permute.xlu0 %3182
          %s3185 = sor.u32 256, 32
          %3186 = vbcast.lane.b32.xlu0 %v3168, %s3185
          %v3187 = vpop.permute.xlu0 %3186
          %s3189 = sor.u32 256, 40
          %3190 = vbcast.lane.b32.xlu0 %v3168, %s3189
          %v3191 = vpop.permute.xlu0 %3190
          %s3193 = sor.u32 256, 48
          %3194 = vbcast.lane.b32.xlu0 %v3168, %s3193
          %v3195 = vpop.permute.xlu0 %3194
          %s3197 = sor.u32 256, 56
          %3198 = vbcast.lane.b32.xlu0 %v3168, %s3197
          %v3199 = vpop.permute.xlu0 %3198
          %s3201 = sor.u32 256, 64
          %3202 = vbcast.lane.b32.xlu0 %v3168, %s3201
          %v3203 = vpop.permute.xlu0 %3202
          %s3205 = sor.u32 256, 72
          %3206 = vbcast.lane.b32.xlu0 %v3168, %s3205
          %v3207 = vpop.permute.xlu0 %3206
          %s3209 = sor.u32 256, 80
          %3210 = vbcast.lane.b32.xlu0 %v3168, %s3209
          %v3211 = vpop.permute.xlu0 %3210
          %s3213 = sor.u32 256, 88
          %3214 = vbcast.lane.b32.xlu0 %v3168, %s3213
          %v3215 = vpop.permute.xlu0 %3214
          %s3217 = sor.u32 256, 96
          %3218 = vbcast.lane.b32.xlu0 %v3168, %s3217
          %v3219 = vpop.permute.xlu0 %3218
          %s3221 = sor.u32 256, 104
          %3222 = vbcast.lane.b32.xlu0 %v3168, %s3221
          %v3223 = vpop.permute.xlu0 %3222
          %s3225 = sor.u32 256, 112
          %3226 = vbcast.lane.b32.xlu0 %v3168, %s3225
          %v3227 = vpop.permute.xlu0 %3226
          %s3229 = sor.u32 256, 120
          %3230 = vbcast.lane.b32.xlu0 %v3168, %s3229
          %v3231 = vpop.permute.xlu0 %3230
          %v3232 = vlaneseq
          %v3233 = vshrl.u32 %v3232, 7
          %v3234 = vsub.s32 3, %v3233
          %v3235 = vrot.slane %v2428, %v3234
          %3237 = vbcast.lane.b32.xlu0 %v3235, 256
          %v3238 = vpop.permute.xlu0 %3237
          %s3240 = sor.u32 256, 8
          %3241 = vbcast.lane.b32.xlu0 %v3235, %s3240
          %v3242 = vpop.permute.xlu0 %3241
          %s3244 = sor.u32 256, 16
          %3245 = vbcast.lane.b32.xlu0 %v3235, %s3244
          %v3246 = vpop.permute.xlu0 %3245
          %s3248 = sor.u32 256, 24
          %3249 = vbcast.lane.b32.xlu0 %v3235, %s3248
          %v3250 = vpop.permute.xlu0 %3249
          %s3252 = sor.u32 256, 32
          %3253 = vbcast.lane.b32.xlu0 %v3235, %s3252
          %v3254 = vpop.permute.xlu0 %3253
          %s3256 = sor.u32 256, 40
          %3257 = vbcast.lane.b32.xlu0 %v3235, %s3256
          %v3258 = vpop.permute.xlu0 %3257
          %s3260 = sor.u32 256, 48
          %3261 = vbcast.lane.b32.xlu0 %v3235, %s3260
          %v3262 = vpop.permute.xlu0 %3261
          %s3264 = sor.u32 256, 56
          %3265 = vbcast.lane.b32.xlu0 %v3235, %s3264
          %v3266 = vpop.permute.xlu0 %3265
          %s3268 = sor.u32 256, 64
          %3269 = vbcast.lane.b32.xlu0 %v3235, %s3268
          %v3270 = vpop.permute.xlu0 %3269
          %s3272 = sor.u32 256, 72
          %3273 = vbcast.lane.b32.xlu0 %v3235, %s3272
          %v3274 = vpop.permute.xlu0 %3273
          %s3276 = sor.u32 256, 80
          %3277 = vbcast.lane.b32.xlu0 %v3235, %s3276
          %v3278 = vpop.permute.xlu0 %3277
          %s3280 = sor.u32 256, 88
          %3281 = vbcast.lane.b32.xlu0 %v3235, %s3280
          %v3282 = vpop.permute.xlu0 %3281
          %s3284 = sor.u32 256, 96
          %3285 = vbcast.lane.b32.xlu0 %v3235, %s3284
          %v3286 = vpop.permute.xlu0 %3285
          %s3288 = sor.u32 256, 104
          %3289 = vbcast.lane.b32.xlu0 %v3235, %s3288
          %v3290 = vpop.permute.xlu0 %3289
          %s3292 = sor.u32 256, 112
          %3293 = vbcast.lane.b32.xlu0 %v3235, %s3292
          %v3294 = vpop.permute.xlu0 %3293
          %s3296 = sor.u32 256, 120
          %3297 = vbcast.lane.b32.xlu0 %v3235, %s3296
          %v3298 = vpop.permute.xlu0 %3297
          %v3299 = vsub.f32 %v2903, %v3037
          %v3300 = vsub.f32 %v2904, %v3037
          %v3301 = vsub.f32 %v2905, %v3041
          %v3302 = vsub.f32 %v2906, %v3041
          %v3303 = vsub.f32 %v2907, %v3045
          %v3304 = vsub.f32 %v2908, %v3045
          %v3305 = vsub.f32 %v2909, %v3049
          %v3306 = vsub.f32 %v2910, %v3049
          %v3307 = vsub.f32 %v2911, %v3053
          %v3308 = vsub.f32 %v2912, %v3053
          %v3309 = vsub.f32 %v2913, %v3057
          %v3310 = vsub.f32 %v2914, %v3057
          %v3311 = vsub.f32 %v2915, %v3061
          %v3312 = vsub.f32 %v2916, %v3061
          %v3313 = vsub.f32 %v2917, %v3065
          %v3314 = vsub.f32 %v2918, %v3065
          %v3315 = vsub.f32 %v2919, %v3069
          %v3316 = vsub.f32 %v2920, %v3069
          %v3317 = vsub.f32 %v2921, %v3073
          %v3318 = vsub.f32 %v2922, %v3073
          %v3319 = vsub.f32 %v2923, %v3077
          %v3320 = vsub.f32 %v2924, %v3077
          %v3321 = vsub.f32 %v2925, %v3081
          %v3322 = vsub.f32 %v2926, %v3081
          %v3323 = vsub.f32 %v2927, %v3085
          %v3324 = vsub.f32 %v2928, %v3085
          %v3325 = vsub.f32 %v2929, %v3089
          %v3326 = vsub.f32 %v2930, %v3089
          %v3327 = vsub.f32 %v2931, %v3093
          %v3328 = vsub.f32 %v2932, %v3093
          %v3329 = vsub.f32 %v2933, %v3097
          %v3330 = vsub.f32 %v2934, %v3097
          %v3331 = vsub.f32 %v2935, %v3104
          %v3332 = vsub.f32 %v2936, %v3104
          %v3333 = vsub.f32 %v2937, %v3108
          %v3334 = vsub.f32 %v2938, %v3108
          %v3335 = vsub.f32 %v2939, %v3112
          %v3336 = vsub.f32 %v2940, %v3112
          %v3337 = vsub.f32 %v2941, %v3116
          %v3338 = vsub.f32 %v2942, %v3116
          %v3339 = vsub.f32 %v2943, %v3120
          %v3340 = vsub.f32 %v2944, %v3120
          %v3341 = vsub.f32 %v2945, %v3124
          %v3342 = vsub.f32 %v2946, %v3124
          %v3343 = vsub.f32 %v2947, %v3128
          %v3344 = vsub.f32 %v2948, %v3128
          %v3345 = vsub.f32 %v2949, %v3132
          %v3346 = vsub.f32 %v2950, %v3132
          %v3347 = vsub.f32 %v2951, %v3136
          %v3348 = vsub.f32 %v2952, %v3136
          %v3349 = vsub.f32 %v2953, %v3140
          %v3350 = vsub.f32 %v2954, %v3140
          %v3351 = vsub.f32 %v2955, %v3144
          %v3352 = vsub.f32 %v2956, %v3144
          %v3353 = vsub.f32 %v2957, %v3148
          %v3354 = vsub.f32 %v2958, %v3148
          %v3355 = vsub.f32 %v2959, %v3152
          %v3356 = vsub.f32 %v2960, %v3152
          %v3357 = vsub.f32 %v2961, %v3156
          %v3358 = vsub.f32 %v2962, %v3156
          %v3359 = vsub.f32 %v2963, %v3160
          %v3360 = vsub.f32 %v2964, %v3160
          %v3361 = vsub.f32 %v2965, %v3164
          %v3362 = vsub.f32 %v2966, %v3164
          %v3363 = vsub.f32 %v2967, %v3171
          %v3364 = vsub.f32 %v2968, %v3171
          %v3365 = vsub.f32 %v2969, %v3175
          %v3366 = vsub.f32 %v2970, %v3175
          %v3367 = vsub.f32 %v2971, %v3179
          %v3368 = vsub.f32 %v2972, %v3179
          %v3369 = vsub.f32 %v2973, %v3183
          %v3370 = vsub.f32 %v2974, %v3183
          %v3371 = vsub.f32 %v2975, %v3187
          %v3372 = vsub.f32 %v2976, %v3187
          %v3373 = vsub.f32 %v2977, %v3191
          %v3374 = vsub.f32 %v2978, %v3191
          %v3375 = vsub.f32 %v2979, %v3195
          %v3376 = vsub.f32 %v2980, %v3195
          %v3377 = vsub.f32 %v2981, %v3199
          %v3378 = vsub.f32 %v2982, %v3199
          %v3379 = vsub.f32 %v2983, %v3203
          %v3380 = vsub.f32 %v2984, %v3203
          %v3381 = vsub.f32 %v2985, %v3207
          %v3382 = vsub.f32 %v2986, %v3207
          %v3383 = vsub.f32 %v2987, %v3211
          %v3384 = vsub.f32 %v2988, %v3211
          %v3385 = vsub.f32 %v2989, %v3215
          %v3386 = vsub.f32 %v2990, %v3215
          %v3387 = vsub.f32 %v2991, %v3219
          %v3388 = vsub.f32 %v2992, %v3219
          %v3389 = vsub.f32 %v2993, %v3223
          %v3390 = vsub.f32 %v2994, %v3223
          %v3391 = vsub.f32 %v2995, %v3227
          %v3392 = vsub.f32 %v2996, %v3227
          %v3393 = vsub.f32 %v2997, %v3231
          %v3394 = vsub.f32 %v2998, %v3231
          %v3395 = vsub.f32 %v2999, %v3238
          %v3396 = vsub.f32 %v3000, %v3238
          %v3397 = vsub.f32 %v3001, %v3242
          %v3398 = vsub.f32 %v3002, %v3242
          %v3399 = vsub.f32 %v3003, %v3246
          %v3400 = vsub.f32 %v3004, %v3246
          %v3401 = vsub.f32 %v3005, %v3250
          %v3402 = vsub.f32 %v3006, %v3250
          %v3403 = vsub.f32 %v3007, %v3254
          %v3404 = vsub.f32 %v3008, %v3254
          %v3405 = vsub.f32 %v3009, %v3258
          %v3406 = vsub.f32 %v3010, %v3258
          %v3407 = vsub.f32 %v3011, %v3262
          %v3408 = vsub.f32 %v3012, %v3262
          %v3409 = vsub.f32 %v3013, %v3266
          %v3410 = vsub.f32 %v3014, %v3266
          %v3411 = vsub.f32 %v3015, %v3270
          %v3412 = vsub.f32 %v3016, %v3270
          %v3413 = vsub.f32 %v3017, %v3274
          %v3414 = vsub.f32 %v3018, %v3274
          %v3415 = vsub.f32 %v3019, %v3278
          %v3416 = vsub.f32 %v3020, %v3278
          %v3417 = vsub.f32 %v3021, %v3282
          %v3418 = vsub.f32 %v3022, %v3282
          %v3419 = vsub.f32 %v3023, %v3286
          %v3420 = vsub.f32 %v3024, %v3286
          %v3421 = vsub.f32 %v3025, %v3290
          %v3422 = vsub.f32 %v3026, %v3290
          %v3423 = vsub.f32 %v3027, %v3294
          %v3424 = vsub.f32 %v3028, %v3294
          %v3425 = vsub.f32 %v3029, %v3298
          %v3426 = vsub.f32 %v3030, %v3298
          %v3427 = vmul.f32 %v3299, 1.442695
          %v3428 = vpow.pop %v3427
          %v3429 = vmul.f32 %v3300, 1.442695
          %v3430 = vpow.pop %v3429
          %v3431 = vmul.f32 %v3301, 1.442695
          %v3432 = vpow.pop %v3431
          %v3433 = vmul.f32 %v3302, 1.442695
          %v3434 = vpow.pop %v3433
          %v3435 = vmul.f32 %v3303, 1.442695
          %v3436 = vpow.pop %v3435
          %v3437 = vmul.f32 %v3304, 1.442695
          %v3438 = vpow.pop %v3437
          %v3439 = vmul.f32 %v3305, 1.442695
          %v3440 = vpow.pop %v3439
          %v3441 = vmul.f32 %v3306, 1.442695
          %v3442 = vpow.pop %v3441
          %v3443 = vmul.f32 %v3307, 1.442695
          %v3444 = vpow.pop %v3443
          %v3445 = vmul.f32 %v3308, 1.442695
          %v3446 = vpow.pop %v3445
          %v3447 = vmul.f32 %v3309, 1.442695
          %v3448 = vpow.pop %v3447
          %v3449 = vmul.f32 %v3310, 1.442695
          %v3450 = vpow.pop %v3449
          %v3451 = vmul.f32 %v3311, 1.442695
          %v3452 = vpow.pop %v3451
          %v3453 = vmul.f32 %v3312, 1.442695
          %v3454 = vpow.pop %v3453
          %v3455 = vmul.f32 %v3313, 1.442695
          %v3456 = vpow.pop %v3455
          %v3457 = vmul.f32 %v3314, 1.442695
          %v3458 = vpow.pop %v3457
          %v3459 = vmul.f32 %v3315, 1.442695
          %v3460 = vpow.pop %v3459
          %v3461 = vmul.f32 %v3316, 1.442695
          %v3462 = vpow.pop %v3461
          %v3463 = vmul.f32 %v3317, 1.442695
          %v3464 = vpow.pop %v3463
          %v3465 = vmul.f32 %v3318, 1.442695
          %v3466 = vpow.pop %v3465
          %v3467 = vmul.f32 %v3319, 1.442695
          %v3468 = vpow.pop %v3467
          %v3469 = vmul.f32 %v3320, 1.442695
          %v3470 = vpow.pop %v3469
          %v3471 = vmul.f32 %v3321, 1.442695
          %v3472 = vpow.pop %v3471
          %v3473 = vmul.f32 %v3322, 1.442695
          %v3474 = vpow.pop %v3473
          %v3475 = vmul.f32 %v3323, 1.442695
          %v3476 = vpow.pop %v3475
          %v3477 = vmul.f32 %v3324, 1.442695
          %v3478 = vpow.pop %v3477
          %v3479 = vmul.f32 %v3325, 1.442695
          %v3480 = vpow.pop %v3479
          %v3481 = vmul.f32 %v3326, 1.442695
          %v3482 = vpow.pop %v3481
          %v3483 = vmul.f32 %v3327, 1.442695
          %v3484 = vpow.pop %v3483
          %v3485 = vmul.f32 %v3328, 1.442695
          %v3486 = vpow.pop %v3485
          %v3487 = vmul.f32 %v3329, 1.442695
          %v3488 = vpow.pop %v3487
          %v3489 = vmul.f32 %v3330, 1.442695
          %v3490 = vpow.pop %v3489
          %v3491 = vmul.f32 %v3331, 1.442695
          %v3492 = vpow.pop %v3491
          %v3493 = vmul.f32 %v3332, 1.442695
          %v3494 = vpow.pop %v3493
          %v3495 = vmul.f32 %v3333, 1.442695
          %v3496 = vpow.pop %v3495
          %v3497 = vmul.f32 %v3334, 1.442695
          %v3498 = vpow.pop %v3497
          %v3499 = vmul.f32 %v3335, 1.442695
          %v3500 = vpow.pop %v3499
          %v3501 = vmul.f32 %v3336, 1.442695
          %v3502 = vpow.pop %v3501
          %v3503 = vmul.f32 %v3337, 1.442695
          %v3504 = vpow.pop %v3503
          %v3505 = vmul.f32 %v3338, 1.442695
          %v3506 = vpow.pop %v3505
          %v3507 = vmul.f32 %v3339, 1.442695
          %v3508 = vpow.pop %v3507
          %v3509 = vmul.f32 %v3340, 1.442695
          %v3510 = vpow.pop %v3509
          %v3511 = vmul.f32 %v3341, 1.442695
          %v3512 = vpow.pop %v3511
          %v3513 = vmul.f32 %v3342, 1.442695
          %v3514 = vpow.pop %v3513
          %v3515 = vmul.f32 %v3343, 1.442695
          %v3516 = vpow.pop %v3515
          %v3517 = vmul.f32 %v3344, 1.442695
          %v3518 = vpow.pop %v3517
          %v3519 = vmul.f32 %v3345, 1.442695
          %v3520 = vpow.pop %v3519
          %v3521 = vmul.f32 %v3346, 1.442695
          %v3522 = vpow.pop %v3521
          %v3523 = vmul.f32 %v3347, 1.442695
          %v3524 = vpow.pop %v3523
          %v3525 = vmul.f32 %v3348, 1.442695
          %v3526 = vpow.pop %v3525
          %v3527 = vmul.f32 %v3349, 1.442695
          %v3528 = vpow.pop %v3527
          %v3529 = vmul.f32 %v3350, 1.442695
          %v3530 = vpow.pop %v3529
          %v3531 = vmul.f32 %v3351, 1.442695
          %v3532 = vpow.pop %v3531
          %v3533 = vmul.f32 %v3352, 1.442695
          %v3534 = vpow.pop %v3533
          %v3535 = vmul.f32 %v3353, 1.442695
          %v3536 = vpow.pop %v3535
          %v3537 = vmul.f32 %v3354, 1.442695
          %v3538 = vpow.pop %v3537
          %v3539 = vmul.f32 %v3355, 1.442695
          %v3540 = vpow.pop %v3539
          %v3541 = vmul.f32 %v3356, 1.442695
          %v3542 = vpow.pop %v3541
          %v3543 = vmul.f32 %v3357, 1.442695
          %v3544 = vpow.pop %v3543
          %v3545 = vmul.f32 %v3358, 1.442695
          %v3546 = vpow.pop %v3545
          %v3547 = vmul.f32 %v3359, 1.442695
          %v3548 = vpow.pop %v3547
          %v3549 = vmul.f32 %v3360, 1.442695
          %v3550 = vpow.pop %v3549
          %v3551 = vmul.f32 %v3361, 1.442695
          %v3552 = vpow.pop %v3551
          %v3553 = vmul.f32 %v3362, 1.442695
          %v3554 = vpow.pop %v3553
          %v3555 = vmul.f32 %v3363, 1.442695
          %v3556 = vpow.pop %v3555
          %v3557 = vmul.f32 %v3364, 1.442695
          %v3558 = vpow.pop %v3557
          %v3559 = vmul.f32 %v3365, 1.442695
          %v3560 = vpow.pop %v3559
          %v3561 = vmul.f32 %v3366, 1.442695
          %v3562 = vpow.pop %v3561
          %v3563 = vmul.f32 %v3367, 1.442695
          %v3564 = vpow.pop %v3563
          %v3565 = vmul.f32 %v3368, 1.442695
          %v3566 = vpow.pop %v3565
          %v3567 = vmul.f32 %v3369, 1.442695
          %v3568 = vpow.pop %v3567
          %v3569 = vmul.f32 %v3370, 1.442695
          %v3570 = vpow.pop %v3569
          %v3571 = vmul.f32 %v3371, 1.442695
          %v3572 = vpow.pop %v3571
          %v3573 = vmul.f32 %v3372, 1.442695
          %v3574 = vpow.pop %v3573
          %v3575 = vmul.f32 %v3373, 1.442695
          %v3576 = vpow.pop %v3575
          %v3577 = vmul.f32 %v3374, 1.442695
          %v3578 = vpow.pop %v3577
          %v3579 = vmul.f32 %v3375, 1.442695
          %v3580 = vpow.pop %v3579
          %v3581 = vmul.f32 %v3376, 1.442695
          %v3582 = vpow.pop %v3581
          %v3583 = vmul.f32 %v3377, 1.442695
          %v3584 = vpow.pop %v3583
          %v3585 = vmul.f32 %v3378, 1.442695
          %v3586 = vpow.pop %v3585
          %v3587 = vmul.f32 %v3379, 1.442695
          %v3588 = vpow.pop %v3587
          %v3589 = vmul.f32 %v3380, 1.442695
          %v3590 = vpow.pop %v3589
          %v3591 = vmul.f32 %v3381, 1.442695
          %v3592 = vpow.pop %v3591
          %v3593 = vmul.f32 %v3382, 1.442695
          %v3594 = vpow.pop %v3593
          %v3595 = vmul.f32 %v3383, 1.442695
          %v3596 = vpow.pop %v3595
          %v3597 = vmul.f32 %v3384, 1.442695
          %v3598 = vpow.pop %v3597
          %v3599 = vmul.f32 %v3385, 1.442695
          %v3600 = vpow.pop %v3599
          %v3601 = vmul.f32 %v3386, 1.442695
          %v3602 = vpow.pop %v3601
          %v3603 = vmul.f32 %v3387, 1.442695
          %v3604 = vpow.pop %v3603
          %v3605 = vmul.f32 %v3388, 1.442695
          %v3606 = vpow.pop %v3605
          %v3607 = vmul.f32 %v3389, 1.442695
          %v3608 = vpow.pop %v3607
          %v3609 = vmul.f32 %v3390, 1.442695
          %v3610 = vpow.pop %v3609
          %v3611 = vmul.f32 %v3391, 1.442695
          %v3612 = vpow.pop %v3611
          %v3613 = vmul.f32 %v3392, 1.442695
          %v3614 = vpow.pop %v3613
          %v3615 = vmul.f32 %v3393, 1.442695
          %v3616 = vpow.pop %v3615
          %v3617 = vmul.f32 %v3394, 1.442695
          %v3618 = vpow.pop %v3617
          %v3619 = vmul.f32 %v3395, 1.442695
          %v3620 = vpow.pop %v3619
          %v3621 = vmul.f32 %v3396, 1.442695
          %v3622 = vpow.pop %v3621
          %v3623 = vmul.f32 %v3397, 1.442695
          %v3624 = vpow.pop %v3623
          %v3625 = vmul.f32 %v3398, 1.442695
          %v3626 = vpow.pop %v3625
          %v3627 = vmul.f32 %v3399, 1.442695
          %v3628 = vpow.pop %v3627
          %v3629 = vmul.f32 %v3400, 1.442695
          %v3630 = vpow.pop %v3629
          %v3631 = vmul.f32 %v3401, 1.442695
          %v3632 = vpow.pop %v3631
          %v3633 = vmul.f32 %v3402, 1.442695
          %v3634 = vpow.pop %v3633
          %v3635 = vmul.f32 %v3403, 1.442695
          %v3636 = vpow.pop %v3635
          %v3637 = vmul.f32 %v3404, 1.442695
          %v3638 = vpow.pop %v3637
          %v3639 = vmul.f32 %v3405, 1.442695
          %v3640 = vpow.pop %v3639
          %v3641 = vmul.f32 %v3406, 1.442695
          %v3642 = vpow.pop %v3641
          %v3643 = vmul.f32 %v3407, 1.442695
          %v3644 = vpow.pop %v3643
          %v3645 = vmul.f32 %v3408, 1.442695
          %v3646 = vpow.pop %v3645
          %v3647 = vmul.f32 %v3409, 1.442695
          %v3648 = vpow.pop %v3647
          %v3649 = vmul.f32 %v3410, 1.442695
          %v3650 = vpow.pop %v3649
          %v3651 = vmul.f32 %v3411, 1.442695
          %v3652 = vpow.pop %v3651
          %v3653 = vmul.f32 %v3412, 1.442695
          %v3654 = vpow.pop %v3653
          %v3655 = vmul.f32 %v3413, 1.442695
          %v3656 = vpow.pop %v3655
          %v3657 = vmul.f32 %v3414, 1.442695
          %v3658 = vpow.pop %v3657
          %v3659 = vmul.f32 %v3415, 1.442695
          %v3660 = vpow.pop %v3659
          %v3661 = vmul.f32 %v3416, 1.442695
          %v3662 = vpow.pop %v3661
          %v3663 = vmul.f32 %v3417, 1.442695
          %v3664 = vpow.pop %v3663
          %v3665 = vmul.f32 %v3418, 1.442695
          %v3666 = vpow.pop %v3665
          %v3667 = vmul.f32 %v3419, 1.442695
          %v3668 = vpow.pop %v3667
          %v3669 = vmul.f32 %v3420, 1.442695
          %v3670 = vpow.pop %v3669
          %v3671 = vmul.f32 %v3421, 1.442695
          %v3672 = vpow.pop %v3671
          %v3673 = vmul.f32 %v3422, 1.442695
          %v3674 = vpow.pop %v3673
          %v3675 = vmul.f32 %v3423, 1.442695
          %v3676 = vpow.pop %v3675
          %v3677 = vmul.f32 %v3424, 1.442695
          %v3678 = vpow.pop %v3677
          %v3679 = vmul.f32 %v3425, 1.442695
          %v3680 = vpow.pop %v3679
          %v3681 = vmul.f32 %v3426, 1.442695
          %v3682 = vpow.pop %v3681
          %v3683 = vsub.f32 %v3428, 1.0
          %v3684 = vsub.f32 %v3430, 1.0
          %v3685 = vsub.f32 %v3432, 1.0
          %v3686 = vsub.f32 %v3434, 1.0
          %v3687 = vsub.f32 %v3436, 1.0
          %v3688 = vsub.f32 %v3438, 1.0
          %v3689 = vsub.f32 %v3440, 1.0
          %v3690 = vsub.f32 %v3442, 1.0
          %v3691 = vsub.f32 %v3444, 1.0
          %v3692 = vsub.f32 %v3446, 1.0
          %v3693 = vsub.f32 %v3448, 1.0
          %v3694 = vsub.f32 %v3450, 1.0
          %v3695 = vsub.f32 %v3452, 1.0
          %v3696 = vsub.f32 %v3454, 1.0
          %v3697 = vsub.f32 %v3456, 1.0
          %v3698 = vsub.f32 %v3458, 1.0
          %v3699 = vsub.f32 %v3460, 1.0
          %v3700 = vsub.f32 %v3462, 1.0
          %v3701 = vsub.f32 %v3464, 1.0
          %v3702 = vsub.f32 %v3466, 1.0
          %v3703 = vsub.f32 %v3468, 1.0
          %v3704 = vsub.f32 %v3470, 1.0
          %v3705 = vsub.f32 %v3472, 1.0
          %v3706 = vsub.f32 %v3474, 1.0
          %v3707 = vsub.f32 %v3476, 1.0
          %v3708 = vsub.f32 %v3478, 1.0
          %v3709 = vsub.f32 %v3480, 1.0
          %v3710 = vsub.f32 %v3482, 1.0
          %v3711 = vsub.f32 %v3484, 1.0
          %v3712 = vsub.f32 %v3486, 1.0
          %v3713 = vsub.f32 %v3488, 1.0
          %v3714 = vsub.f32 %v3490, 1.0
          %v3715 = vsub.f32 %v3492, 1.0
          %v3716 = vsub.f32 %v3494, 1.0
          %v3717 = vsub.f32 %v3496, 1.0
          %v3718 = vsub.f32 %v3498, 1.0
          %v3719 = vsub.f32 %v3500, 1.0
          %v3720 = vsub.f32 %v3502, 1.0
          %v3721 = vsub.f32 %v3504, 1.0
          %v3722 = vsub.f32 %v3506, 1.0
          %v3723 = vsub.f32 %v3508, 1.0
          %v3724 = vsub.f32 %v3510, 1.0
          %v3725 = vsub.f32 %v3512, 1.0
          %v3726 = vsub.f32 %v3514, 1.0
          %v3727 = vsub.f32 %v3516, 1.0
          %v3728 = vsub.f32 %v3518, 1.0
          %v3729 = vsub.f32 %v3520, 1.0
          %v3730 = vsub.f32 %v3522, 1.0
          %v3731 = vsub.f32 %v3524, 1.0
          %v3732 = vsub.f32 %v3526, 1.0
          %v3733 = vsub.f32 %v3528, 1.0
          %v3734 = vsub.f32 %v3530, 1.0
          %v3735 = vsub.f32 %v3532, 1.0
          %v3736 = vsub.f32 %v3534, 1.0
          %v3737 = vsub.f32 %v3536, 1.0
          %v3738 = vsub.f32 %v3538, 1.0
          %v3739 = vsub.f32 %v3540, 1.0
          %v3740 = vsub.f32 %v3542, 1.0
          %v3741 = vsub.f32 %v3544, 1.0
          %v3742 = vsub.f32 %v3546, 1.0
          %v3743 = vsub.f32 %v3548, 1.0
          %v3744 = vsub.f32 %v3550, 1.0
          %v3745 = vsub.f32 %v3552, 1.0
          %v3746 = vsub.f32 %v3554, 1.0
          %v3747 = vsub.f32 %v3556, 1.0
          %v3748 = vsub.f32 %v3558, 1.0
          %v3749 = vsub.f32 %v3560, 1.0
          %v3750 = vsub.f32 %v3562, 1.0
          %v3751 = vsub.f32 %v3564, 1.0
          %v3752 = vsub.f32 %v3566, 1.0
          %v3753 = vsub.f32 %v3568, 1.0
          %v3754 = vsub.f32 %v3570, 1.0
          %v3755 = vsub.f32 %v3572, 1.0
          %v3756 = vsub.f32 %v3574, 1.0
          %v3757 = vsub.f32 %v3576, 1.0
          %v3758 = vsub.f32 %v3578, 1.0
          %v3759 = vsub.f32 %v3580, 1.0
          %v3760 = vsub.f32 %v3582, 1.0
          %v3761 = vsub.f32 %v3584, 1.0
          %v3762 = vsub.f32 %v3586, 1.0
          %v3763 = vsub.f32 %v3588, 1.0
          %v3764 = vsub.f32 %v3590, 1.0
          %v3765 = vsub.f32 %v3592, 1.0
          %v3766 = vsub.f32 %v3594, 1.0
          %v3767 = vsub.f32 %v3596, 1.0
          %v3768 = vsub.f32 %v3598, 1.0
          %v3769 = vsub.f32 %v3600, 1.0
          %v3770 = vsub.f32 %v3602, 1.0
          %v3771 = vsub.f32 %v3604, 1.0
          %v3772 = vsub.f32 %v3606, 1.0
          %v3773 = vsub.f32 %v3608, 1.0
          %v3774 = vsub.f32 %v3610, 1.0
          %v3775 = vsub.f32 %v3612, 1.0
          %v3776 = vsub.f32 %v3614, 1.0
          %v3777 = vsub.f32 %v3616, 1.0
          %v3778 = vsub.f32 %v3618, 1.0
          %v3779 = vsub.f32 %v3620, 1.0
          %v3780 = vsub.f32 %v3622, 1.0
          %v3781 = vsub.f32 %v3624, 1.0
          %v3782 = vsub.f32 %v3626, 1.0
          %v3783 = vsub.f32 %v3628, 1.0
          %v3784 = vsub.f32 %v3630, 1.0
          %v3785 = vsub.f32 %v3632, 1.0
          %v3786 = vsub.f32 %v3634, 1.0
          %v3787 = vsub.f32 %v3636, 1.0
          %v3788 = vsub.f32 %v3638, 1.0
          %v3789 = vsub.f32 %v3640, 1.0
          %v3790 = vsub.f32 %v3642, 1.0
          %v3791 = vsub.f32 %v3644, 1.0
          %v3792 = vsub.f32 %v3646, 1.0
          %v3793 = vsub.f32 %v3648, 1.0
          %v3794 = vsub.f32 %v3650, 1.0
          %v3795 = vsub.f32 %v3652, 1.0
          %v3796 = vsub.f32 %v3654, 1.0
          %v3797 = vsub.f32 %v3656, 1.0
          %v3798 = vsub.f32 %v3658, 1.0
          %v3799 = vsub.f32 %v3660, 1.0
          %v3800 = vsub.f32 %v3662, 1.0
          %v3801 = vsub.f32 %v3664, 1.0
          %v3802 = vsub.f32 %v3666, 1.0
          %v3803 = vsub.f32 %v3668, 1.0
          %v3804 = vsub.f32 %v3670, 1.0
          %v3805 = vsub.f32 %v3672, 1.0
          %v3806 = vsub.f32 %v3674, 1.0
          %v3807 = vsub.f32 %v3676, 1.0
          %v3808 = vsub.f32 %v3678, 1.0
          %v3809 = vsub.f32 %v3680, 1.0
          %v3810 = vsub.f32 %v3682, 1.0
          %v3811 = vpack.c.bf16 %v3685, %v3683
          %v3812 = vpack.c.bf16 %v3686, %v3684
          %v3813 = vpack.c.bf16 %v3689, %v3687
          %v3814 = vpack.c.bf16 %v3690, %v3688
          %v3815 = vpack.c.bf16 %v3693, %v3691
          %v3816 = vpack.c.bf16 %v3694, %v3692
          %v3817 = vpack.c.bf16 %v3697, %v3695
          %v3818 = vpack.c.bf16 %v3698, %v3696
          %v3819 = vpack.c.bf16 %v3701, %v3699
          %v3820 = vpack.c.bf16 %v3702, %v3700
          %v3821 = vpack.c.bf16 %v3705, %v3703
          %v3822 = vpack.c.bf16 %v3706, %v3704
          %v3823 = vpack.c.bf16 %v3709, %v3707
          %v3824 = vpack.c.bf16 %v3710, %v3708
          %v3825 = vpack.c.bf16 %v3713, %v3711
          %v3826 = vpack.c.bf16 %v3714, %v3712
          %v3827 = vpack.c.bf16 %v3717, %v3715
          %v3828 = vpack.c.bf16 %v3718, %v3716
          %v3829 = vpack.c.bf16 %v3721, %v3719
          %v3830 = vpack.c.bf16 %v3722, %v3720
          %v3831 = vpack.c.bf16 %v3725, %v3723
          %v3832 = vpack.c.bf16 %v3726, %v3724
          %v3833 = vpack.c.bf16 %v3729, %v3727
          %v3834 = vpack.c.bf16 %v3730, %v3728
          %v3835 = vpack.c.bf16 %v3733, %v3731
          %v3836 = vpack.c.bf16 %v3734, %v3732
          %v3837 = vpack.c.bf16 %v3737, %v3735
          %v3838 = vpack.c.bf16 %v3738, %v3736
          %v3839 = vpack.c.bf16 %v3741, %v3739
          %v3840 = vpack.c.bf16 %v3742, %v3740
          %v3841 = vpack.c.bf16 %v3745, %v3743
          %v3842 = vpack.c.bf16 %v3746, %v3744
          %v3843 = vpack.c.bf16 %v3749, %v3747
          %v3844 = vpack.c.bf16 %v3750, %v3748
          %v3845 = vpack.c.bf16 %v3753, %v3751
          %v3846 = vpack.c.bf16 %v3754, %v3752
          %v3847 = vpack.c.bf16 %v3757, %v3755
          %v3848 = vpack.c.bf16 %v3758, %v3756
          %v3849 = vpack.c.bf16 %v3761, %v3759
          %v3850 = vpack.c.bf16 %v3762, %v3760
          %v3851 = vpack.c.bf16 %v3765, %v3763
          %v3852 = vpack.c.bf16 %v3766, %v3764
          %v3853 = vpack.c.bf16 %v3769, %v3767
          %v3854 = vpack.c.bf16 %v3770, %v3768
          %v3855 = vpack.c.bf16 %v3773, %v3771
          %v3856 = vpack.c.bf16 %v3774, %v3772
          %v3857 = vpack.c.bf16 %v3777, %v3775
          %v3858 = vpack.c.bf16 %v3778, %v3776
          %v3859 = vpack.c.bf16 %v3781, %v3779
          %v3860 = vpack.c.bf16 %v3782, %v3780
          %v3861 = vpack.c.bf16 %v3785, %v3783
          %v3862 = vpack.c.bf16 %v3786, %v3784
          %v3863 = vpack.c.bf16 %v3789, %v3787
          %v3864 = vpack.c.bf16 %v3790, %v3788
          %v3865 = vpack.c.bf16 %v3793, %v3791
          %v3866 = vpack.c.bf16 %v3794, %v3792
          %v3867 = vpack.c.bf16 %v3797, %v3795
          %v3868 = vpack.c.bf16 %v3798, %v3796
          %v3869 = vpack.c.bf16 %v3801, %v3799
          %v3870 = vpack.c.bf16 %v3802, %v3800
          %v3871 = vpack.c.bf16 %v3805, %v3803
          %v3872 = vpack.c.bf16 %v3806, %v3804
          %v3873 = vpack.c.bf16 %v3809, %v3807
          %v3874 = vpack.c.bf16 %v3810, %v3808
          %3875 = vmatprep.subr.bf16.mxu0 %v3812
          %3876 = vmatpush1.bf16.xpose.msra.mxu0 %v3811
          %3877 = vmatprep.subr.bf16.mxu0 %v3814
          %3878 = vmatpush1.bf16.xpose.msra.mxu0 %v3813
          %3879 = vmatprep.subr.bf16.mxu0 %v3816
          %3880 = vmatpush1.bf16.xpose.msra.mxu0 %v3815
          %3881 = vmatprep.subr.bf16.mxu0 %v3818
          %3882 = vmatpush1.bf16.xpose.msra.mxu0 %v3817
          %3883 = vmatprep.subr.bf16.mxu0 %v3820
          %3884 = vmatpush1.bf16.xpose.msra.mxu0 %v3819
          %3885 = vmatprep.subr.bf16.mxu0 %v3822
          %3886 = vmatpush1.bf16.xpose.msra.mxu0 %v3821
          %3887 = vmatprep.subr.bf16.mxu0 %v3824
          %3888 = vmatpush1.bf16.xpose.msra.mxu0 %v3823
          %3889 = vmatprep.subr.bf16.mxu0 %v3826
          %3890 = vmatpush1.bf16.xpose.msra.mxu0 %v3825
          %3891 = vmatprep.subr.bf16.mxu0 0
          %3892 = vmatpush1.bf16.xpose.msra.mxu0 0
          %3893 = vmatprep.subr.bf16.mxu0 0
          %3894 = vmatpush1.bf16.xpose.msra.mxu0 0
          %3895 = vmatprep.subr.bf16.mxu0 0
          %3896 = vmatpush1.bf16.xpose.msra.mxu0 0
          %3897 = vmatprep.subr.bf16.mxu0 0
          %3898 = vmatpush1.bf16.xpose.msra.mxu0 0
          %3899 = vmatprep.subr.bf16.mxu0 0
          %3900 = vmatpush1.bf16.xpose.msra.mxu0 0
          %3901 = vmatprep.subr.bf16.mxu0 0
          %3902 = vmatpush1.bf16.xpose.msra.mxu0 0
          %3903 = vmatprep.subr.bf16.mxu0 0
          %3904 = vmatpush1.bf16.xpose.msra.mxu0 0
          %3905 = vmatprep.subr.bf16.mxu0 0
          %3906 = vmatpush1.bf16.xpose.msra.mxu0 0
          %3907 = vmatprep.mubr.bf16.mxu0 %v2407
          %3908 = vmatmul.mubr.bf16.gmra.mrb[0].mxu0 %v2406
          %v3909 = vpop.f32.mrb[0].mxu0
          %v3910 = vadd.f32 0.0, %v3909
          %v3911 = vpop.f32.mrb[0].mxu0
          %v3912 = vpop.f32.mrb[0].mxu0
          %v3913 = vpop.f32.mrb[0].mxu0
          %3914 = vdwg.mxu0
          %3915 = vmatprep.subr.bf16.mxu0 %v3828
          %3916 = vmatpush1.bf16.xpose.msra.mxu0 %v3827
          %3917 = vmatprep.subr.bf16.mxu0 %v3830
          %3918 = vmatpush1.bf16.xpose.msra.mxu0 %v3829
          %3919 = vmatprep.subr.bf16.mxu0 %v3832
          %3920 = vmatpush1.bf16.xpose.msra.mxu0 %v3831
          %3921 = vmatprep.subr.bf16.mxu0 %v3834
          %3922 = vmatpush1.bf16.xpose.msra.mxu0 %v3833
          %3923 = vmatprep.subr.bf16.mxu0 %v3836
          %3924 = vmatpush1.bf16.xpose.msra.mxu0 %v3835
          %3925 = vmatprep.subr.bf16.mxu0 %v3838
          %3926 = vmatpush1.bf16.xpose.msra.mxu0 %v3837
          %3927 = vmatprep.subr.bf16.mxu0 %v3840
          %3928 = vmatpush1.bf16.xpose.msra.mxu0 %v3839
          %3929 = vmatprep.subr.bf16.mxu0 %v3842
          %3930 = vmatpush1.bf16.xpose.msra.mxu0 %v3841
          %3931 = vmatprep.subr.bf16.mxu0 0
          %3932 = vmatpush1.bf16.xpose.msra.mxu0 0
          %3933 = vmatprep.subr.bf16.mxu0 0
          %3934 = vmatpush1.bf16.xpose.msra.mxu0 0
          %3935 = vmatprep.subr.bf16.mxu0 0
          %3936 = vmatpush1.bf16.xpose.msra.mxu0 0
          %3937 = vmatprep.subr.bf16.mxu0 0
          %3938 = vmatpush1.bf16.xpose.msra.mxu0 0
          %3939 = vmatprep.subr.bf16.mxu0 0
          %3940 = vmatpush1.bf16.xpose.msra.mxu0 0
          %3941 = vmatprep.subr.bf16.mxu0 0
          %3942 = vmatpush1.bf16.xpose.msra.mxu0 0
          %3943 = vmatprep.subr.bf16.mxu0 0
          %3944 = vmatpush1.bf16.xpose.msra.mxu0 0
          %3945 = vmatprep.subr.bf16.mxu0 0
          %3946 = vmatpush1.bf16.xpose.msra.mxu0 0
          %3947 = vmatprep.mubr.bf16.mxu0 %v2409
          %3948 = vmatmul.mubr.bf16.gmra.mrb[0].mxu0 %v2408
          %v3949 = vpop.f32.mrb[0].mxu0
          %v3950 = vadd.f32 0.0, %v3949
          %v3951 = vpop.f32.mrb[0].mxu0
          %v3952 = vpop.f32.mrb[0].mxu0
          %v3953 = vpop.f32.mrb[0].mxu0
          %3954 = vdwg.mxu0
          %3955 = vmatprep.subr.bf16.mxu0 %v3844
          %3956 = vmatpush1.bf16.xpose.msra.mxu0 %v3843
          %3957 = vmatprep.subr.bf16.mxu0 %v3846
          %3958 = vmatpush1.bf16.xpose.msra.mxu0 %v3845
          %3959 = vmatprep.subr.bf16.mxu0 %v3848
          %3960 = vmatpush1.bf16.xpose.msra.mxu0 %v3847
          %3961 = vmatprep.subr.bf16.mxu0 %v3850
          %3962 = vmatpush1.bf16.xpose.msra.mxu0 %v3849
          %3963 = vmatprep.subr.bf16.mxu0 %v3852
          %3964 = vmatpush1.bf16.xpose.msra.mxu0 %v3851
          %3965 = vmatprep.subr.bf16.mxu0 %v3854
          %3966 = vmatpush1.bf16.xpose.msra.mxu0 %v3853
          %3967 = vmatprep.subr.bf16.mxu0 %v3856
          %3968 = vmatpush1.bf16.xpose.msra.mxu0 %v3855
          %3969 = vmatprep.subr.bf16.mxu0 %v3858
          %3970 = vmatpush1.bf16.xpose.msra.mxu0 %v3857
          %3971 = vmatprep.subr.bf16.mxu0 0
          %3972 = vmatpush1.bf16.xpose.msra.mxu0 0
          %3973 = vmatprep.subr.bf16.mxu0 0
          %3974 = vmatpush1.bf16.xpose.msra.mxu0 0
          %3975 = vmatprep.subr.bf16.mxu0 0
          %3976 = vmatpush1.bf16.xpose.msra.mxu0 0
          %3977 = vmatprep.subr.bf16.mxu0 0
          %3978 = vmatpush1.bf16.xpose.msra.mxu0 0
          %3979 = vmatprep.subr.bf16.mxu0 0
          %3980 = vmatpush1.bf16.xpose.msra.mxu0 0
          %3981 = vmatprep.subr.bf16.mxu0 0
          %3982 = vmatpush1.bf16.xpose.msra.mxu0 0
          %3983 = vmatprep.subr.bf16.mxu0 0
          %3984 = vmatpush1.bf16.xpose.msra.mxu0 0
          %3985 = vmatprep.subr.bf16.mxu0 0
          %3986 = vmatpush1.bf16.xpose.msra.mxu0 0
          %3987 = vmatprep.mubr.bf16.mxu0 %v2411
          %3988 = vmatmul.mubr.bf16.gmra.mrb[0].mxu0 %v2410
          %v3989 = vpop.f32.mrb[0].mxu0
          %v3990 = vadd.f32 0.0, %v3989
          %v3991 = vpop.f32.mrb[0].mxu0
          %v3992 = vpop.f32.mrb[0].mxu0
          %v3993 = vpop.f32.mrb[0].mxu0
          %3994 = vdwg.mxu0
          %3995 = vmatprep.subr.bf16.mxu0 %v3860
          %3996 = vmatpush1.bf16.xpose.msra.mxu0 %v3859
          %3997 = vmatprep.subr.bf16.mxu0 %v3862
          %3998 = vmatpush1.bf16.xpose.msra.mxu0 %v3861
          %3999 = vmatprep.subr.bf16.mxu0 %v3864
          %4000 = vmatpush1.bf16.xpose.msra.mxu0 %v3863
          %4001 = vmatprep.subr.bf16.mxu0 %v3866
          %4002 = vmatpush1.bf16.xpose.msra.mxu0 %v3865
          %4003 = vmatprep.subr.bf16.mxu0 %v3868
          %4004 = vmatpush1.bf16.xpose.msra.mxu0 %v3867
          %4005 = vmatprep.subr.bf16.mxu0 %v3870
          %4006 = vmatpush1.bf16.xpose.msra.mxu0 %v3869
          %4007 = vmatprep.subr.bf16.mxu0 %v3872
          %4008 = vmatpush1.bf16.xpose.msra.mxu0 %v3871
          %4009 = vmatprep.subr.bf16.mxu0 %v3874
          %4010 = vmatpush1.bf16.xpose.msra.mxu0 %v3873
          %4011 = vmatprep.subr.bf16.mxu0 0
          %4012 = vmatpush1.bf16.xpose.msra.mxu0 0
          %4013 = vmatprep.subr.bf16.mxu0 0
          %4014 = vmatpush1.bf16.xpose.msra.mxu0 0
          %4015 = vmatprep.subr.bf16.mxu0 0
          %4016 = vmatpush1.bf16.xpose.msra.mxu0 0
          %4017 = vmatprep.subr.bf16.mxu0 0
          %4018 = vmatpush1.bf16.xpose.msra.mxu0 0
          %4019 = vmatprep.subr.bf16.mxu0 0
          %4020 = vmatpush1.bf16.xpose.msra.mxu0 0
          %4021 = vmatprep.subr.bf16.mxu0 0
          %4022 = vmatpush1.bf16.xpose.msra.mxu0 0
          %4023 = vmatprep.subr.bf16.mxu0 0
          %4024 = vmatpush1.bf16.xpose.msra.mxu0 0
          %4025 = vmatprep.subr.bf16.mxu0 0
          %4026 = vmatpush1.bf16.xpose.msra.mxu0 0
          %4027 = vmatprep.mubr.bf16.mxu0 %v2413
          %4028 = vmatmul.mubr.bf16.gmra.mrb[0].mxu0 %v2412
          %v4029 = vpop.f32.mrb[0].mxu0
          %v4030 = vadd.f32 0.0, %v4029
          %v4031 = vpop.f32.mrb[0].mxu0
          %v4032 = vpop.f32.mrb[0].mxu0
          %v4033 = vpop.f32.mrb[0].mxu0
          %4034 = vdwg.mxu0
          %v4036 = vrot.slane %v2333, 1
          %v4037 = vrot.slane %v2333, 2
          %v4038 = vrot.slane %v2333, 3
          %v4043 = vadd.f32 %v3910, %v2333
          %v4044 = vadd.f32 %v3950, %v4036
          %v4045 = vadd.f32 %v3990, %v4037
          %v4046 = vadd.f32 %v4030, %v4038
          %v4047 = vadd.f32 %v3910, 200.0
          %v4048 = vadd.f32 %v3950, 200.0
          %v4049 = vadd.f32 %v3990, 200.0
          %v4050 = vadd.f32 %v4030, 200.0
          %s4051 = smul.addr %s2421, 4
          %s4052 = scalar_lea.vmem [#allocation2], %s4051
          %v4053 = vld [vmem:[%s4052] sm:$0xf]
          %v4055 = vrot.slane %v2431, 1
          %v4056 = vrot.slane %v2431, 2
          %v4057 = vrot.slane %v2431, 3
          %v4062 = vsub.f32 %v4043, %v2431
          %v4063 = vsub.f32 %v4044, %v4055
          %v4064 = vsub.f32 %v4045, %v4056
          %v4065 = vsub.f32 %v4046, %v4057
          %v4070 = vrot.slane %v4047, 1
          %v4071 = vrot.slane %v4048, 1
          %v4072 = vrot.slane %v4049, 1
          %v4073 = vrot.slane %v4050, 1
          %v4078 = vrcp.pop %v4070
          %v4079 = vmul.f32 %v4062, %v4078
          %v4080 = vrcp.pop %v4071
          %v4081 = vmul.f32 %v4063, %v4080
          %v4082 = vrcp.pop %v4072
          %v4083 = vmul.f32 %v4064, %v4082
          %v4084 = vrcp.pop %v4073
          %v4085 = vmul.f32 %v4065, %v4084
          %v4090 = vrot.slane %v4081, 7
          %vm4091 = vcmask 1041409
          %v4092 = vsel %vm4091, %v4090, %v4079
          %vm4093 = vcmask 1045509
          %v4094 = vsel %vm4093, %v4090, %v4092
          %v4095 = vrot.slane %v4083, 6
          %vm4096 = vcmask 1042434
          %v4097 = vsel %vm4096, %v4095, %v4094
          %vm4098 = vcmask 1046534
          %v4099 = vsel %vm4098, %v4095, %v4097
          %v4100 = vrot.slane %v4085, 5
          %vm4101 = vcmask 1043459
          %v4102 = vsel %vm4101, %v4100, %v4099
          %vm4103 = vcmask 1047559
          %v4104 = vsel %vm4103, %v4100, %v4102
          %v4106 = vadd.f32 %v4053, %v4104
          %4107 = vst [vmem:[%s4052] sm:$0xf] %v4106
        $region60: #{_lambda_.5} parent=47 // loop_footer
          %s2419 = sadd.s32 1, %s2415
        $region61: #{_lambda_.5} parent=47 // loop_footer_branch
          %2414 = sbr.rel target = $region57
        $region62: #{_lambda_.5} parent=47 // loop_exit
          _
        %v4108 = vld [vmem:[#allocation2] sm:$0xff]
        %v4109 = vcombine.low %v493, %v497
        %v4111 = vmul.f32 %v4108, %v4109
        %v4113 = vcombine.high %v4111, %v4111
        %v4115 = vsel %vm375, %v4111, 0.0
        %v4116 = vsel %vm375, %v4113, 0.0
        %v4117 = vadd.f32 %v4115, %v4116
        %4118 = vadd.xlane.f32.xlu0 %v4117
        %v4119 = vpop.xlane.xlu0 %4118
        %v4120 = vmul.f32 %v4119, 0.005
        %v4123 = vunpack.c.l.s4 839922192
        %v4124 = vunpack.c.0.s8 %v4123
        %v4125 = vlaneseq
        %v4126 = vshrl.u32 %v4125, 7
        %v4127 = vsub.s32 %v4124, %v4126
        %v4128 = vrot.slane %v4120, %v4127
        %v4130 = vsub.f32 %v4108, %v4128
        %v4131 = vmul.f32 %v4130, %v4109
        %v4132 = vmul.f32 %v4131, %v4131
        %v4134 = vcombine.high %v4132, %v4132
        %v4136 = vsel %vm375, %v4132, 0.0
        %v4137 = vsel %vm375, %v4134, 0.0
        %v4138 = vadd.f32 %v4136, %v4137
        %4139 = vadd.xlane.f32.xlu0 %v4138
        %v4140 = vpop.xlane.xlu0 %4139
        %v4141 = vmul.f32 %v4140, 0.0050251256
        %v4142 = vld [vmem:[%s3] sm:$0x3]
        %v4143 = vrsqrt.pop %v4141
        %v4144 = vmul.f32 %v4141, %v4143
        %vm4145 = vcmp.eq.f32.partialorder %v4141, inf
        %v4146 = vsel %vm4145, %v4141, %v4144
        %vm4147 = vcmp.eq.f32.partialorder %v4141, 0.0
        %v4148 = vand.u32 %v4141, 2147483648
        %v4149 = vsel %vm4147, %v4148, %v4146
        %v4150 = vadd.f32 %v4149, 1e-06
        %v4153 = vunpack.c.l.s4 839922192
        %v4154 = vunpack.c.0.s8 %v4153
        %v4155 = vlaneseq
        %v4156 = vshrl.u32 %v4155, 7
        %v4157 = vsub.s32 %v4154, %v4156
        %v4158 = vrot.slane %v4150, %v4157
        %v4160 = vrcp.pop %v4158
        %v4161 = vmul.f32 %v4130, %v4160
        %v4163 = vlaneseq
        %v4164 = vshrl.u32 %v4163, 7
        %v4165 = vsub.s32 0, %v4164
        %v4166 = vrot.slane %v4142, %v4165
        %v4167 = vlaneseq
        %v4168 = vshrl.u32 %v4167, 7
        %v4169 = vsub.s32 1, %v4168
        %v4170 = vrot.slane %v4142, %v4169
        %v4174 = vcombine.high %v4161, %v4161
        %v4176 = vmul.f32 %v4166, %v4161
        %v4177 = vmul.f32 %v4170, %v4174
        %v4178 = vld [vmem:[%s4] sm:$0x3]
        %v4180 = vlaneseq
        %v4181 = vshrl.u32 %v4180, 7
        %v4182 = vsub.s32 0, %v4181
        %v4183 = vrot.slane %v4178, %v4182
        %v4184 = vlaneseq
        %v4185 = vshrl.u32 %v4184, 7
        %v4186 = vsub.s32 1, %v4185
        %v4187 = vrot.slane %v4178, %v4186
        %v4190 = vadd.f32 %v4176, %v4183
        %v4191 = vadd.f32 %v4177, %v4187
        %v4194 = vcombine.low %v4190, %v4191
        %v4196 = vadd.f32 %v278, %v4194
        %v4197 = vmul.f32 %v4196, %v4109
        %v4198 = vmax.f32 %v4197, 0.0
        %v4199 = vld [vmem:[%s5] sm:$0xff]
        %v4200 = vld [vmem:[%s5 + $0x8] sm:$0xff]
        %v4201 = vld [vmem:[%s5 + $0x10] sm:$0xff]
        %v4202 = vld [vmem:[%s5 + $0x18] sm:$0xff]
        %v4203 = vld [vmem:[%s5 + $0x20] sm:$0xff]
        %v4204 = vld [vmem:[%s5 + $0x28] sm:$0xff]
        %v4205 = vld [vmem:[%s5 + $0x30] sm:$0xff]
        %v4206 = vld [vmem:[%s5 + $0x38] sm:$0xff]
        %v4207 = vld [vmem:[%s5 + $0x40] sm:$0xff]
        %v4208 = vld [vmem:[%s5 + $0x48] sm:$0xff]
        %v4209 = vld [vmem:[%s5 + $0x50] sm:$0xff]
        %v4210 = vld [vmem:[%s5 + $0x58] sm:$0xff]
        %v4211 = vld [vmem:[%s5 + $0x60] sm:$0xff]
        %v4212 = vld [vmem:[%s5 + $0x68] sm:$0xff]
        %v4213 = vld [vmem:[%s5 + $0x70] sm:$0xff]
        %v4214 = vld [vmem:[%s5 + $0x78] sm:$0xff]
        %v4215 = vld [vmem:[%s5 + $0x80] sm:$0xff]
        %v4216 = vld [vmem:[%s5 + $0x88] sm:$0xff]
        %v4217 = vld [vmem:[%s5 + $0x90] sm:$0xff]
        %v4218 = vld [vmem:[%s5 + $0x98] sm:$0xff]
        %v4219 = vld [vmem:[%s5 + $0xa0] sm:$0xff]
        %v4220 = vld [vmem:[%s5 + $0xa8] sm:$0xff]
        %v4221 = vld [vmem:[%s5 + $0xb0] sm:$0xff]
        %v4222 = vld [vmem:[%s5 + $0xb8] sm:$0xff]
        %v4223 = vld [vmem:[%s5 + $0xc0] sm:$0xff]
        %v4224 = vld [vmem:[%s5 + $0xc8] sm:$0xff]
        %v4225 = vld [vmem:[%s5 + $0xd0] sm:$0xff]
        %v4226 = vld [vmem:[%s5 + $0xd8] sm:$0xff]
        %v4227 = vld [vmem:[%s5 + $0xe0] sm:$0xff]
        %v4228 = vld [vmem:[%s5 + $0xe8] sm:$0xff]
        %v4229 = vld [vmem:[%s5 + $0xf0] sm:$0xff]
        %v4230 = vld [vmem:[%s5 + $0xf8] sm:$0xff]
        %v4231 = vld [vmem:[%s6] sm:$0x1]
        %v4233 = vlaneseq
        %v4234 = vshrl.u32 %v4233, 7
        %v4235 = vsub.s32 0, %v4234
        %v4236 = vrot.slane %v4231, %v4235
        %v4239 = vcombine.high %v4198, %v4198
        %4241 = vmatprep.subr.mxu0 0.0
        %4242 = vmatpush1.msra.mxu0 %v4199
        %4243 = vmatprep.subr.mxu0 0.0
        %4244 = vmatpush1.msra.mxu0 %v4200
        %4245 = vmatprep.subr.mxu0 0.0
        %4246 = vmatpush1.msra.mxu0 %v4201
        %4247 = vmatprep.subr.mxu0 0.0
        %4248 = vmatpush1.msra.mxu0 %v4202
        %4249 = vmatprep.subr.mxu0 0.0
        %4250 = vmatpush1.msra.mxu0 %v4203
        %4251 = vmatprep.subr.mxu0 0.0
        %4252 = vmatpush1.msra.mxu0 %v4204
        %4253 = vmatprep.subr.mxu0 0.0
        %4254 = vmatpush1.msra.mxu0 %v4205
        %4255 = vmatprep.subr.mxu0 0.0
        %4256 = vmatpush1.msra.mxu0 %v4206
        %4257 = vmatprep.subr.mxu0 0.0
        %4258 = vmatpush1.msra.mxu0 %v4207
        %4259 = vmatprep.subr.mxu0 0.0
        %4260 = vmatpush1.msra.mxu0 %v4208
        %4261 = vmatprep.subr.mxu0 0.0
        %4262 = vmatpush1.msra.mxu0 %v4209
        %4263 = vmatprep.subr.mxu0 0.0
        %4264 = vmatpush1.msra.mxu0 %v4210
        %4265 = vmatprep.subr.mxu0 0.0
        %4266 = vmatpush1.msra.mxu0 %v4211
        %4267 = vmatprep.subr.mxu0 0.0
        %4268 = vmatpush1.msra.mxu0 %v4212
        %4269 = vmatprep.subr.mxu0 0.0
        %4270 = vmatpush1.msra.mxu0 %v4213
        %4271 = vmatprep.subr.mxu0 0.0
        %4272 = vmatpush1.msra.mxu0 %v4214
        %4273 = vmatprep.subr.mxu0 0.0
        %4274 = vmatpush1.msra.mxu0 %v4215
        %4275 = vmatprep.subr.mxu0 0.0
        %4276 = vmatpush1.msra.mxu0 %v4216
        %4277 = vmatprep.subr.mxu0 0.0
        %4278 = vmatpush1.msra.mxu0 %v4217
        %4279 = vmatprep.subr.mxu0 0.0
        %4280 = vmatpush1.msra.mxu0 %v4218
        %4281 = vmatprep.subr.mxu0 0.0
        %4282 = vmatpush1.msra.mxu0 %v4219
        %4283 = vmatprep.subr.mxu0 0.0
        %4284 = vmatpush1.msra.mxu0 %v4220
        %4285 = vmatprep.subr.mxu0 0.0
        %4286 = vmatpush1.msra.mxu0 %v4221
        %4287 = vmatprep.subr.mxu0 0.0
        %4288 = vmatpush1.msra.mxu0 %v4222
        %4289 = vmatprep.subr.mxu0 0.0
        %4290 = vmatpush1.msra.mxu0 %v4223
        %4291 = vmatprep.subr.mxu0 0.0
        %4292 = vmatpush1.msra.mxu0 %v4224
        %4293 = vmatprep.subr.mxu0 0.0
        %4294 = vmatpush1.msra.mxu0 %v4225
        %4295 = vmatprep.subr.mxu0 0.0
        %4296 = vmatpush1.msra.mxu0 %v4226
        %4297 = vmatprep.subr.mxu0 0.0
        %4298 = vmatpush1.msra.mxu0 %v4227
        %4299 = vmatprep.subr.mxu0 0.0
        %4300 = vmatpush1.msra.mxu0 %v4228
        %4301 = vmatprep.subr.mxu0 0.0
        %4302 = vmatpush1.msra.mxu0 %v4229
        %4303 = vmatprep.subr.mxu0 0.0
        %4304 = vmatpush1.msra.mxu0 %v4230
        %4305 = vmatprep.mubr.f32.mxu0 %v4239
        %4306 = vmatmul.mubr.f32.gmra.mrb[0].mxu0 %v4198
        %v4307 = vpop.f32.mrb[0].mxu0
        %v4308 = vadd.f32 %v4236, %v4307
        %v4309 = vpop.f32.mrb[0].mxu0
        %4310 = vdwg.mxu0
        %v4311 = vsel %vm375, %v4308, -inf
        %4312 = vmax.xlane.f32.xlu0 %v4311
        %v4313 = vpop.xlane.xlu0 %4312
        %v4314 = vsub.f32 %v4308, %v4313
        %v4315 = vmul.f32 %v4314, 1.442695
        %v4316 = vpow.pop %v4315
        %v4317 = vsel %vm375, %v4316, 0.0
        %4318 = vadd.xlane.f32.xlu0 %v4317
        %v4319 = vpop.xlane.xlu0 %4318
        %v4320 = vlog2.pop %v4319
        %v4321 = vmul.f32 %v4320, 0.6931472
        %v4322 = vsub.f32 %v4314, %v4321
        %4323 = vst [vmem:[%s271] sm:$0xf] %v4322
        %s4324 = sand.u32 %s181, 1
        %s4325 = scalar_lea.sflag [#allocation7], %s4324
        %s4326 = sand.u32 %s181, 1
        %s4327 = smul.addr %s4326, 4
        %s4328 = scalar_lea.vmem [#allocation6], %s4327
        // Predicated region
        $region63: #{_lambda_.5} parent=47 // pred_check
          %p4329 = pneg %p191
        $region64: #{_lambda_.5} parent=47 // pred_check_branch
          %4331 = sbr.rel (%p4329) target = $region66
        $region65: #{_lambda_.5} parent=47 // pred_region
          %s4333 = ssub.s32 64, 64
          %4334 = vsyncadd %s4325, %s4333
          %s4335 = smul.addr %s21, 64
          %s4336 = scalar_lea.hbm %s7, %s4335
          %s4338 = sshll.u32 %s4328, 4
          %s4339 = int_to_ptr.vmem [resolvable:$true] %s4338
          %4341 = dma.vmem_to_hbm [thread:$0]  %s4339, 64, %s4336, %s4325
        $region66: #{_lambda_.5} parent=47 // pred_fallthru
          _
      $region48: #{_lambda_.5} parent=5 // pred_fallthru
        _
      %p4342 = scmp.le.s32.totalorder 2, %s16
      // Predicated region
      $region67: #{_lambda_.5} parent=5 // pred_check
        %p4343 = pneg %p4342
      $region68: #{_lambda_.5} parent=5 // pred_check_branch
        %4345 = sbr.rel (%p4343) target = $region70
      $region69: #{_lambda_.5} parent=5 // pred_region
        %s4346 = ssub.s32 %s16, 2
        // Predicated region
        $region71: #{_lambda_.5} parent=69 // pred_check
          %p4347 = pneg %p197
        $region72: #{_lambda_.5} parent=69 // pred_check_branch
          %4349 = sbr.rel (%p4347) target = $region74
        $region73: #{_lambda_.5} parent=69 // pred_region
          %s4350 = sand.u32 %s182, 1
          %s4351 = scalar_lea.sflag [#allocation7], %s4350
          %s4352 = sand.u32 %s182, 1
          %s4353 = smul.addr %s4352, 4
          %s4354 = scalar_lea.vmem [#allocation6], %s4353
          %4355 = dma.done %s4351, 64
        $region74: #{_lambda_.5} parent=69 // pred_fallthru
          _
      $region70: #{_lambda_.5} parent=5 // pred_fallthru
        _
    $region6: #{_lambda_.5} parent=1 // loop_footer
      %s20 = sadd.s32 1, %s16
    $region7: #{_lambda_.5} parent=1 // loop_footer_branch
      %15 = sbr.rel target = $region3
    $region8: #{_lambda_.5} parent=1 // loop_exit
      _
    %4356 = vsyncpa [#allocation7], 1
    %s4357 = scalar_lea.sflag [#allocation7], 1
    %4358 = vsyncpa %s4357, 1

</llo_original>
